<compile_context>
chip_gen: v6e
topology: v6e:2x2x1
jax: 0.10.0
libtpu: 0.0.40
codegen_flags: <defaults>
</compile_context>

<pallas_src>
import functools

import jax
import jax.numpy as jnp
from jax.experimental import pallas as pl
from jax.experimental.pallas import tpu as pltpu

LANE = 128      # lane width (last dim tiling)
SUBLANE = 8     # sublane width (second-to-last dim tiling)


def _round_up(x, m):
    return (x + m - 1) // m * m


def _pad_to(a, shape):
    return jnp.pad(a, [(0, t - s) for s, t in zip(a.shape, shape)])


# ---------------------------------------------------------------------------
# Fused kernel: one grid step processes `nb` images end-to-end.
#   conv1(1x1)+bias -> relu -> conv2(3x3,pad1)+bias -> relu
#   -> conv3(1x1)+bias -> (+identity) -> relu
# (BN scales are pre-folded into the conv weights by the wrapper.)
# ---------------------------------------------------------------------------
def bottleneck_kernel(x_ref, w1_ref, w2_ref, w3_ref, b1_ref, b2_ref, b3_ref,
                      o_ref, hc_ref, hm_ref, hp_ref, *, w_valid):
    nb, H, Wp, cin_p = x_ref.shape
    wd_p = w1_ref.shape[1]
    co_p = w3_ref.shape[1]
    W = w_valid
    R = nb * H * Wp
    f32 = jnp.float32
    bf16 = jnp.bfloat16

    b1 = b1_ref[...]
    b2 = b2_ref[...]
    b3 = b3_ref[...]

    # ---- stage 1: 1x1 conv + bias + relu (single whole-plane matmul) ----
    xb = x_ref[...].reshape(R, cin_p)                           # bf16
    t1 = jnp.dot(xb, w1_ref[...], preferred_element_type=f32)
    t1 = jnp.maximum(t1 + b1, 0.0).reshape(nb, H, Wp, wd_p)     # f32

    # ---- stage 2 staging: three halo'd bf16 planes in VMEM scratch ----
    # Halo pixel-rows (above / below each image) are zeroed every step (megacore
    # safe: each core initialises its own scratch), the interior rows are fully
    # overwritten below.
    zrow = jnp.zeros((nb, 1, Wp, wd_p), bf16)
    for h in (hc_ref, hm_ref, hp_ref):
        h[:, 0:1, :, :] = zrow
        h[:, H + 1:H + 2, :, :] = zrow

    # Only the W valid columns are propagated; padded columns become exact zeros
    # (they double as the left/right zero padding of the 3x3 conv).
    t1v = t1[:, :, :W, :]                                       # (nb, H, W, wd_p)
    z1 = jnp.zeros((nb, H, 1, wd_p), f32)

    def zcols(k):
        return jnp.zeros((nb, H, k, wd_p), f32)

    # center, column-shift-left (reads col-1), column-shift-right (reads col+1)
    c0 = jnp.concatenate([t1v, zcols(Wp - W)], axis=2)
    cm_pieces = [z1, t1v]
    if Wp - W - 1 > 0:
        cm_pieces.append(zcols(Wp - W - 1))
    cm = jnp.concatenate(cm_pieces, axis=2)
    cp = jnp.concatenate([t1v[:, :, 1:, :], zcols(Wp - W), z1], axis=2)

    hc_ref[:, 1:H + 1, :, :] = c0.astype(bf16)   # cast once, store lane-dense
    hm_ref[:, 1:H + 1, :, :] = cm.astype(bf16)
    hp_ref[:, 1:H + 1, :, :] = cp.astype(bf16)

    # ---- stage 2: 3x3 conv as 9 whole-plane matmuls on ref windows ----
    # Tap (oy, ox): row offset handled by a static window on a leading scratch
    # dim (free), column offset by reading the pre-shifted buffer.  Exactly R
    # rows per tap -> no dots on halo rows.
    acc = jnp.zeros((R, wd_p), f32)
    buf = {-1: hm_ref, 0: hc_ref, 1: hp_ref}
    for t in range(9):
        oy, ox = t // 3 - 1, t % 3 - 1
        win = buf[ox][:, 1 + oy:1 + oy + H, :, :].reshape(R, wd_p)   # bf16
        acc = acc + jnp.dot(win, w2_ref[t], preferred_element_type=f32)
    t2 = jnp.maximum(acc + b2, 0.0)

    # ---- stage 3: 1x1 conv + bias + residual + relu ----
    t3 = jnp.dot(t2.astype(bf16), w3_ref[...], preferred_element_type=f32) + b3
    idn = x_ref[...].reshape(R, co_p).astype(f32)       # re-read, not kept live
    out = jnp.maximum(t3 + idn, 0.0).reshape(nb, H, Wp, co_p)

    ow = o_ref.shape[2]                                 # write only valid W cols
    o_ref[...] = out[:, :, :ow, :].astype(o_ref.dtype)


# ---------------------------------------------------------------------------
# Generation-aware VMEM budgeting.
# ---------------------------------------------------------------------------
def _vmem_limit_bytes():
    phys = 64 << 20                       # conservative default (v7x per-core)
    try:
        info = pltpu.get_tpu_info()
        cap = getattr(info, "vmem_capacity_bytes", None)
        if cap:
            phys = int(cap)
    except Exception:
        pass
    return min(phys * 3 // 4, 112 << 20)


def _pick_nb(n, h, wp, wout, cin_p, wd_p, co_p, budget_bytes):
    # Keep >=2 grid steps whenever N >= 2 so the "parallel" batch axis can shard
    # across both v7x TensorCores.
    n_cap = n if n < 2 else n // 2
    best = 1
    for nb in range(1, n_cap + 1):
        if n % nb:
            continue
        r = nb * h * wp
        rh = nb * (h + 2) * wp
        blocks = 2 * (nb * h * wp * cin_p * 2) + 2 * (nb * h * wout * co_p * 4)
        weights = 2 * 2 * (cin_p * wd_p + 9 * wd_p * wd_p + wd_p * co_p)
        scratch = 3 * rh * wd_p * 2
        live = 4 * r * (4 * wd_p + 2 * co_p)      # f32 in-kernel temporaries
        if blocks + weights + scratch + live <= budget_bytes:
            best = nb
    return best


# ---------------------------------------------------------------------------
# Wrapper: NCHW in / NCHW out (module boundary), lane-dense padded operands.
# ---------------------------------------------------------------------------
def bottleneck_pallas(x_nchw, p, *, nb=None):
    x = jnp.transpose(x_nchw, (0, 2, 3, 1))               # -> NHWC
    N, H, W, Cin = x.shape
    width = p["w1"].shape[1]
    Cout = p["w3"].shape[1]
    assert Cout == Cin, "identity path requires in_channel == out_channel*expansion"

    cin_p = _round_up(Cin, LANE)
    wd_p = _round_up(width, LANE)
    co_p = _round_up(Cout, LANE)
    Wp = _round_up(W + 1, SUBLANE)          # >= W+1 so a zero column separates rows
    Wout = W if W % SUBLANE == 0 else Wp    # unpadded writeback when sublane-aligned

    vmem_limit = _vmem_limit_bytes()
    if nb is None:
        nb = _pick_nb(N, H, Wp, Wout, cin_p, wd_p, co_p, vmem_limit * 3 // 5)
    assert N % nb == 0

    # bf16 input (half the HBM read), BN scales folded into bf16 weights.
    xp = _pad_to(x.astype(jnp.bfloat16), (N, H, Wp, cin_p))
    w1 = _pad_to((p["w1"] * p["s1"]).astype(jnp.bfloat16), (cin_p, wd_p))
    w2s = (p["w2"] * p["s2"].reshape(1, 1, 1, -1)).reshape(9, width, width)
    w2 = _pad_to(w2s.astype(jnp.bfloat16), (9, wd_p, wd_p))
    w3 = _pad_to((p["w3"] * p["s3"]).astype(jnp.bfloat16), (wd_p, co_p))
    b1 = _pad_to(p["b1"], (1, wd_p))
    b2 = _pad_to(p["b2"], (1, wd_p))
    b3 = _pad_to(p["b3"], (1, co_p))

    full = lambda shape: pl.BlockSpec(shape, lambda n: (0,) * len(shape))

    out = pl.pallas_call(
        functools.partial(bottleneck_kernel, w_valid=W),
        out_shape=jax.ShapeDtypeStruct((N, H, Wout, co_p), jnp.float32),
        grid_spec=pltpu.PrefetchScalarGridSpec(
            num_scalar_prefetch=0,
            grid=(N // nb,),
            in_specs=[
                pl.BlockSpec((nb, H, Wp, cin_p), lambda n: (n, 0, 0, 0)),  # x (bf16)
                full((cin_p, wd_p)),                                       # w1*s1
                full((9, wd_p, wd_p)),                                     # w2*s2 taps
                full((wd_p, co_p)),                                        # w3*s3
                full((1, wd_p)), full((1, wd_p)), full((1, co_p)),         # biases
            ],
            out_specs=pl.BlockSpec((nb, H, Wout, co_p), lambda n: (n, 0, 0, 0)),
            scratch_shapes=[
                pltpu.VMEM((nb, H + 2, Wp, wd_p), jnp.bfloat16),   # center
                pltpu.VMEM((nb, H + 2, Wp, wd_p), jnp.bfloat16),   # col-1
                pltpu.VMEM((nb, H + 2, Wp, wd_p), jnp.bfloat16),   # col+1
            ]),
        compiler_params=pltpu.CompilerParams(
            dimension_semantics=("parallel",),
            vmem_limit_bytes=vmem_limit),
    )(xp, w1, w2, w3, b1, b2, b3)

    out = out[:, :, :W, :Cout]                 # strip remaining padding
    return jnp.transpose(out, (0, 3, 1, 2))    # -> NCHW


# ---------------------------------------------------------------------------
# Reference (NCHW, lax.conv).  Mirrors the kernel's quantization exactly:
# bf16 input, BN scales folded into weights in f32 then cast to bf16,
# f32 accumulation, f32 bias / residual math.
# ---------------------------------------------------------------------------
def bottleneck_ref(x_nchw, p):
    bf = jnp.bfloat16
    xq = x_nchw.astype(bf).astype(jnp.float32)

    def conv(x, w_oihw, pad=0):
        return jax.lax.conv_general_dilated(
            x.astype(bf), w_oihw.astype(bf), (1, 1), [(pad, pad), (pad, pad)],
            dimension_numbers=("NCHW", "OIHW", "NCHW"),
            preferred_element_type=jnp.float32)

    def fold(w_oihw, s):
        return w_oihw * s[:, None, None, None]

    def bias(x, b):
        return x + b[None, :, None, None]

    out = jax.nn.relu(bias(conv(xq, fold(p["w1_oihw"], p["s1v"])), p["b1v"]))
    out = jax.nn.relu(bias(conv(out, fold(p["w2_oihw"], p["s2v"]), pad=1), p["b2v"]))
    out = bias(conv(out, fold(p["w3_oihw"], p["s3v"])), p["b3v"])
    return jax.nn.relu(out + xq)


# ---------------------------------------------------------------------------
# Deterministic parameter construction (shapes match Bottleneck.__init__).
# ---------------------------------------------------------------------------
def make_params(key, in_channel, out_channel, width_per_group=64, groups=1):
    expansion = 4
    width = int(out_channel * (width_per_group / 64.0)) * groups
    c_out = out_channel * expansion
    eps = 1e-5

    ks = jax.random.split(key, 16)
    w1_oihw = 0.1 * jax.random.normal(ks[0], (width, in_channel, 1, 1), jnp.float32)
    w2_oihw = 0.1 * jax.random.normal(ks[1], (width, width, 3, 3), jnp.float32)
    w3_oihw = 0.1 * jax.random.normal(ks[2], (c_out, width, 1, 1), jnp.float32)

    def bn_fold(kg, kb, km, kv, c):
        gamma = 1.0 + 0.1 * jax.random.normal(kg, (c,), jnp.float32)
        beta = 0.1 * jax.random.normal(kb, (c,), jnp.float32)
        mean = 0.1 * jax.random.normal(km, (c,), jnp.float32)
        var = jax.random.uniform(kv, (c,), jnp.float32, 0.5, 1.5)
        scale = gamma / jnp.sqrt(var + eps)
        bias = beta - mean * scale
        return scale, bias

    s1, b1 = bn_fold(ks[3], ks[4], ks[5], ks[6], width)
    s2, b2 = bn_fold(ks[7], ks[8], ks[9], ks[10], width)
    s3, b3 = bn_fold(ks[11], ks[12], ks[13], ks[14], c_out)

    return {
        # kernel layouts
        "w1": jnp.transpose(w1_oihw[:, :, 0, 0], (1, 0)),          # (Cin, width)
        "w2": jnp.transpose(w2_oihw, (2, 3, 1, 0)),                # (3,3,width,width) HWIO
        "w3": jnp.transpose(w3_oihw[:, :, 0, 0], (1, 0)),          # (width, Cout)
        "s1": s1[None, :], "b1": b1[None, :],
        "s2": s2[None, :], "b2": b2[None, :],
        "s3": s3[None, :], "b3": b3[None, :],
        # reference layouts
        "w1_oihw": w1_oihw, "w2_oihw": w2_oihw, "w3_oihw": w3_oihw,
        "s1v": s1, "b1v": b1, "s2v": s2, "b2v": b2, "s3v": s3, "b3v": b3,
    }


if __name__ == "__main__":
    # Bottleneck(in_channel=16, out_channel=4) -> width=4, out = 4*4 = 16 channels
    N, in_channel, out_channel, H, W = 2, 16, 4, 16, 16

    key = jax.random.PRNGKey(0)
    kx, kp = jax.random.split(key)
    x = jax.random.normal(kx, (N, in_channel, H, W), jnp.float32)   # NCHW, like PyTorch
    params = make_params(kp, in_channel, out_channel)

    out = bottleneck_pallas(x, params)
    jax.block_until_ready(out)

    ref = bottleneck_ref(x, params)
    err = float(jnp.max(jnp.abs(out - ref)))
    assert err < 5e-3, f"mismatch vs reference: max abs err {err}"

    print("KERNEL_OK")
</pallas_src>

<mosaic_0001>
module attributes {stable_mosaic.version = 11 : i64} {
  func.func @bottleneck_kernel(%arg0: i32, %arg1: memref<1x16x24x128xbf16, #tpu.memory_space<vmem>>, %arg2: memref<128x128xbf16, #tpu.memory_space<vmem>>, %arg3: memref<9x128x128xbf16, #tpu.memory_space<vmem>>, %arg4: memref<128x128xbf16, #tpu.memory_space<vmem>>, %arg5: memref<1x128xf32, #tpu.memory_space<vmem>>, %arg6: memref<1x128xf32, #tpu.memory_space<vmem>>, %arg7: memref<1x128xf32, #tpu.memory_space<vmem>>, %arg8: memref<1x16x16x128xf32, #tpu.memory_space<vmem>>, %arg9: memref<1x18x24x128xbf16, #tpu.memory_space<vmem>>, %arg10: memref<1x18x24x128xbf16, #tpu.memory_space<vmem>>, %arg11: memref<1x18x24x128xbf16, #tpu.memory_space<vmem>>) attributes {dimension_semantics = [#tpu.dimension_semantics<parallel>], iteration_bounds = array<i64: 2>, scalar_prefetch = 0 : i64, scratch_operands = 3 : i64, tpu.core_type = #tpu.core_type<tc>, window_params = [{transform_indices = @transform_0, window_bounds = array<i64: 1, 16, 24, 128>}, {pipeline_mode = #tpu.pipeline_mode<synchronous>, transform_indices = @transform_1, window_bounds = array<i64: 128, 128>}, {pipeline_mode = #tpu.pipeline_mode<synchronous>, transform_indices = @transform_2, window_bounds = array<i64: 9, 128, 128>}, {pipeline_mode = #tpu.pipeline_mode<synchronous>, transform_indices = @transform_3, window_bounds = array<i64: 128, 128>}, {pipeline_mode = #tpu.pipeline_mode<synchronous>, transform_indices = @transform_4, window_bounds = array<i64: 1, 128>}, {pipeline_mode = #tpu.pipeline_mode<synchronous>, transform_indices = @transform_5, window_bounds = array<i64: 1, 128>}, {pipeline_mode = #tpu.pipeline_mode<synchronous>, transform_indices = @transform_6, window_bounds = array<i64: 1, 128>}, {transform_indices = @transform_7, window_bounds = array<i64: 1, 16, 16, 128>}]} {
    %c0 = arith.constant 0 : index
    %c0_0 = arith.constant 0 : index
    %0 = vector.load %arg5[%c0, %c0_0] : memref<1x128xf32, #tpu.memory_space<vmem>>, vector<1x128xf32>
    %c0_1 = arith.constant 0 : index
    %c0_2 = arith.constant 0 : index
    %1 = vector.load %arg6[%c0_1, %c0_2] : memref<1x128xf32, #tpu.memory_space<vmem>>, vector<1x128xf32>
    %c0_3 = arith.constant 0 : index
    %c0_4 = arith.constant 0 : index
    %2 = vector.load %arg7[%c0_3, %c0_4] : memref<1x128xf32, #tpu.memory_space<vmem>>, vector<1x128xf32>
    %c0_5 = arith.constant 0 : index
    %c0_6 = arith.constant 0 : index
    %c0_7 = arith.constant 0 : index
    %c0_8 = arith.constant 0 : index
    %3 = vector.load %arg1[%c0_5, %c0_6, %c0_7, %c0_8] : memref<1x16x24x128xbf16, #tpu.memory_space<vmem>>, vector<1x16x24x128xbf16>
    %4 = vector.shape_cast %3 : vector<1x16x24x128xbf16> to vector<384x128xbf16>
    %c0_9 = arith.constant 0 : index
    %c0_10 = arith.constant 0 : index
    %5 = vector.load %arg2[%c0_9, %c0_10] : memref<128x128xbf16, #tpu.memory_space<vmem>>, vector<128x128xbf16>
    %cst = arith.constant dense<0.000000e+00> : vector<384x128xf32>
    %6 = tpu.matmul %4, %5, %cst {dimension_numbers = #tpu.dot_dimension_numbers<[1], [0], [0], [1], [0, 0, 1, 1], [], []>} : vector<384x128xbf16>, vector<128x128xbf16>, vector<384x128xf32> -> vector<384x128xf32>
    %7 = vector.broadcast %0 : vector<1x128xf32> to vector<384x128xf32>
    %8 = arith.addf %6, %7 : vector<384x128xf32>
    %cst_11 = arith.constant 0.000000e+00 : f32
    %9 = vector.broadcast %cst_11 : f32 to vector<384x128xf32>
    %10 = arith.maximumf %8, %9 : vector<384x128xf32>
    %11 = vector.shape_cast %10 : vector<384x128xf32> to vector<1x16x24x128xf32>
    %cst_12 = arith.constant 0.000000e+00 : bf16
    %12 = vector.broadcast %cst_12 : bf16 to vector<1x1x24x128xbf16>
    %c0_13 = arith.constant 0 : index
    %c0_14 = arith.constant 0 : index
    %c0_15 = arith.constant 0 : index
    %c0_16 = arith.constant 0 : index
    %13 = vector.load %arg9[%c0_13, %c0_14, %c0_15, %c0_16] : memref<1x18x24x128xbf16, #tpu.memory_space<vmem>>, vector<1x1x24x128xbf16>
    tpu.vector_store %arg9[%c0_13, %c0_14, %c0_15, %c0_16], %12 {strides = array<i32>} : memref<1x18x24x128xbf16, #tpu.memory_space<vmem>>, vector<1x1x24x128xbf16>,
    %c0_17 = arith.constant 0 : index
    %c17 = arith.constant 17 : index
    %c0_18 = arith.constant 0 : index
    %c0_19 = arith.constant 0 : index
    %14 = vector.load %arg9[%c0_17, %c17, %c0_18, %c0_19] : memref<1x18x24x128xbf16, #tpu.memory_space<vmem>>, vector<1x1x24x128xbf16>
    tpu.vector_store %arg9[%c0_17, %c17, %c0_18, %c0_19], %12 {strides = array<i32>} : memref<1x18x24x128xbf16, #tpu.memory_space<vmem>>, vector<1x1x24x128xbf16>,
    %c0_20 = arith.constant 0 : index
    %c0_21 = arith.constant 0 : index
    %c0_22 = arith.constant 0 : index
    %c0_23 = arith.constant 0 : index
    %15 = vector.load %arg10[%c0_20, %c0_21, %c0_22, %c0_23] : memref<1x18x24x128xbf16, #tpu.memory_space<vmem>>, vector<1x1x24x128xbf16>
    tpu.vector_store %arg10[%c0_20, %c0_21, %c0_22, %c0_23], %12 {strides = array<i32>} : memref<1x18x24x128xbf16, #tpu.memory_space<vmem>>, vector<1x1x24x128xbf16>,
    %c0_24 = arith.constant 0 : index
    %c17_25 = arith.constant 17 : index
    %c0_26 = arith.constant 0 : index
    %c0_27 = arith.constant 0 : index
    %16 = vector.load %arg10[%c0_24, %c17_25, %c0_26, %c0_27] : memref<1x18x24x128xbf16, #tpu.memory_space<vmem>>, vector<1x1x24x128xbf16>
    tpu.vector_store %arg10[%c0_24, %c17_25, %c0_26, %c0_27], %12 {strides = array<i32>} : memref<1x18x24x128xbf16, #tpu.memory_space<vmem>>, vector<1x1x24x128xbf16>,
    %c0_28 = arith.constant 0 : index
    %c0_29 = arith.constant 0 : index
    %c0_30 = arith.constant 0 : index
    %c0_31 = arith.constant 0 : index
    %17 = vector.load %arg11[%c0_28, %c0_29, %c0_30, %c0_31] : memref<1x18x24x128xbf16, #tpu.memory_space<vmem>>, vector<1x1x24x128xbf16>
    tpu.vector_store %arg11[%c0_28, %c0_29, %c0_30, %c0_31], %12 {strides = array<i32>} : memref<1x18x24x128xbf16, #tpu.memory_space<vmem>>, vector<1x1x24x128xbf16>,
    %c0_32 = arith.constant 0 : index
    %c17_33 = arith.constant 17 : index
    %c0_34 = arith.constant 0 : index
    %c0_35 = arith.constant 0 : index
    %18 = vector.load %arg11[%c0_32, %c17_33, %c0_34, %c0_35] : memref<1x18x24x128xbf16, #tpu.memory_space<vmem>>, vector<1x1x24x128xbf16>
    tpu.vector_store %arg11[%c0_32, %c17_33, %c0_34, %c0_35], %12 {strides = array<i32>} : memref<1x18x24x128xbf16, #tpu.memory_space<vmem>>, vector<1x1x24x128xbf16>,
    %19 = vector.extract_strided_slice %11 {offsets = [0, 0, 0, 0], sizes = [1, 16, 16, 128], strides = [1, 1, 1, 1]} : vector<1x16x24x128xf32> to vector<1x16x16x128xf32>
    %cst_36 = arith.constant 0.000000e+00 : f32
    %20 = vector.broadcast %cst_36 : f32 to vector<1x16x1x128xf32>
    %cst_37 = arith.constant 0.000000e+00 : f32
    %21 = vector.broadcast %cst_37 : f32 to vector<1x16x8x128xf32>
    %22 = tpu.concatenate %19, %21 in 2 : vector<1x16x16x128xf32>, vector<1x16x8x128xf32> -> vector<1x16x24x128xf32>
    %cst_38 = arith.constant 0.000000e+00 : f32
    %23 = vector.broadcast %cst_38 : f32 to vector<1x16x7x128xf32>
    %24 = tpu.concatenate %20, %19, %23 in 2 : vector<1x16x1x128xf32>, vector<1x16x16x128xf32>, vector<1x16x7x128xf32> -> vector<1x16x24x128xf32>
    %25 = vector.extract_strided_slice %19 {offsets = [0, 0, 1, 0], sizes = [1, 16, 15, 128], strides = [1, 1, 1, 1]} : vector<1x16x16x128xf32> to vector<1x16x15x128xf32>
    %cst_39 = arith.constant 0.000000e+00 : f32
    %26 = vector.broadcast %cst_39 : f32 to vector<1x16x8x128xf32>
    %27 = tpu.concatenate %25, %26, %20 in 2 : vector<1x16x15x128xf32>, vector<1x16x8x128xf32>, vector<1x16x1x128xf32> -> vector<1x16x24x128xf32>
    %28 = arith.truncf %22 : vector<1x16x24x128xf32> to vector<1x16x24x128xbf16>
    %c0_40 = arith.constant 0 : index
    %c1 = arith.constant 1 : index
    %c0_41 = arith.constant 0 : index
    %c0_42 = arith.constant 0 : index
    %29 = vector.load %arg9[%c0_40, %c1, %c0_41, %c0_42] : memref<1x18x24x128xbf16, #tpu.memory_space<vmem>>, vector<1x16x24x128xbf16>
    tpu.vector_store %arg9[%c0_40, %c1, %c0_41, %c0_42], %28 {strides = array<i32>} : memref<1x18x24x128xbf16, #tpu.memory_space<vmem>>, vector<1x16x24x128xbf16>,
    %30 = arith.truncf %24 : vector<1x16x24x128xf32> to vector<1x16x24x128xbf16>
    %c0_43 = arith.constant 0 : index
    %c1_44 = arith.constant 1 : index
    %c0_45 = arith.constant 0 : index
    %c0_46 = arith.constant 0 : index
    %31 = vector.load %arg10[%c0_43, %c1_44, %c0_45, %c0_46] : memref<1x18x24x128xbf16, #tpu.memory_space<vmem>>, vector<1x16x24x128xbf16>
    tpu.vector_store %arg10[%c0_43, %c1_44, %c0_45, %c0_46], %30 {strides = array<i32>} : memref<1x18x24x128xbf16, #tpu.memory_space<vmem>>, vector<1x16x24x128xbf16>,
    %32 = arith.truncf %27 : vector<1x16x24x128xf32> to vector<1x16x24x128xbf16>
    %c0_47 = arith.constant 0 : index
    %c1_48 = arith.constant 1 : index
    %c0_49 = arith.constant 0 : index
    %c0_50 = arith.constant 0 : index
    %33 = vector.load %arg11[%c0_47, %c1_48, %c0_49, %c0_50] : memref<1x18x24x128xbf16, #tpu.memory_space<vmem>>, vector<1x16x24x128xbf16>
    tpu.vector_store %arg11[%c0_47, %c1_48, %c0_49, %c0_50], %32 {strides = array<i32>} : memref<1x18x24x128xbf16, #tpu.memory_space<vmem>>, vector<1x16x24x128xbf16>,
    %cst_51 = arith.constant 0.000000e+00 : f32
    %34 = vector.broadcast %cst_51 : f32 to vector<384x128xf32>
    %c0_52 = arith.constant 0 : index
    %c0_53 = arith.constant 0 : index
    %c0_54 = arith.constant 0 : index
    %c0_55 = arith.constant 0 : index
    %35 = vector.load %arg10[%c0_52, %c0_53, %c0_54, %c0_55] : memref<1x18x24x128xbf16, #tpu.memory_space<vmem>>, vector<1x16x24x128xbf16>
    %36 = vector.shape_cast %35 : vector<1x16x24x128xbf16> to vector<384x128xbf16>
    %c0_56 = arith.constant 0 : index
    %c0_57 = arith.constant 0 : index
    %c0_58 = arith.constant 0 : index
    %37 = vector.load %arg3[%c0_56, %c0_57, %c0_58] : memref<9x128x128xbf16, #tpu.memory_space<vmem>>, vector<1x128x128xbf16>
    %38 = vector.shape_cast %37 : vector<1x128x128xbf16> to vector<128x128xbf16>
    %cst_59 = arith.constant dense<0.000000e+00> : vector<384x128xf32>
    %39 = tpu.matmul %36, %38, %cst_59 {dimension_numbers = #tpu.dot_dimension_numbers<[1], [0], [0], [1], [0, 0, 1, 1], [], []>} : vector<384x128xbf16>, vector<128x128xbf16>, vector<384x128xf32> -> vector<384x128xf32>
    %40 = arith.addf %34, %39 : vector<384x128xf32>
    %c0_60 = arith.constant 0 : index
    %c0_61 = arith.constant 0 : index
    %c0_62 = arith.constant 0 : index
    %c0_63 = arith.constant 0 : index
    %41 = vector.load %arg9[%c0_60, %c0_61, %c0_62, %c0_63] : memref<1x18x24x128xbf16, #tpu.memory_space<vmem>>, vector<1x16x24x128xbf16>
    %42 = vector.shape_cast %41 : vector<1x16x24x128xbf16> to vector<384x128xbf16>
    %c1_64 = arith.constant 1 : index
    %c0_65 = arith.constant 0 : index
    %c0_66 = arith.constant 0 : index
    %43 = vector.load %arg3[%c1_64, %c0_65, %c0_66] : memref<9x128x128xbf16, #tpu.memory_space<vmem>>, vector<1x128x128xbf16>
    %44 = vector.shape_cast %43 : vector<1x128x128xbf16> to vector<128x128xbf16>
    %cst_67 = arith.constant dense<0.000000e+00> : vector<384x128xf32>
    %45 = tpu.matmul %42, %44, %cst_67 {dimension_numbers = #tpu.dot_dimension_numbers<[1], [0], [0], [1], [0, 0, 1, 1], [], []>} : vector<384x128xbf16>, vector<128x128xbf16>, vector<384x128xf32> -> vector<384x128xf32>
    %46 = arith.addf %40, %45 : vector<384x128xf32>
    %c0_68 = arith.constant 0 : index
    %c0_69 = arith.constant 0 : index
    %c0_70 = arith.constant 0 : index
    %c0_71 = arith.constant 0 : index
    %47 = vector.load %arg11[%c0_68, %c0_69, %c0_70, %c0_71] : memref<1x18x24x128xbf16, #tpu.memory_space<vmem>>, vector<1x16x24x128xbf16>
    %48 = vector.shape_cast %47 : vector<1x16x24x128xbf16> to vector<384x128xbf16>
    %c2 = arith.constant 2 : index
    %c0_72 = arith.constant 0 : index
    %c0_73 = arith.constant 0 : index
    %49 = vector.load %arg3[%c2, %c0_72, %c0_73] : memref<9x128x128xbf16, #tpu.memory_space<vmem>>, vector<1x128x128xbf16>
    %50 = vector.shape_cast %49 : vector<1x128x128xbf16> to vector<128x128xbf16>
    %cst_74 = arith.constant dense<0.000000e+00> : vector<384x128xf32>
    %51 = tpu.matmul %48, %50, %cst_74 {dimension_numbers = #tpu.dot_dimension_numbers<[1], [0], [0], [1], [0, 0, 1, 1], [], []>} : vector<384x128xbf16>, vector<128x128xbf16>, vector<384x128xf32> -> vector<384x128xf32>
    %52 = arith.addf %46, %51 : vector<384x128xf32>
    %c0_75 = arith.constant 0 : index
    %c1_76 = arith.constant 1 : index
    %c0_77 = arith.constant 0 : index
    %c0_78 = arith.constant 0 : index
    %53 = vector.load %arg10[%c0_75, %c1_76, %c0_77, %c0_78] : memref<1x18x24x128xbf16, #tpu.memory_space<vmem>>, vector<1x16x24x128xbf16>
    %54 = vector.shape_cast %53 : vector<1x16x24x128xbf16> to vector<384x128xbf16>
    %c3 = arith.constant 3 : index
    %c0_79 = arith.constant 0 : index
    %c0_80 = arith.constant 0 : index
    %55 = vector.load %arg3[%c3, %c0_79, %c0_80] : memref<9x128x128xbf16, #tpu.memory_space<vmem>>, vector<1x128x128xbf16>
    %56 = vector.shape_cast %55 : vector<1x128x128xbf16> to vector<128x128xbf16>
    %cst_81 = arith.constant dense<0.000000e+00> : vector<384x128xf32>
    %57 = tpu.matmul %54, %56, %cst_81 {dimension_numbers = #tpu.dot_dimension_numbers<[1], [0], [0], [1], [0, 0, 1, 1], [], []>} : vector<384x128xbf16>, vector<128x128xbf16>, vector<384x128xf32> -> vector<384x128xf32>
    %58 = arith.addf %52, %57 : vector<384x128xf32>
    %c0_82 = arith.constant 0 : index
    %c1_83 = arith.constant 1 : index
    %c0_84 = arith.constant 0 : index
    %c0_85 = arith.constant 0 : index
    %59 = vector.load %arg9[%c0_82, %c1_83, %c0_84, %c0_85] : memref<1x18x24x128xbf16, #tpu.memory_space<vmem>>, vector<1x16x24x128xbf16>
    %60 = vector.shape_cast %59 : vector<1x16x24x128xbf16> to vector<384x128xbf16>
    %c4 = arith.constant 4 : index
    %c0_86 = arith.constant 0 : index
    %c0_87 = arith.constant 0 : index
    %61 = vector.load %arg3[%c4, %c0_86, %c0_87] : memref<9x128x128xbf16, #tpu.memory_space<vmem>>, vector<1x128x128xbf16>
    %62 = vector.shape_cast %61 : vector<1x128x128xbf16> to vector<128x128xbf16>
    %cst_88 = arith.constant dense<0.000000e+00> : vector<384x128xf32>
    %63 = tpu.matmul %60, %62, %cst_88 {dimension_numbers = #tpu.dot_dimension_numbers<[1], [0], [0], [1], [0, 0, 1, 1], [], []>} : vector<384x128xbf16>, vector<128x128xbf16>, vector<384x128xf32> -> vector<384x128xf32>
    %64 = arith.addf %58, %63 : vector<384x128xf32>
    %c0_89 = arith.constant 0 : index
    %c1_90 = arith.constant 1 : index
    %c0_91 = arith.constant 0 : index
    %c0_92 = arith.constant 0 : index
    %65 = vector.load %arg11[%c0_89, %c1_90, %c0_91, %c0_92] : memref<1x18x24x128xbf16, #tpu.memory_space<vmem>>, vector<1x16x24x128xbf16>
    %66 = vector.shape_cast %65 : vector<1x16x24x128xbf16> to vector<384x128xbf16>
    %c5 = arith.constant 5 : index
    %c0_93 = arith.constant 0 : index
    %c0_94 = arith.constant 0 : index
    %67 = vector.load %arg3[%c5, %c0_93, %c0_94] : memref<9x128x128xbf16, #tpu.memory_space<vmem>>, vector<1x128x128xbf16>
    %68 = vector.shape_cast %67 : vector<1x128x128xbf16> to vector<128x128xbf16>
    %cst_95 = arith.constant dense<0.000000e+00> : vector<384x128xf32>
    %69 = tpu.matmul %66, %68, %cst_95 {dimension_numbers = #tpu.dot_dimension_numbers<[1], [0], [0], [1], [0, 0, 1, 1], [], []>} : vector<384x128xbf16>, vector<128x128xbf16>, vector<384x128xf32> -> vector<384x128xf32>
    %70 = arith.addf %64, %69 : vector<384x128xf32>
    %c0_96 = arith.constant 0 : index
    %c2_97 = arith.constant 2 : index
    %c0_98 = arith.constant 0 : index
    %c0_99 = arith.constant 0 : index
    %71 = vector.load %arg10[%c0_96, %c2_97, %c0_98, %c0_99] : memref<1x18x24x128xbf16, #tpu.memory_space<vmem>>, vector<1x16x24x128xbf16>
    %72 = vector.shape_cast %71 : vector<1x16x24x128xbf16> to vector<384x128xbf16>
    %c6 = arith.constant 6 : index
    %c0_100 = arith.constant 0 : index
    %c0_101 = arith.constant 0 : index
    %73 = vector.load %arg3[%c6, %c0_100, %c0_101] : memref<9x128x128xbf16, #tpu.memory_space<vmem>>, vector<1x128x128xbf16>
    %74 = vector.shape_cast %73 : vector<1x128x128xbf16> to vector<128x128xbf16>
    %cst_102 = arith.constant dense<0.000000e+00> : vector<384x128xf32>
    %75 = tpu.matmul %72, %74, %cst_102 {dimension_numbers = #tpu.dot_dimension_numbers<[1], [0], [0], [1], [0, 0, 1, 1], [], []>} : vector<384x128xbf16>, vector<128x128xbf16>, vector<384x128xf32> -> vector<384x128xf32>
    %76 = arith.addf %70, %75 : vector<384x128xf32>
    %c0_103 = arith.constant 0 : index
    %c2_104 = arith.constant 2 : index
    %c0_105 = arith.constant 0 : index
    %c0_106 = arith.constant 0 : index
    %77 = vector.load %arg9[%c0_103, %c2_104, %c0_105, %c0_106] : memref<1x18x24x128xbf16, #tpu.memory_space<vmem>>, vector<1x16x24x128xbf16>
    %78 = vector.shape_cast %77 : vector<1x16x24x128xbf16> to vector<384x128xbf16>
    %c7 = arith.constant 7 : index
    %c0_107 = arith.constant 0 : index
    %c0_108 = arith.constant 0 : index
    %79 = vector.load %arg3[%c7, %c0_107, %c0_108] : memref<9x128x128xbf16, #tpu.memory_space<vmem>>, vector<1x128x128xbf16>
    %80 = vector.shape_cast %79 : vector<1x128x128xbf16> to vector<128x128xbf16>
    %cst_109 = arith.constant dense<0.000000e+00> : vector<384x128xf32>
    %81 = tpu.matmul %78, %80, %cst_109 {dimension_numbers = #tpu.dot_dimension_numbers<[1], [0], [0], [1], [0, 0, 1, 1], [], []>} : vector<384x128xbf16>, vector<128x128xbf16>, vector<384x128xf32> -> vector<384x128xf32>
    %82 = arith.addf %76, %81 : vector<384x128xf32>
    %c0_110 = arith.constant 0 : index
    %c2_111 = arith.constant 2 : index
    %c0_112 = arith.constant 0 : index
    %c0_113 = arith.constant 0 : index
    %83 = vector.load %arg11[%c0_110, %c2_111, %c0_112, %c0_113] : memref<1x18x24x128xbf16, #tpu.memory_space<vmem>>, vector<1x16x24x128xbf16>
    %84 = vector.shape_cast %83 : vector<1x16x24x128xbf16> to vector<384x128xbf16>
    %c8 = arith.constant 8 : index
    %c0_114 = arith.constant 0 : index
    %c0_115 = arith.constant 0 : index
    %85 = vector.load %arg3[%c8, %c0_114, %c0_115] : memref<9x128x128xbf16, #tpu.memory_space<vmem>>, vector<1x128x128xbf16>
    %86 = vector.shape_cast %85 : vector<1x128x128xbf16> to vector<128x128xbf16>
    %cst_116 = arith.constant dense<0.000000e+00> : vector<384x128xf32>
    %87 = tpu.matmul %84, %86, %cst_116 {dimension_numbers = #tpu.dot_dimension_numbers<[1], [0], [0], [1], [0, 0, 1, 1], [], []>} : vector<384x128xbf16>, vector<128x128xbf16>, vector<384x128xf32> -> vector<384x128xf32>
    %88 = arith.addf %82, %87 : vector<384x128xf32>
    %89 = vector.broadcast %1 : vector<1x128xf32> to vector<384x128xf32>
    %90 = arith.addf %88, %89 : vector<384x128xf32>
    %cst_117 = arith.constant 0.000000e+00 : f32
    %91 = vector.broadcast %cst_117 : f32 to vector<384x128xf32>
    %92 = arith.maximumf %90, %91 : vector<384x128xf32>
    %93 = arith.truncf %92 : vector<384x128xf32> to vector<384x128xbf16>
    %c0_118 = arith.constant 0 : index
    %c0_119 = arith.constant 0 : index
    %94 = vector.load %arg4[%c0_118, %c0_119] : memref<128x128xbf16, #tpu.memory_space<vmem>>, vector<128x128xbf16>
    %cst_120 = arith.constant dense<0.000000e+00> : vector<384x128xf32>
    %95 = tpu.matmul %93, %94, %cst_120 {dimension_numbers = #tpu.dot_dimension_numbers<[1], [0], [0], [1], [0, 0, 1, 1], [], []>} : vector<384x128xbf16>, vector<128x128xbf16>, vector<384x128xf32> -> vector<384x128xf32>
    %96 = vector.broadcast %2 : vector<1x128xf32> to vector<384x128xf32>
    %97 = arith.addf %95, %96 : vector<384x128xf32>
    %c0_121 = arith.constant 0 : index
    %c0_122 = arith.constant 0 : index
    %c0_123 = arith.constant 0 : index
    %c0_124 = arith.constant 0 : index
    %98 = vector.load %arg1[%c0_121, %c0_122, %c0_123, %c0_124] : memref<1x16x24x128xbf16, #tpu.memory_space<vmem>>, vector<1x16x24x128xbf16>
    %99 = vector.shape_cast %98 : vector<1x16x24x128xbf16> to vector<384x128xbf16>
    %100 = arith.extf %99 : vector<384x128xbf16> to vector<384x128xf32>
    %101 = arith.addf %97, %100 : vector<384x128xf32>
    %cst_125 = arith.constant 0.000000e+00 : f32
    %102 = vector.broadcast %cst_125 : f32 to vector<384x128xf32>
    %103 = arith.maximumf %101, %102 : vector<384x128xf32>
    %104 = vector.shape_cast %103 : vector<384x128xf32> to vector<1x16x24x128xf32>
    %105 = vector.extract_strided_slice %104 {offsets = [0, 0, 0, 0], sizes = [1, 16, 16, 128], strides = [1, 1, 1, 1]} : vector<1x16x24x128xf32> to vector<1x16x16x128xf32>
    %c0_126 = arith.constant 0 : index
    %c0_127 = arith.constant 0 : index
    %c0_128 = arith.constant 0 : index
    %c0_129 = arith.constant 0 : index
    %106 = vector.load %arg8[%c0_126, %c0_127, %c0_128, %c0_129] : memref<1x16x16x128xf32, #tpu.memory_space<vmem>>, vector<1x16x16x128xf32>
    tpu.vector_store %arg8[%c0_126, %c0_127, %c0_128, %c0_129], %105 {strides = array<i32>} : memref<1x16x16x128xf32, #tpu.memory_space<vmem>>, vector<1x16x16x128xf32>,
    return
  }
  func.func @transform_0(%arg0: i32) -> (i32, i32, i32, i32) {
    %c0_i32 = arith.constant 0 : i32
    %c0_i32_0 = arith.constant 0 : i32
    %c0_i32_1 = arith.constant 0 : i32
    %c0_i32_2 = arith.constant 0 : i32
    return %arg0, %c0_i32, %c0_i32_0, %c0_i32_1 : i32, i32, i32, i32
  }
  func.func @transform_1(%arg0: i32) -> (i32, i32) {
    %c0_i32 = arith.constant 0 : i32
    %c0_i32_0 = arith.constant 0 : i32
    %c0_i32_1 = arith.constant 0 : i32
    return %c0_i32, %c0_i32_0 : i32, i32
  }
  func.func @transform_2(%arg0: i32) -> (i32, i32, i32) {
    %c0_i32 = arith.constant 0 : i32
    %c0_i32_0 = arith.constant 0 : i32
    %c0_i32_1 = arith.constant 0 : i32
    %c0_i32_2 = arith.constant 0 : i32
    return %c0_i32, %c0_i32_0, %c0_i32_1 : i32, i32, i32
  }
  func.func @transform_3(%arg0: i32) -> (i32, i32) {
    %c0_i32 = arith.constant 0 : i32
    %c0_i32_0 = arith.constant 0 : i32
    %c0_i32_1 = arith.constant 0 : i32
    return %c0_i32, %c0_i32_0 : i32, i32
  }
  func.func @transform_4(%arg0: i32) -> (i32, i32) {
    %c0_i32 = arith.constant 0 : i32
    %c0_i32_0 = arith.constant 0 : i32
    %c0_i32_1 = arith.constant 0 : i32
    return %c0_i32, %c0_i32_0 : i32, i32
  }
  func.func @transform_5(%arg0: i32) -> (i32, i32) {
    %c0_i32 = arith.constant 0 : i32
    %c0_i32_0 = arith.constant 0 : i32
    %c0_i32_1 = arith.constant 0 : i32
    return %c0_i32, %c0_i32_0 : i32, i32
  }
  func.func @transform_6(%arg0: i32) -> (i32, i32) {
    %c0_i32 = arith.constant 0 : i32
    %c0_i32_0 = arith.constant 0 : i32
    %c0_i32_1 = arith.constant 0 : i32
    return %c0_i32, %c0_i32_0 : i32, i32
  }
  func.func @transform_7(%arg0: i32) -> (i32, i32, i32, i32) {
    %c0_i32 = arith.constant 0 : i32
    %c0_i32_0 = arith.constant 0 : i32
    %c0_i32_1 = arith.constant 0 : i32
    %c0_i32_2 = arith.constant 0 : i32
    return %arg0, %c0_i32, %c0_i32_0, %c0_i32_1 : i32, i32, i32, i32
  }
}

</mosaic_0001>

<llo_original>
// kernel: tpu_custom_call.1
$region0: #{tpu_custom_call.1}
  #allocation0 [shape = 'u32[]', space=smem, size = 0x4, offset = 0x4, fixed_abs, tag = 'smem constant byte address 0x4 - core index']
  #allocation1 [shape = 'u32[144,128]{1,0:T(1,128)}', space=vmem, size = 0x12000, scoped, tag = 'internal scratch']
  #allocation2 [shape = 'bf16[1,18,24,128]{3,2,1,0:T(8,128)(2,1)}', space=vmem, size = 0x1b000, scoped, tag = 'scratch operand']
  #allocation3 [shape = 'bf16[1,18,24,128]{3,2,1,0:T(8,128)(2,1)}', space=vmem, size = 0x1b000, scoped, tag = 'scratch operand']
  #allocation4 [shape = 'bf16[1,18,24,128]{3,2,1,0:T(8,128)(2,1)}', space=vmem, size = 0x1b000, scoped, tag = 'scratch operand']
  %s0 = inlined_call_operand.hbm [shape: bf16[2,16,24,128], index: 0, kind: input, shape index: {}]
  %s1 = inlined_call_operand.hbm [shape: bf16[128,128], index: 1, kind: input, shape index: {}]
  %s2 = inlined_call_operand.hbm [shape: bf16[9,128,128], index: 2, kind: input, shape index: {}]
  %s3 = inlined_call_operand.hbm [shape: bf16[128,128], index: 3, kind: input, shape index: {}]
  %s4 = inlined_call_operand.vmem [shape: f32[1,128], index: 4, kind: input, shape index: {}]
  %s5 = inlined_call_operand.vmem [shape: f32[1,128], index: 5, kind: input, shape index: {}]
  %s6 = inlined_call_operand.vmem [shape: f32[1,128], index: 6, kind: input, shape index: {}]
  %s7 = inlined_call_operand.hbm [shape: f32[2,16,16,128], index: 7, kind: output, shape index: {}]
  %s8 = sld [smem:[#allocation0]]
  $region77: #{tpu_custom_call.1} parent=0
    _
  %s10 = ssub.s32 1, %s8
  %s11 = scalar_select 0, %s10, %s8
  $region1: #{tpu_custom_call.1} parent=0
    #allocation5 [shape = 'u8[196608]{0}', space=vmem, size = 0x30000, scoped, tag = 'input window, operand 0']
    #allocation6 [shape = 's32[2]{0}', space=sflag, size = 0x8, scoped, tag = 'scoped memory for tpu_custom_call.1']
    #allocation7 [shape = 's32[2]{0}', space=sflag, size = 0x8, scoped, tag = 'scoped memory for tpu_custom_call.1']
    #allocation8 [shape = 'u8[32768]{0}', space=vmem, size = 0x8000, scoped, tag = 'input window, operand 1, single buffered']
    #allocation9 [shape = 's32[1]{0}', space=sflag, size = 0x4, scoped, tag = 'scoped memory for tpu_custom_call.1']
    #allocation10 [shape = 'u8[294912]{0}', space=vmem, size = 0x48000, scoped, tag = 'input window, operand 2, single buffered']
    #allocation11 [shape = 'u8[32768]{0}', space=vmem, size = 0x8000, scoped, tag = 'input window, operand 3, single buffered']
    #allocation12 [shape = 's32[1]{0}', space=sflag, size = 0x4, scoped, tag = 'scoped memory for tpu_custom_call.1']
    #allocation13 [shape = 'u8[262144]{0}', space=vmem, size = 0x40000, scoped, tag = 'output window, operand 0']
    %12 = vsyncpa [#allocation6], 0
    %s13 = scalar_lea.sflag [#allocation6], 1
    %14 = vsyncpa %s13, 0
    %15 = vsyncpa [#allocation9], 0
    %16 = vsyncpa [#allocation12], 0
    %17 = vsyncpa [#allocation7], 0
    %s18 = scalar_lea.sflag [#allocation7], 1
    %19 = vsyncpa %s18, 0
    loop: start=0, step=1, limit=4
    $region2: #{tpu_custom_call.1} parent=1 // loop_pre_header
      _
    $region3: #{tpu_custom_call.1} parent=1 // loop_header
      %s21 = sphi 0, %s25
      %p22 = scmp.ge.s32.totalorder %s21, 4
      %s31 = sphi 0, %s33
      %s34 = sphi 0, %s31
      %s35 = sphi 0, %s34
      %s51 = sphi 0, %s35
      %s55 = sphi 0, %s55
      %s57 = sphi 0, %s55
      %s58 = sphi 0, %s57
      %s72 = sphi 0, %s58
      %s76 = sphi 0, %s76
      %s78 = sphi 0, %s76
      %s79 = sphi 0, %s78
      %s93 = sphi 0, %s79
      %s97 = sphi 0, %s97
      %s99 = sphi 0, %s97
      %s100 = sphi 0, %s99
      %s114 = sphi 0, %s100
      %s118 = sphi 0, %s118
      %s120 = sphi 0, %s118
      %s121 = sphi 0, %s120
      %s135 = sphi 0, %s121
      %s139 = sphi 0, %s139
      %s141 = sphi 0, %s139
      %s142 = sphi 0, %s141
      %s156 = sphi 0, %s142
      %s160 = sphi 0, %s160
      %s162 = sphi 0, %s160
      %s163 = sphi 0, %s162
      %s177 = sphi 0, %s163
      %s183 = sphi 0, %s185
      %s186 = sphi 0, %s183
      %s187 = sphi 0, %s186
      %s203 = sphi 0, %s187
    $region4: #{tpu_custom_call.1} parent=1 // loop_header_branch
      %24 = sbr.rel (%p22) target = $region8
    $region5: #{tpu_custom_call.1} parent=1 // loop_body
      %s26 = ssub.s32 %s21, 1
      %s27 = ssub.s32 %s21, 2
      %s28 = sadd.s32 %s21, 1
      %s29 = ssub.s32 %s21, %s28
      %p30 = scmp.eq.s32.totalorder %s29, 0
      %s32 = sadd.s32 %s31, 1
      %s33 = scalar_select %p30, %s31, %s32
      %p36 = pneg %p30
      %p37 = scmp.eq.s32.totalorder %s21, 1
      %p38 = por %p36, %p37
      %p39 = scmp.ne.s32.totalorder %s31, %s34
      %p40 = scmp.eq.s32.totalorder %s21, 0
      %p41 = por %p39, %p40
      %p42 = scmp.ne.s32.totalorder %s31, %s34
      %p43 = scmp.eq.s32.totalorder %s26, 1
      %p44 = por %p42, %p43
      %p45 = scmp.ne.s32.totalorder %s34, %s35
      %p46 = scmp.eq.s32.totalorder %s26, 0
      %p47 = por %p45, %p46
      %p48 = scmp.ne.s32.totalorder %s34, %s35
      %p49 = scmp.eq.s32.totalorder %s27, 1
      %p50 = por %p48, %p49
      %p52 = scmp.ne.s32.totalorder %s35, %s51
      %p53 = scmp.eq.s32.totalorder %s27, 0
      %p54 = por %p52, %p53
      %s56 = sadd.s32 %s55, 1
      %p59 = scmp.eq.s32.totalorder %s21, 1
      %p60 = scmp.ne.s32.totalorder %s55, %s57
      %p61 = scmp.eq.s32.totalorder %s21, 0
      %p62 = por %p60, %p61
      %p63 = scmp.ne.s32.totalorder %s55, %s57
      %p64 = scmp.eq.s32.totalorder %s26, 1
      %p65 = por %p63, %p64
      %p66 = scmp.ne.s32.totalorder %s57, %s58
      %p67 = scmp.eq.s32.totalorder %s26, 0
      %p68 = por %p66, %p67
      %p69 = scmp.ne.s32.totalorder %s57, %s58
      %p70 = scmp.eq.s32.totalorder %s27, 1
      %p71 = por %p69, %p70
      %p73 = scmp.ne.s32.totalorder %s58, %s72
      %p74 = scmp.eq.s32.totalorder %s27, 0
      %p75 = por %p73, %p74
      %s77 = sadd.s32 %s76, 1
      %p80 = scmp.eq.s32.totalorder %s21, 1
      %p81 = scmp.ne.s32.totalorder %s76, %s78
      %p82 = scmp.eq.s32.totalorder %s21, 0
      %p83 = por %p81, %p82
      %p84 = scmp.ne.s32.totalorder %s76, %s78
      %p85 = scmp.eq.s32.totalorder %s26, 1
      %p86 = por %p84, %p85
      %p87 = scmp.ne.s32.totalorder %s78, %s79
      %p88 = scmp.eq.s32.totalorder %s26, 0
      %p89 = por %p87, %p88
      %p90 = scmp.ne.s32.totalorder %s78, %s79
      %p91 = scmp.eq.s32.totalorder %s27, 1
      %p92 = por %p90, %p91
      %p94 = scmp.ne.s32.totalorder %s79, %s93
      %p95 = scmp.eq.s32.totalorder %s27, 0
      %p96 = por %p94, %p95
      %s98 = sadd.s32 %s97, 1
      %p101 = scmp.eq.s32.totalorder %s21, 1
      %p102 = scmp.ne.s32.totalorder %s97, %s99
      %p103 = scmp.eq.s32.totalorder %s21, 0
      %p104 = por %p102, %p103
      %p105 = scmp.ne.s32.totalorder %s97, %s99
      %p106 = scmp.eq.s32.totalorder %s26, 1
      %p107 = por %p105, %p106
      %p108 = scmp.ne.s32.totalorder %s99, %s100
      %p109 = scmp.eq.s32.totalorder %s26, 0
      %p110 = por %p108, %p109
      %p111 = scmp.ne.s32.totalorder %s99, %s100
      %p112 = scmp.eq.s32.totalorder %s27, 1
      %p113 = por %p111, %p112
      %p115 = scmp.ne.s32.totalorder %s100, %s114
      %p116 = scmp.eq.s32.totalorder %s27, 0
      %p117 = por %p115, %p116
      %s119 = sadd.s32 %s118, 1
      %p122 = scmp.eq.s32.totalorder %s21, 1
      %p123 = scmp.ne.s32.totalorder %s118, %s120
      %p124 = scmp.eq.s32.totalorder %s21, 0
      %p125 = por %p123, %p124
      %p126 = scmp.ne.s32.totalorder %s118, %s120
      %p127 = scmp.eq.s32.totalorder %s26, 1
      %p128 = por %p126, %p127
      %p129 = scmp.ne.s32.totalorder %s120, %s121
      %p130 = scmp.eq.s32.totalorder %s26, 0
      %p131 = por %p129, %p130
      %p132 = scmp.ne.s32.totalorder %s120, %s121
      %p133 = scmp.eq.s32.totalorder %s27, 1
      %p134 = por %p132, %p133
      %p136 = scmp.ne.s32.totalorder %s121, %s135
      %p137 = scmp.eq.s32.totalorder %s27, 0
      %p138 = por %p136, %p137
      %s140 = sadd.s32 %s139, 1
      %p143 = scmp.eq.s32.totalorder %s21, 1
      %p144 = scmp.ne.s32.totalorder %s139, %s141
      %p145 = scmp.eq.s32.totalorder %s21, 0
      %p146 = por %p144, %p145
      %p147 = scmp.ne.s32.totalorder %s139, %s141
      %p148 = scmp.eq.s32.totalorder %s26, 1
      %p149 = por %p147, %p148
      %p150 = scmp.ne.s32.totalorder %s141, %s142
      %p151 = scmp.eq.s32.totalorder %s26, 0
      %p152 = por %p150, %p151
      %p153 = scmp.ne.s32.totalorder %s141, %s142
      %p154 = scmp.eq.s32.totalorder %s27, 1
      %p155 = por %p153, %p154
      %p157 = scmp.ne.s32.totalorder %s142, %s156
      %p158 = scmp.eq.s32.totalorder %s27, 0
      %p159 = por %p157, %p158
      %s161 = sadd.s32 %s160, 1
      %p164 = scmp.eq.s32.totalorder %s21, 1
      %p165 = scmp.ne.s32.totalorder %s160, %s162
      %p166 = scmp.eq.s32.totalorder %s21, 0
      %p167 = por %p165, %p166
      %p168 = scmp.ne.s32.totalorder %s160, %s162
      %p169 = scmp.eq.s32.totalorder %s26, 1
      %p170 = por %p168, %p169
      %p171 = scmp.ne.s32.totalorder %s162, %s163
      %p172 = scmp.eq.s32.totalorder %s26, 0
      %p173 = por %p171, %p172
      %p174 = scmp.ne.s32.totalorder %s162, %s163
      %p175 = scmp.eq.s32.totalorder %s27, 1
      %p176 = por %p174, %p175
      %p178 = scmp.ne.s32.totalorder %s163, %s177
      %p179 = scmp.eq.s32.totalorder %s27, 0
      %p180 = por %p178, %p179
      %s181 = ssub.s32 %s21, %s28
      %p182 = scmp.eq.s32.totalorder %s181, 0
      %s184 = sadd.s32 %s183, 1
      %s185 = scalar_select %p182, %s183, %s184
      %p188 = pneg %p182
      %p189 = scmp.eq.s32.totalorder %s21, 1
      %p190 = por %p188, %p189
      %p191 = scmp.ne.s32.totalorder %s183, %s186
      %p192 = scmp.eq.s32.totalorder %s21, 0
      %p193 = por %p191, %p192
      %p194 = scmp.ne.s32.totalorder %s183, %s186
      %p195 = scmp.eq.s32.totalorder %s26, 1
      %p196 = por %p194, %p195
      %p197 = scmp.ne.s32.totalorder %s186, %s187
      %p198 = scmp.eq.s32.totalorder %s26, 0
      %p199 = por %p197, %p198
      %p200 = scmp.ne.s32.totalorder %s186, %s187
      %p201 = scmp.eq.s32.totalorder %s27, 1
      %p202 = por %p200, %p201
      %p204 = scmp.ne.s32.totalorder %s187, %s203
      %p205 = scmp.eq.s32.totalorder %s27, 0
      %p206 = por %p204, %p205
      %p207 = scmp.le.s32.totalorder 1, %s21
      %p208 = scmp.lt.s32.totalorder %s21, 3
      %p209 = pnand %p207, %p208
      %p210 = pneg %p209
      // Predicated region
      $region9: #{tpu_custom_call.1} parent=5 // pred_check
        _
      $region10: #{tpu_custom_call.1} parent=5 // pred_check_branch
        %212 = sbr.rel (%p209) target = $region12
      $region11: #{tpu_custom_call.1} parent=5 // pred_region
        %s213 = ssub.s32 %s21, 1
        // Predicated region
        $region13: #{tpu_custom_call.1} parent=11 // pred_check
          %p214 = pneg %p68
        $region14: #{tpu_custom_call.1} parent=11 // pred_check_branch
          %216 = sbr.rel (%p214) target = $region16
        $region15: #{tpu_custom_call.1} parent=11 // pred_region
          %s218 = ssub.s32 1024, 1024
          %219 = vsyncadd [#allocation9], %s218
          %s220 = sshll.u32 [#allocation8], 4
          %s221 = int_to_ptr.vmem [resolvable:$true] %s220
          %226 = dma.hbm_to_vmem [thread:$0]  %s1, 1024, %s221, [#allocation9], 64, 64, 4
        $region16: #{tpu_custom_call.1} parent=11 // pred_fallthru
          _
        // Predicated region
        $region17: #{tpu_custom_call.1} parent=11 // pred_check
          %p227 = pneg %p89
        $region18: #{tpu_custom_call.1} parent=11 // pred_check_branch
          %229 = sbr.rel (%p227) target = $region20
        $region19: #{tpu_custom_call.1} parent=11 // pred_region
          %s231 = ssub.s32 9216, 9216
          %232 = vsyncadd [#allocation9], %s231
          %s233 = sshll.u32 [#allocation10], 4
          %s234 = int_to_ptr.vmem [resolvable:$true] %s233
          %239 = dma.hbm_to_vmem [thread:$0]  %s2, 9216, %s234, [#allocation9], 64, 64, 4
        $region20: #{tpu_custom_call.1} parent=11 // pred_fallthru
          _
        // Predicated region
        $region21: #{tpu_custom_call.1} parent=11 // pred_check
          %p240 = pneg %p110
        $region22: #{tpu_custom_call.1} parent=11 // pred_check_branch
          %242 = sbr.rel (%p240) target = $region24
        $region23: #{tpu_custom_call.1} parent=11 // pred_region
          %s244 = ssub.s32 1024, 1024
          %245 = vsyncadd [#allocation12], %s244
          %s246 = sshll.u32 [#allocation11], 4
          %s247 = int_to_ptr.vmem [resolvable:$true] %s246
          %252 = dma.hbm_to_vmem [thread:$0]  %s3, 1024, %s247, [#allocation12], 64, 64, 4
        $region24: #{tpu_custom_call.1} parent=11 // pred_fallthru
          _
        // Predicated region
        $region25: #{tpu_custom_call.1} parent=11 // pred_check
          %p253 = pneg %p131
        $region26: #{tpu_custom_call.1} parent=11 // pred_check_branch
          %255 = sbr.rel (%p253) target = $region28
        $region27: #{tpu_custom_call.1} parent=11 // pred_region
          _
        $region28: #{tpu_custom_call.1} parent=11 // pred_fallthru
          _
        // Predicated region
        $region29: #{tpu_custom_call.1} parent=11 // pred_check
          %p256 = pneg %p152
        $region30: #{tpu_custom_call.1} parent=11 // pred_check_branch
          %258 = sbr.rel (%p256) target = $region32
        $region31: #{tpu_custom_call.1} parent=11 // pred_region
          _
        $region32: #{tpu_custom_call.1} parent=11 // pred_fallthru
          _
        // Predicated region
        $region33: #{tpu_custom_call.1} parent=11 // pred_check
          %p259 = pneg %p173
        $region34: #{tpu_custom_call.1} parent=11 // pred_check_branch
          %261 = sbr.rel (%p259) target = $region36
        $region35: #{tpu_custom_call.1} parent=11 // pred_region
          _
        $region36: #{tpu_custom_call.1} parent=11 // pred_fallthru
          _
      $region12: #{tpu_custom_call.1} parent=5 // pred_fallthru
        _
      %p262 = scmp.lt.s32.totalorder %s21, 2
      // Predicated region
      $region37: #{tpu_custom_call.1} parent=5 // pred_check
        %p263 = pneg %p262
      $region38: #{tpu_custom_call.1} parent=5 // pred_check_branch
        %265 = sbr.rel (%p263) target = $region40
      $region39: #{tpu_custom_call.1} parent=5 // pred_region
        // Predicated region
        $region41: #{tpu_custom_call.1} parent=39 // pred_check
          %p266 = pneg %p41
        $region42: #{tpu_custom_call.1} parent=39 // pred_check_branch
          %268 = sbr.rel (%p266) target = $region44
        $region43: #{tpu_custom_call.1} parent=39 // pred_region
          %s269 = sand.u32 %s31, 1
          %s270 = scalar_lea.sflag [#allocation6], %s269
          %s271 = sand.u32 %s31, 1
          %s272 = smul.addr %s271, 192
          %s273 = scalar_lea.vmem [#allocation5], %s272
          %s275 = ssub.s32 3072, 3072
          %276 = vsyncadd %s270, %s275
          %s277 = smul.addr %s21, 48
          %s278 = smul.addr %s277, 64
          %s279 = scalar_lea.hbm %s0, %s278
          %s280 = sshll.u32 %s273, 4
          %s281 = int_to_ptr.vmem [resolvable:$true] %s280
          %286 = dma.hbm_to_vmem [thread:$0]  %s279, 3072, %s281, %s270, 64, 64, 4
        $region44: #{tpu_custom_call.1} parent=39 // pred_fallthru
          _
      $region40: #{tpu_custom_call.1} parent=5 // pred_fallthru
        _
      %p287 = scmp.le.s32.totalorder 1, %s21
      %p288 = scmp.lt.s32.totalorder %s21, 3
      %p289 = pnand %p287, %p288
      %p290 = pneg %p289
      // Predicated region
      $region45: #{tpu_custom_call.1} parent=5 // pred_check
        _
      $region46: #{tpu_custom_call.1} parent=5 // pred_check_branch
        %292 = sbr.rel (%p289) target = $region48
      $region47: #{tpu_custom_call.1} parent=5 // pred_region
        %s293 = ssub.s32 %s21, 1
        %s294 = sand.u32 %s34, 1
        %s295 = scalar_lea.sflag [#allocation6], %s294
        %s296 = sand.u32 %s34, 1
        %s297 = smul.addr %s296, 192
        %s298 = scalar_lea.vmem [#allocation5], %s297
        // Predicated region
        $region49: #{tpu_custom_call.1} parent=47 // pred_check
          %p299 = pneg %p47
        $region50: #{tpu_custom_call.1} parent=47 // pred_check_branch
          %301 = sbr.rel (%p299) target = $region52
        $region51: #{tpu_custom_call.1} parent=47 // pred_region
          %302 = dma.done %s295, 3072
        $region52: #{tpu_custom_call.1} parent=47 // pred_fallthru
          _
        // Predicated region
        $region53: #{tpu_custom_call.1} parent=47 // pred_check
          %p303 = pneg %p68
        $region54: #{tpu_custom_call.1} parent=47 // pred_check_branch
          %305 = sbr.rel (%p303) target = $region56
        $region55: #{tpu_custom_call.1} parent=47 // pred_region
          %306 = dma.done [#allocation9], 1024
        $region56: #{tpu_custom_call.1} parent=47 // pred_fallthru
          _
        // Predicated region
        $region57: #{tpu_custom_call.1} parent=47 // pred_check
          %p307 = pneg %p89
        $region58: #{tpu_custom_call.1} parent=47 // pred_check_branch
          %309 = sbr.rel (%p307) target = $region60
        $region59: #{tpu_custom_call.1} parent=47 // pred_region
          %310 = dma.done [#allocation9], 9216
        $region60: #{tpu_custom_call.1} parent=47 // pred_fallthru
          _
        // Predicated region
        $region61: #{tpu_custom_call.1} parent=47 // pred_check
          %p311 = pneg %p110
        $region62: #{tpu_custom_call.1} parent=47 // pred_check_branch
          %313 = sbr.rel (%p311) target = $region64
        $region63: #{tpu_custom_call.1} parent=47 // pred_region
          %314 = dma.done [#allocation12], 1024
        $region64: #{tpu_custom_call.1} parent=47 // pred_fallthru
          _
        %s315 = sand.u32 %s34, 1
        %s316 = scalar_lea.sflag [#allocation6], %s315
        %s317 = sand.u32 %s34, 1
        %s318 = smul.addr %s317, 192
        %s319 = scalar_lea.vmem [#allocation5], %s318
        %p320 = pneg %p47
        %p321 = pneg %p44
        %p322 = pneg %p68
        %p323 = pneg %p65
        %p324 = pneg %p89
        %p325 = pneg %p86
        %p326 = pneg %p110
        %p327 = pneg %p107
        %p328 = pneg %p131
        %p329 = pneg %p128
        %p330 = pneg %p152
        %p331 = pneg %p149
        %p332 = pneg %p173
        %p333 = pneg %p170
        %p334 = pneg %p199
        %p335 = pneg %p196
        %s336 = sand.u32 %s186, 1
        %s337 = scalar_lea.sflag [#allocation7], %s336
        %s338 = sand.u32 %s186, 1
        %s339 = smul.addr %s338, 256
        %s340 = scalar_lea.vmem [#allocation13], %s339
        %v342 = vld [vmem:[%s4] sm:$0x1]
        %v343 = vld [vmem:[%s5] sm:$0x1]
        %v344 = vld [vmem:[%s6] sm:$0x1]
        %v345 = vld [vmem:[%s298] sm:$0xf]
        %v346 = vld [vmem:[%s298 + $0x4] sm:$0xf]
        %v347 = vld [vmem:[%s298 + $0x8] sm:$0xf]
        %v348 = vld [vmem:[%s298 + $0xc] sm:$0xf]
        %v349 = vld [vmem:[%s298 + $0x10] sm:$0xf]
        %v350 = vld [vmem:[%s298 + $0x14] sm:$0xf]
        %v351 = vld [vmem:[%s298 + $0x18] sm:$0xf]
        %v352 = vld [vmem:[%s298 + $0x1c] sm:$0xf]
        %v353 = vld [vmem:[%s298 + $0x20] sm:$0xf]
        %v354 = vld [vmem:[%s298 + $0x24] sm:$0xf]
        %v355 = vld [vmem:[%s298 + $0x28] sm:$0xf]
        %v356 = vld [vmem:[%s298 + $0x2c] sm:$0xf]
        %v357 = vld [vmem:[%s298 + $0x30] sm:$0xf]
        %v358 = vld [vmem:[%s298 + $0x34] sm:$0xf]
        %v359 = vld [vmem:[%s298 + $0x38] sm:$0xf]
        %v360 = vld [vmem:[%s298 + $0x3c] sm:$0xf]
        %v361 = vld [vmem:[%s298 + $0x40] sm:$0xf]
        %v362 = vld [vmem:[%s298 + $0x44] sm:$0xf]
        %v363 = vld [vmem:[%s298 + $0x48] sm:$0xf]
        %v364 = vld [vmem:[%s298 + $0x4c] sm:$0xf]
        %v365 = vld [vmem:[%s298 + $0x50] sm:$0xf]
        %v366 = vld [vmem:[%s298 + $0x54] sm:$0xf]
        %v367 = vld [vmem:[%s298 + $0x58] sm:$0xf]
        %v368 = vld [vmem:[%s298 + $0x5c] sm:$0xf]
        %v369 = vld [vmem:[%s298 + $0x60] sm:$0xf]
        %v370 = vld [vmem:[%s298 + $0x64] sm:$0xf]
        %v371 = vld [vmem:[%s298 + $0x68] sm:$0xf]
        %v372 = vld [vmem:[%s298 + $0x6c] sm:$0xf]
        %v373 = vld [vmem:[%s298 + $0x70] sm:$0xf]
        %v374 = vld [vmem:[%s298 + $0x74] sm:$0xf]
        %v375 = vld [vmem:[%s298 + $0x78] sm:$0xf]
        %v376 = vld [vmem:[%s298 + $0x7c] sm:$0xf]
        %v377 = vld [vmem:[%s298 + $0x80] sm:$0xf]
        %v378 = vld [vmem:[%s298 + $0x84] sm:$0xf]
        %v379 = vld [vmem:[%s298 + $0x88] sm:$0xf]
        %v380 = vld [vmem:[%s298 + $0x8c] sm:$0xf]
        %v381 = vld [vmem:[%s298 + $0x90] sm:$0xf]
        %v382 = vld [vmem:[%s298 + $0x94] sm:$0xf]
        %v383 = vld [vmem:[%s298 + $0x98] sm:$0xf]
        %v384 = vld [vmem:[%s298 + $0x9c] sm:$0xf]
        %v385 = vld [vmem:[%s298 + $0xa0] sm:$0xf]
        %v386 = vld [vmem:[%s298 + $0xa4] sm:$0xf]
        %v387 = vld [vmem:[%s298 + $0xa8] sm:$0xf]
        %v388 = vld [vmem:[%s298 + $0xac] sm:$0xf]
        %v389 = vld [vmem:[%s298 + $0xb0] sm:$0xf]
        %v390 = vld [vmem:[%s298 + $0xb4] sm:$0xf]
        %v391 = vld [vmem:[%s298 + $0xb8] sm:$0xf]
        %v392 = vld [vmem:[%s298 + $0xbc] sm:$0xf]
        %v393 = vld [vmem:[#allocation8] sm:$0xf]
        %v394 = vld [vmem:[#allocation8 + $0x4] sm:$0xf]
        %v395 = vld [vmem:[#allocation8 + $0x8] sm:$0xf]
        %v396 = vld [vmem:[#allocation8 + $0xc] sm:$0xf]
        %v397 = vld [vmem:[#allocation8 + $0x10] sm:$0xf]
        %v398 = vld [vmem:[#allocation8 + $0x14] sm:$0xf]
        %v399 = vld [vmem:[#allocation8 + $0x18] sm:$0xf]
        %v400 = vld [vmem:[#allocation8 + $0x1c] sm:$0xf]
        %v401 = vld [vmem:[#allocation8 + $0x20] sm:$0xf]
        %v402 = vld [vmem:[#allocation8 + $0x24] sm:$0xf]
        %v403 = vld [vmem:[#allocation8 + $0x28] sm:$0xf]
        %v404 = vld [vmem:[#allocation8 + $0x2c] sm:$0xf]
        %v405 = vld [vmem:[#allocation8 + $0x30] sm:$0xf]
        %v406 = vld [vmem:[#allocation8 + $0x34] sm:$0xf]
        %v407 = vld [vmem:[#allocation8 + $0x38] sm:$0xf]
        %v408 = vld [vmem:[#allocation8 + $0x3c] sm:$0xf]
        %v410 = vlaneseq
        %v411 = vshrl.u32 %v410, 7
        %v412 = vsub.s32 0, %v411
        %v413 = vrot.slane %v342, %v412
        %v463 = vunpack.c.l.b16 %v345
        %v464 = vunpack.c.l.b16 %v346
        %v465 = vunpack.c.l.b16 %v347
        %v466 = vunpack.c.l.b16 %v348
        %v467 = vunpack.c.l.b16 %v349
        %v468 = vunpack.c.l.b16 %v350
        %v469 = vunpack.c.l.b16 %v351
        %v470 = vunpack.c.l.b16 %v352
        %v471 = vunpack.c.l.b16 %v353
        %v472 = vunpack.c.l.b16 %v354
        %v473 = vunpack.c.l.b16 %v355
        %v474 = vunpack.c.l.b16 %v356
        %v475 = vunpack.c.l.b16 %v357
        %v476 = vunpack.c.l.b16 %v358
        %v477 = vunpack.c.l.b16 %v359
        %v478 = vunpack.c.l.b16 %v360
        %v479 = vunpack.c.l.b16 %v361
        %v480 = vunpack.c.l.b16 %v362
        %v481 = vunpack.c.l.b16 %v363
        %v482 = vunpack.c.l.b16 %v364
        %v483 = vunpack.c.l.b16 %v365
        %v484 = vunpack.c.l.b16 %v366
        %v485 = vunpack.c.l.b16 %v367
        %v486 = vunpack.c.l.b16 %v368
        %v487 = vunpack.c.l.b16 %v369
        %v488 = vunpack.c.l.b16 %v370
        %v489 = vunpack.c.l.b16 %v371
        %v490 = vunpack.c.l.b16 %v372
        %v491 = vunpack.c.l.b16 %v373
        %v492 = vunpack.c.l.b16 %v374
        %v493 = vunpack.c.l.b16 %v375
        %v494 = vunpack.c.l.b16 %v376
        %v495 = vunpack.c.l.b16 %v377
        %v496 = vunpack.c.l.b16 %v378
        %v497 = vunpack.c.l.b16 %v379
        %v498 = vunpack.c.l.b16 %v380
        %v499 = vunpack.c.l.b16 %v381
        %v500 = vunpack.c.l.b16 %v382
        %v501 = vunpack.c.l.b16 %v383
        %v502 = vunpack.c.l.b16 %v384
        %v503 = vunpack.c.l.b16 %v385
        %v504 = vunpack.c.l.b16 %v386
        %v505 = vunpack.c.l.b16 %v387
        %v506 = vunpack.c.l.b16 %v388
        %v507 = vunpack.c.l.b16 %v389
        %v508 = vunpack.c.l.b16 %v390
        %v509 = vunpack.c.l.b16 %v391
        %v510 = vunpack.c.l.b16 %v392
        %v511 = vpack.c.b16 %v464, %v463
        %v512 = vpack.c.b16 %v466, %v465
        %v513 = vpack.c.b16 %v468, %v467
        %v514 = vpack.c.b16 %v470, %v469
        %v515 = vpack.c.b16 %v472, %v471
        %v516 = vpack.c.b16 %v474, %v473
        %v517 = vpack.c.b16 %v476, %v475
        %v518 = vpack.c.b16 %v478, %v477
        %v519 = vpack.c.b16 %v480, %v479
        %v520 = vpack.c.b16 %v482, %v481
        %v521 = vpack.c.b16 %v484, %v483
        %v522 = vpack.c.b16 %v486, %v485
        %v523 = vpack.c.b16 %v488, %v487
        %v524 = vpack.c.b16 %v490, %v489
        %v525 = vpack.c.b16 %v492, %v491
        %v526 = vpack.c.b16 %v494, %v493
        %v527 = vpack.c.b16 %v496, %v495
        %v528 = vpack.c.b16 %v498, %v497
        %v529 = vpack.c.b16 %v500, %v499
        %v530 = vpack.c.b16 %v502, %v501
        %v531 = vpack.c.b16 %v504, %v503
        %v532 = vpack.c.b16 %v506, %v505
        %v533 = vpack.c.b16 %v508, %v507
        %v534 = vpack.c.b16 %v510, %v509
        %v575 = vunpack.c.l.b16 %v393
        %v576 = vunpack.c.l.b16 %v394
        %v577 = vunpack.c.l.b16 %v395
        %v578 = vunpack.c.l.b16 %v396
        %v579 = vunpack.c.l.b16 %v397
        %v580 = vunpack.c.l.b16 %v398
        %v581 = vunpack.c.l.b16 %v399
        %v582 = vunpack.c.l.b16 %v400
        %v583 = vunpack.c.l.b16 %v401
        %v584 = vunpack.c.l.b16 %v402
        %v585 = vunpack.c.l.b16 %v403
        %v586 = vunpack.c.l.b16 %v404
        %v587 = vunpack.c.l.b16 %v405
        %v588 = vunpack.c.l.b16 %v406
        %v589 = vunpack.c.l.b16 %v407
        %v590 = vunpack.c.l.b16 %v408
        %v591 = vpack.c.b16 %v576, %v575
        %v592 = vpack.c.b16 %v578, %v577
        %v593 = vpack.c.b16 %v580, %v579
        %v594 = vpack.c.b16 %v582, %v581
        %v595 = vpack.c.b16 %v584, %v583
        %v596 = vpack.c.b16 %v586, %v585
        %v597 = vpack.c.b16 %v588, %v587
        %v598 = vpack.c.b16 %v590, %v589
        %607 = vmatprep.subr.bf16.mxu0 0
        %608 = vmatpush1.bf16.msra.mxu0 %v598
        %609 = vmatprep.subr.bf16.mxu0 0
        %610 = vmatpush1.bf16.msra.mxu0 %v597
        %611 = vmatprep.subr.bf16.mxu0 0
        %612 = vmatpush1.bf16.msra.mxu0 %v596
        %613 = vmatprep.subr.bf16.mxu0 0
        %614 = vmatpush1.bf16.msra.mxu0 %v595
        %615 = vmatprep.subr.bf16.mxu0 0
        %616 = vmatpush1.bf16.msra.mxu0 %v594
        %617 = vmatprep.subr.bf16.mxu0 0
        %618 = vmatpush1.bf16.msra.mxu0 %v593
        %619 = vmatprep.subr.bf16.mxu0 0
        %620 = vmatpush1.bf16.msra.mxu0 %v592
        %621 = vmatprep.subr.bf16.mxu0 0
        %622 = vmatpush1.bf16.msra.mxu0 %v591
        %623 = vmatprep.subr.bf16.mxu0 0
        %624 = vmatpush2.bf16.msra.mxu0 0
        %625 = vmatprep.subr.bf16.mxu0 0
        %626 = vmatpush2.bf16.msra.mxu0 0
        %627 = vmatprep.subr.bf16.mxu0 0
        %628 = vmatpush2.bf16.msra.mxu0 0
        %629 = vmatprep.subr.bf16.mxu0 0
        %630 = vmatpush2.bf16.msra.mxu0 0
        %631 = vmatprep.subr.bf16.mxu0 0
        %632 = vmatpush2.bf16.msra.mxu0 0
        %633 = vmatprep.subr.bf16.mxu0 0
        %634 = vmatpush2.bf16.msra.mxu0 0
        %635 = vmatprep.subr.bf16.mxu0 0
        %636 = vmatpush2.bf16.msra.mxu0 0
        %637 = vmatprep.subr.bf16.mxu0 0
        %638 = vmatpush2.bf16.msra.mxu0 0
        %639 = vmatprep.mubr.bf16.mxu0 0
        %640 = vmatmul.mubr.bf16.gmra.mxu0 %v511
        %v641 = vpop.f32.mrf.mxu0
        %v642 = vadd.f32 %v413, %v641
        %v643 = vpop.f32.mrf.mxu0
        %v644 = vpop.f32.mrf.mxu0
        %v645 = vadd.f32 %v413, %v644
        %v646 = vpop.f32.mrf.mxu0
        %647 = vmatprep.mubr.bf16.mxu0 0
        %648 = vmatmul.mubr.bf16.gmra.mxu0 %v512
        %v649 = vpop.f32.mrf.mxu0
        %v650 = vpop.f32.mrf.mxu0
        %v651 = vpop.f32.mrf.mxu0
        %v652 = vadd.f32 %v413, %v651
        %v653 = vpop.f32.mrf.mxu0
        %654 = vmatprep.mubr.bf16.mxu0 0
        %655 = vmatmul.mubr.bf16.gmra.mxu0 %v513
        %v656 = vpop.f32.mrf.mxu0
        %v657 = vadd.f32 %v413, %v656
        %v658 = vpop.f32.mrf.mxu0
        %v659 = vpop.f32.mrf.mxu0
        %v660 = vpop.f32.mrf.mxu0
        %661 = vmatprep.mubr.bf16.mxu0 0
        %662 = vmatmul.mubr.bf16.gmra.mxu0 %v514
        %v663 = vpop.f32.mrf.mxu0
        %v664 = vadd.f32 %v413, %v663
        %v665 = vpop.f32.mrf.mxu0
        %v666 = vpop.f32.mrf.mxu0
        %v667 = vadd.f32 %v413, %v666
        %v668 = vpop.f32.mrf.mxu0
        %669 = vmatprep.mubr.bf16.mxu0 0
        %670 = vmatmul.mubr.bf16.gmra.mxu0 %v515
        %v671 = vpop.f32.mrf.mxu0
        %v672 = vpop.f32.mrf.mxu0
        %v673 = vpop.f32.mrf.mxu0
        %v674 = vadd.f32 %v413, %v673
        %v675 = vpop.f32.mrf.mxu0
        %676 = vmatprep.mubr.bf16.mxu0 0
        %677 = vmatmul.mubr.bf16.gmra.mxu0 %v516
        %v678 = vpop.f32.mrf.mxu0
        %v679 = vadd.f32 %v413, %v678
        %v680 = vpop.f32.mrf.mxu0
        %v681 = vpop.f32.mrf.mxu0
        %v682 = vpop.f32.mrf.mxu0
        %683 = vmatprep.mubr.bf16.mxu0 0
        %684 = vmatmul.mubr.bf16.gmra.mxu0 %v517
        %v685 = vpop.f32.mrf.mxu0
        %v686 = vadd.f32 %v413, %v685
        %v687 = vpop.f32.mrf.mxu0
        %v688 = vpop.f32.mrf.mxu0
        %v689 = vadd.f32 %v413, %v688
        %v690 = vpop.f32.mrf.mxu0
        %691 = vmatprep.mubr.bf16.mxu0 0
        %692 = vmatmul.mubr.bf16.gmra.mxu0 %v518
        %v693 = vpop.f32.mrf.mxu0
        %v694 = vpop.f32.mrf.mxu0
        %v695 = vpop.f32.mrf.mxu0
        %v696 = vadd.f32 %v413, %v695
        %v697 = vpop.f32.mrf.mxu0
        %698 = vmatprep.mubr.bf16.mxu0 0
        %699 = vmatmul.mubr.bf16.gmra.mxu0 %v519
        %v700 = vpop.f32.mrf.mxu0
        %v701 = vadd.f32 %v413, %v700
        %v702 = vpop.f32.mrf.mxu0
        %v703 = vpop.f32.mrf.mxu0
        %v704 = vpop.f32.mrf.mxu0
        %705 = vmatprep.mubr.bf16.mxu0 0
        %706 = vmatmul.mubr.bf16.gmra.mxu0 %v520
        %v707 = vpop.f32.mrf.mxu0
        %v708 = vadd.f32 %v413, %v707
        %v709 = vpop.f32.mrf.mxu0
        %v710 = vpop.f32.mrf.mxu0
        %v711 = vadd.f32 %v413, %v710
        %v712 = vpop.f32.mrf.mxu0
        %713 = vmatprep.mubr.bf16.mxu0 0
        %714 = vmatmul.mubr.bf16.gmra.mxu0 %v521
        %v715 = vpop.f32.mrf.mxu0
        %v716 = vpop.f32.mrf.mxu0
        %v717 = vpop.f32.mrf.mxu0
        %v718 = vadd.f32 %v413, %v717
        %v719 = vpop.f32.mrf.mxu0
        %720 = vmatprep.mubr.bf16.mxu0 0
        %721 = vmatmul.mubr.bf16.gmra.mxu0 %v522
        %v722 = vpop.f32.mrf.mxu0
        %v723 = vadd.f32 %v413, %v722
        %v724 = vpop.f32.mrf.mxu0
        %v725 = vpop.f32.mrf.mxu0
        %v726 = vpop.f32.mrf.mxu0
        %727 = vmatprep.mubr.bf16.mxu0 0
        %728 = vmatmul.mubr.bf16.gmra.mxu0 %v523
        %v729 = vpop.f32.mrf.mxu0
        %v730 = vadd.f32 %v413, %v729
        %v731 = vpop.f32.mrf.mxu0
        %v732 = vpop.f32.mrf.mxu0
        %v733 = vadd.f32 %v413, %v732
        %v734 = vpop.f32.mrf.mxu0
        %735 = vmatprep.mubr.bf16.mxu0 0
        %736 = vmatmul.mubr.bf16.gmra.mxu0 %v524
        %v737 = vpop.f32.mrf.mxu0
        %v738 = vpop.f32.mrf.mxu0
        %v739 = vpop.f32.mrf.mxu0
        %v740 = vadd.f32 %v413, %v739
        %v741 = vpop.f32.mrf.mxu0
        %742 = vmatprep.mubr.bf16.mxu0 0
        %743 = vmatmul.mubr.bf16.gmra.mxu0 %v525
        %v744 = vpop.f32.mrf.mxu0
        %v745 = vadd.f32 %v413, %v744
        %v746 = vpop.f32.mrf.mxu0
        %v747 = vpop.f32.mrf.mxu0
        %v748 = vpop.f32.mrf.mxu0
        %749 = vmatprep.mubr.bf16.mxu0 0
        %750 = vmatmul.mubr.bf16.gmra.mxu0 %v526
        %v751 = vpop.f32.mrf.mxu0
        %v752 = vadd.f32 %v413, %v751
        %v753 = vpop.f32.mrf.mxu0
        %v754 = vpop.f32.mrf.mxu0
        %v755 = vadd.f32 %v413, %v754
        %v756 = vpop.f32.mrf.mxu0
        %757 = vmatprep.mubr.bf16.mxu0 0
        %758 = vmatmul.mubr.bf16.gmra.mxu0 %v527
        %v759 = vpop.f32.mrf.mxu0
        %v760 = vpop.f32.mrf.mxu0
        %v761 = vpop.f32.mrf.mxu0
        %v762 = vadd.f32 %v413, %v761
        %v763 = vpop.f32.mrf.mxu0
        %764 = vmatprep.mubr.bf16.mxu0 0
        %765 = vmatmul.mubr.bf16.gmra.mxu0 %v528
        %v766 = vpop.f32.mrf.mxu0
        %v767 = vadd.f32 %v413, %v766
        %v768 = vpop.f32.mrf.mxu0
        %v769 = vpop.f32.mrf.mxu0
        %v770 = vpop.f32.mrf.mxu0
        %771 = vmatprep.mubr.bf16.mxu0 0
        %772 = vmatmul.mubr.bf16.gmra.mxu0 %v529
        %v773 = vpop.f32.mrf.mxu0
        %v774 = vadd.f32 %v413, %v773
        %v775 = vpop.f32.mrf.mxu0
        %v776 = vpop.f32.mrf.mxu0
        %v777 = vadd.f32 %v413, %v776
        %v778 = vpop.f32.mrf.mxu0
        %779 = vmatprep.mubr.bf16.mxu0 0
        %780 = vmatmul.mubr.bf16.gmra.mxu0 %v530
        %v781 = vpop.f32.mrf.mxu0
        %v782 = vpop.f32.mrf.mxu0
        %v783 = vpop.f32.mrf.mxu0
        %v784 = vadd.f32 %v413, %v783
        %v785 = vpop.f32.mrf.mxu0
        %786 = vmatprep.mubr.bf16.mxu0 0
        %787 = vmatmul.mubr.bf16.gmra.mxu0 %v531
        %v788 = vpop.f32.mrf.mxu0
        %v789 = vadd.f32 %v413, %v788
        %v790 = vpop.f32.mrf.mxu0
        %v791 = vpop.f32.mrf.mxu0
        %v792 = vpop.f32.mrf.mxu0
        %793 = vmatprep.mubr.bf16.mxu0 0
        %794 = vmatmul.mubr.bf16.gmra.mxu0 %v532
        %v795 = vpop.f32.mrf.mxu0
        %v796 = vadd.f32 %v413, %v795
        %v797 = vpop.f32.mrf.mxu0
        %v798 = vpop.f32.mrf.mxu0
        %v799 = vadd.f32 %v413, %v798
        %v800 = vpop.f32.mrf.mxu0
        %801 = vmatprep.mubr.bf16.mxu0 0
        %802 = vmatmul.mubr.bf16.gmra.mxu0 %v533
        %v803 = vpop.f32.mrf.mxu0
        %v804 = vpop.f32.mrf.mxu0
        %v805 = vpop.f32.mrf.mxu0
        %v806 = vadd.f32 %v413, %v805
        %v807 = vpop.f32.mrf.mxu0
        %808 = vmatprep.mubr.bf16.mxu0 0
        %809 = vmatmul.mubr.bf16.gmra.mxu0 %v534
        %v810 = vpop.f32.mrf.mxu0
        %v811 = vadd.f32 %v413, %v810
        %v812 = vpop.f32.mrf.mxu0
        %v813 = vpop.f32.mrf.mxu0
        %v814 = vpop.f32.mrf.mxu0
        %815 = vdwg.mxu0
        %v816 = vmax.f32 %v642, 0.0
        %v817 = vmax.f32 %v645, 0.0
        %v818 = vmax.f32 %v652, 0.0
        %v819 = vmax.f32 %v657, 0.0
        %v820 = vmax.f32 %v664, 0.0
        %v821 = vmax.f32 %v667, 0.0
        %v822 = vmax.f32 %v674, 0.0
        %v823 = vmax.f32 %v679, 0.0
        %v824 = vmax.f32 %v686, 0.0
        %v825 = vmax.f32 %v689, 0.0
        %v826 = vmax.f32 %v696, 0.0
        %v827 = vmax.f32 %v701, 0.0
        %v828 = vmax.f32 %v708, 0.0
        %v829 = vmax.f32 %v711, 0.0
        %v830 = vmax.f32 %v718, 0.0
        %v831 = vmax.f32 %v723, 0.0
        %v832 = vmax.f32 %v730, 0.0
        %v833 = vmax.f32 %v733, 0.0
        %v834 = vmax.f32 %v740, 0.0
        %v835 = vmax.f32 %v745, 0.0
        %v836 = vmax.f32 %v752, 0.0
        %v837 = vmax.f32 %v755, 0.0
        %v838 = vmax.f32 %v762, 0.0
        %v839 = vmax.f32 %v767, 0.0
        %v840 = vmax.f32 %v774, 0.0
        %v841 = vmax.f32 %v777, 0.0
        %v842 = vmax.f32 %v784, 0.0
        %v843 = vmax.f32 %v789, 0.0
        %v844 = vmax.f32 %v796, 0.0
        %v845 = vmax.f32 %v799, 0.0
        %v846 = vmax.f32 %v806, 0.0
        %v847 = vmax.f32 %v811, 0.0
        %848 = vst [vmem:[#allocation2] sm:$0xf] 0
        %849 = vst [vmem:[#allocation2 + $0x4] sm:$0xf] 0
        %850 = vst [vmem:[#allocation2 + $0x8] sm:$0xf] 0
        %s851 = scalar_lea.vmem [#allocation2], 204
        %852 = vst [vmem:[%s851] sm:$0xf] 0
        %853 = vst [vmem:[%s851 + $0x4] sm:$0xf] 0
        %854 = vst [vmem:[%s851 + $0x8] sm:$0xf] 0
        %855 = vst [vmem:[#allocation3] sm:$0xf] 0
        %856 = vst [vmem:[#allocation3 + $0x4] sm:$0xf] 0
        %857 = vst [vmem:[#allocation3 + $0x8] sm:$0xf] 0
        %s858 = scalar_lea.vmem [#allocation3], 204
        %859 = vst [vmem:[%s858] sm:$0xf] 0
        %860 = vst [vmem:[%s858 + $0x4] sm:$0xf] 0
        %861 = vst [vmem:[%s858 + $0x8] sm:$0xf] 0
        %862 = vst [vmem:[#allocation4] sm:$0xf] 0
        %863 = vst [vmem:[#allocation4 + $0x4] sm:$0xf] 0
        %864 = vst [vmem:[#allocation4 + $0x8] sm:$0xf] 0
        %s865 = scalar_lea.vmem [#allocation4], 204
        %866 = vst [vmem:[%s865] sm:$0xf] 0
        %867 = vst [vmem:[%s865 + $0x4] sm:$0xf] 0
        %868 = vst [vmem:[%s865 + $0x8] sm:$0xf] 0
        %vm901 = vcmask 1040384
        %v902 = vrot.slane %v816, 7
        %v903 = vrot.slane %v817, 7
        %v904 = vsel %vm901, %v902, %v903
        %v905 = vrot.slane %v818, 7
        %v906 = vrot.slane %v819, 7
        %v907 = vsel %vm901, %v905, %v906
        %v908 = vrot.slane %v820, 7
        %v909 = vrot.slane %v821, 7
        %v910 = vsel %vm901, %v908, %v909
        %v911 = vrot.slane %v822, 7
        %v912 = vrot.slane %v823, 7
        %v913 = vsel %vm901, %v911, %v912
        %v914 = vrot.slane %v824, 7
        %v915 = vrot.slane %v825, 7
        %v916 = vsel %vm901, %v914, %v915
        %v917 = vrot.slane %v826, 7
        %v918 = vrot.slane %v827, 7
        %v919 = vsel %vm901, %v917, %v918
        %v920 = vrot.slane %v828, 7
        %v921 = vrot.slane %v829, 7
        %v922 = vsel %vm901, %v920, %v921
        %v923 = vrot.slane %v830, 7
        %v924 = vrot.slane %v831, 7
        %v925 = vsel %vm901, %v923, %v924
        %v926 = vrot.slane %v832, 7
        %v927 = vrot.slane %v833, 7
        %v928 = vsel %vm901, %v926, %v927
        %v929 = vrot.slane %v834, 7
        %v930 = vrot.slane %v835, 7
        %v931 = vsel %vm901, %v929, %v930
        %v932 = vrot.slane %v836, 7
        %v933 = vrot.slane %v837, 7
        %v934 = vsel %vm901, %v932, %v933
        %v935 = vrot.slane %v838, 7
        %v936 = vrot.slane %v839, 7
        %v937 = vsel %vm901, %v935, %v936
        %v938 = vrot.slane %v840, 7
        %v939 = vrot.slane %v841, 7
        %v940 = vsel %vm901, %v938, %v939
        %v941 = vrot.slane %v842, 7
        %v942 = vrot.slane %v843, 7
        %v943 = vsel %vm901, %v941, %v942
        %v944 = vrot.slane %v844, 7
        %v945 = vrot.slane %v845, 7
        %v946 = vsel %vm901, %v944, %v945
        %v947 = vrot.slane %v846, 7
        %v948 = vrot.slane %v847, 7
        %v949 = vsel %vm901, %v947, %v948
        %v998 = vsel %vm901, 0.0, %v902
        %v999 = vsel %vm901, 0.0, %v905
        %v1000 = vsel %vm901, 0.0, %v908
        %v1001 = vsel %vm901, 0.0, %v911
        %v1002 = vsel %vm901, 0.0, %v914
        %v1003 = vsel %vm901, 0.0, %v917
        %v1004 = vsel %vm901, 0.0, %v920
        %v1005 = vsel %vm901, 0.0, %v923
        %v1006 = vsel %vm901, 0.0, %v926
        %v1007 = vsel %vm901, 0.0, %v929
        %v1008 = vsel %vm901, 0.0, %v932
        %v1009 = vsel %vm901, 0.0, %v935
        %v1010 = vsel %vm901, 0.0, %v938
        %v1011 = vsel %vm901, 0.0, %v941
        %v1012 = vsel %vm901, 0.0, %v944
        %v1013 = vsel %vm901, 0.0, %v947
        %v1014 = vsel %vm901, %v903, 0.0
        %v1015 = vsel %vm901, %v906, 0.0
        %v1016 = vsel %vm901, %v909, 0.0
        %v1017 = vsel %vm901, %v912, 0.0
        %v1018 = vsel %vm901, %v915, 0.0
        %v1019 = vsel %vm901, %v918, 0.0
        %v1020 = vsel %vm901, %v921, 0.0
        %v1021 = vsel %vm901, %v924, 0.0
        %v1022 = vsel %vm901, %v927, 0.0
        %v1023 = vsel %vm901, %v930, 0.0
        %v1024 = vsel %vm901, %v933, 0.0
        %v1025 = vsel %vm901, %v936, 0.0
        %v1026 = vsel %vm901, %v939, 0.0
        %v1027 = vsel %vm901, %v942, 0.0
        %v1028 = vsel %vm901, %v945, 0.0
        %v1029 = vsel %vm901, %v948, 0.0
        %vm1030 = vcmask 1046528
        %v1031 = vrot.slane %v816, 1
        %v1032 = vrot.slane %v817, 1
        %v1033 = vsel %vm1030, %v1031, %v1032
        %v1034 = vrot.slane %v818, 1
        %v1035 = vrot.slane %v819, 1
        %v1036 = vsel %vm1030, %v1034, %v1035
        %v1037 = vrot.slane %v820, 1
        %v1038 = vrot.slane %v821, 1
        %v1039 = vsel %vm1030, %v1037, %v1038
        %v1040 = vrot.slane %v822, 1
        %v1041 = vrot.slane %v823, 1
        %v1042 = vsel %vm1030, %v1040, %v1041
        %v1043 = vrot.slane %v824, 1
        %v1044 = vrot.slane %v825, 1
        %v1045 = vsel %vm1030, %v1043, %v1044
        %v1046 = vrot.slane %v826, 1
        %v1047 = vrot.slane %v827, 1
        %v1048 = vsel %vm1030, %v1046, %v1047
        %v1049 = vrot.slane %v828, 1
        %v1050 = vrot.slane %v829, 1
        %v1051 = vsel %vm1030, %v1049, %v1050
        %v1052 = vrot.slane %v830, 1
        %v1053 = vrot.slane %v831, 1
        %v1054 = vsel %vm1030, %v1052, %v1053
        %v1055 = vrot.slane %v832, 1
        %v1056 = vrot.slane %v833, 1
        %v1057 = vsel %vm1030, %v1055, %v1056
        %v1058 = vrot.slane %v834, 1
        %v1059 = vrot.slane %v835, 1
        %v1060 = vsel %vm1030, %v1058, %v1059
        %v1061 = vrot.slane %v836, 1
        %v1062 = vrot.slane %v837, 1
        %v1063 = vsel %vm1030, %v1061, %v1062
        %v1064 = vrot.slane %v838, 1
        %v1065 = vrot.slane %v839, 1
        %v1066 = vsel %vm1030, %v1064, %v1065
        %v1067 = vrot.slane %v840, 1
        %v1068 = vrot.slane %v841, 1
        %v1069 = vsel %vm1030, %v1067, %v1068
        %v1070 = vrot.slane %v842, 1
        %v1071 = vrot.slane %v843, 1
        %v1072 = vsel %vm1030, %v1070, %v1071
        %v1073 = vrot.slane %v844, 1
        %v1074 = vrot.slane %v845, 1
        %v1075 = vsel %vm1030, %v1073, %v1074
        %v1076 = vrot.slane %v846, 1
        %v1077 = vrot.slane %v847, 1
        %v1078 = vsel %vm1030, %v1076, %v1077
        %v1111 = vsel %vm1030, %v1032, 0.0
        %v1112 = vsel %vm1030, %v1035, 0.0
        %v1113 = vsel %vm1030, %v1038, 0.0
        %v1114 = vsel %vm1030, %v1041, 0.0
        %v1115 = vsel %vm1030, %v1044, 0.0
        %v1116 = vsel %vm1030, %v1047, 0.0
        %v1117 = vsel %vm1030, %v1050, 0.0
        %v1118 = vsel %vm1030, %v1053, 0.0
        %v1119 = vsel %vm1030, %v1056, 0.0
        %v1120 = vsel %vm1030, %v1059, 0.0
        %v1121 = vsel %vm1030, %v1062, 0.0
        %v1122 = vsel %vm1030, %v1065, 0.0
        %v1123 = vsel %vm1030, %v1068, 0.0
        %v1124 = vsel %vm1030, %v1071, 0.0
        %v1125 = vsel %vm1030, %v1074, 0.0
        %v1126 = vsel %vm1030, %v1077, 0.0
        %v1127 = vpack.c.bf16 %v817, %v816
        %v1128 = vpack.c.bf16 0.0, 0.0
        %v1129 = vpack.c.bf16 %v819, %v818
        %v1130 = vpack.c.bf16 %v821, %v820
        %v1131 = vpack.c.bf16 %v823, %v822
        %v1132 = vpack.c.bf16 %v825, %v824
        %v1133 = vpack.c.bf16 %v827, %v826
        %v1134 = vpack.c.bf16 %v829, %v828
        %v1135 = vpack.c.bf16 %v831, %v830
        %v1136 = vpack.c.bf16 %v833, %v832
        %v1137 = vpack.c.bf16 %v835, %v834
        %v1138 = vpack.c.bf16 %v837, %v836
        %v1139 = vpack.c.bf16 %v839, %v838
        %v1140 = vpack.c.bf16 %v841, %v840
        %v1141 = vpack.c.bf16 %v843, %v842
        %v1142 = vpack.c.bf16 %v845, %v844
        %v1143 = vpack.c.bf16 %v847, %v846
        %v1161 = vunpack.c.l.b16 %v1127
        %v1162 = vunpack.c.h.b16 %v1127
        %v1163 = vunpack.c.l.b16 %v1128
        %v1164 = vunpack.c.l.b16 %v1129
        %v1165 = vunpack.c.h.b16 %v1129
        %v1166 = vunpack.c.l.b16 %v1130
        %v1167 = vunpack.c.h.b16 %v1130
        %v1168 = vunpack.c.l.b16 %v1131
        %v1169 = vunpack.c.h.b16 %v1131
        %v1170 = vunpack.c.l.b16 %v1132
        %v1171 = vunpack.c.h.b16 %v1132
        %v1172 = vunpack.c.l.b16 %v1133
        %v1173 = vunpack.c.h.b16 %v1133
        %v1174 = vunpack.c.l.b16 %v1134
        %v1175 = vunpack.c.h.b16 %v1134
        %v1176 = vunpack.c.l.b16 %v1135
        %v1177 = vunpack.c.h.b16 %v1135
        %v1178 = vunpack.c.l.b16 %v1136
        %v1179 = vunpack.c.h.b16 %v1136
        %v1180 = vunpack.c.l.b16 %v1137
        %v1181 = vunpack.c.h.b16 %v1137
        %v1182 = vunpack.c.l.b16 %v1138
        %v1183 = vunpack.c.h.b16 %v1138
        %v1184 = vunpack.c.l.b16 %v1139
        %v1185 = vunpack.c.h.b16 %v1139
        %v1186 = vunpack.c.l.b16 %v1140
        %v1187 = vunpack.c.h.b16 %v1140
        %v1188 = vunpack.c.l.b16 %v1141
        %v1189 = vunpack.c.h.b16 %v1141
        %v1190 = vunpack.c.l.b16 %v1142
        %v1191 = vunpack.c.h.b16 %v1142
        %v1192 = vunpack.c.l.b16 %v1143
        %v1193 = vunpack.c.h.b16 %v1143
        %v1194 = vpack.c.b16 %v1161, %v1161
        %v1195 = vpack.c.b16 %v1162, %v1162
        %v1196 = vpack.c.b16 %v1163, %v1163
        %v1197 = vpack.c.b16 %v1164, %v1164
        %v1198 = vpack.c.b16 %v1165, %v1165
        %v1199 = vpack.c.b16 %v1166, %v1166
        %v1200 = vpack.c.b16 %v1167, %v1167
        %v1201 = vpack.c.b16 %v1168, %v1168
        %v1202 = vpack.c.b16 %v1169, %v1169
        %v1203 = vpack.c.b16 %v1170, %v1170
        %v1204 = vpack.c.b16 %v1171, %v1171
        %v1205 = vpack.c.b16 %v1172, %v1172
        %v1206 = vpack.c.b16 %v1173, %v1173
        %v1207 = vpack.c.b16 %v1174, %v1174
        %v1208 = vpack.c.b16 %v1175, %v1175
        %v1209 = vpack.c.b16 %v1176, %v1176
        %v1210 = vpack.c.b16 %v1177, %v1177
        %v1211 = vpack.c.b16 %v1178, %v1178
        %v1212 = vpack.c.b16 %v1179, %v1179
        %v1213 = vpack.c.b16 %v1180, %v1180
        %v1214 = vpack.c.b16 %v1181, %v1181
        %v1215 = vpack.c.b16 %v1182, %v1182
        %v1216 = vpack.c.b16 %v1183, %v1183
        %v1217 = vpack.c.b16 %v1184, %v1184
        %v1218 = vpack.c.b16 %v1185, %v1185
        %v1219 = vpack.c.b16 %v1186, %v1186
        %v1220 = vpack.c.b16 %v1187, %v1187
        %v1221 = vpack.c.b16 %v1188, %v1188
        %v1222 = vpack.c.b16 %v1189, %v1189
        %v1223 = vpack.c.b16 %v1190, %v1190
        %v1224 = vpack.c.b16 %v1191, %v1191
        %v1225 = vpack.c.b16 %v1192, %v1192
        %v1226 = vpack.c.b16 %v1193, %v1193
        %s1260 = scalar_lea.vmem [#allocation2], 12
        %1261 = vst [vmem:[%s1260] sm:$0xf] %v1194
        %1262 = vst [vmem:[%s1260 + $0x4] sm:$0xf] %v1195
        %1263 = vst [vmem:[%s1260 + $0x8] sm:$0xf] %v1196
        %1264 = vst [vmem:[%s1260 + $0xc] sm:$0xf] %v1197
        %1265 = vst [vmem:[%s1260 + $0x10] sm:$0xf] %v1198
        %1266 = vst [vmem:[%s1260 + $0x14] sm:$0xf] %v1196
        %1267 = vst [vmem:[%s1260 + $0x18] sm:$0xf] %v1199
        %1268 = vst [vmem:[%s1260 + $0x1c] sm:$0xf] %v1200
        %1269 = vst [vmem:[%s1260 + $0x20] sm:$0xf] %v1196
        %1270 = vst [vmem:[%s1260 + $0x24] sm:$0xf] %v1201
        %1271 = vst [vmem:[%s1260 + $0x28] sm:$0xf] %v1202
        %1272 = vst [vmem:[%s1260 + $0x2c] sm:$0xf] %v1196
        %1273 = vst [vmem:[%s1260 + $0x30] sm:$0xf] %v1203
        %1274 = vst [vmem:[%s1260 + $0x34] sm:$0xf] %v1204
        %1275 = vst [vmem:[%s1260 + $0x38] sm:$0xf] %v1196
        %1276 = vst [vmem:[%s1260 + $0x3c] sm:$0xf] %v1205
        %1277 = vst [vmem:[%s1260 + $0x40] sm:$0xf] %v1206
        %1278 = vst [vmem:[%s1260 + $0x44] sm:$0xf] %v1196
        %1279 = vst [vmem:[%s1260 + $0x48] sm:$0xf] %v1207
        %1280 = vst [vmem:[%s1260 + $0x4c] sm:$0xf] %v1208
        %1281 = vst [vmem:[%s1260 + $0x50] sm:$0xf] %v1196
        %1282 = vst [vmem:[%s1260 + $0x54] sm:$0xf] %v1209
        %1283 = vst [vmem:[%s1260 + $0x58] sm:$0xf] %v1210
        %1284 = vst [vmem:[%s1260 + $0x5c] sm:$0xf] %v1196
        %1285 = vst [vmem:[%s1260 + $0x60] sm:$0xf] %v1211
        %1286 = vst [vmem:[%s1260 + $0x64] sm:$0xf] %v1212
        %1287 = vst [vmem:[%s1260 + $0x68] sm:$0xf] %v1196
        %1288 = vst [vmem:[%s1260 + $0x6c] sm:$0xf] %v1213
        %1289 = vst [vmem:[%s1260 + $0x70] sm:$0xf] %v1214
        %1290 = vst [vmem:[%s1260 + $0x74] sm:$0xf] %v1196
        %1291 = vst [vmem:[%s1260 + $0x78] sm:$0xf] %v1215
        %1292 = vst [vmem:[%s1260 + $0x7c] sm:$0xf] %v1216
        %1293 = vst [vmem:[%s1260 + $0x80] sm:$0xf] %v1196
        %1294 = vst [vmem:[%s1260 + $0x84] sm:$0xf] %v1217
        %1295 = vst [vmem:[%s1260 + $0x88] sm:$0xf] %v1218
        %1296 = vst [vmem:[%s1260 + $0x8c] sm:$0xf] %v1196
        %1297 = vst [vmem:[%s1260 + $0x90] sm:$0xf] %v1219
        %1298 = vst [vmem:[%s1260 + $0x94] sm:$0xf] %v1220
        %1299 = vst [vmem:[%s1260 + $0x98] sm:$0xf] %v1196
        %1300 = vst [vmem:[%s1260 + $0x9c] sm:$0xf] %v1221
        %1301 = vst [vmem:[%s1260 + $0xa0] sm:$0xf] %v1222
        %1302 = vst [vmem:[%s1260 + $0xa4] sm:$0xf] %v1196
        %1303 = vst [vmem:[%s1260 + $0xa8] sm:$0xf] %v1223
        %1304 = vst [vmem:[%s1260 + $0xac] sm:$0xf] %v1224
        %1305 = vst [vmem:[%s1260 + $0xb0] sm:$0xf] %v1196
        %1306 = vst [vmem:[%s1260 + $0xb4] sm:$0xf] %v1225
        %1307 = vst [vmem:[%s1260 + $0xb8] sm:$0xf] %v1226
        %1308 = vst [vmem:[%s1260 + $0xbc] sm:$0xf] %v1196
        %v1309 = vpack.c.bf16 %v904, %v998
        %v1310 = vpack.c.bf16 %v1014, %v1014
        %v1311 = vpack.c.bf16 %v907, %v999
        %v1312 = vpack.c.bf16 %v1015, %v1015
        %v1313 = vpack.c.bf16 %v910, %v1000
        %v1314 = vpack.c.bf16 %v1016, %v1016
        %v1315 = vpack.c.bf16 %v913, %v1001
        %v1316 = vpack.c.bf16 %v1017, %v1017
        %v1317 = vpack.c.bf16 %v916, %v1002
        %v1318 = vpack.c.bf16 %v1018, %v1018
        %v1319 = vpack.c.bf16 %v919, %v1003
        %v1320 = vpack.c.bf16 %v1019, %v1019
        %v1321 = vpack.c.bf16 %v922, %v1004
        %v1322 = vpack.c.bf16 %v1020, %v1020
        %v1323 = vpack.c.bf16 %v925, %v1005
        %v1324 = vpack.c.bf16 %v1021, %v1021
        %v1325 = vpack.c.bf16 %v928, %v1006
        %v1326 = vpack.c.bf16 %v1022, %v1022
        %v1327 = vpack.c.bf16 %v931, %v1007
        %v1328 = vpack.c.bf16 %v1023, %v1023
        %v1329 = vpack.c.bf16 %v934, %v1008
        %v1330 = vpack.c.bf16 %v1024, %v1024
        %v1331 = vpack.c.bf16 %v937, %v1009
        %v1332 = vpack.c.bf16 %v1025, %v1025
        %v1333 = vpack.c.bf16 %v940, %v1010
        %v1334 = vpack.c.bf16 %v1026, %v1026
        %v1335 = vpack.c.bf16 %v943, %v1011
        %v1336 = vpack.c.bf16 %v1027, %v1027
        %v1337 = vpack.c.bf16 %v946, %v1012
        %v1338 = vpack.c.bf16 %v1028, %v1028
        %v1339 = vpack.c.bf16 %v949, %v1013
        %v1340 = vpack.c.bf16 %v1029, %v1029
        %v1373 = vunpack.c.l.b16 %v1309
        %v1374 = vunpack.c.h.b16 %v1309
        %v1375 = vunpack.c.l.b16 %v1310
        %v1376 = vunpack.c.l.b16 %v1311
        %v1377 = vunpack.c.h.b16 %v1311
        %v1378 = vunpack.c.l.b16 %v1312
        %v1379 = vunpack.c.l.b16 %v1313
        %v1380 = vunpack.c.h.b16 %v1313
        %v1381 = vunpack.c.l.b16 %v1314
        %v1382 = vunpack.c.l.b16 %v1315
        %v1383 = vunpack.c.h.b16 %v1315
        %v1384 = vunpack.c.l.b16 %v1316
        %v1385 = vunpack.c.l.b16 %v1317
        %v1386 = vunpack.c.h.b16 %v1317
        %v1387 = vunpack.c.l.b16 %v1318
        %v1388 = vunpack.c.l.b16 %v1319
        %v1389 = vunpack.c.h.b16 %v1319
        %v1390 = vunpack.c.l.b16 %v1320
        %v1391 = vunpack.c.l.b16 %v1321
        %v1392 = vunpack.c.h.b16 %v1321
        %v1393 = vunpack.c.l.b16 %v1322
        %v1394 = vunpack.c.l.b16 %v1323
        %v1395 = vunpack.c.h.b16 %v1323
        %v1396 = vunpack.c.l.b16 %v1324
        %v1397 = vunpack.c.l.b16 %v1325
        %v1398 = vunpack.c.h.b16 %v1325
        %v1399 = vunpack.c.l.b16 %v1326
        %v1400 = vunpack.c.l.b16 %v1327
        %v1401 = vunpack.c.h.b16 %v1327
        %v1402 = vunpack.c.l.b16 %v1328
        %v1403 = vunpack.c.l.b16 %v1329
        %v1404 = vunpack.c.h.b16 %v1329
        %v1405 = vunpack.c.l.b16 %v1330
        %v1406 = vunpack.c.l.b16 %v1331
        %v1407 = vunpack.c.h.b16 %v1331
        %v1408 = vunpack.c.l.b16 %v1332
        %v1409 = vunpack.c.l.b16 %v1333
        %v1410 = vunpack.c.h.b16 %v1333
        %v1411 = vunpack.c.l.b16 %v1334
        %v1412 = vunpack.c.l.b16 %v1335
        %v1413 = vunpack.c.h.b16 %v1335
        %v1414 = vunpack.c.l.b16 %v1336
        %v1415 = vunpack.c.l.b16 %v1337
        %v1416 = vunpack.c.h.b16 %v1337
        %v1417 = vunpack.c.l.b16 %v1338
        %v1418 = vunpack.c.l.b16 %v1339
        %v1419 = vunpack.c.h.b16 %v1339
        %v1420 = vunpack.c.l.b16 %v1340
        %v1421 = vpack.c.b16 %v1373, %v1373
        %v1422 = vpack.c.b16 %v1374, %v1374
        %v1423 = vpack.c.b16 %v1375, %v1375
        %v1424 = vpack.c.b16 %v1376, %v1376
        %v1425 = vpack.c.b16 %v1377, %v1377
        %v1426 = vpack.c.b16 %v1378, %v1378
        %v1427 = vpack.c.b16 %v1379, %v1379
        %v1428 = vpack.c.b16 %v1380, %v1380
        %v1429 = vpack.c.b16 %v1381, %v1381
        %v1430 = vpack.c.b16 %v1382, %v1382
        %v1431 = vpack.c.b16 %v1383, %v1383
        %v1432 = vpack.c.b16 %v1384, %v1384
        %v1433 = vpack.c.b16 %v1385, %v1385
        %v1434 = vpack.c.b16 %v1386, %v1386
        %v1435 = vpack.c.b16 %v1387, %v1387
        %v1436 = vpack.c.b16 %v1388, %v1388
        %v1437 = vpack.c.b16 %v1389, %v1389
        %v1438 = vpack.c.b16 %v1390, %v1390
        %v1439 = vpack.c.b16 %v1391, %v1391
        %v1440 = vpack.c.b16 %v1392, %v1392
        %v1441 = vpack.c.b16 %v1393, %v1393
        %v1442 = vpack.c.b16 %v1394, %v1394
        %v1443 = vpack.c.b16 %v1395, %v1395
        %v1444 = vpack.c.b16 %v1396, %v1396
        %v1445 = vpack.c.b16 %v1397, %v1397
        %v1446 = vpack.c.b16 %v1398, %v1398
        %v1447 = vpack.c.b16 %v1399, %v1399
        %v1448 = vpack.c.b16 %v1400, %v1400
        %v1449 = vpack.c.b16 %v1401, %v1401
        %v1450 = vpack.c.b16 %v1402, %v1402
        %v1451 = vpack.c.b16 %v1403, %v1403
        %v1452 = vpack.c.b16 %v1404, %v1404
        %v1453 = vpack.c.b16 %v1405, %v1405
        %v1454 = vpack.c.b16 %v1406, %v1406
        %v1455 = vpack.c.b16 %v1407, %v1407
        %v1456 = vpack.c.b16 %v1408, %v1408
        %v1457 = vpack.c.b16 %v1409, %v1409
        %v1458 = vpack.c.b16 %v1410, %v1410
        %v1459 = vpack.c.b16 %v1411, %v1411
        %v1460 = vpack.c.b16 %v1412, %v1412
        %v1461 = vpack.c.b16 %v1413, %v1413
        %v1462 = vpack.c.b16 %v1414, %v1414
        %v1463 = vpack.c.b16 %v1415, %v1415
        %v1464 = vpack.c.b16 %v1416, %v1416
        %v1465 = vpack.c.b16 %v1417, %v1417
        %v1466 = vpack.c.b16 %v1418, %v1418
        %v1467 = vpack.c.b16 %v1419, %v1419
        %v1468 = vpack.c.b16 %v1420, %v1420
        %s1517 = scalar_lea.vmem [#allocation3], 12
        %1518 = vst [vmem:[%s1517] sm:$0xf] %v1421
        %1519 = vst [vmem:[%s1517 + $0x4] sm:$0xf] %v1422
        %1520 = vst [vmem:[%s1517 + $0x8] sm:$0xf] %v1423
        %1521 = vst [vmem:[%s1517 + $0xc] sm:$0xf] %v1424
        %1522 = vst [vmem:[%s1517 + $0x10] sm:$0xf] %v1425
        %1523 = vst [vmem:[%s1517 + $0x14] sm:$0xf] %v1426
        %1524 = vst [vmem:[%s1517 + $0x18] sm:$0xf] %v1427
        %1525 = vst [vmem:[%s1517 + $0x1c] sm:$0xf] %v1428
        %1526 = vst [vmem:[%s1517 + $0x20] sm:$0xf] %v1429
        %1527 = vst [vmem:[%s1517 + $0x24] sm:$0xf] %v1430
        %1528 = vst [vmem:[%s1517 + $0x28] sm:$0xf] %v1431
        %1529 = vst [vmem:[%s1517 + $0x2c] sm:$0xf] %v1432
        %1530 = vst [vmem:[%s1517 + $0x30] sm:$0xf] %v1433
        %1531 = vst [vmem:[%s1517 + $0x34] sm:$0xf] %v1434
        %1532 = vst [vmem:[%s1517 + $0x38] sm:$0xf] %v1435
        %1533 = vst [vmem:[%s1517 + $0x3c] sm:$0xf] %v1436
        %1534 = vst [vmem:[%s1517 + $0x40] sm:$0xf] %v1437
        %1535 = vst [vmem:[%s1517 + $0x44] sm:$0xf] %v1438
        %1536 = vst [vmem:[%s1517 + $0x48] sm:$0xf] %v1439
        %1537 = vst [vmem:[%s1517 + $0x4c] sm:$0xf] %v1440
        %1538 = vst [vmem:[%s1517 + $0x50] sm:$0xf] %v1441
        %1539 = vst [vmem:[%s1517 + $0x54] sm:$0xf] %v1442
        %1540 = vst [vmem:[%s1517 + $0x58] sm:$0xf] %v1443
        %1541 = vst [vmem:[%s1517 + $0x5c] sm:$0xf] %v1444
        %1542 = vst [vmem:[%s1517 + $0x60] sm:$0xf] %v1445
        %1543 = vst [vmem:[%s1517 + $0x64] sm:$0xf] %v1446
        %1544 = vst [vmem:[%s1517 + $0x68] sm:$0xf] %v1447
        %1545 = vst [vmem:[%s1517 + $0x6c] sm:$0xf] %v1448
        %1546 = vst [vmem:[%s1517 + $0x70] sm:$0xf] %v1449
        %1547 = vst [vmem:[%s1517 + $0x74] sm:$0xf] %v1450
        %1548 = vst [vmem:[%s1517 + $0x78] sm:$0xf] %v1451
        %1549 = vst [vmem:[%s1517 + $0x7c] sm:$0xf] %v1452
        %1550 = vst [vmem:[%s1517 + $0x80] sm:$0xf] %v1453
        %1551 = vst [vmem:[%s1517 + $0x84] sm:$0xf] %v1454
        %1552 = vst [vmem:[%s1517 + $0x88] sm:$0xf] %v1455
        %1553 = vst [vmem:[%s1517 + $0x8c] sm:$0xf] %v1456
        %1554 = vst [vmem:[%s1517 + $0x90] sm:$0xf] %v1457
        %1555 = vst [vmem:[%s1517 + $0x94] sm:$0xf] %v1458
        %1556 = vst [vmem:[%s1517 + $0x98] sm:$0xf] %v1459
        %1557 = vst [vmem:[%s1517 + $0x9c] sm:$0xf] %v1460
        %1558 = vst [vmem:[%s1517 + $0xa0] sm:$0xf] %v1461
        %1559 = vst [vmem:[%s1517 + $0xa4] sm:$0xf] %v1462
        %1560 = vst [vmem:[%s1517 + $0xa8] sm:$0xf] %v1463
        %1561 = vst [vmem:[%s1517 + $0xac] sm:$0xf] %v1464
        %1562 = vst [vmem:[%s1517 + $0xb0] sm:$0xf] %v1465
        %1563 = vst [vmem:[%s1517 + $0xb4] sm:$0xf] %v1466
        %1564 = vst [vmem:[%s1517 + $0xb8] sm:$0xf] %v1467
        %1565 = vst [vmem:[%s1517 + $0xbc] sm:$0xf] %v1468
        %v1566 = vpack.c.bf16 %v1111, %v1033
        %v1567 = vpack.c.bf16 %v1112, %v1036
        %v1568 = vpack.c.bf16 %v1113, %v1039
        %v1569 = vpack.c.bf16 %v1114, %v1042
        %v1570 = vpack.c.bf16 %v1115, %v1045
        %v1571 = vpack.c.bf16 %v1116, %v1048
        %v1572 = vpack.c.bf16 %v1117, %v1051
        %v1573 = vpack.c.bf16 %v1118, %v1054
        %v1574 = vpack.c.bf16 %v1119, %v1057
        %v1575 = vpack.c.bf16 %v1120, %v1060
        %v1576 = vpack.c.bf16 %v1121, %v1063
        %v1577 = vpack.c.bf16 %v1122, %v1066
        %v1578 = vpack.c.bf16 %v1123, %v1069
        %v1579 = vpack.c.bf16 %v1124, %v1072
        %v1580 = vpack.c.bf16 %v1125, %v1075
        %v1581 = vpack.c.bf16 %v1126, %v1078
        %v1598 = vunpack.c.l.b16 %v1566
        %v1599 = vunpack.c.h.b16 %v1566
        %v1600 = vunpack.c.l.b16 %v1567
        %v1601 = vunpack.c.h.b16 %v1567
        %v1602 = vunpack.c.l.b16 %v1568
        %v1603 = vunpack.c.h.b16 %v1568
        %v1604 = vunpack.c.l.b16 %v1569
        %v1605 = vunpack.c.h.b16 %v1569
        %v1606 = vunpack.c.l.b16 %v1570
        %v1607 = vunpack.c.h.b16 %v1570
        %v1608 = vunpack.c.l.b16 %v1571
        %v1609 = vunpack.c.h.b16 %v1571
        %v1610 = vunpack.c.l.b16 %v1572
        %v1611 = vunpack.c.h.b16 %v1572
        %v1612 = vunpack.c.l.b16 %v1573
        %v1613 = vunpack.c.h.b16 %v1573
        %v1614 = vunpack.c.l.b16 %v1574
        %v1615 = vunpack.c.h.b16 %v1574
        %v1616 = vunpack.c.l.b16 %v1575
        %v1617 = vunpack.c.h.b16 %v1575
        %v1618 = vunpack.c.l.b16 %v1576
        %v1619 = vunpack.c.h.b16 %v1576
        %v1620 = vunpack.c.l.b16 %v1577
        %v1621 = vunpack.c.h.b16 %v1577
        %v1622 = vunpack.c.l.b16 %v1578
        %v1623 = vunpack.c.h.b16 %v1578
        %v1624 = vunpack.c.l.b16 %v1579
        %v1625 = vunpack.c.h.b16 %v1579
        %v1626 = vunpack.c.l.b16 %v1580
        %v1627 = vunpack.c.h.b16 %v1580
        %v1628 = vunpack.c.l.b16 %v1581
        %v1629 = vunpack.c.h.b16 %v1581
        %v1630 = vpack.c.b16 %v1598, %v1598
        %v1631 = vpack.c.b16 %v1599, %v1599
        %v1632 = vpack.c.b16 %v1600, %v1600
        %v1633 = vpack.c.b16 %v1601, %v1601
        %v1634 = vpack.c.b16 %v1602, %v1602
        %v1635 = vpack.c.b16 %v1603, %v1603
        %v1636 = vpack.c.b16 %v1604, %v1604
        %v1637 = vpack.c.b16 %v1605, %v1605
        %v1638 = vpack.c.b16 %v1606, %v1606
        %v1639 = vpack.c.b16 %v1607, %v1607
        %v1640 = vpack.c.b16 %v1608, %v1608
        %v1641 = vpack.c.b16 %v1609, %v1609
        %v1642 = vpack.c.b16 %v1610, %v1610
        %v1643 = vpack.c.b16 %v1611, %v1611
        %v1644 = vpack.c.b16 %v1612, %v1612
        %v1645 = vpack.c.b16 %v1613, %v1613
        %v1646 = vpack.c.b16 %v1614, %v1614
        %v1647 = vpack.c.b16 %v1615, %v1615
        %v1648 = vpack.c.b16 %v1616, %v1616
        %v1649 = vpack.c.b16 %v1617, %v1617
        %v1650 = vpack.c.b16 %v1618, %v1618
        %v1651 = vpack.c.b16 %v1619, %v1619
        %v1652 = vpack.c.b16 %v1620, %v1620
        %v1653 = vpack.c.b16 %v1621, %v1621
        %v1654 = vpack.c.b16 %v1622, %v1622
        %v1655 = vpack.c.b16 %v1623, %v1623
        %v1656 = vpack.c.b16 %v1624, %v1624
        %v1657 = vpack.c.b16 %v1625, %v1625
        %v1658 = vpack.c.b16 %v1626, %v1626
        %v1659 = vpack.c.b16 %v1627, %v1627
        %v1660 = vpack.c.b16 %v1628, %v1628
        %v1661 = vpack.c.b16 %v1629, %v1629
        %s1694 = scalar_lea.vmem [#allocation4], 12
        %1695 = vst [vmem:[%s1694] sm:$0xf] %v1630
        %1696 = vst [vmem:[%s1694 + $0x4] sm:$0xf] %v1631
        %1697 = vst [vmem:[%s1694 + $0x8] sm:$0xf] %v1196
        %1698 = vst [vmem:[%s1694 + $0xc] sm:$0xf] %v1632
        %1699 = vst [vmem:[%s1694 + $0x10] sm:$0xf] %v1633
        %1700 = vst [vmem:[%s1694 + $0x14] sm:$0xf] %v1196
        %1701 = vst [vmem:[%s1694 + $0x18] sm:$0xf] %v1634
        %1702 = vst [vmem:[%s1694 + $0x1c] sm:$0xf] %v1635
        %1703 = vst [vmem:[%s1694 + $0x20] sm:$0xf] %v1196
        %1704 = vst [vmem:[%s1694 + $0x24] sm:$0xf] %v1636
        %1705 = vst [vmem:[%s1694 + $0x28] sm:$0xf] %v1637
        %1706 = vst [vmem:[%s1694 + $0x2c] sm:$0xf] %v1196
        %1707 = vst [vmem:[%s1694 + $0x30] sm:$0xf] %v1638
        %1708 = vst [vmem:[%s1694 + $0x34] sm:$0xf] %v1639
        %1709 = vst [vmem:[%s1694 + $0x38] sm:$0xf] %v1196
        %1710 = vst [vmem:[%s1694 + $0x3c] sm:$0xf] %v1640
        %1711 = vst [vmem:[%s1694 + $0x40] sm:$0xf] %v1641
        %1712 = vst [vmem:[%s1694 + $0x44] sm:$0xf] %v1196
        %1713 = vst [vmem:[%s1694 + $0x48] sm:$0xf] %v1642
        %1714 = vst [vmem:[%s1694 + $0x4c] sm:$0xf] %v1643
        %1715 = vst [vmem:[%s1694 + $0x50] sm:$0xf] %v1196
        %1716 = vst [vmem:[%s1694 + $0x54] sm:$0xf] %v1644
        %1717 = vst [vmem:[%s1694 + $0x58] sm:$0xf] %v1645
        %1718 = vst [vmem:[%s1694 + $0x5c] sm:$0xf] %v1196
        %1719 = vst [vmem:[%s1694 + $0x60] sm:$0xf] %v1646
        %1720 = vst [vmem:[%s1694 + $0x64] sm:$0xf] %v1647
        %1721 = vst [vmem:[%s1694 + $0x68] sm:$0xf] %v1196
        %1722 = vst [vmem:[%s1694 + $0x6c] sm:$0xf] %v1648
        %1723 = vst [vmem:[%s1694 + $0x70] sm:$0xf] %v1649
        %1724 = vst [vmem:[%s1694 + $0x74] sm:$0xf] %v1196
        %1725 = vst [vmem:[%s1694 + $0x78] sm:$0xf] %v1650
        %1726 = vst [vmem:[%s1694 + $0x7c] sm:$0xf] %v1651
        %1727 = vst [vmem:[%s1694 + $0x80] sm:$0xf] %v1196
        %1728 = vst [vmem:[%s1694 + $0x84] sm:$0xf] %v1652
        %1729 = vst [vmem:[%s1694 + $0x88] sm:$0xf] %v1653
        %1730 = vst [vmem:[%s1694 + $0x8c] sm:$0xf] %v1196
        %1731 = vst [vmem:[%s1694 + $0x90] sm:$0xf] %v1654
        %1732 = vst [vmem:[%s1694 + $0x94] sm:$0xf] %v1655
        %1733 = vst [vmem:[%s1694 + $0x98] sm:$0xf] %v1196
        %1734 = vst [vmem:[%s1694 + $0x9c] sm:$0xf] %v1656
        %1735 = vst [vmem:[%s1694 + $0xa0] sm:$0xf] %v1657
        %1736 = vst [vmem:[%s1694 + $0xa4] sm:$0xf] %v1196
        %1737 = vst [vmem:[%s1694 + $0xa8] sm:$0xf] %v1658
        %1738 = vst [vmem:[%s1694 + $0xac] sm:$0xf] %v1659
        %1739 = vst [vmem:[%s1694 + $0xb0] sm:$0xf] %v1196
        %1740 = vst [vmem:[%s1694 + $0xb4] sm:$0xf] %v1660
        %1741 = vst [vmem:[%s1694 + $0xb8] sm:$0xf] %v1661
        %1742 = vst [vmem:[%s1694 + $0xbc] sm:$0xf] %v1196
        %v1743 = vld [vmem:[#allocation3] sm:$0xf]
        %v1744 = vld [vmem:[#allocation3 + $0x4] sm:$0xf]
        %v1745 = vld [vmem:[#allocation3 + $0x8] sm:$0xf]
        %v1746 = vld [vmem:[#allocation3 + $0xc] sm:$0xf]
        %v1747 = vld [vmem:[#allocation3 + $0x10] sm:$0xf]
        %v1748 = vld [vmem:[#allocation3 + $0x14] sm:$0xf]
        %v1749 = vld [vmem:[#allocation3 + $0x18] sm:$0xf]
        %v1750 = vld [vmem:[#allocation3 + $0x1c] sm:$0xf]
        %v1751 = vld [vmem:[#allocation3 + $0x20] sm:$0xf]
        %v1752 = vld [vmem:[#allocation3 + $0x24] sm:$0xf]
        %v1753 = vld [vmem:[#allocation3 + $0x28] sm:$0xf]
        %v1754 = vld [vmem:[#allocation3 + $0x2c] sm:$0xf]
        %v1755 = vld [vmem:[#allocation3 + $0x30] sm:$0xf]
        %v1756 = vld [vmem:[#allocation3 + $0x34] sm:$0xf]
        %v1757 = vld [vmem:[#allocation3 + $0x38] sm:$0xf]
        %v1758 = vld [vmem:[#allocation3 + $0x3c] sm:$0xf]
        %v1759 = vld [vmem:[#allocation3 + $0x40] sm:$0xf]
        %v1760 = vld [vmem:[#allocation3 + $0x44] sm:$0xf]
        %v1761 = vld [vmem:[#allocation3 + $0x48] sm:$0xf]
        %v1762 = vld [vmem:[#allocation3 + $0x4c] sm:$0xf]
        %v1763 = vld [vmem:[#allocation3 + $0x50] sm:$0xf]
        %v1764 = vld [vmem:[#allocation3 + $0x54] sm:$0xf]
        %v1765 = vld [vmem:[#allocation3 + $0x58] sm:$0xf]
        %v1766 = vld [vmem:[#allocation3 + $0x5c] sm:$0xf]
        %v1767 = vld [vmem:[#allocation3 + $0x60] sm:$0xf]
        %v1768 = vld [vmem:[#allocation3 + $0x64] sm:$0xf]
        %v1769 = vld [vmem:[#allocation3 + $0x68] sm:$0xf]
        %v1770 = vld [vmem:[#allocation3 + $0x6c] sm:$0xf]
        %v1771 = vld [vmem:[#allocation3 + $0x70] sm:$0xf]
        %v1772 = vld [vmem:[#allocation3 + $0x74] sm:$0xf]
        %v1773 = vld [vmem:[#allocation3 + $0x78] sm:$0xf]
        %v1774 = vld [vmem:[#allocation3 + $0x7c] sm:$0xf]
        %v1775 = vld [vmem:[#allocation3 + $0x80] sm:$0xf]
        %v1776 = vld [vmem:[#allocation3 + $0x84] sm:$0xf]
        %v1777 = vld [vmem:[#allocation3 + $0x88] sm:$0xf]
        %v1778 = vld [vmem:[#allocation3 + $0x8c] sm:$0xf]
        %v1779 = vld [vmem:[#allocation3 + $0x90] sm:$0xf]
        %v1780 = vld [vmem:[#allocation3 + $0x94] sm:$0xf]
        %v1781 = vld [vmem:[#allocation3 + $0x98] sm:$0xf]
        %v1782 = vld [vmem:[#allocation3 + $0x9c] sm:$0xf]
        %v1783 = vld [vmem:[#allocation3 + $0xa0] sm:$0xf]
        %v1784 = vld [vmem:[#allocation3 + $0xa4] sm:$0xf]
        %v1785 = vld [vmem:[#allocation3 + $0xa8] sm:$0xf]
        %v1786 = vld [vmem:[#allocation3 + $0xac] sm:$0xf]
        %v1787 = vld [vmem:[#allocation3 + $0xb0] sm:$0xf]
        %v1788 = vld [vmem:[#allocation3 + $0xb4] sm:$0xf]
        %v1789 = vld [vmem:[#allocation3 + $0xb8] sm:$0xf]
        %v1790 = vld [vmem:[#allocation3 + $0xbc] sm:$0xf]
        %v1791 = vld [vmem:[#allocation10] sm:$0xf]
        %v1792 = vld [vmem:[#allocation10 + $0x4] sm:$0xf]
        %v1793 = vld [vmem:[#allocation10 + $0x8] sm:$0xf]
        %v1794 = vld [vmem:[#allocation10 + $0xc] sm:$0xf]
        %v1795 = vld [vmem:[#allocation10 + $0x10] sm:$0xf]
        %v1796 = vld [vmem:[#allocation10 + $0x14] sm:$0xf]
        %v1797 = vld [vmem:[#allocation10 + $0x18] sm:$0xf]
        %v1798 = vld [vmem:[#allocation10 + $0x1c] sm:$0xf]
        %v1799 = vld [vmem:[#allocation10 + $0x20] sm:$0xf]
        %v1800 = vld [vmem:[#allocation10 + $0x24] sm:$0xf]
        %v1801 = vld [vmem:[#allocation10 + $0x28] sm:$0xf]
        %v1802 = vld [vmem:[#allocation10 + $0x2c] sm:$0xf]
        %v1803 = vld [vmem:[#allocation10 + $0x30] sm:$0xf]
        %v1804 = vld [vmem:[#allocation10 + $0x34] sm:$0xf]
        %v1805 = vld [vmem:[#allocation10 + $0x38] sm:$0xf]
        %v1806 = vld [vmem:[#allocation10 + $0x3c] sm:$0xf]
        %v1807 = vld [vmem:[#allocation2] sm:$0xf]
        %v1808 = vld [vmem:[#allocation2 + $0x4] sm:$0xf]
        %v1809 = vld [vmem:[#allocation2 + $0x8] sm:$0xf]
        %v1810 = vld [vmem:[#allocation2 + $0xc] sm:$0xf]
        %v1811 = vld [vmem:[#allocation2 + $0x10] sm:$0xf]
        %v1812 = vld [vmem:[#allocation2 + $0x14] sm:$0xf]
        %v1813 = vld [vmem:[#allocation2 + $0x18] sm:$0xf]
        %v1814 = vld [vmem:[#allocation2 + $0x1c] sm:$0xf]
        %v1815 = vld [vmem:[#allocation2 + $0x20] sm:$0xf]
        %v1816 = vld [vmem:[#allocation2 + $0x24] sm:$0xf]
        %v1817 = vld [vmem:[#allocation2 + $0x28] sm:$0xf]
        %v1818 = vld [vmem:[#allocation2 + $0x2c] sm:$0xf]
        %v1819 = vld [vmem:[#allocation2 + $0x30] sm:$0xf]
        %v1820 = vld [vmem:[#allocation2 + $0x34] sm:$0xf]
        %v1821 = vld [vmem:[#allocation2 + $0x38] sm:$0xf]
        %v1822 = vld [vmem:[#allocation2 + $0x3c] sm:$0xf]
        %v1823 = vld [vmem:[#allocation2 + $0x40] sm:$0xf]
        %v1824 = vld [vmem:[#allocation2 + $0x44] sm:$0xf]
        %v1825 = vld [vmem:[#allocation2 + $0x48] sm:$0xf]
        %v1826 = vld [vmem:[#allocation2 + $0x4c] sm:$0xf]
        %v1827 = vld [vmem:[#allocation2 + $0x50] sm:$0xf]
        %v1828 = vld [vmem:[#allocation2 + $0x54] sm:$0xf]
        %v1829 = vld [vmem:[#allocation2 + $0x58] sm:$0xf]
        %v1830 = vld [vmem:[#allocation2 + $0x5c] sm:$0xf]
        %v1831 = vld [vmem:[#allocation2 + $0x60] sm:$0xf]
        %v1832 = vld [vmem:[#allocation2 + $0x64] sm:$0xf]
        %v1833 = vld [vmem:[#allocation2 + $0x68] sm:$0xf]
        %v1834 = vld [vmem:[#allocation2 + $0x6c] sm:$0xf]
        %v1835 = vld [vmem:[#allocation2 + $0x70] sm:$0xf]
        %v1836 = vld [vmem:[#allocation2 + $0x74] sm:$0xf]
        %v1837 = vld [vmem:[#allocation2 + $0x78] sm:$0xf]
        %v1838 = vld [vmem:[#allocation2 + $0x7c] sm:$0xf]
        %v1839 = vld [vmem:[#allocation2 + $0x80] sm:$0xf]
        %v1840 = vld [vmem:[#allocation2 + $0x84] sm:$0xf]
        %v1841 = vld [vmem:[#allocation2 + $0x88] sm:$0xf]
        %v1842 = vld [vmem:[#allocation2 + $0x8c] sm:$0xf]
        %v1843 = vld [vmem:[#allocation2 + $0x90] sm:$0xf]
        %v1844 = vld [vmem:[#allocation2 + $0x94] sm:$0xf]
        %v1845 = vld [vmem:[#allocation2 + $0x98] sm:$0xf]
        %v1846 = vld [vmem:[#allocation2 + $0x9c] sm:$0xf]
        %v1847 = vld [vmem:[#allocation2 + $0xa0] sm:$0xf]
        %v1848 = vld [vmem:[#allocation2 + $0xa4] sm:$0xf]
        %v1849 = vld [vmem:[#allocation2 + $0xa8] sm:$0xf]
        %v1850 = vld [vmem:[#allocation2 + $0xac] sm:$0xf]
        %v1851 = vld [vmem:[#allocation2 + $0xb0] sm:$0xf]
        %v1852 = vld [vmem:[#allocation2 + $0xb4] sm:$0xf]
        %v1853 = vld [vmem:[#allocation2 + $0xb8] sm:$0xf]
        %v1854 = vld [vmem:[#allocation2 + $0xbc] sm:$0xf]
        %s1855 = scalar_lea.vmem [#allocation10], 64
        %v1856 = vld [vmem:[%s1855] sm:$0xf]
        %v1857 = vld [vmem:[%s1855 + $0x4] sm:$0xf]
        %v1858 = vld [vmem:[%s1855 + $0x8] sm:$0xf]
        %v1859 = vld [vmem:[%s1855 + $0xc] sm:$0xf]
        %v1860 = vld [vmem:[%s1855 + $0x10] sm:$0xf]
        %v1861 = vld [vmem:[%s1855 + $0x14] sm:$0xf]
        %v1862 = vld [vmem:[%s1855 + $0x18] sm:$0xf]
        %v1863 = vld [vmem:[%s1855 + $0x1c] sm:$0xf]
        %v1864 = vld [vmem:[%s1855 + $0x20] sm:$0xf]
        %v1865 = vld [vmem:[%s1855 + $0x24] sm:$0xf]
        %v1866 = vld [vmem:[%s1855 + $0x28] sm:$0xf]
        %v1867 = vld [vmem:[%s1855 + $0x2c] sm:$0xf]
        %v1868 = vld [vmem:[%s1855 + $0x30] sm:$0xf]
        %v1869 = vld [vmem:[%s1855 + $0x34] sm:$0xf]
        %v1870 = vld [vmem:[%s1855 + $0x38] sm:$0xf]
        %v1871 = vld [vmem:[%s1855 + $0x3c] sm:$0xf]
        %v1920 = vunpack.c.l.b16 %v1807
        %v1921 = vunpack.c.l.b16 %v1808
        %v1922 = vunpack.c.l.b16 %v1809
        %v1923 = vunpack.c.l.b16 %v1810
        %v1924 = vunpack.c.l.b16 %v1811
        %v1925 = vunpack.c.l.b16 %v1812
        %v1926 = vunpack.c.l.b16 %v1813
        %v1927 = vunpack.c.l.b16 %v1814
        %v1928 = vunpack.c.l.b16 %v1815
        %v1929 = vunpack.c.l.b16 %v1816
        %v1930 = vunpack.c.l.b16 %v1817
        %v1931 = vunpack.c.l.b16 %v1818
        %v1932 = vunpack.c.l.b16 %v1819
        %v1933 = vunpack.c.l.b16 %v1820
        %v1934 = vunpack.c.l.b16 %v1821
        %v1935 = vunpack.c.l.b16 %v1822
        %v1936 = vunpack.c.l.b16 %v1823
        %v1937 = vunpack.c.l.b16 %v1824
        %v1938 = vunpack.c.l.b16 %v1825
        %v1939 = vunpack.c.l.b16 %v1826
        %v1940 = vunpack.c.l.b16 %v1827
        %v1941 = vunpack.c.l.b16 %v1828
        %v1942 = vunpack.c.l.b16 %v1829
        %v1943 = vunpack.c.l.b16 %v1830
        %v1944 = vunpack.c.l.b16 %v1831
        %v1945 = vunpack.c.l.b16 %v1832
        %v1946 = vunpack.c.l.b16 %v1833
        %v1947 = vunpack.c.l.b16 %v1834
        %v1948 = vunpack.c.l.b16 %v1835
        %v1949 = vunpack.c.l.b16 %v1836
        %v1950 = vunpack.c.l.b16 %v1837
        %v1951 = vunpack.c.l.b16 %v1838
        %v1952 = vunpack.c.l.b16 %v1839
        %v1953 = vunpack.c.l.b16 %v1840
        %v1954 = vunpack.c.l.b16 %v1841
        %v1955 = vunpack.c.l.b16 %v1842
        %v1956 = vunpack.c.l.b16 %v1843
        %v1957 = vunpack.c.l.b16 %v1844
        %v1958 = vunpack.c.l.b16 %v1845
        %v1959 = vunpack.c.l.b16 %v1846
        %v1960 = vunpack.c.l.b16 %v1847
        %v1961 = vunpack.c.l.b16 %v1848
        %v1962 = vunpack.c.l.b16 %v1849
        %v1963 = vunpack.c.l.b16 %v1850
        %v1964 = vunpack.c.l.b16 %v1851
        %v1965 = vunpack.c.l.b16 %v1852
        %v1966 = vunpack.c.l.b16 %v1853
        %v1967 = vunpack.c.l.b16 %v1854
        %v1968 = vpack.c.b16 %v1921, %v1920
        %v1969 = vpack.c.b16 %v1923, %v1922
        %v1970 = vpack.c.b16 %v1925, %v1924
        %v1971 = vpack.c.b16 %v1927, %v1926
        %v1972 = vpack.c.b16 %v1929, %v1928
        %v1973 = vpack.c.b16 %v1931, %v1930
        %v1974 = vpack.c.b16 %v1933, %v1932
        %v1975 = vpack.c.b16 %v1935, %v1934
        %v1976 = vpack.c.b16 %v1937, %v1936
        %v1977 = vpack.c.b16 %v1939, %v1938
        %v1978 = vpack.c.b16 %v1941, %v1940
        %v1979 = vpack.c.b16 %v1943, %v1942
        %v1980 = vpack.c.b16 %v1945, %v1944
        %v1981 = vpack.c.b16 %v1947, %v1946
        %v1982 = vpack.c.b16 %v1949, %v1948
        %v1983 = vpack.c.b16 %v1951, %v1950
        %v1984 = vpack.c.b16 %v1953, %v1952
        %v1985 = vpack.c.b16 %v1955, %v1954
        %v1986 = vpack.c.b16 %v1957, %v1956
        %v1987 = vpack.c.b16 %v1959, %v1958
        %v1988 = vpack.c.b16 %v1961, %v1960
        %v1989 = vpack.c.b16 %v1963, %v1962
        %v1990 = vpack.c.b16 %v1965, %v1964
        %v1991 = vpack.c.b16 %v1967, %v1966
        %v2032 = vunpack.c.l.b16 %v1856
        %v2033 = vunpack.c.l.b16 %v1857
        %v2034 = vunpack.c.l.b16 %v1858
        %v2035 = vunpack.c.l.b16 %v1859
        %v2036 = vunpack.c.l.b16 %v1860
        %v2037 = vunpack.c.l.b16 %v1861
        %v2038 = vunpack.c.l.b16 %v1862
        %v2039 = vunpack.c.l.b16 %v1863
        %v2040 = vunpack.c.l.b16 %v1864
        %v2041 = vunpack.c.l.b16 %v1865
        %v2042 = vunpack.c.l.b16 %v1866
        %v2043 = vunpack.c.l.b16 %v1867
        %v2044 = vunpack.c.l.b16 %v1868
        %v2045 = vunpack.c.l.b16 %v1869
        %v2046 = vunpack.c.l.b16 %v1870
        %v2047 = vunpack.c.l.b16 %v1871
        %v2048 = vpack.c.b16 %v2033, %v2032
        %v2049 = vpack.c.b16 %v2035, %v2034
        %v2050 = vpack.c.b16 %v2037, %v2036
        %v2051 = vpack.c.b16 %v2039, %v2038
        %v2052 = vpack.c.b16 %v2041, %v2040
        %v2053 = vpack.c.b16 %v2043, %v2042
        %v2054 = vpack.c.b16 %v2045, %v2044
        %v2055 = vpack.c.b16 %v2047, %v2046
        %2064 = vmatprep.subr.bf16.mxu0 0
        %2065 = vmatpush1.bf16.msra.mxu0 %v2055
        %2066 = vmatprep.subr.bf16.mxu0 0
        %2067 = vmatpush1.bf16.msra.mxu0 %v2054
        %2068 = vmatprep.subr.bf16.mxu0 0
        %2069 = vmatpush1.bf16.msra.mxu0 %v2053
        %2070 = vmatprep.subr.bf16.mxu0 0
        %2071 = vmatpush1.bf16.msra.mxu0 %v2052
        %2072 = vmatprep.subr.bf16.mxu0 0
        %2073 = vmatpush1.bf16.msra.mxu0 %v2051
        %2074 = vmatprep.subr.bf16.mxu0 0
        %2075 = vmatpush1.bf16.msra.mxu0 %v2050
        %2076 = vmatprep.subr.bf16.mxu0 0
        %2077 = vmatpush1.bf16.msra.mxu0 %v2049
        %2078 = vmatprep.subr.bf16.mxu0 0
        %2079 = vmatpush1.bf16.msra.mxu0 %v2048
        %2080 = vmatprep.subr.bf16.mxu0 0
        %2081 = vmatpush2.bf16.msra.mxu0 0
        %2082 = vmatprep.subr.bf16.mxu0 0
        %2083 = vmatpush2.bf16.msra.mxu0 0
        %2084 = vmatprep.subr.bf16.mxu0 0
        %2085 = vmatpush2.bf16.msra.mxu0 0
        %2086 = vmatprep.subr.bf16.mxu0 0
        %2087 = vmatpush2.bf16.msra.mxu0 0
        %2088 = vmatprep.subr.bf16.mxu0 0
        %2089 = vmatpush2.bf16.msra.mxu0 0
        %2090 = vmatprep.subr.bf16.mxu0 0
        %2091 = vmatpush2.bf16.msra.mxu0 0
        %2092 = vmatprep.subr.bf16.mxu0 0
        %2093 = vmatpush2.bf16.msra.mxu0 0
        %2094 = vmatprep.subr.bf16.mxu0 0
        %2095 = vmatpush2.bf16.msra.mxu0 0
        %2096 = vmatprep.mubr.bf16.mxu0 0
        %2097 = vmatmul.mubr.bf16.gmra.mxu0 %v1968
        %v2098 = vpop.f32.mrf.mxu0
        %v2099 = vadd.f32 0.0, %v2098
        %v2100 = vpop.f32.mrf.mxu0
        %v2101 = vpop.f32.mrf.mxu0
        %v2102 = vadd.f32 0.0, %v2101
        %v2103 = vpop.f32.mrf.mxu0
        %2104 = vmatprep.mubr.bf16.mxu0 0
        %2105 = vmatmul.mubr.bf16.gmra.mxu0 %v1969
        %v2106 = vpop.f32.mrf.mxu0
        %v2107 = vadd.f32 0.0, %v2106
        %v2108 = vpop.f32.mrf.mxu0
        %v2109 = vpop.f32.mrf.mxu0
        %v2110 = vadd.f32 0.0, %v2109
        %v2111 = vpop.f32.mrf.mxu0
        %2112 = vmatprep.mubr.bf16.mxu0 0
        %2113 = vmatmul.mubr.bf16.gmra.mxu0 %v1970
        %v2114 = vpop.f32.mrf.mxu0
        %v2115 = vadd.f32 0.0, %v2114
        %v2116 = vpop.f32.mrf.mxu0
        %v2117 = vpop.f32.mrf.mxu0
        %v2118 = vadd.f32 0.0, %v2117
        %v2119 = vpop.f32.mrf.mxu0
        %2120 = vmatprep.mubr.bf16.mxu0 0
        %2121 = vmatmul.mubr.bf16.gmra.mxu0 %v1971
        %v2122 = vpop.f32.mrf.mxu0
        %v2123 = vadd.f32 0.0, %v2122
        %v2124 = vpop.f32.mrf.mxu0
        %v2125 = vpop.f32.mrf.mxu0
        %v2126 = vadd.f32 0.0, %v2125
        %v2127 = vpop.f32.mrf.mxu0
        %2128 = vmatprep.mubr.bf16.mxu0 0
        %2129 = vmatmul.mubr.bf16.gmra.mxu0 %v1972
        %v2130 = vpop.f32.mrf.mxu0
        %v2131 = vadd.f32 0.0, %v2130
        %v2132 = vpop.f32.mrf.mxu0
        %v2133 = vpop.f32.mrf.mxu0
        %v2134 = vadd.f32 0.0, %v2133
        %v2135 = vpop.f32.mrf.mxu0
        %2136 = vmatprep.mubr.bf16.mxu0 0
        %2137 = vmatmul.mubr.bf16.gmra.mxu0 %v1973
        %v2138 = vpop.f32.mrf.mxu0
        %v2139 = vadd.f32 0.0, %v2138
        %v2140 = vpop.f32.mrf.mxu0
        %v2141 = vpop.f32.mrf.mxu0
        %v2142 = vadd.f32 0.0, %v2141
        %v2143 = vpop.f32.mrf.mxu0
        %2144 = vmatprep.mubr.bf16.mxu0 0
        %2145 = vmatmul.mubr.bf16.gmra.mxu0 %v1974
        %v2146 = vpop.f32.mrf.mxu0
        %v2147 = vadd.f32 0.0, %v2146
        %v2148 = vpop.f32.mrf.mxu0
        %v2149 = vpop.f32.mrf.mxu0
        %v2150 = vadd.f32 0.0, %v2149
        %v2151 = vpop.f32.mrf.mxu0
        %2152 = vmatprep.mubr.bf16.mxu0 0
        %2153 = vmatmul.mubr.bf16.gmra.mxu0 %v1975
        %v2154 = vpop.f32.mrf.mxu0
        %v2155 = vadd.f32 0.0, %v2154
        %v2156 = vpop.f32.mrf.mxu0
        %v2157 = vpop.f32.mrf.mxu0
        %v2158 = vadd.f32 0.0, %v2157
        %v2159 = vpop.f32.mrf.mxu0
        %2160 = vmatprep.mubr.bf16.mxu0 0
        %2161 = vmatmul.mubr.bf16.gmra.mxu0 %v1976
        %v2162 = vpop.f32.mrf.mxu0
        %v2163 = vadd.f32 0.0, %v2162
        %v2164 = vpop.f32.mrf.mxu0
        %v2165 = vpop.f32.mrf.mxu0
        %v2166 = vadd.f32 0.0, %v2165
        %v2167 = vpop.f32.mrf.mxu0
        %2168 = vmatprep.mubr.bf16.mxu0 0
        %2169 = vmatmul.mubr.bf16.gmra.mxu0 %v1977
        %v2170 = vpop.f32.mrf.mxu0
        %v2171 = vadd.f32 0.0, %v2170
        %v2172 = vpop.f32.mrf.mxu0
        %v2173 = vpop.f32.mrf.mxu0
        %v2174 = vadd.f32 0.0, %v2173
        %v2175 = vpop.f32.mrf.mxu0
        %2176 = vmatprep.mubr.bf16.mxu0 0
        %2177 = vmatmul.mubr.bf16.gmra.mxu0 %v1978
        %v2178 = vpop.f32.mrf.mxu0
        %v2179 = vadd.f32 0.0, %v2178
        %v2180 = vpop.f32.mrf.mxu0
        %v2181 = vpop.f32.mrf.mxu0
        %v2182 = vadd.f32 0.0, %v2181
        %v2183 = vpop.f32.mrf.mxu0
        %2184 = vmatprep.mubr.bf16.mxu0 0
        %2185 = vmatmul.mubr.bf16.gmra.mxu0 %v1979
        %v2186 = vpop.f32.mrf.mxu0
        %v2187 = vadd.f32 0.0, %v2186
        %v2188 = vpop.f32.mrf.mxu0
        %v2189 = vpop.f32.mrf.mxu0
        %v2190 = vadd.f32 0.0, %v2189
        %v2191 = vpop.f32.mrf.mxu0
        %2192 = vmatprep.mubr.bf16.mxu0 0
        %2193 = vmatmul.mubr.bf16.gmra.mxu0 %v1980
        %v2194 = vpop.f32.mrf.mxu0
        %v2195 = vadd.f32 0.0, %v2194
        %v2196 = vpop.f32.mrf.mxu0
        %v2197 = vpop.f32.mrf.mxu0
        %v2198 = vadd.f32 0.0, %v2197
        %v2199 = vpop.f32.mrf.mxu0
        %2200 = vmatprep.mubr.bf16.mxu0 0
        %2201 = vmatmul.mubr.bf16.gmra.mxu0 %v1981
        %v2202 = vpop.f32.mrf.mxu0
        %v2203 = vadd.f32 0.0, %v2202
        %v2204 = vpop.f32.mrf.mxu0
        %v2205 = vpop.f32.mrf.mxu0
        %v2206 = vadd.f32 0.0, %v2205
        %v2207 = vpop.f32.mrf.mxu0
        %2208 = vmatprep.mubr.bf16.mxu0 0
        %2209 = vmatmul.mubr.bf16.gmra.mxu0 %v1982
        %v2210 = vpop.f32.mrf.mxu0
        %v2211 = vadd.f32 0.0, %v2210
        %v2212 = vpop.f32.mrf.mxu0
        %v2213 = vpop.f32.mrf.mxu0
        %v2214 = vadd.f32 0.0, %v2213
        %v2215 = vpop.f32.mrf.mxu0
        %2216 = vmatprep.mubr.bf16.mxu0 0
        %2217 = vmatmul.mubr.bf16.gmra.mxu0 %v1983
        %v2218 = vpop.f32.mrf.mxu0
        %v2219 = vadd.f32 0.0, %v2218
        %v2220 = vpop.f32.mrf.mxu0
        %v2221 = vpop.f32.mrf.mxu0
        %v2222 = vadd.f32 0.0, %v2221
        %v2223 = vpop.f32.mrf.mxu0
        %2224 = vmatprep.mubr.bf16.mxu0 0
        %2225 = vmatmul.mubr.bf16.gmra.mxu0 %v1984
        %v2226 = vpop.f32.mrf.mxu0
        %v2227 = vadd.f32 0.0, %v2226
        %v2228 = vpop.f32.mrf.mxu0
        %v2229 = vpop.f32.mrf.mxu0
        %v2230 = vadd.f32 0.0, %v2229
        %v2231 = vpop.f32.mrf.mxu0
        %2232 = vmatprep.mubr.bf16.mxu0 0
        %2233 = vmatmul.mubr.bf16.gmra.mxu0 %v1985
        %v2234 = vpop.f32.mrf.mxu0
        %v2235 = vadd.f32 0.0, %v2234
        %v2236 = vpop.f32.mrf.mxu0
        %v2237 = vpop.f32.mrf.mxu0
        %v2238 = vadd.f32 0.0, %v2237
        %v2239 = vpop.f32.mrf.mxu0
        %2240 = vmatprep.mubr.bf16.mxu0 0
        %2241 = vmatmul.mubr.bf16.gmra.mxu0 %v1986
        %v2242 = vpop.f32.mrf.mxu0
        %v2243 = vadd.f32 0.0, %v2242
        %v2244 = vpop.f32.mrf.mxu0
        %v2245 = vpop.f32.mrf.mxu0
        %v2246 = vadd.f32 0.0, %v2245
        %v2247 = vpop.f32.mrf.mxu0
        %2248 = vmatprep.mubr.bf16.mxu0 0
        %2249 = vmatmul.mubr.bf16.gmra.mxu0 %v1987
        %v2250 = vpop.f32.mrf.mxu0
        %v2251 = vadd.f32 0.0, %v2250
        %v2252 = vpop.f32.mrf.mxu0
        %v2253 = vpop.f32.mrf.mxu0
        %v2254 = vadd.f32 0.0, %v2253
        %v2255 = vpop.f32.mrf.mxu0
        %2256 = vmatprep.mubr.bf16.mxu0 0
        %2257 = vmatmul.mubr.bf16.gmra.mxu0 %v1988
        %v2258 = vpop.f32.mrf.mxu0
        %v2259 = vadd.f32 0.0, %v2258
        %v2260 = vpop.f32.mrf.mxu0
        %v2261 = vpop.f32.mrf.mxu0
        %v2262 = vadd.f32 0.0, %v2261
        %v2263 = vpop.f32.mrf.mxu0
        %2264 = vmatprep.mubr.bf16.mxu0 0
        %2265 = vmatmul.mubr.bf16.gmra.mxu0 %v1989
        %v2266 = vpop.f32.mrf.mxu0
        %v2267 = vadd.f32 0.0, %v2266
        %v2268 = vpop.f32.mrf.mxu0
        %v2269 = vpop.f32.mrf.mxu0
        %v2270 = vadd.f32 0.0, %v2269
        %v2271 = vpop.f32.mrf.mxu0
        %2272 = vmatprep.mubr.bf16.mxu0 0
        %2273 = vmatmul.mubr.bf16.gmra.mxu0 %v1990
        %v2274 = vpop.f32.mrf.mxu0
        %v2275 = vadd.f32 0.0, %v2274
        %v2276 = vpop.f32.mrf.mxu0
        %v2277 = vpop.f32.mrf.mxu0
        %v2278 = vadd.f32 0.0, %v2277
        %v2279 = vpop.f32.mrf.mxu0
        %2280 = vmatprep.mubr.bf16.mxu0 0
        %2281 = vmatmul.mubr.bf16.gmra.mxu0 %v1991
        %v2282 = vpop.f32.mrf.mxu0
        %v2283 = vadd.f32 0.0, %v2282
        %v2284 = vpop.f32.mrf.mxu0
        %v2285 = vpop.f32.mrf.mxu0
        %v2286 = vadd.f32 0.0, %v2285
        %v2287 = vpop.f32.mrf.mxu0
        %2288 = vdwg.mxu0
        %v2337 = vunpack.c.l.b16 %v1743
        %v2338 = vunpack.c.l.b16 %v1744
        %v2339 = vunpack.c.l.b16 %v1745
        %v2340 = vunpack.c.l.b16 %v1746
        %v2341 = vunpack.c.l.b16 %v1747
        %v2342 = vunpack.c.l.b16 %v1748
        %v2343 = vunpack.c.l.b16 %v1749
        %v2344 = vunpack.c.l.b16 %v1750
        %v2345 = vunpack.c.l.b16 %v1751
        %v2346 = vunpack.c.l.b16 %v1752
        %v2347 = vunpack.c.l.b16 %v1753
        %v2348 = vunpack.c.l.b16 %v1754
        %v2349 = vunpack.c.l.b16 %v1755
        %v2350 = vunpack.c.l.b16 %v1756
        %v2351 = vunpack.c.l.b16 %v1757
        %v2352 = vunpack.c.l.b16 %v1758
        %v2353 = vunpack.c.l.b16 %v1759
        %v2354 = vunpack.c.l.b16 %v1760
        %v2355 = vunpack.c.l.b16 %v1761
        %v2356 = vunpack.c.l.b16 %v1762
        %v2357 = vunpack.c.l.b16 %v1763
        %v2358 = vunpack.c.l.b16 %v1764
        %v2359 = vunpack.c.l.b16 %v1765
        %v2360 = vunpack.c.l.b16 %v1766
        %v2361 = vunpack.c.l.b16 %v1767
        %v2362 = vunpack.c.l.b16 %v1768
        %v2363 = vunpack.c.l.b16 %v1769
        %v2364 = vunpack.c.l.b16 %v1770
        %v2365 = vunpack.c.l.b16 %v1771
        %v2366 = vunpack.c.l.b16 %v1772
        %v2367 = vunpack.c.l.b16 %v1773
        %v2368 = vunpack.c.l.b16 %v1774
        %v2369 = vunpack.c.l.b16 %v1775
        %v2370 = vunpack.c.l.b16 %v1776
        %v2371 = vunpack.c.l.b16 %v1777
        %v2372 = vunpack.c.l.b16 %v1778
        %v2373 = vunpack.c.l.b16 %v1779
        %v2374 = vunpack.c.l.b16 %v1780
        %v2375 = vunpack.c.l.b16 %v1781
        %v2376 = vunpack.c.l.b16 %v1782
        %v2377 = vunpack.c.l.b16 %v1783
        %v2378 = vunpack.c.l.b16 %v1784
        %v2379 = vunpack.c.l.b16 %v1785
        %v2380 = vunpack.c.l.b16 %v1786
        %v2381 = vunpack.c.l.b16 %v1787
        %v2382 = vunpack.c.l.b16 %v1788
        %v2383 = vunpack.c.l.b16 %v1789
        %v2384 = vunpack.c.l.b16 %v1790
        %v2385 = vpack.c.b16 %v2338, %v2337
        %v2386 = vpack.c.b16 %v2340, %v2339
        %v2387 = vpack.c.b16 %v2342, %v2341
        %v2388 = vpack.c.b16 %v2344, %v2343
        %v2389 = vpack.c.b16 %v2346, %v2345
        %v2390 = vpack.c.b16 %v2348, %v2347
        %v2391 = vpack.c.b16 %v2350, %v2349
        %v2392 = vpack.c.b16 %v2352, %v2351
        %v2393 = vpack.c.b16 %v2354, %v2353
        %v2394 = vpack.c.b16 %v2356, %v2355
        %v2395 = vpack.c.b16 %v2358, %v2357
        %v2396 = vpack.c.b16 %v2360, %v2359
        %v2397 = vpack.c.b16 %v2362, %v2361
        %v2398 = vpack.c.b16 %v2364, %v2363
        %v2399 = vpack.c.b16 %v2366, %v2365
        %v2400 = vpack.c.b16 %v2368, %v2367
        %v2401 = vpack.c.b16 %v2370, %v2369
        %v2402 = vpack.c.b16 %v2372, %v2371
        %v2403 = vpack.c.b16 %v2374, %v2373
        %v2404 = vpack.c.b16 %v2376, %v2375
        %v2405 = vpack.c.b16 %v2378, %v2377
        %v2406 = vpack.c.b16 %v2380, %v2379
        %v2407 = vpack.c.b16 %v2382, %v2381
        %v2408 = vpack.c.b16 %v2384, %v2383
        %v2449 = vunpack.c.l.b16 %v1791
        %v2450 = vunpack.c.l.b16 %v1792
        %v2451 = vunpack.c.l.b16 %v1793
        %v2452 = vunpack.c.l.b16 %v1794
        %v2453 = vunpack.c.l.b16 %v1795
        %v2454 = vunpack.c.l.b16 %v1796
        %v2455 = vunpack.c.l.b16 %v1797
        %v2456 = vunpack.c.l.b16 %v1798
        %v2457 = vunpack.c.l.b16 %v1799
        %v2458 = vunpack.c.l.b16 %v1800
        %v2459 = vunpack.c.l.b16 %v1801
        %v2460 = vunpack.c.l.b16 %v1802
        %v2461 = vunpack.c.l.b16 %v1803
        %v2462 = vunpack.c.l.b16 %v1804
        %v2463 = vunpack.c.l.b16 %v1805
        %v2464 = vunpack.c.l.b16 %v1806
        %v2465 = vpack.c.b16 %v2450, %v2449
        %v2466 = vpack.c.b16 %v2452, %v2451
        %v2467 = vpack.c.b16 %v2454, %v2453
        %v2468 = vpack.c.b16 %v2456, %v2455
        %v2469 = vpack.c.b16 %v2458, %v2457
        %v2470 = vpack.c.b16 %v2460, %v2459
        %v2471 = vpack.c.b16 %v2462, %v2461
        %v2472 = vpack.c.b16 %v2464, %v2463
        %2481 = vmatprep.subr.bf16.mxu0 0
        %2482 = vmatpush1.bf16.msra.mxu0 %v2472
        %2483 = vmatprep.subr.bf16.mxu0 0
        %2484 = vmatpush1.bf16.msra.mxu0 %v2471
        %2485 = vmatprep.subr.bf16.mxu0 0
        %2486 = vmatpush1.bf16.msra.mxu0 %v2470
        %2487 = vmatprep.subr.bf16.mxu0 0
        %2488 = vmatpush1.bf16.msra.mxu0 %v2469
        %2489 = vmatprep.subr.bf16.mxu0 0
        %2490 = vmatpush1.bf16.msra.mxu0 %v2468
        %2491 = vmatprep.subr.bf16.mxu0 0
        %2492 = vmatpush1.bf16.msra.mxu0 %v2467
        %2493 = vmatprep.subr.bf16.mxu0 0
        %2494 = vmatpush1.bf16.msra.mxu0 %v2466
        %2495 = vmatprep.subr.bf16.mxu0 0
        %2496 = vmatpush1.bf16.msra.mxu0 %v2465
        %2497 = vmatprep.subr.bf16.mxu0 0
        %2498 = vmatpush2.bf16.msra.mxu0 0
        %2499 = vmatprep.subr.bf16.mxu0 0
        %2500 = vmatpush2.bf16.msra.mxu0 0
        %2501 = vmatprep.subr.bf16.mxu0 0
        %2502 = vmatpush2.bf16.msra.mxu0 0
        %2503 = vmatprep.subr.bf16.mxu0 0
        %2504 = vmatpush2.bf16.msra.mxu0 0
        %2505 = vmatprep.subr.bf16.mxu0 0
        %2506 = vmatpush2.bf16.msra.mxu0 0
        %2507 = vmatprep.subr.bf16.mxu0 0
        %2508 = vmatpush2.bf16.msra.mxu0 0
        %2509 = vmatprep.subr.bf16.mxu0 0
        %2510 = vmatpush2.bf16.msra.mxu0 0
        %2511 = vmatprep.subr.bf16.mxu0 0
        %2512 = vmatpush2.bf16.msra.mxu0 0
        %2513 = vmatprep.mubr.bf16.mxu0 0
        %2514 = vmatmul.mubr.bf16.gmra.mxu0 %v2385
        %v2515 = vpop.f32.mrf.mxu0
        %v2516 = vadd.f32 %v2099, %v2515
        %v2517 = vpop.f32.mrf.mxu0
        %v2518 = vpop.f32.mrf.mxu0
        %v2519 = vadd.f32 %v2102, %v2518
        %v2520 = vpop.f32.mrf.mxu0
        %2521 = vmatprep.mubr.bf16.mxu0 0
        %2522 = vmatmul.mubr.bf16.gmra.mxu0 %v2386
        %v2523 = vpop.f32.mrf.mxu0
        %v2524 = vadd.f32 %v2107, %v2523
        %v2525 = vpop.f32.mrf.mxu0
        %v2526 = vpop.f32.mrf.mxu0
        %v2527 = vadd.f32 %v2110, %v2526
        %v2528 = vpop.f32.mrf.mxu0
        %2529 = vmatprep.mubr.bf16.mxu0 0
        %2530 = vmatmul.mubr.bf16.gmra.mxu0 %v2387
        %v2531 = vpop.f32.mrf.mxu0
        %v2532 = vadd.f32 %v2115, %v2531
        %v2533 = vpop.f32.mrf.mxu0
        %v2534 = vpop.f32.mrf.mxu0
        %v2535 = vadd.f32 %v2118, %v2534
        %v2536 = vpop.f32.mrf.mxu0
        %2537 = vmatprep.mubr.bf16.mxu0 0
        %2538 = vmatmul.mubr.bf16.gmra.mxu0 %v2388
        %v2539 = vpop.f32.mrf.mxu0
        %v2540 = vadd.f32 %v2123, %v2539
        %v2541 = vpop.f32.mrf.mxu0
        %v2542 = vpop.f32.mrf.mxu0
        %v2543 = vadd.f32 %v2126, %v2542
        %v2544 = vpop.f32.mrf.mxu0
        %2545 = vmatprep.mubr.bf16.mxu0 0
        %2546 = vmatmul.mubr.bf16.gmra.mxu0 %v2389
        %v2547 = vpop.f32.mrf.mxu0
        %v2548 = vadd.f32 %v2131, %v2547
        %v2549 = vpop.f32.mrf.mxu0
        %v2550 = vpop.f32.mrf.mxu0
        %v2551 = vadd.f32 %v2134, %v2550
        %v2552 = vpop.f32.mrf.mxu0
        %2553 = vmatprep.mubr.bf16.mxu0 0
        %2554 = vmatmul.mubr.bf16.gmra.mxu0 %v2390
        %v2555 = vpop.f32.mrf.mxu0
        %v2556 = vadd.f32 %v2139, %v2555
        %v2557 = vpop.f32.mrf.mxu0
        %v2558 = vpop.f32.mrf.mxu0
        %v2559 = vadd.f32 %v2142, %v2558
        %v2560 = vpop.f32.mrf.mxu0
        %2561 = vmatprep.mubr.bf16.mxu0 0
        %2562 = vmatmul.mubr.bf16.gmra.mxu0 %v2391
        %v2563 = vpop.f32.mrf.mxu0
        %v2564 = vadd.f32 %v2147, %v2563
        %v2565 = vpop.f32.mrf.mxu0
        %v2566 = vpop.f32.mrf.mxu0
        %v2567 = vadd.f32 %v2150, %v2566
        %v2568 = vpop.f32.mrf.mxu0
        %2569 = vmatprep.mubr.bf16.mxu0 0
        %2570 = vmatmul.mubr.bf16.gmra.mxu0 %v2392
        %v2571 = vpop.f32.mrf.mxu0
        %v2572 = vadd.f32 %v2155, %v2571
        %v2573 = vpop.f32.mrf.mxu0
        %v2574 = vpop.f32.mrf.mxu0
        %v2575 = vadd.f32 %v2158, %v2574
        %v2576 = vpop.f32.mrf.mxu0
        %2577 = vmatprep.mubr.bf16.mxu0 0
        %2578 = vmatmul.mubr.bf16.gmra.mxu0 %v2393
        %v2579 = vpop.f32.mrf.mxu0
        %v2580 = vadd.f32 %v2163, %v2579
        %v2581 = vpop.f32.mrf.mxu0
        %v2582 = vpop.f32.mrf.mxu0
        %v2583 = vadd.f32 %v2166, %v2582
        %v2584 = vpop.f32.mrf.mxu0
        %2585 = vmatprep.mubr.bf16.mxu0 0
        %2586 = vmatmul.mubr.bf16.gmra.mxu0 %v2394
        %v2587 = vpop.f32.mrf.mxu0
        %v2588 = vadd.f32 %v2171, %v2587
        %v2589 = vpop.f32.mrf.mxu0
        %v2590 = vpop.f32.mrf.mxu0
        %v2591 = vadd.f32 %v2174, %v2590
        %v2592 = vpop.f32.mrf.mxu0
        %2593 = vmatprep.mubr.bf16.mxu0 0
        %2594 = vmatmul.mubr.bf16.gmra.mxu0 %v2395
        %v2595 = vpop.f32.mrf.mxu0
        %v2596 = vadd.f32 %v2179, %v2595
        %v2597 = vpop.f32.mrf.mxu0
        %v2598 = vpop.f32.mrf.mxu0
        %v2599 = vadd.f32 %v2182, %v2598
        %v2600 = vpop.f32.mrf.mxu0
        %2601 = vmatprep.mubr.bf16.mxu0 0
        %2602 = vmatmul.mubr.bf16.gmra.mxu0 %v2396
        %v2603 = vpop.f32.mrf.mxu0
        %v2604 = vadd.f32 %v2187, %v2603
        %v2605 = vpop.f32.mrf.mxu0
        %v2606 = vpop.f32.mrf.mxu0
        %v2607 = vadd.f32 %v2190, %v2606
        %v2608 = vpop.f32.mrf.mxu0
        %2609 = vmatprep.mubr.bf16.mxu0 0
        %2610 = vmatmul.mubr.bf16.gmra.mxu0 %v2397
        %v2611 = vpop.f32.mrf.mxu0
        %v2612 = vadd.f32 %v2195, %v2611
        %v2613 = vpop.f32.mrf.mxu0
        %v2614 = vpop.f32.mrf.mxu0
        %v2615 = vadd.f32 %v2198, %v2614
        %v2616 = vpop.f32.mrf.mxu0
        %2617 = vmatprep.mubr.bf16.mxu0 0
        %2618 = vmatmul.mubr.bf16.gmra.mxu0 %v2398
        %v2619 = vpop.f32.mrf.mxu0
        %v2620 = vadd.f32 %v2203, %v2619
        %v2621 = vpop.f32.mrf.mxu0
        %v2622 = vpop.f32.mrf.mxu0
        %v2623 = vadd.f32 %v2206, %v2622
        %v2624 = vpop.f32.mrf.mxu0
        %2625 = vmatprep.mubr.bf16.mxu0 0
        %2626 = vmatmul.mubr.bf16.gmra.mxu0 %v2399
        %v2627 = vpop.f32.mrf.mxu0
        %v2628 = vadd.f32 %v2211, %v2627
        %v2629 = vpop.f32.mrf.mxu0
        %v2630 = vpop.f32.mrf.mxu0
        %v2631 = vadd.f32 %v2214, %v2630
        %v2632 = vpop.f32.mrf.mxu0
        %2633 = vmatprep.mubr.bf16.mxu0 0
        %2634 = vmatmul.mubr.bf16.gmra.mxu0 %v2400
        %v2635 = vpop.f32.mrf.mxu0
        %v2636 = vadd.f32 %v2219, %v2635
        %v2637 = vpop.f32.mrf.mxu0
        %v2638 = vpop.f32.mrf.mxu0
        %v2639 = vadd.f32 %v2222, %v2638
        %v2640 = vpop.f32.mrf.mxu0
        %2641 = vmatprep.mubr.bf16.mxu0 0
        %2642 = vmatmul.mubr.bf16.gmra.mxu0 %v2401
        %v2643 = vpop.f32.mrf.mxu0
        %v2644 = vadd.f32 %v2227, %v2643
        %v2645 = vpop.f32.mrf.mxu0
        %v2646 = vpop.f32.mrf.mxu0
        %v2647 = vadd.f32 %v2230, %v2646
        %v2648 = vpop.f32.mrf.mxu0
        %2649 = vmatprep.mubr.bf16.mxu0 0
        %2650 = vmatmul.mubr.bf16.gmra.mxu0 %v2402
        %v2651 = vpop.f32.mrf.mxu0
        %v2652 = vadd.f32 %v2235, %v2651
        %v2653 = vpop.f32.mrf.mxu0
        %v2654 = vpop.f32.mrf.mxu0
        %v2655 = vadd.f32 %v2238, %v2654
        %v2656 = vpop.f32.mrf.mxu0
        %2657 = vmatprep.mubr.bf16.mxu0 0
        %2658 = vmatmul.mubr.bf16.gmra.mxu0 %v2403
        %v2659 = vpop.f32.mrf.mxu0
        %v2660 = vadd.f32 %v2243, %v2659
        %v2661 = vpop.f32.mrf.mxu0
        %v2662 = vpop.f32.mrf.mxu0
        %v2663 = vadd.f32 %v2246, %v2662
        %v2664 = vpop.f32.mrf.mxu0
        %2665 = vmatprep.mubr.bf16.mxu0 0
        %2666 = vmatmul.mubr.bf16.gmra.mxu0 %v2404
        %v2667 = vpop.f32.mrf.mxu0
        %v2668 = vadd.f32 %v2251, %v2667
        %v2669 = vpop.f32.mrf.mxu0
        %v2670 = vpop.f32.mrf.mxu0
        %v2671 = vadd.f32 %v2254, %v2670
        %v2672 = vpop.f32.mrf.mxu0
        %2673 = vmatprep.mubr.bf16.mxu0 0
        %2674 = vmatmul.mubr.bf16.gmra.mxu0 %v2405
        %v2675 = vpop.f32.mrf.mxu0
        %v2676 = vadd.f32 %v2259, %v2675
        %v2677 = vpop.f32.mrf.mxu0
        %v2678 = vpop.f32.mrf.mxu0
        %v2679 = vadd.f32 %v2262, %v2678
        %v2680 = vpop.f32.mrf.mxu0
        %2681 = vmatprep.mubr.bf16.mxu0 0
        %2682 = vmatmul.mubr.bf16.gmra.mxu0 %v2406
        %v2683 = vpop.f32.mrf.mxu0
        %v2684 = vadd.f32 %v2267, %v2683
        %v2685 = vpop.f32.mrf.mxu0
        %v2686 = vpop.f32.mrf.mxu0
        %v2687 = vadd.f32 %v2270, %v2686
        %v2688 = vpop.f32.mrf.mxu0
        %2689 = vmatprep.mubr.bf16.mxu0 0
        %2690 = vmatmul.mubr.bf16.gmra.mxu0 %v2407
        %v2691 = vpop.f32.mrf.mxu0
        %v2692 = vadd.f32 %v2275, %v2691
        %v2693 = vpop.f32.mrf.mxu0
        %v2694 = vpop.f32.mrf.mxu0
        %v2695 = vadd.f32 %v2278, %v2694
        %v2696 = vpop.f32.mrf.mxu0
        %2697 = vmatprep.mubr.bf16.mxu0 0
        %2698 = vmatmul.mubr.bf16.gmra.mxu0 %v2408
        %v2699 = vpop.f32.mrf.mxu0
        %v2700 = vadd.f32 %v2283, %v2699
        %v2701 = vpop.f32.mrf.mxu0
        %v2702 = vpop.f32.mrf.mxu0
        %v2703 = vadd.f32 %v2286, %v2702
        %v2704 = vpop.f32.mrf.mxu0
        %2705 = vdwg.mxu0
        %v2706 = vld [vmem:[#allocation4] sm:$0xf]
        %v2707 = vld [vmem:[#allocation4 + $0x4] sm:$0xf]
        %v2708 = vld [vmem:[#allocation4 + $0x8] sm:$0xf]
        %v2709 = vld [vmem:[#allocation4 + $0xc] sm:$0xf]
        %v2710 = vld [vmem:[#allocation4 + $0x10] sm:$0xf]
        %v2711 = vld [vmem:[#allocation4 + $0x14] sm:$0xf]
        %v2712 = vld [vmem:[#allocation4 + $0x18] sm:$0xf]
        %v2713 = vld [vmem:[#allocation4 + $0x1c] sm:$0xf]
        %v2714 = vld [vmem:[#allocation4 + $0x20] sm:$0xf]
        %v2715 = vld [vmem:[#allocation4 + $0x24] sm:$0xf]
        %v2716 = vld [vmem:[#allocation4 + $0x28] sm:$0xf]
        %v2717 = vld [vmem:[#allocation4 + $0x2c] sm:$0xf]
        %v2718 = vld [vmem:[#allocation4 + $0x30] sm:$0xf]
        %v2719 = vld [vmem:[#allocation4 + $0x34] sm:$0xf]
        %v2720 = vld [vmem:[#allocation4 + $0x38] sm:$0xf]
        %v2721 = vld [vmem:[#allocation4 + $0x3c] sm:$0xf]
        %v2722 = vld [vmem:[#allocation4 + $0x40] sm:$0xf]
        %v2723 = vld [vmem:[#allocation4 + $0x44] sm:$0xf]
        %v2724 = vld [vmem:[#allocation4 + $0x48] sm:$0xf]
        %v2725 = vld [vmem:[#allocation4 + $0x4c] sm:$0xf]
        %v2726 = vld [vmem:[#allocation4 + $0x50] sm:$0xf]
        %v2727 = vld [vmem:[#allocation4 + $0x54] sm:$0xf]
        %v2728 = vld [vmem:[#allocation4 + $0x58] sm:$0xf]
        %v2729 = vld [vmem:[#allocation4 + $0x5c] sm:$0xf]
        %v2730 = vld [vmem:[#allocation4 + $0x60] sm:$0xf]
        %v2731 = vld [vmem:[#allocation4 + $0x64] sm:$0xf]
        %v2732 = vld [vmem:[#allocation4 + $0x68] sm:$0xf]
        %v2733 = vld [vmem:[#allocation4 + $0x6c] sm:$0xf]
        %v2734 = vld [vmem:[#allocation4 + $0x70] sm:$0xf]
        %v2735 = vld [vmem:[#allocation4 + $0x74] sm:$0xf]
        %v2736 = vld [vmem:[#allocation4 + $0x78] sm:$0xf]
        %v2737 = vld [vmem:[#allocation4 + $0x7c] sm:$0xf]
        %v2738 = vld [vmem:[#allocation4 + $0x80] sm:$0xf]
        %v2739 = vld [vmem:[#allocation4 + $0x84] sm:$0xf]
        %v2740 = vld [vmem:[#allocation4 + $0x88] sm:$0xf]
        %v2741 = vld [vmem:[#allocation4 + $0x8c] sm:$0xf]
        %v2742 = vld [vmem:[#allocation4 + $0x90] sm:$0xf]
        %v2743 = vld [vmem:[#allocation4 + $0x94] sm:$0xf]
        %v2744 = vld [vmem:[#allocation4 + $0x98] sm:$0xf]
        %v2745 = vld [vmem:[#allocation4 + $0x9c] sm:$0xf]
        %v2746 = vld [vmem:[#allocation4 + $0xa0] sm:$0xf]
        %v2747 = vld [vmem:[#allocation4 + $0xa4] sm:$0xf]
        %v2748 = vld [vmem:[#allocation4 + $0xa8] sm:$0xf]
        %v2749 = vld [vmem:[#allocation4 + $0xac] sm:$0xf]
        %v2750 = vld [vmem:[#allocation4 + $0xb0] sm:$0xf]
        %v2751 = vld [vmem:[#allocation4 + $0xb4] sm:$0xf]
        %v2752 = vld [vmem:[#allocation4 + $0xb8] sm:$0xf]
        %v2753 = vld [vmem:[#allocation4 + $0xbc] sm:$0xf]
        %s2754 = scalar_lea.vmem [#allocation10], 128
        %v2755 = vld [vmem:[%s2754] sm:$0xf]
        %v2756 = vld [vmem:[%s2754 + $0x4] sm:$0xf]
        %v2757 = vld [vmem:[%s2754 + $0x8] sm:$0xf]
        %v2758 = vld [vmem:[%s2754 + $0xc] sm:$0xf]
        %v2759 = vld [vmem:[%s2754 + $0x10] sm:$0xf]
        %v2760 = vld [vmem:[%s2754 + $0x14] sm:$0xf]
        %v2761 = vld [vmem:[%s2754 + $0x18] sm:$0xf]
        %v2762 = vld [vmem:[%s2754 + $0x1c] sm:$0xf]
        %v2763 = vld [vmem:[%s2754 + $0x20] sm:$0xf]
        %v2764 = vld [vmem:[%s2754 + $0x24] sm:$0xf]
        %v2765 = vld [vmem:[%s2754 + $0x28] sm:$0xf]
        %v2766 = vld [vmem:[%s2754 + $0x2c] sm:$0xf]
        %v2767 = vld [vmem:[%s2754 + $0x30] sm:$0xf]
        %v2768 = vld [vmem:[%s2754 + $0x34] sm:$0xf]
        %v2769 = vld [vmem:[%s2754 + $0x38] sm:$0xf]
        %v2770 = vld [vmem:[%s2754 + $0x3c] sm:$0xf]
        %v2819 = vunpack.c.l.b16 %v2706
        %v2820 = vunpack.c.l.b16 %v2707
        %v2821 = vunpack.c.l.b16 %v2708
        %v2822 = vunpack.c.l.b16 %v2709
        %v2823 = vunpack.c.l.b16 %v2710
        %v2824 = vunpack.c.l.b16 %v2711
        %v2825 = vunpack.c.l.b16 %v2712
        %v2826 = vunpack.c.l.b16 %v2713
        %v2827 = vunpack.c.l.b16 %v2714
        %v2828 = vunpack.c.l.b16 %v2715
        %v2829 = vunpack.c.l.b16 %v2716
        %v2830 = vunpack.c.l.b16 %v2717
        %v2831 = vunpack.c.l.b16 %v2718
        %v2832 = vunpack.c.l.b16 %v2719
        %v2833 = vunpack.c.l.b16 %v2720
        %v2834 = vunpack.c.l.b16 %v2721
        %v2835 = vunpack.c.l.b16 %v2722
        %v2836 = vunpack.c.l.b16 %v2723
        %v2837 = vunpack.c.l.b16 %v2724
        %v2838 = vunpack.c.l.b16 %v2725
        %v2839 = vunpack.c.l.b16 %v2726
        %v2840 = vunpack.c.l.b16 %v2727
        %v2841 = vunpack.c.l.b16 %v2728
        %v2842 = vunpack.c.l.b16 %v2729
        %v2843 = vunpack.c.l.b16 %v2730
        %v2844 = vunpack.c.l.b16 %v2731
        %v2845 = vunpack.c.l.b16 %v2732
        %v2846 = vunpack.c.l.b16 %v2733
        %v2847 = vunpack.c.l.b16 %v2734
        %v2848 = vunpack.c.l.b16 %v2735
        %v2849 = vunpack.c.l.b16 %v2736
        %v2850 = vunpack.c.l.b16 %v2737
        %v2851 = vunpack.c.l.b16 %v2738
        %v2852 = vunpack.c.l.b16 %v2739
        %v2853 = vunpack.c.l.b16 %v2740
        %v2854 = vunpack.c.l.b16 %v2741
        %v2855 = vunpack.c.l.b16 %v2742
        %v2856 = vunpack.c.l.b16 %v2743
        %v2857 = vunpack.c.l.b16 %v2744
        %v2858 = vunpack.c.l.b16 %v2745
        %v2859 = vunpack.c.l.b16 %v2746
        %v2860 = vunpack.c.l.b16 %v2747
        %v2861 = vunpack.c.l.b16 %v2748
        %v2862 = vunpack.c.l.b16 %v2749
        %v2863 = vunpack.c.l.b16 %v2750
        %v2864 = vunpack.c.l.b16 %v2751
        %v2865 = vunpack.c.l.b16 %v2752
        %v2866 = vunpack.c.l.b16 %v2753
        %v2867 = vpack.c.b16 %v2820, %v2819
        %v2868 = vpack.c.b16 %v2822, %v2821
        %v2869 = vpack.c.b16 %v2824, %v2823
        %v2870 = vpack.c.b16 %v2826, %v2825
        %v2871 = vpack.c.b16 %v2828, %v2827
        %v2872 = vpack.c.b16 %v2830, %v2829
        %v2873 = vpack.c.b16 %v2832, %v2831
        %v2874 = vpack.c.b16 %v2834, %v2833
        %v2875 = vpack.c.b16 %v2836, %v2835
        %v2876 = vpack.c.b16 %v2838, %v2837
        %v2877 = vpack.c.b16 %v2840, %v2839
        %v2878 = vpack.c.b16 %v2842, %v2841
        %v2879 = vpack.c.b16 %v2844, %v2843
        %v2880 = vpack.c.b16 %v2846, %v2845
        %v2881 = vpack.c.b16 %v2848, %v2847
        %v2882 = vpack.c.b16 %v2850, %v2849
        %v2883 = vpack.c.b16 %v2852, %v2851
        %v2884 = vpack.c.b16 %v2854, %v2853
        %v2885 = vpack.c.b16 %v2856, %v2855
        %v2886 = vpack.c.b16 %v2858, %v2857
        %v2887 = vpack.c.b16 %v2860, %v2859
        %v2888 = vpack.c.b16 %v2862, %v2861
        %v2889 = vpack.c.b16 %v2864, %v2863
        %v2890 = vpack.c.b16 %v2866, %v2865
        %v2931 = vunpack.c.l.b16 %v2755
        %v2932 = vunpack.c.l.b16 %v2756
        %v2933 = vunpack.c.l.b16 %v2757
        %v2934 = vunpack.c.l.b16 %v2758
        %v2935 = vunpack.c.l.b16 %v2759
        %v2936 = vunpack.c.l.b16 %v2760
        %v2937 = vunpack.c.l.b16 %v2761
        %v2938 = vunpack.c.l.b16 %v2762
        %v2939 = vunpack.c.l.b16 %v2763
        %v2940 = vunpack.c.l.b16 %v2764
        %v2941 = vunpack.c.l.b16 %v2765
        %v2942 = vunpack.c.l.b16 %v2766
        %v2943 = vunpack.c.l.b16 %v2767
        %v2944 = vunpack.c.l.b16 %v2768
        %v2945 = vunpack.c.l.b16 %v2769
        %v2946 = vunpack.c.l.b16 %v2770
        %v2947 = vpack.c.b16 %v2932, %v2931
        %v2948 = vpack.c.b16 %v2934, %v2933
        %v2949 = vpack.c.b16 %v2936, %v2935
        %v2950 = vpack.c.b16 %v2938, %v2937
        %v2951 = vpack.c.b16 %v2940, %v2939
        %v2952 = vpack.c.b16 %v2942, %v2941
        %v2953 = vpack.c.b16 %v2944, %v2943
        %v2954 = vpack.c.b16 %v2946, %v2945
        %2963 = vmatprep.subr.bf16.mxu0 0
        %2964 = vmatpush1.bf16.msra.mxu0 %v2954
        %2965 = vmatprep.subr.bf16.mxu0 0
        %2966 = vmatpush1.bf16.msra.mxu0 %v2953
        %2967 = vmatprep.subr.bf16.mxu0 0
        %2968 = vmatpush1.bf16.msra.mxu0 %v2952
        %2969 = vmatprep.subr.bf16.mxu0 0
        %2970 = vmatpush1.bf16.msra.mxu0 %v2951
        %2971 = vmatprep.subr.bf16.mxu0 0
        %2972 = vmatpush1.bf16.msra.mxu0 %v2950
        %2973 = vmatprep.subr.bf16.mxu0 0
        %2974 = vmatpush1.bf16.msra.mxu0 %v2949
        %2975 = vmatprep.subr.bf16.mxu0 0
        %2976 = vmatpush1.bf16.msra.mxu0 %v2948
        %2977 = vmatprep.subr.bf16.mxu0 0
        %2978 = vmatpush1.bf16.msra.mxu0 %v2947
        %2979 = vmatprep.subr.bf16.mxu0 0
        %2980 = vmatpush2.bf16.msra.mxu0 0
        %2981 = vmatprep.subr.bf16.mxu0 0
        %2982 = vmatpush2.bf16.msra.mxu0 0
        %2983 = vmatprep.subr.bf16.mxu0 0
        %2984 = vmatpush2.bf16.msra.mxu0 0
        %2985 = vmatprep.subr.bf16.mxu0 0
        %2986 = vmatpush2.bf16.msra.mxu0 0
        %2987 = vmatprep.subr.bf16.mxu0 0
        %2988 = vmatpush2.bf16.msra.mxu0 0
        %2989 = vmatprep.subr.bf16.mxu0 0
        %2990 = vmatpush2.bf16.msra.mxu0 0
        %2991 = vmatprep.subr.bf16.mxu0 0
        %2992 = vmatpush2.bf16.msra.mxu0 0
        %2993 = vmatprep.subr.bf16.mxu0 0
        %2994 = vmatpush2.bf16.msra.mxu0 0
        %2995 = vmatprep.mubr.bf16.mxu0 0
        %2996 = vmatmul.mubr.bf16.gmra.mxu0 %v2867
        %v2997 = vpop.f32.mrf.mxu0
        %v2998 = vadd.f32 0.0, %v2997
        %v2999 = vpop.f32.mrf.mxu0
        %v3000 = vpop.f32.mrf.mxu0
        %v3001 = vadd.f32 0.0, %v3000
        %v3002 = vpop.f32.mrf.mxu0
        %3003 = vmatprep.mubr.bf16.mxu0 0
        %3004 = vmatmul.mubr.bf16.gmra.mxu0 %v2868
        %v3005 = vpop.f32.mrf.mxu0
        %v3006 = vadd.f32 0.0, %v3005
        %v3007 = vpop.f32.mrf.mxu0
        %v3008 = vpop.f32.mrf.mxu0
        %v3009 = vadd.f32 0.0, %v3008
        %v3010 = vpop.f32.mrf.mxu0
        %3011 = vmatprep.mubr.bf16.mxu0 0
        %3012 = vmatmul.mubr.bf16.gmra.mxu0 %v2869
        %v3013 = vpop.f32.mrf.mxu0
        %v3014 = vadd.f32 0.0, %v3013
        %v3015 = vpop.f32.mrf.mxu0
        %v3016 = vpop.f32.mrf.mxu0
        %v3017 = vadd.f32 0.0, %v3016
        %v3018 = vpop.f32.mrf.mxu0
        %3019 = vmatprep.mubr.bf16.mxu0 0
        %3020 = vmatmul.mubr.bf16.gmra.mxu0 %v2870
        %v3021 = vpop.f32.mrf.mxu0
        %v3022 = vadd.f32 0.0, %v3021
        %v3023 = vpop.f32.mrf.mxu0
        %v3024 = vpop.f32.mrf.mxu0
        %v3025 = vadd.f32 0.0, %v3024
        %v3026 = vpop.f32.mrf.mxu0
        %3027 = vmatprep.mubr.bf16.mxu0 0
        %3028 = vmatmul.mubr.bf16.gmra.mxu0 %v2871
        %v3029 = vpop.f32.mrf.mxu0
        %v3030 = vadd.f32 0.0, %v3029
        %v3031 = vpop.f32.mrf.mxu0
        %v3032 = vpop.f32.mrf.mxu0
        %v3033 = vadd.f32 0.0, %v3032
        %v3034 = vpop.f32.mrf.mxu0
        %3035 = vmatprep.mubr.bf16.mxu0 0
        %3036 = vmatmul.mubr.bf16.gmra.mxu0 %v2872
        %v3037 = vpop.f32.mrf.mxu0
        %v3038 = vadd.f32 0.0, %v3037
        %v3039 = vpop.f32.mrf.mxu0
        %v3040 = vpop.f32.mrf.mxu0
        %v3041 = vadd.f32 0.0, %v3040
        %v3042 = vpop.f32.mrf.mxu0
        %3043 = vmatprep.mubr.bf16.mxu0 0
        %3044 = vmatmul.mubr.bf16.gmra.mxu0 %v2873
        %v3045 = vpop.f32.mrf.mxu0
        %v3046 = vadd.f32 0.0, %v3045
        %v3047 = vpop.f32.mrf.mxu0
        %v3048 = vpop.f32.mrf.mxu0
        %v3049 = vadd.f32 0.0, %v3048
        %v3050 = vpop.f32.mrf.mxu0
        %3051 = vmatprep.mubr.bf16.mxu0 0
        %3052 = vmatmul.mubr.bf16.gmra.mxu0 %v2874
        %v3053 = vpop.f32.mrf.mxu0
        %v3054 = vadd.f32 0.0, %v3053
        %v3055 = vpop.f32.mrf.mxu0
        %v3056 = vpop.f32.mrf.mxu0
        %v3057 = vadd.f32 0.0, %v3056
        %v3058 = vpop.f32.mrf.mxu0
        %3059 = vmatprep.mubr.bf16.mxu0 0
        %3060 = vmatmul.mubr.bf16.gmra.mxu0 %v2875
        %v3061 = vpop.f32.mrf.mxu0
        %v3062 = vadd.f32 0.0, %v3061
        %v3063 = vpop.f32.mrf.mxu0
        %v3064 = vpop.f32.mrf.mxu0
        %v3065 = vadd.f32 0.0, %v3064
        %v3066 = vpop.f32.mrf.mxu0
        %3067 = vmatprep.mubr.bf16.mxu0 0
        %3068 = vmatmul.mubr.bf16.gmra.mxu0 %v2876
        %v3069 = vpop.f32.mrf.mxu0
        %v3070 = vadd.f32 0.0, %v3069
        %v3071 = vpop.f32.mrf.mxu0
        %v3072 = vpop.f32.mrf.mxu0
        %v3073 = vadd.f32 0.0, %v3072
        %v3074 = vpop.f32.mrf.mxu0
        %3075 = vmatprep.mubr.bf16.mxu0 0
        %3076 = vmatmul.mubr.bf16.gmra.mxu0 %v2877
        %v3077 = vpop.f32.mrf.mxu0
        %v3078 = vadd.f32 0.0, %v3077
        %v3079 = vpop.f32.mrf.mxu0
        %v3080 = vpop.f32.mrf.mxu0
        %v3081 = vadd.f32 0.0, %v3080
        %v3082 = vpop.f32.mrf.mxu0
        %3083 = vmatprep.mubr.bf16.mxu0 0
        %3084 = vmatmul.mubr.bf16.gmra.mxu0 %v2878
        %v3085 = vpop.f32.mrf.mxu0
        %v3086 = vadd.f32 0.0, %v3085
        %v3087 = vpop.f32.mrf.mxu0
        %v3088 = vpop.f32.mrf.mxu0
        %v3089 = vadd.f32 0.0, %v3088
        %v3090 = vpop.f32.mrf.mxu0
        %3091 = vmatprep.mubr.bf16.mxu0 0
        %3092 = vmatmul.mubr.bf16.gmra.mxu0 %v2879
        %v3093 = vpop.f32.mrf.mxu0
        %v3094 = vadd.f32 0.0, %v3093
        %v3095 = vpop.f32.mrf.mxu0
        %v3096 = vpop.f32.mrf.mxu0
        %v3097 = vadd.f32 0.0, %v3096
        %v3098 = vpop.f32.mrf.mxu0
        %3099 = vmatprep.mubr.bf16.mxu0 0
        %3100 = vmatmul.mubr.bf16.gmra.mxu0 %v2880
        %v3101 = vpop.f32.mrf.mxu0
        %v3102 = vadd.f32 0.0, %v3101
        %v3103 = vpop.f32.mrf.mxu0
        %v3104 = vpop.f32.mrf.mxu0
        %v3105 = vadd.f32 0.0, %v3104
        %v3106 = vpop.f32.mrf.mxu0
        %3107 = vmatprep.mubr.bf16.mxu0 0
        %3108 = vmatmul.mubr.bf16.gmra.mxu0 %v2881
        %v3109 = vpop.f32.mrf.mxu0
        %v3110 = vadd.f32 0.0, %v3109
        %v3111 = vpop.f32.mrf.mxu0
        %v3112 = vpop.f32.mrf.mxu0
        %v3113 = vadd.f32 0.0, %v3112
        %v3114 = vpop.f32.mrf.mxu0
        %3115 = vmatprep.mubr.bf16.mxu0 0
        %3116 = vmatmul.mubr.bf16.gmra.mxu0 %v2882
        %v3117 = vpop.f32.mrf.mxu0
        %v3118 = vadd.f32 0.0, %v3117
        %v3119 = vpop.f32.mrf.mxu0
        %v3120 = vpop.f32.mrf.mxu0
        %v3121 = vadd.f32 0.0, %v3120
        %v3122 = vpop.f32.mrf.mxu0
        %3123 = vmatprep.mubr.bf16.mxu0 0
        %3124 = vmatmul.mubr.bf16.gmra.mxu0 %v2883
        %v3125 = vpop.f32.mrf.mxu0
        %v3126 = vadd.f32 0.0, %v3125
        %v3127 = vpop.f32.mrf.mxu0
        %v3128 = vpop.f32.mrf.mxu0
        %v3129 = vadd.f32 0.0, %v3128
        %v3130 = vpop.f32.mrf.mxu0
        %3131 = vmatprep.mubr.bf16.mxu0 0
        %3132 = vmatmul.mubr.bf16.gmra.mxu0 %v2884
        %v3133 = vpop.f32.mrf.mxu0
        %v3134 = vadd.f32 0.0, %v3133
        %v3135 = vpop.f32.mrf.mxu0
        %v3136 = vpop.f32.mrf.mxu0
        %v3137 = vadd.f32 0.0, %v3136
        %v3138 = vpop.f32.mrf.mxu0
        %3139 = vmatprep.mubr.bf16.mxu0 0
        %3140 = vmatmul.mubr.bf16.gmra.mxu0 %v2885
        %v3141 = vpop.f32.mrf.mxu0
        %v3142 = vadd.f32 0.0, %v3141
        %v3143 = vpop.f32.mrf.mxu0
        %v3144 = vpop.f32.mrf.mxu0
        %v3145 = vadd.f32 0.0, %v3144
        %v3146 = vpop.f32.mrf.mxu0
        %3147 = vmatprep.mubr.bf16.mxu0 0
        %3148 = vmatmul.mubr.bf16.gmra.mxu0 %v2886
        %v3149 = vpop.f32.mrf.mxu0
        %v3150 = vadd.f32 0.0, %v3149
        %v3151 = vpop.f32.mrf.mxu0
        %v3152 = vpop.f32.mrf.mxu0
        %v3153 = vadd.f32 0.0, %v3152
        %v3154 = vpop.f32.mrf.mxu0
        %3155 = vmatprep.mubr.bf16.mxu0 0
        %3156 = vmatmul.mubr.bf16.gmra.mxu0 %v2887
        %v3157 = vpop.f32.mrf.mxu0
        %v3158 = vadd.f32 0.0, %v3157
        %v3159 = vpop.f32.mrf.mxu0
        %v3160 = vpop.f32.mrf.mxu0
        %v3161 = vadd.f32 0.0, %v3160
        %v3162 = vpop.f32.mrf.mxu0
        %3163 = vmatprep.mubr.bf16.mxu0 0
        %3164 = vmatmul.mubr.bf16.gmra.mxu0 %v2888
        %v3165 = vpop.f32.mrf.mxu0
        %v3166 = vadd.f32 0.0, %v3165
        %v3167 = vpop.f32.mrf.mxu0
        %v3168 = vpop.f32.mrf.mxu0
        %v3169 = vadd.f32 0.0, %v3168
        %v3170 = vpop.f32.mrf.mxu0
        %3171 = vmatprep.mubr.bf16.mxu0 0
        %3172 = vmatmul.mubr.bf16.gmra.mxu0 %v2889
        %v3173 = vpop.f32.mrf.mxu0
        %v3174 = vadd.f32 0.0, %v3173
        %v3175 = vpop.f32.mrf.mxu0
        %v3176 = vpop.f32.mrf.mxu0
        %v3177 = vadd.f32 0.0, %v3176
        %v3178 = vpop.f32.mrf.mxu0
        %3179 = vmatprep.mubr.bf16.mxu0 0
        %3180 = vmatmul.mubr.bf16.gmra.mxu0 %v2890
        %v3181 = vpop.f32.mrf.mxu0
        %v3182 = vadd.f32 0.0, %v3181
        %v3183 = vpop.f32.mrf.mxu0
        %v3184 = vpop.f32.mrf.mxu0
        %v3185 = vadd.f32 0.0, %v3184
        %v3186 = vpop.f32.mrf.mxu0
        %3187 = vdwg.mxu0
        %v3188 = vadd.f32 %v2516, %v2998
        %v3189 = vadd.f32 %v2519, %v3001
        %v3190 = vadd.f32 %v2524, %v3006
        %v3191 = vadd.f32 %v2527, %v3009
        %v3192 = vadd.f32 %v2532, %v3014
        %v3193 = vadd.f32 %v2535, %v3017
        %v3194 = vadd.f32 %v2540, %v3022
        %v3195 = vadd.f32 %v2543, %v3025
        %v3196 = vadd.f32 %v2548, %v3030
        %v3197 = vadd.f32 %v2551, %v3033
        %v3198 = vadd.f32 %v2556, %v3038
        %v3199 = vadd.f32 %v2559, %v3041
        %v3200 = vadd.f32 %v2564, %v3046
        %v3201 = vadd.f32 %v2567, %v3049
        %v3202 = vadd.f32 %v2572, %v3054
        %v3203 = vadd.f32 %v2575, %v3057
        %v3204 = vadd.f32 %v2580, %v3062
        %v3205 = vadd.f32 %v2583, %v3065
        %v3206 = vadd.f32 %v2588, %v3070
        %v3207 = vadd.f32 %v2591, %v3073
        %v3208 = vadd.f32 %v2596, %v3078
        %v3209 = vadd.f32 %v2599, %v3081
        %v3210 = vadd.f32 %v2604, %v3086
        %v3211 = vadd.f32 %v2607, %v3089
        %v3212 = vadd.f32 %v2612, %v3094
        %v3213 = vadd.f32 %v2615, %v3097
        %v3214 = vadd.f32 %v2620, %v3102
        %v3215 = vadd.f32 %v2623, %v3105
        %v3216 = vadd.f32 %v2628, %v3110
        %v3217 = vadd.f32 %v2631, %v3113
        %v3218 = vadd.f32 %v2636, %v3118
        %v3219 = vadd.f32 %v2639, %v3121
        %v3220 = vadd.f32 %v2644, %v3126
        %v3221 = vadd.f32 %v2647, %v3129
        %v3222 = vadd.f32 %v2652, %v3134
        %v3223 = vadd.f32 %v2655, %v3137
        %v3224 = vadd.f32 %v2660, %v3142
        %v3225 = vadd.f32 %v2663, %v3145
        %v3226 = vadd.f32 %v2668, %v3150
        %v3227 = vadd.f32 %v2671, %v3153
        %v3228 = vadd.f32 %v2676, %v3158
        %v3229 = vadd.f32 %v2679, %v3161
        %v3230 = vadd.f32 %v2684, %v3166
        %v3231 = vadd.f32 %v2687, %v3169
        %v3232 = vadd.f32 %v2692, %v3174
        %v3233 = vadd.f32 %v2695, %v3177
        %v3234 = vadd.f32 %v2700, %v3182
        %v3235 = vadd.f32 %v2703, %v3185
        %v3236 = vld [vmem:[%s1517] sm:$0xf]
        %v3237 = vld [vmem:[%s1517 + $0x4] sm:$0xf]
        %v3238 = vld [vmem:[%s1517 + $0x8] sm:$0xf]
        %v3239 = vld [vmem:[%s1517 + $0xc] sm:$0xf]
        %v3240 = vld [vmem:[%s1517 + $0x10] sm:$0xf]
        %v3241 = vld [vmem:[%s1517 + $0x14] sm:$0xf]
        %v3242 = vld [vmem:[%s1517 + $0x18] sm:$0xf]
        %v3243 = vld [vmem:[%s1517 + $0x1c] sm:$0xf]
        %v3244 = vld [vmem:[%s1517 + $0x20] sm:$0xf]
        %v3245 = vld [vmem:[%s1517 + $0x24] sm:$0xf]
        %v3246 = vld [vmem:[%s1517 + $0x28] sm:$0xf]
        %v3247 = vld [vmem:[%s1517 + $0x2c] sm:$0xf]
        %v3248 = vld [vmem:[%s1517 + $0x30] sm:$0xf]
        %v3249 = vld [vmem:[%s1517 + $0x34] sm:$0xf]
        %v3250 = vld [vmem:[%s1517 + $0x38] sm:$0xf]
        %v3251 = vld [vmem:[%s1517 + $0x3c] sm:$0xf]
        %v3252 = vld [vmem:[%s1517 + $0x40] sm:$0xf]
        %v3253 = vld [vmem:[%s1517 + $0x44] sm:$0xf]
        %v3254 = vld [vmem:[%s1517 + $0x48] sm:$0xf]
        %v3255 = vld [vmem:[%s1517 + $0x4c] sm:$0xf]
        %v3256 = vld [vmem:[%s1517 + $0x50] sm:$0xf]
        %v3257 = vld [vmem:[%s1517 + $0x54] sm:$0xf]
        %v3258 = vld [vmem:[%s1517 + $0x58] sm:$0xf]
        %v3259 = vld [vmem:[%s1517 + $0x5c] sm:$0xf]
        %v3260 = vld [vmem:[%s1517 + $0x60] sm:$0xf]
        %v3261 = vld [vmem:[%s1517 + $0x64] sm:$0xf]
        %v3262 = vld [vmem:[%s1517 + $0x68] sm:$0xf]
        %v3263 = vld [vmem:[%s1517 + $0x6c] sm:$0xf]
        %v3264 = vld [vmem:[%s1517 + $0x70] sm:$0xf]
        %v3265 = vld [vmem:[%s1517 + $0x74] sm:$0xf]
        %v3266 = vld [vmem:[%s1517 + $0x78] sm:$0xf]
        %v3267 = vld [vmem:[%s1517 + $0x7c] sm:$0xf]
        %v3268 = vld [vmem:[%s1517 + $0x80] sm:$0xf]
        %v3269 = vld [vmem:[%s1517 + $0x84] sm:$0xf]
        %v3270 = vld [vmem:[%s1517 + $0x88] sm:$0xf]
        %v3271 = vld [vmem:[%s1517 + $0x8c] sm:$0xf]
        %v3272 = vld [vmem:[%s1517 + $0x90] sm:$0xf]
        %v3273 = vld [vmem:[%s1517 + $0x94] sm:$0xf]
        %v3274 = vld [vmem:[%s1517 + $0x98] sm:$0xf]
        %v3275 = vld [vmem:[%s1517 + $0x9c] sm:$0xf]
        %v3276 = vld [vmem:[%s1517 + $0xa0] sm:$0xf]
        %v3277 = vld [vmem:[%s1517 + $0xa4] sm:$0xf]
        %v3278 = vld [vmem:[%s1517 + $0xa8] sm:$0xf]
        %v3279 = vld [vmem:[%s1517 + $0xac] sm:$0xf]
        %v3280 = vld [vmem:[%s1517 + $0xb0] sm:$0xf]
        %v3281 = vld [vmem:[%s1517 + $0xb4] sm:$0xf]
        %v3282 = vld [vmem:[%s1517 + $0xb8] sm:$0xf]
        %v3283 = vld [vmem:[%s1517 + $0xbc] sm:$0xf]
        %s3284 = scalar_lea.vmem [#allocation10], 192
        %v3285 = vld [vmem:[%s3284] sm:$0xf]
        %v3286 = vld [vmem:[%s3284 + $0x4] sm:$0xf]
        %v3287 = vld [vmem:[%s3284 + $0x8] sm:$0xf]
        %v3288 = vld [vmem:[%s3284 + $0xc] sm:$0xf]
        %v3289 = vld [vmem:[%s3284 + $0x10] sm:$0xf]
        %v3290 = vld [vmem:[%s3284 + $0x14] sm:$0xf]
        %v3291 = vld [vmem:[%s3284 + $0x18] sm:$0xf]
        %v3292 = vld [vmem:[%s3284 + $0x1c] sm:$0xf]
        %v3293 = vld [vmem:[%s3284 + $0x20] sm:$0xf]
        %v3294 = vld [vmem:[%s3284 + $0x24] sm:$0xf]
        %v3295 = vld [vmem:[%s3284 + $0x28] sm:$0xf]
        %v3296 = vld [vmem:[%s3284 + $0x2c] sm:$0xf]
        %v3297 = vld [vmem:[%s3284 + $0x30] sm:$0xf]
        %v3298 = vld [vmem:[%s3284 + $0x34] sm:$0xf]
        %v3299 = vld [vmem:[%s3284 + $0x38] sm:$0xf]
        %v3300 = vld [vmem:[%s3284 + $0x3c] sm:$0xf]
        %v3349 = vunpack.c.l.b16 %v3236
        %v3350 = vunpack.c.l.b16 %v3237
        %v3351 = vunpack.c.l.b16 %v3238
        %v3352 = vunpack.c.l.b16 %v3239
        %v3353 = vunpack.c.l.b16 %v3240
        %v3354 = vunpack.c.l.b16 %v3241
        %v3355 = vunpack.c.l.b16 %v3242
        %v3356 = vunpack.c.l.b16 %v3243
        %v3357 = vunpack.c.l.b16 %v3244
        %v3358 = vunpack.c.l.b16 %v3245
        %v3359 = vunpack.c.l.b16 %v3246
        %v3360 = vunpack.c.l.b16 %v3247
        %v3361 = vunpack.c.l.b16 %v3248
        %v3362 = vunpack.c.l.b16 %v3249
        %v3363 = vunpack.c.l.b16 %v3250
        %v3364 = vunpack.c.l.b16 %v3251
        %v3365 = vunpack.c.l.b16 %v3252
        %v3366 = vunpack.c.l.b16 %v3253
        %v3367 = vunpack.c.l.b16 %v3254
        %v3368 = vunpack.c.l.b16 %v3255
        %v3369 = vunpack.c.l.b16 %v3256
        %v3370 = vunpack.c.l.b16 %v3257
        %v3371 = vunpack.c.l.b16 %v3258
        %v3372 = vunpack.c.l.b16 %v3259
        %v3373 = vunpack.c.l.b16 %v3260
        %v3374 = vunpack.c.l.b16 %v3261
        %v3375 = vunpack.c.l.b16 %v3262
        %v3376 = vunpack.c.l.b16 %v3263
        %v3377 = vunpack.c.l.b16 %v3264
        %v3378 = vunpack.c.l.b16 %v3265
        %v3379 = vunpack.c.l.b16 %v3266
        %v3380 = vunpack.c.l.b16 %v3267
        %v3381 = vunpack.c.l.b16 %v3268
        %v3382 = vunpack.c.l.b16 %v3269
        %v3383 = vunpack.c.l.b16 %v3270
        %v3384 = vunpack.c.l.b16 %v3271
        %v3385 = vunpack.c.l.b16 %v3272
        %v3386 = vunpack.c.l.b16 %v3273
        %v3387 = vunpack.c.l.b16 %v3274
        %v3388 = vunpack.c.l.b16 %v3275
        %v3389 = vunpack.c.l.b16 %v3276
        %v3390 = vunpack.c.l.b16 %v3277
        %v3391 = vunpack.c.l.b16 %v3278
        %v3392 = vunpack.c.l.b16 %v3279
        %v3393 = vunpack.c.l.b16 %v3280
        %v3394 = vunpack.c.l.b16 %v3281
        %v3395 = vunpack.c.l.b16 %v3282
        %v3396 = vunpack.c.l.b16 %v3283
        %v3397 = vpack.c.b16 %v3350, %v3349
        %v3398 = vpack.c.b16 %v3352, %v3351
        %v3399 = vpack.c.b16 %v3354, %v3353
        %v3400 = vpack.c.b16 %v3356, %v3355
        %v3401 = vpack.c.b16 %v3358, %v3357
        %v3402 = vpack.c.b16 %v3360, %v3359
        %v3403 = vpack.c.b16 %v3362, %v3361
        %v3404 = vpack.c.b16 %v3364, %v3363
        %v3405 = vpack.c.b16 %v3366, %v3365
        %v3406 = vpack.c.b16 %v3368, %v3367
        %v3407 = vpack.c.b16 %v3370, %v3369
        %v3408 = vpack.c.b16 %v3372, %v3371
        %v3409 = vpack.c.b16 %v3374, %v3373
        %v3410 = vpack.c.b16 %v3376, %v3375
        %v3411 = vpack.c.b16 %v3378, %v3377
        %v3412 = vpack.c.b16 %v3380, %v3379
        %v3413 = vpack.c.b16 %v3382, %v3381
        %v3414 = vpack.c.b16 %v3384, %v3383
        %v3415 = vpack.c.b16 %v3386, %v3385
        %v3416 = vpack.c.b16 %v3388, %v3387
        %v3417 = vpack.c.b16 %v3390, %v3389
        %v3418 = vpack.c.b16 %v3392, %v3391
        %v3419 = vpack.c.b16 %v3394, %v3393
        %v3420 = vpack.c.b16 %v3396, %v3395
        %v3461 = vunpack.c.l.b16 %v3285
        %v3462 = vunpack.c.l.b16 %v3286
        %v3463 = vunpack.c.l.b16 %v3287
        %v3464 = vunpack.c.l.b16 %v3288
        %v3465 = vunpack.c.l.b16 %v3289
        %v3466 = vunpack.c.l.b16 %v3290
        %v3467 = vunpack.c.l.b16 %v3291
        %v3468 = vunpack.c.l.b16 %v3292
        %v3469 = vunpack.c.l.b16 %v3293
        %v3470 = vunpack.c.l.b16 %v3294
        %v3471 = vunpack.c.l.b16 %v3295
        %v3472 = vunpack.c.l.b16 %v3296
        %v3473 = vunpack.c.l.b16 %v3297
        %v3474 = vunpack.c.l.b16 %v3298
        %v3475 = vunpack.c.l.b16 %v3299
        %v3476 = vunpack.c.l.b16 %v3300
        %v3477 = vpack.c.b16 %v3462, %v3461
        %v3478 = vpack.c.b16 %v3464, %v3463
        %v3479 = vpack.c.b16 %v3466, %v3465
        %v3480 = vpack.c.b16 %v3468, %v3467
        %v3481 = vpack.c.b16 %v3470, %v3469
        %v3482 = vpack.c.b16 %v3472, %v3471
        %v3483 = vpack.c.b16 %v3474, %v3473
        %v3484 = vpack.c.b16 %v3476, %v3475
        %3493 = vmatprep.subr.bf16.mxu0 0
        %3494 = vmatpush1.bf16.msra.mxu0 %v3484
        %3495 = vmatprep.subr.bf16.mxu0 0
        %3496 = vmatpush1.bf16.msra.mxu0 %v3483
        %3497 = vmatprep.subr.bf16.mxu0 0
        %3498 = vmatpush1.bf16.msra.mxu0 %v3482
        %3499 = vmatprep.subr.bf16.mxu0 0
        %3500 = vmatpush1.bf16.msra.mxu0 %v3481
        %3501 = vmatprep.subr.bf16.mxu0 0
        %3502 = vmatpush1.bf16.msra.mxu0 %v3480
        %3503 = vmatprep.subr.bf16.mxu0 0
        %3504 = vmatpush1.bf16.msra.mxu0 %v3479
        %3505 = vmatprep.subr.bf16.mxu0 0
        %3506 = vmatpush1.bf16.msra.mxu0 %v3478
        %3507 = vmatprep.subr.bf16.mxu0 0
        %3508 = vmatpush1.bf16.msra.mxu0 %v3477
        %3509 = vmatprep.subr.bf16.mxu0 0
        %3510 = vmatpush2.bf16.msra.mxu0 0
        %3511 = vmatprep.subr.bf16.mxu0 0
        %3512 = vmatpush2.bf16.msra.mxu0 0
        %3513 = vmatprep.subr.bf16.mxu0 0
        %3514 = vmatpush2.bf16.msra.mxu0 0
        %3515 = vmatprep.subr.bf16.mxu0 0
        %3516 = vmatpush2.bf16.msra.mxu0 0
        %3517 = vmatprep.subr.bf16.mxu0 0
        %3518 = vmatpush2.bf16.msra.mxu0 0
        %3519 = vmatprep.subr.bf16.mxu0 0
        %3520 = vmatpush2.bf16.msra.mxu0 0
        %3521 = vmatprep.subr.bf16.mxu0 0
        %3522 = vmatpush2.bf16.msra.mxu0 0
        %3523 = vmatprep.subr.bf16.mxu0 0
        %3524 = vmatpush2.bf16.msra.mxu0 0
        %3525 = vmatprep.mubr.bf16.mxu0 0
        %3526 = vmatmul.mubr.bf16.gmra.mxu0 %v3397
        %v3527 = vpop.f32.mrf.mxu0
        %v3528 = vadd.f32 0.0, %v3527
        %v3529 = vpop.f32.mrf.mxu0
        %v3530 = vpop.f32.mrf.mxu0
        %v3531 = vadd.f32 0.0, %v3530
        %v3532 = vpop.f32.mrf.mxu0
        %3533 = vmatprep.mubr.bf16.mxu0 0
        %3534 = vmatmul.mubr.bf16.gmra.mxu0 %v3398
        %v3535 = vpop.f32.mrf.mxu0
        %v3536 = vadd.f32 0.0, %v3535
        %v3537 = vpop.f32.mrf.mxu0
        %v3538 = vpop.f32.mrf.mxu0
        %v3539 = vadd.f32 0.0, %v3538
        %v3540 = vpop.f32.mrf.mxu0
        %3541 = vmatprep.mubr.bf16.mxu0 0
        %3542 = vmatmul.mubr.bf16.gmra.mxu0 %v3399
        %v3543 = vpop.f32.mrf.mxu0
        %v3544 = vadd.f32 0.0, %v3543
        %v3545 = vpop.f32.mrf.mxu0
        %v3546 = vpop.f32.mrf.mxu0
        %v3547 = vadd.f32 0.0, %v3546
        %v3548 = vpop.f32.mrf.mxu0
        %3549 = vmatprep.mubr.bf16.mxu0 0
        %3550 = vmatmul.mubr.bf16.gmra.mxu0 %v3400
        %v3551 = vpop.f32.mrf.mxu0
        %v3552 = vadd.f32 0.0, %v3551
        %v3553 = vpop.f32.mrf.mxu0
        %v3554 = vpop.f32.mrf.mxu0
        %v3555 = vadd.f32 0.0, %v3554
        %v3556 = vpop.f32.mrf.mxu0
        %3557 = vmatprep.mubr.bf16.mxu0 0
        %3558 = vmatmul.mubr.bf16.gmra.mxu0 %v3401
        %v3559 = vpop.f32.mrf.mxu0
        %v3560 = vadd.f32 0.0, %v3559
        %v3561 = vpop.f32.mrf.mxu0
        %v3562 = vpop.f32.mrf.mxu0
        %v3563 = vadd.f32 0.0, %v3562
        %v3564 = vpop.f32.mrf.mxu0
        %3565 = vmatprep.mubr.bf16.mxu0 0
        %3566 = vmatmul.mubr.bf16.gmra.mxu0 %v3402
        %v3567 = vpop.f32.mrf.mxu0
        %v3568 = vadd.f32 0.0, %v3567
        %v3569 = vpop.f32.mrf.mxu0
        %v3570 = vpop.f32.mrf.mxu0
        %v3571 = vadd.f32 0.0, %v3570
        %v3572 = vpop.f32.mrf.mxu0
        %3573 = vmatprep.mubr.bf16.mxu0 0
        %3574 = vmatmul.mubr.bf16.gmra.mxu0 %v3403
        %v3575 = vpop.f32.mrf.mxu0
        %v3576 = vadd.f32 0.0, %v3575
        %v3577 = vpop.f32.mrf.mxu0
        %v3578 = vpop.f32.mrf.mxu0
        %v3579 = vadd.f32 0.0, %v3578
        %v3580 = vpop.f32.mrf.mxu0
        %3581 = vmatprep.mubr.bf16.mxu0 0
        %3582 = vmatmul.mubr.bf16.gmra.mxu0 %v3404
        %v3583 = vpop.f32.mrf.mxu0
        %v3584 = vadd.f32 0.0, %v3583
        %v3585 = vpop.f32.mrf.mxu0
        %v3586 = vpop.f32.mrf.mxu0
        %v3587 = vadd.f32 0.0, %v3586
        %v3588 = vpop.f32.mrf.mxu0
        %3589 = vmatprep.mubr.bf16.mxu0 0
        %3590 = vmatmul.mubr.bf16.gmra.mxu0 %v3405
        %v3591 = vpop.f32.mrf.mxu0
        %v3592 = vadd.f32 0.0, %v3591
        %v3593 = vpop.f32.mrf.mxu0
        %v3594 = vpop.f32.mrf.mxu0
        %v3595 = vadd.f32 0.0, %v3594
        %v3596 = vpop.f32.mrf.mxu0
        %3597 = vmatprep.mubr.bf16.mxu0 0
        %3598 = vmatmul.mubr.bf16.gmra.mxu0 %v3406
        %v3599 = vpop.f32.mrf.mxu0
        %v3600 = vadd.f32 0.0, %v3599
        %v3601 = vpop.f32.mrf.mxu0
        %v3602 = vpop.f32.mrf.mxu0
        %v3603 = vadd.f32 0.0, %v3602
        %v3604 = vpop.f32.mrf.mxu0
        %3605 = vmatprep.mubr.bf16.mxu0 0
        %3606 = vmatmul.mubr.bf16.gmra.mxu0 %v3407
        %v3607 = vpop.f32.mrf.mxu0
        %v3608 = vadd.f32 0.0, %v3607
        %v3609 = vpop.f32.mrf.mxu0
        %v3610 = vpop.f32.mrf.mxu0
        %v3611 = vadd.f32 0.0, %v3610
        %v3612 = vpop.f32.mrf.mxu0
        %3613 = vmatprep.mubr.bf16.mxu0 0
        %3614 = vmatmul.mubr.bf16.gmra.mxu0 %v3408
        %v3615 = vpop.f32.mrf.mxu0
        %v3616 = vadd.f32 0.0, %v3615
        %v3617 = vpop.f32.mrf.mxu0
        %v3618 = vpop.f32.mrf.mxu0
        %v3619 = vadd.f32 0.0, %v3618
        %v3620 = vpop.f32.mrf.mxu0
        %3621 = vmatprep.mubr.bf16.mxu0 0
        %3622 = vmatmul.mubr.bf16.gmra.mxu0 %v3409
        %v3623 = vpop.f32.mrf.mxu0
        %v3624 = vadd.f32 0.0, %v3623
        %v3625 = vpop.f32.mrf.mxu0
        %v3626 = vpop.f32.mrf.mxu0
        %v3627 = vadd.f32 0.0, %v3626
        %v3628 = vpop.f32.mrf.mxu0
        %3629 = vmatprep.mubr.bf16.mxu0 0
        %3630 = vmatmul.mubr.bf16.gmra.mxu0 %v3410
        %v3631 = vpop.f32.mrf.mxu0
        %v3632 = vadd.f32 0.0, %v3631
        %v3633 = vpop.f32.mrf.mxu0
        %v3634 = vpop.f32.mrf.mxu0
        %v3635 = vadd.f32 0.0, %v3634
        %v3636 = vpop.f32.mrf.mxu0
        %3637 = vmatprep.mubr.bf16.mxu0 0
        %3638 = vmatmul.mubr.bf16.gmra.mxu0 %v3411
        %v3639 = vpop.f32.mrf.mxu0
        %v3640 = vadd.f32 0.0, %v3639
        %v3641 = vpop.f32.mrf.mxu0
        %v3642 = vpop.f32.mrf.mxu0
        %v3643 = vadd.f32 0.0, %v3642
        %v3644 = vpop.f32.mrf.mxu0
        %3645 = vmatprep.mubr.bf16.mxu0 0
        %3646 = vmatmul.mubr.bf16.gmra.mxu0 %v3412
        %v3647 = vpop.f32.mrf.mxu0
        %v3648 = vadd.f32 0.0, %v3647
        %v3649 = vpop.f32.mrf.mxu0
        %v3650 = vpop.f32.mrf.mxu0
        %v3651 = vadd.f32 0.0, %v3650
        %v3652 = vpop.f32.mrf.mxu0
        %3653 = vmatprep.mubr.bf16.mxu0 0
        %3654 = vmatmul.mubr.bf16.gmra.mxu0 %v3413
        %v3655 = vpop.f32.mrf.mxu0
        %v3656 = vadd.f32 0.0, %v3655
        %v3657 = vpop.f32.mrf.mxu0
        %v3658 = vpop.f32.mrf.mxu0
        %v3659 = vadd.f32 0.0, %v3658
        %v3660 = vpop.f32.mrf.mxu0
        %3661 = vmatprep.mubr.bf16.mxu0 0
        %3662 = vmatmul.mubr.bf16.gmra.mxu0 %v3414
        %v3663 = vpop.f32.mrf.mxu0
        %v3664 = vadd.f32 0.0, %v3663
        %v3665 = vpop.f32.mrf.mxu0
        %v3666 = vpop.f32.mrf.mxu0
        %v3667 = vadd.f32 0.0, %v3666
        %v3668 = vpop.f32.mrf.mxu0
        %3669 = vmatprep.mubr.bf16.mxu0 0
        %3670 = vmatmul.mubr.bf16.gmra.mxu0 %v3415
        %v3671 = vpop.f32.mrf.mxu0
        %v3672 = vadd.f32 0.0, %v3671
        %v3673 = vpop.f32.mrf.mxu0
        %v3674 = vpop.f32.mrf.mxu0
        %v3675 = vadd.f32 0.0, %v3674
        %v3676 = vpop.f32.mrf.mxu0
        %3677 = vmatprep.mubr.bf16.mxu0 0
        %3678 = vmatmul.mubr.bf16.gmra.mxu0 %v3416
        %v3679 = vpop.f32.mrf.mxu0
        %v3680 = vadd.f32 0.0, %v3679
        %v3681 = vpop.f32.mrf.mxu0
        %v3682 = vpop.f32.mrf.mxu0
        %v3683 = vadd.f32 0.0, %v3682
        %v3684 = vpop.f32.mrf.mxu0
        %3685 = vmatprep.mubr.bf16.mxu0 0
        %3686 = vmatmul.mubr.bf16.gmra.mxu0 %v3417
        %v3687 = vpop.f32.mrf.mxu0
        %v3688 = vadd.f32 0.0, %v3687
        %v3689 = vpop.f32.mrf.mxu0
        %v3690 = vpop.f32.mrf.mxu0
        %v3691 = vadd.f32 0.0, %v3690
        %v3692 = vpop.f32.mrf.mxu0
        %3693 = vmatprep.mubr.bf16.mxu0 0
        %3694 = vmatmul.mubr.bf16.gmra.mxu0 %v3418
        %v3695 = vpop.f32.mrf.mxu0
        %v3696 = vadd.f32 0.0, %v3695
        %v3697 = vpop.f32.mrf.mxu0
        %v3698 = vpop.f32.mrf.mxu0
        %v3699 = vadd.f32 0.0, %v3698
        %v3700 = vpop.f32.mrf.mxu0
        %3701 = vmatprep.mubr.bf16.mxu0 0
        %3702 = vmatmul.mubr.bf16.gmra.mxu0 %v3419
        %v3703 = vpop.f32.mrf.mxu0
        %v3704 = vadd.f32 0.0, %v3703
        %v3705 = vpop.f32.mrf.mxu0
        %v3706 = vpop.f32.mrf.mxu0
        %v3707 = vadd.f32 0.0, %v3706
        %v3708 = vpop.f32.mrf.mxu0
        %3709 = vmatprep.mubr.bf16.mxu0 0
        %3710 = vmatmul.mubr.bf16.gmra.mxu0 %v3420
        %v3711 = vpop.f32.mrf.mxu0
        %v3712 = vadd.f32 0.0, %v3711
        %v3713 = vpop.f32.mrf.mxu0
        %v3714 = vpop.f32.mrf.mxu0
        %v3715 = vadd.f32 0.0, %v3714
        %v3716 = vpop.f32.mrf.mxu0
        %3717 = vdwg.mxu0
        %v3718 = vadd.f32 %v3188, %v3528
        %v3719 = vadd.f32 %v3189, %v3531
        %v3720 = vadd.f32 %v3190, %v3536
        %v3721 = vadd.f32 %v3191, %v3539
        %v3722 = vadd.f32 %v3192, %v3544
        %v3723 = vadd.f32 %v3193, %v3547
        %v3724 = vadd.f32 %v3194, %v3552
        %v3725 = vadd.f32 %v3195, %v3555
        %v3726 = vadd.f32 %v3196, %v3560
        %v3727 = vadd.f32 %v3197, %v3563
        %v3728 = vadd.f32 %v3198, %v3568
        %v3729 = vadd.f32 %v3199, %v3571
        %v3730 = vadd.f32 %v3200, %v3576
        %v3731 = vadd.f32 %v3201, %v3579
        %v3732 = vadd.f32 %v3202, %v3584
        %v3733 = vadd.f32 %v3203, %v3587
        %v3734 = vadd.f32 %v3204, %v3592
        %v3735 = vadd.f32 %v3205, %v3595
        %v3736 = vadd.f32 %v3206, %v3600
        %v3737 = vadd.f32 %v3207, %v3603
        %v3738 = vadd.f32 %v3208, %v3608
        %v3739 = vadd.f32 %v3209, %v3611
        %v3740 = vadd.f32 %v3210, %v3616
        %v3741 = vadd.f32 %v3211, %v3619
        %v3742 = vadd.f32 %v3212, %v3624
        %v3743 = vadd.f32 %v3213, %v3627
        %v3744 = vadd.f32 %v3214, %v3632
        %v3745 = vadd.f32 %v3215, %v3635
        %v3746 = vadd.f32 %v3216, %v3640
        %v3747 = vadd.f32 %v3217, %v3643
        %v3748 = vadd.f32 %v3218, %v3648
        %v3749 = vadd.f32 %v3219, %v3651
        %v3750 = vadd.f32 %v3220, %v3656
        %v3751 = vadd.f32 %v3221, %v3659
        %v3752 = vadd.f32 %v3222, %v3664
        %v3753 = vadd.f32 %v3223, %v3667
        %v3754 = vadd.f32 %v3224, %v3672
        %v3755 = vadd.f32 %v3225, %v3675
        %v3756 = vadd.f32 %v3226, %v3680
        %v3757 = vadd.f32 %v3227, %v3683
        %v3758 = vadd.f32 %v3228, %v3688
        %v3759 = vadd.f32 %v3229, %v3691
        %v3760 = vadd.f32 %v3230, %v3696
        %v3761 = vadd.f32 %v3231, %v3699
        %v3762 = vadd.f32 %v3232, %v3704
        %v3763 = vadd.f32 %v3233, %v3707
        %v3764 = vadd.f32 %v3234, %v3712
        %v3765 = vadd.f32 %v3235, %v3715
        %v3766 = vld [vmem:[%s1260] sm:$0xf]
        %v3767 = vld [vmem:[%s1260 + $0x4] sm:$0xf]
        %v3768 = vld [vmem:[%s1260 + $0x8] sm:$0xf]
        %v3769 = vld [vmem:[%s1260 + $0xc] sm:$0xf]
        %v3770 = vld [vmem:[%s1260 + $0x10] sm:$0xf]
        %v3771 = vld [vmem:[%s1260 + $0x14] sm:$0xf]
        %v3772 = vld [vmem:[%s1260 + $0x18] sm:$0xf]
        %v3773 = vld [vmem:[%s1260 + $0x1c] sm:$0xf]
        %v3774 = vld [vmem:[%s1260 + $0x20] sm:$0xf]
        %v3775 = vld [vmem:[%s1260 + $0x24] sm:$0xf]
        %v3776 = vld [vmem:[%s1260 + $0x28] sm:$0xf]
        %v3777 = vld [vmem:[%s1260 + $0x2c] sm:$0xf]
        %v3778 = vld [vmem:[%s1260 + $0x30] sm:$0xf]
        %v3779 = vld [vmem:[%s1260 + $0x34] sm:$0xf]
        %v3780 = vld [vmem:[%s1260 + $0x38] sm:$0xf]
        %v3781 = vld [vmem:[%s1260 + $0x3c] sm:$0xf]
        %v3782 = vld [vmem:[%s1260 + $0x40] sm:$0xf]
        %v3783 = vld [vmem:[%s1260 + $0x44] sm:$0xf]
        %v3784 = vld [vmem:[%s1260 + $0x48] sm:$0xf]
        %v3785 = vld [vmem:[%s1260 + $0x4c] sm:$0xf]
        %v3786 = vld [vmem:[%s1260 + $0x50] sm:$0xf]
        %v3787 = vld [vmem:[%s1260 + $0x54] sm:$0xf]
        %v3788 = vld [vmem:[%s1260 + $0x58] sm:$0xf]
        %v3789 = vld [vmem:[%s1260 + $0x5c] sm:$0xf]
        %v3790 = vld [vmem:[%s1260 + $0x60] sm:$0xf]
        %v3791 = vld [vmem:[%s1260 + $0x64] sm:$0xf]
        %v3792 = vld [vmem:[%s1260 + $0x68] sm:$0xf]
        %v3793 = vld [vmem:[%s1260 + $0x6c] sm:$0xf]
        %v3794 = vld [vmem:[%s1260 + $0x70] sm:$0xf]
        %v3795 = vld [vmem:[%s1260 + $0x74] sm:$0xf]
        %v3796 = vld [vmem:[%s1260 + $0x78] sm:$0xf]
        %v3797 = vld [vmem:[%s1260 + $0x7c] sm:$0xf]
        %v3798 = vld [vmem:[%s1260 + $0x80] sm:$0xf]
        %v3799 = vld [vmem:[%s1260 + $0x84] sm:$0xf]
        %v3800 = vld [vmem:[%s1260 + $0x88] sm:$0xf]
        %v3801 = vld [vmem:[%s1260 + $0x8c] sm:$0xf]
        %v3802 = vld [vmem:[%s1260 + $0x90] sm:$0xf]
        %v3803 = vld [vmem:[%s1260 + $0x94] sm:$0xf]
        %v3804 = vld [vmem:[%s1260 + $0x98] sm:$0xf]
        %v3805 = vld [vmem:[%s1260 + $0x9c] sm:$0xf]
        %v3806 = vld [vmem:[%s1260 + $0xa0] sm:$0xf]
        %v3807 = vld [vmem:[%s1260 + $0xa4] sm:$0xf]
        %v3808 = vld [vmem:[%s1260 + $0xa8] sm:$0xf]
        %v3809 = vld [vmem:[%s1260 + $0xac] sm:$0xf]
        %v3810 = vld [vmem:[%s1260 + $0xb0] sm:$0xf]
        %v3811 = vld [vmem:[%s1260 + $0xb4] sm:$0xf]
        %v3812 = vld [vmem:[%s1260 + $0xb8] sm:$0xf]
        %v3813 = vld [vmem:[%s1260 + $0xbc] sm:$0xf]
        %s3814 = scalar_lea.vmem [#allocation10], 256
        %v3815 = vld [vmem:[%s3814] sm:$0xf]
        %v3816 = vld [vmem:[%s3814 + $0x4] sm:$0xf]
        %v3817 = vld [vmem:[%s3814 + $0x8] sm:$0xf]
        %v3818 = vld [vmem:[%s3814 + $0xc] sm:$0xf]
        %v3819 = vld [vmem:[%s3814 + $0x10] sm:$0xf]
        %v3820 = vld [vmem:[%s3814 + $0x14] sm:$0xf]
        %v3821 = vld [vmem:[%s3814 + $0x18] sm:$0xf]
        %v3822 = vld [vmem:[%s3814 + $0x1c] sm:$0xf]
        %v3823 = vld [vmem:[%s3814 + $0x20] sm:$0xf]
        %v3824 = vld [vmem:[%s3814 + $0x24] sm:$0xf]
        %v3825 = vld [vmem:[%s3814 + $0x28] sm:$0xf]
        %v3826 = vld [vmem:[%s3814 + $0x2c] sm:$0xf]
        %v3827 = vld [vmem:[%s3814 + $0x30] sm:$0xf]
        %v3828 = vld [vmem:[%s3814 + $0x34] sm:$0xf]
        %v3829 = vld [vmem:[%s3814 + $0x38] sm:$0xf]
        %v3830 = vld [vmem:[%s3814 + $0x3c] sm:$0xf]
        %v3879 = vunpack.c.l.b16 %v3766
        %v3880 = vunpack.c.l.b16 %v3767
        %v3881 = vunpack.c.l.b16 %v3768
        %v3882 = vunpack.c.l.b16 %v3769
        %v3883 = vunpack.c.l.b16 %v3770
        %v3884 = vunpack.c.l.b16 %v3771
        %v3885 = vunpack.c.l.b16 %v3772
        %v3886 = vunpack.c.l.b16 %v3773
        %v3887 = vunpack.c.l.b16 %v3774
        %v3888 = vunpack.c.l.b16 %v3775
        %v3889 = vunpack.c.l.b16 %v3776
        %v3890 = vunpack.c.l.b16 %v3777
        %v3891 = vunpack.c.l.b16 %v3778
        %v3892 = vunpack.c.l.b16 %v3779
        %v3893 = vunpack.c.l.b16 %v3780
        %v3894 = vunpack.c.l.b16 %v3781
        %v3895 = vunpack.c.l.b16 %v3782
        %v3896 = vunpack.c.l.b16 %v3783
        %v3897 = vunpack.c.l.b16 %v3784
        %v3898 = vunpack.c.l.b16 %v3785
        %v3899 = vunpack.c.l.b16 %v3786
        %v3900 = vunpack.c.l.b16 %v3787
        %v3901 = vunpack.c.l.b16 %v3788
        %v3902 = vunpack.c.l.b16 %v3789
        %v3903 = vunpack.c.l.b16 %v3790
        %v3904 = vunpack.c.l.b16 %v3791
        %v3905 = vunpack.c.l.b16 %v3792
        %v3906 = vunpack.c.l.b16 %v3793
        %v3907 = vunpack.c.l.b16 %v3794
        %v3908 = vunpack.c.l.b16 %v3795
        %v3909 = vunpack.c.l.b16 %v3796
        %v3910 = vunpack.c.l.b16 %v3797
        %v3911 = vunpack.c.l.b16 %v3798
        %v3912 = vunpack.c.l.b16 %v3799
        %v3913 = vunpack.c.l.b16 %v3800
        %v3914 = vunpack.c.l.b16 %v3801
        %v3915 = vunpack.c.l.b16 %v3802
        %v3916 = vunpack.c.l.b16 %v3803
        %v3917 = vunpack.c.l.b16 %v3804
        %v3918 = vunpack.c.l.b16 %v3805
        %v3919 = vunpack.c.l.b16 %v3806
        %v3920 = vunpack.c.l.b16 %v3807
        %v3921 = vunpack.c.l.b16 %v3808
        %v3922 = vunpack.c.l.b16 %v3809
        %v3923 = vunpack.c.l.b16 %v3810
        %v3924 = vunpack.c.l.b16 %v3811
        %v3925 = vunpack.c.l.b16 %v3812
        %v3926 = vunpack.c.l.b16 %v3813
        %v3927 = vpack.c.b16 %v3880, %v3879
        %v3928 = vpack.c.b16 %v3882, %v3881
        %v3929 = vpack.c.b16 %v3884, %v3883
        %v3930 = vpack.c.b16 %v3886, %v3885
        %v3931 = vpack.c.b16 %v3888, %v3887
        %v3932 = vpack.c.b16 %v3890, %v3889
        %v3933 = vpack.c.b16 %v3892, %v3891
        %v3934 = vpack.c.b16 %v3894, %v3893
        %v3935 = vpack.c.b16 %v3896, %v3895
        %v3936 = vpack.c.b16 %v3898, %v3897
        %v3937 = vpack.c.b16 %v3900, %v3899
        %v3938 = vpack.c.b16 %v3902, %v3901
        %v3939 = vpack.c.b16 %v3904, %v3903
        %v3940 = vpack.c.b16 %v3906, %v3905
        %v3941 = vpack.c.b16 %v3908, %v3907
        %v3942 = vpack.c.b16 %v3910, %v3909
        %v3943 = vpack.c.b16 %v3912, %v3911
        %v3944 = vpack.c.b16 %v3914, %v3913
        %v3945 = vpack.c.b16 %v3916, %v3915
        %v3946 = vpack.c.b16 %v3918, %v3917
        %v3947 = vpack.c.b16 %v3920, %v3919
        %v3948 = vpack.c.b16 %v3922, %v3921
        %v3949 = vpack.c.b16 %v3924, %v3923
        %v3950 = vpack.c.b16 %v3926, %v3925
        %v3991 = vunpack.c.l.b16 %v3815
        %v3992 = vunpack.c.l.b16 %v3816
        %v3993 = vunpack.c.l.b16 %v3817
        %v3994 = vunpack.c.l.b16 %v3818
        %v3995 = vunpack.c.l.b16 %v3819
        %v3996 = vunpack.c.l.b16 %v3820
        %v3997 = vunpack.c.l.b16 %v3821
        %v3998 = vunpack.c.l.b16 %v3822
        %v3999 = vunpack.c.l.b16 %v3823
        %v4000 = vunpack.c.l.b16 %v3824
        %v4001 = vunpack.c.l.b16 %v3825
        %v4002 = vunpack.c.l.b16 %v3826
        %v4003 = vunpack.c.l.b16 %v3827
        %v4004 = vunpack.c.l.b16 %v3828
        %v4005 = vunpack.c.l.b16 %v3829
        %v4006 = vunpack.c.l.b16 %v3830
        %v4007 = vpack.c.b16 %v3992, %v3991
        %v4008 = vpack.c.b16 %v3994, %v3993
        %v4009 = vpack.c.b16 %v3996, %v3995
        %v4010 = vpack.c.b16 %v3998, %v3997
        %v4011 = vpack.c.b16 %v4000, %v3999
        %v4012 = vpack.c.b16 %v4002, %v4001
        %v4013 = vpack.c.b16 %v4004, %v4003
        %v4014 = vpack.c.b16 %v4006, %v4005
        %4023 = vmatprep.subr.bf16.mxu0 0
        %4024 = vmatpush1.bf16.msra.mxu0 %v4014
        %4025 = vmatprep.subr.bf16.mxu0 0
        %4026 = vmatpush1.bf16.msra.mxu0 %v4013
        %4027 = vmatprep.subr.bf16.mxu0 0
        %4028 = vmatpush1.bf16.msra.mxu0 %v4012
        %4029 = vmatprep.subr.bf16.mxu0 0
        %4030 = vmatpush1.bf16.msra.mxu0 %v4011
        %4031 = vmatprep.subr.bf16.mxu0 0
        %4032 = vmatpush1.bf16.msra.mxu0 %v4010
        %4033 = vmatprep.subr.bf16.mxu0 0
        %4034 = vmatpush1.bf16.msra.mxu0 %v4009
        %4035 = vmatprep.subr.bf16.mxu0 0
        %4036 = vmatpush1.bf16.msra.mxu0 %v4008
        %4037 = vmatprep.subr.bf16.mxu0 0
        %4038 = vmatpush1.bf16.msra.mxu0 %v4007
        %4039 = vmatprep.subr.bf16.mxu0 0
        %4040 = vmatpush2.bf16.msra.mxu0 0
        %4041 = vmatprep.subr.bf16.mxu0 0
        %4042 = vmatpush2.bf16.msra.mxu0 0
        %4043 = vmatprep.subr.bf16.mxu0 0
        %4044 = vmatpush2.bf16.msra.mxu0 0
        %4045 = vmatprep.subr.bf16.mxu0 0
        %4046 = vmatpush2.bf16.msra.mxu0 0
        %4047 = vmatprep.subr.bf16.mxu0 0
        %4048 = vmatpush2.bf16.msra.mxu0 0
        %4049 = vmatprep.subr.bf16.mxu0 0
        %4050 = vmatpush2.bf16.msra.mxu0 0
        %4051 = vmatprep.subr.bf16.mxu0 0
        %4052 = vmatpush2.bf16.msra.mxu0 0
        %4053 = vmatprep.subr.bf16.mxu0 0
        %4054 = vmatpush2.bf16.msra.mxu0 0
        %4055 = vmatprep.mubr.bf16.mxu0 0
        %4056 = vmatmul.mubr.bf16.gmra.mxu0 %v3927
        %v4057 = vpop.f32.mrf.mxu0
        %v4058 = vadd.f32 0.0, %v4057
        %v4059 = vpop.f32.mrf.mxu0
        %v4060 = vpop.f32.mrf.mxu0
        %v4061 = vadd.f32 0.0, %v4060
        %v4062 = vpop.f32.mrf.mxu0
        %4063 = vmatprep.mubr.bf16.mxu0 0
        %4064 = vmatmul.mubr.bf16.gmra.mxu0 %v3928
        %v4065 = vpop.f32.mrf.mxu0
        %v4066 = vadd.f32 0.0, %v4065
        %v4067 = vpop.f32.mrf.mxu0
        %v4068 = vpop.f32.mrf.mxu0
        %v4069 = vadd.f32 0.0, %v4068
        %v4070 = vpop.f32.mrf.mxu0
        %4071 = vmatprep.mubr.bf16.mxu0 0
        %4072 = vmatmul.mubr.bf16.gmra.mxu0 %v3929
        %v4073 = vpop.f32.mrf.mxu0
        %v4074 = vadd.f32 0.0, %v4073
        %v4075 = vpop.f32.mrf.mxu0
        %v4076 = vpop.f32.mrf.mxu0
        %v4077 = vadd.f32 0.0, %v4076
        %v4078 = vpop.f32.mrf.mxu0
        %4079 = vmatprep.mubr.bf16.mxu0 0
        %4080 = vmatmul.mubr.bf16.gmra.mxu0 %v3930
        %v4081 = vpop.f32.mrf.mxu0
        %v4082 = vadd.f32 0.0, %v4081
        %v4083 = vpop.f32.mrf.mxu0
        %v4084 = vpop.f32.mrf.mxu0
        %v4085 = vadd.f32 0.0, %v4084
        %v4086 = vpop.f32.mrf.mxu0
        %4087 = vmatprep.mubr.bf16.mxu0 0
        %4088 = vmatmul.mubr.bf16.gmra.mxu0 %v3931
        %v4089 = vpop.f32.mrf.mxu0
        %v4090 = vadd.f32 0.0, %v4089
        %v4091 = vpop.f32.mrf.mxu0
        %v4092 = vpop.f32.mrf.mxu0
        %v4093 = vadd.f32 0.0, %v4092
        %v4094 = vpop.f32.mrf.mxu0
        %4095 = vmatprep.mubr.bf16.mxu0 0
        %4096 = vmatmul.mubr.bf16.gmra.mxu0 %v3932
        %v4097 = vpop.f32.mrf.mxu0
        %v4098 = vadd.f32 0.0, %v4097
        %v4099 = vpop.f32.mrf.mxu0
        %v4100 = vpop.f32.mrf.mxu0
        %v4101 = vadd.f32 0.0, %v4100
        %v4102 = vpop.f32.mrf.mxu0
        %4103 = vmatprep.mubr.bf16.mxu0 0
        %4104 = vmatmul.mubr.bf16.gmra.mxu0 %v3933
        %v4105 = vpop.f32.mrf.mxu0
        %v4106 = vadd.f32 0.0, %v4105
        %v4107 = vpop.f32.mrf.mxu0
        %v4108 = vpop.f32.mrf.mxu0
        %v4109 = vadd.f32 0.0, %v4108
        %v4110 = vpop.f32.mrf.mxu0
        %4111 = vmatprep.mubr.bf16.mxu0 0
        %4112 = vmatmul.mubr.bf16.gmra.mxu0 %v3934
        %v4113 = vpop.f32.mrf.mxu0
        %v4114 = vadd.f32 0.0, %v4113
        %v4115 = vpop.f32.mrf.mxu0
        %v4116 = vpop.f32.mrf.mxu0
        %v4117 = vadd.f32 0.0, %v4116
        %v4118 = vpop.f32.mrf.mxu0
        %4119 = vmatprep.mubr.bf16.mxu0 0
        %4120 = vmatmul.mubr.bf16.gmra.mxu0 %v3935
        %v4121 = vpop.f32.mrf.mxu0
        %v4122 = vadd.f32 0.0, %v4121
        %v4123 = vpop.f32.mrf.mxu0
        %v4124 = vpop.f32.mrf.mxu0
        %v4125 = vadd.f32 0.0, %v4124
        %v4126 = vpop.f32.mrf.mxu0
        %4127 = vmatprep.mubr.bf16.mxu0 0
        %4128 = vmatmul.mubr.bf16.gmra.mxu0 %v3936
        %v4129 = vpop.f32.mrf.mxu0
        %v4130 = vadd.f32 0.0, %v4129
        %v4131 = vpop.f32.mrf.mxu0
        %v4132 = vpop.f32.mrf.mxu0
        %v4133 = vadd.f32 0.0, %v4132
        %v4134 = vpop.f32.mrf.mxu0
        %4135 = vmatprep.mubr.bf16.mxu0 0
        %4136 = vmatmul.mubr.bf16.gmra.mxu0 %v3937
        %v4137 = vpop.f32.mrf.mxu0
        %v4138 = vadd.f32 0.0, %v4137
        %v4139 = vpop.f32.mrf.mxu0
        %v4140 = vpop.f32.mrf.mxu0
        %v4141 = vadd.f32 0.0, %v4140
        %v4142 = vpop.f32.mrf.mxu0
        %4143 = vmatprep.mubr.bf16.mxu0 0
        %4144 = vmatmul.mubr.bf16.gmra.mxu0 %v3938
        %v4145 = vpop.f32.mrf.mxu0
        %v4146 = vadd.f32 0.0, %v4145
        %v4147 = vpop.f32.mrf.mxu0
        %v4148 = vpop.f32.mrf.mxu0
        %v4149 = vadd.f32 0.0, %v4148
        %v4150 = vpop.f32.mrf.mxu0
        %4151 = vmatprep.mubr.bf16.mxu0 0
        %4152 = vmatmul.mubr.bf16.gmra.mxu0 %v3939
        %v4153 = vpop.f32.mrf.mxu0
        %v4154 = vadd.f32 0.0, %v4153
        %v4155 = vpop.f32.mrf.mxu0
        %v4156 = vpop.f32.mrf.mxu0
        %v4157 = vadd.f32 0.0, %v4156
        %v4158 = vpop.f32.mrf.mxu0
        %4159 = vmatprep.mubr.bf16.mxu0 0
        %4160 = vmatmul.mubr.bf16.gmra.mxu0 %v3940
        %v4161 = vpop.f32.mrf.mxu0
        %v4162 = vadd.f32 0.0, %v4161
        %v4163 = vpop.f32.mrf.mxu0
        %v4164 = vpop.f32.mrf.mxu0
        %v4165 = vadd.f32 0.0, %v4164
        %v4166 = vpop.f32.mrf.mxu0
        %4167 = vmatprep.mubr.bf16.mxu0 0
        %4168 = vmatmul.mubr.bf16.gmra.mxu0 %v3941
        %v4169 = vpop.f32.mrf.mxu0
        %v4170 = vadd.f32 0.0, %v4169
        %v4171 = vpop.f32.mrf.mxu0
        %v4172 = vpop.f32.mrf.mxu0
        %v4173 = vadd.f32 0.0, %v4172
        %v4174 = vpop.f32.mrf.mxu0
        %4175 = vmatprep.mubr.bf16.mxu0 0
        %4176 = vmatmul.mubr.bf16.gmra.mxu0 %v3942
        %v4177 = vpop.f32.mrf.mxu0
        %v4178 = vadd.f32 0.0, %v4177
        %v4179 = vpop.f32.mrf.mxu0
        %v4180 = vpop.f32.mrf.mxu0
        %v4181 = vadd.f32 0.0, %v4180
        %v4182 = vpop.f32.mrf.mxu0
        %4183 = vmatprep.mubr.bf16.mxu0 0
        %4184 = vmatmul.mubr.bf16.gmra.mxu0 %v3943
        %v4185 = vpop.f32.mrf.mxu0
        %v4186 = vadd.f32 0.0, %v4185
        %v4187 = vpop.f32.mrf.mxu0
        %v4188 = vpop.f32.mrf.mxu0
        %v4189 = vadd.f32 0.0, %v4188
        %v4190 = vpop.f32.mrf.mxu0
        %4191 = vmatprep.mubr.bf16.mxu0 0
        %4192 = vmatmul.mubr.bf16.gmra.mxu0 %v3944
        %v4193 = vpop.f32.mrf.mxu0
        %v4194 = vadd.f32 0.0, %v4193
        %v4195 = vpop.f32.mrf.mxu0
        %v4196 = vpop.f32.mrf.mxu0
        %v4197 = vadd.f32 0.0, %v4196
        %v4198 = vpop.f32.mrf.mxu0
        %4199 = vmatprep.mubr.bf16.mxu0 0
        %4200 = vmatmul.mubr.bf16.gmra.mxu0 %v3945
        %v4201 = vpop.f32.mrf.mxu0
        %v4202 = vadd.f32 0.0, %v4201
        %v4203 = vpop.f32.mrf.mxu0
        %v4204 = vpop.f32.mrf.mxu0
        %v4205 = vadd.f32 0.0, %v4204
        %v4206 = vpop.f32.mrf.mxu0
        %4207 = vmatprep.mubr.bf16.mxu0 0
        %4208 = vmatmul.mubr.bf16.gmra.mxu0 %v3946
        %v4209 = vpop.f32.mrf.mxu0
        %v4210 = vadd.f32 0.0, %v4209
        %v4211 = vpop.f32.mrf.mxu0
        %v4212 = vpop.f32.mrf.mxu0
        %v4213 = vadd.f32 0.0, %v4212
        %v4214 = vpop.f32.mrf.mxu0
        %4215 = vmatprep.mubr.bf16.mxu0 0
        %4216 = vmatmul.mubr.bf16.gmra.mxu0 %v3947
        %v4217 = vpop.f32.mrf.mxu0
        %v4218 = vadd.f32 0.0, %v4217
        %v4219 = vpop.f32.mrf.mxu0
        %v4220 = vpop.f32.mrf.mxu0
        %v4221 = vadd.f32 0.0, %v4220
        %v4222 = vpop.f32.mrf.mxu0
        %4223 = vmatprep.mubr.bf16.mxu0 0
        %4224 = vmatmul.mubr.bf16.gmra.mxu0 %v3948
        %v4225 = vpop.f32.mrf.mxu0
        %v4226 = vadd.f32 0.0, %v4225
        %v4227 = vpop.f32.mrf.mxu0
        %v4228 = vpop.f32.mrf.mxu0
        %v4229 = vadd.f32 0.0, %v4228
        %v4230 = vpop.f32.mrf.mxu0
        %4231 = vmatprep.mubr.bf16.mxu0 0
        %4232 = vmatmul.mubr.bf16.gmra.mxu0 %v3949
        %v4233 = vpop.f32.mrf.mxu0
        %v4234 = vadd.f32 0.0, %v4233
        %v4235 = vpop.f32.mrf.mxu0
        %v4236 = vpop.f32.mrf.mxu0
        %v4237 = vadd.f32 0.0, %v4236
        %v4238 = vpop.f32.mrf.mxu0
        %4239 = vmatprep.mubr.bf16.mxu0 0
        %4240 = vmatmul.mubr.bf16.gmra.mxu0 %v3950
        %v4241 = vpop.f32.mrf.mxu0
        %v4242 = vadd.f32 0.0, %v4241
        %v4243 = vpop.f32.mrf.mxu0
        %v4244 = vpop.f32.mrf.mxu0
        %v4245 = vadd.f32 0.0, %v4244
        %v4246 = vpop.f32.mrf.mxu0
        %4247 = vdwg.mxu0
        %v4248 = vadd.f32 %v3718, %v4058
        %v4249 = vadd.f32 %v3719, %v4061
        %v4250 = vadd.f32 %v3720, %v4066
        %v4251 = vadd.f32 %v3721, %v4069
        %v4252 = vadd.f32 %v3722, %v4074
        %v4253 = vadd.f32 %v3723, %v4077
        %v4254 = vadd.f32 %v3724, %v4082
        %v4255 = vadd.f32 %v3725, %v4085
        %v4256 = vadd.f32 %v3726, %v4090
        %v4257 = vadd.f32 %v3727, %v4093
        %v4258 = vadd.f32 %v3728, %v4098
        %v4259 = vadd.f32 %v3729, %v4101
        %v4260 = vadd.f32 %v3730, %v4106
        %v4261 = vadd.f32 %v3731, %v4109
        %v4262 = vadd.f32 %v3732, %v4114
        %v4263 = vadd.f32 %v3733, %v4117
        %v4264 = vadd.f32 %v3734, %v4122
        %v4265 = vadd.f32 %v3735, %v4125
        %v4266 = vadd.f32 %v3736, %v4130
        %v4267 = vadd.f32 %v3737, %v4133
        %v4268 = vadd.f32 %v3738, %v4138
        %v4269 = vadd.f32 %v3739, %v4141
        %v4270 = vadd.f32 %v3740, %v4146
        %v4271 = vadd.f32 %v3741, %v4149
        %v4272 = vadd.f32 %v3742, %v4154
        %v4273 = vadd.f32 %v3743, %v4157
        %v4274 = vadd.f32 %v3744, %v4162
        %v4275 = vadd.f32 %v3745, %v4165
        %v4276 = vadd.f32 %v3746, %v4170
        %v4277 = vadd.f32 %v3747, %v4173
        %v4278 = vadd.f32 %v3748, %v4178
        %v4279 = vadd.f32 %v3749, %v4181
        %v4280 = vadd.f32 %v3750, %v4186
        %v4281 = vadd.f32 %v3751, %v4189
        %v4282 = vadd.f32 %v3752, %v4194
        %v4283 = vadd.f32 %v3753, %v4197
        %v4284 = vadd.f32 %v3754, %v4202
        %v4285 = vadd.f32 %v3755, %v4205
        %v4286 = vadd.f32 %v3756, %v4210
        %v4287 = vadd.f32 %v3757, %v4213
        %v4288 = vadd.f32 %v3758, %v4218
        %v4289 = vadd.f32 %v3759, %v4221
        %v4290 = vadd.f32 %v3760, %v4226
        %v4291 = vadd.f32 %v3761, %v4229
        %v4292 = vadd.f32 %v3762, %v4234
        %v4293 = vadd.f32 %v3763, %v4237
        %v4294 = vadd.f32 %v3764, %v4242
        %v4295 = vadd.f32 %v3765, %v4245
        %v4296 = vld [vmem:[%s1694] sm:$0xf]
        %v4297 = vld [vmem:[%s1694 + $0x4] sm:$0xf]
        %v4298 = vld [vmem:[%s1694 + $0x8] sm:$0xf]
        %v4299 = vld [vmem:[%s1694 + $0xc] sm:$0xf]
        %v4300 = vld [vmem:[%s1694 + $0x10] sm:$0xf]
        %v4301 = vld [vmem:[%s1694 + $0x14] sm:$0xf]
        %v4302 = vld [vmem:[%s1694 + $0x18] sm:$0xf]
        %v4303 = vld [vmem:[%s1694 + $0x1c] sm:$0xf]
        %v4304 = vld [vmem:[%s1694 + $0x20] sm:$0xf]
        %v4305 = vld [vmem:[%s1694 + $0x24] sm:$0xf]
        %v4306 = vld [vmem:[%s1694 + $0x28] sm:$0xf]
        %v4307 = vld [vmem:[%s1694 + $0x2c] sm:$0xf]
        %v4308 = vld [vmem:[%s1694 + $0x30] sm:$0xf]
        %v4309 = vld [vmem:[%s1694 + $0x34] sm:$0xf]
        %v4310 = vld [vmem:[%s1694 + $0x38] sm:$0xf]
        %v4311 = vld [vmem:[%s1694 + $0x3c] sm:$0xf]
        %v4312 = vld [vmem:[%s1694 + $0x40] sm:$0xf]
        %v4313 = vld [vmem:[%s1694 + $0x44] sm:$0xf]
        %v4314 = vld [vmem:[%s1694 + $0x48] sm:$0xf]
        %v4315 = vld [vmem:[%s1694 + $0x4c] sm:$0xf]
        %v4316 = vld [vmem:[%s1694 + $0x50] sm:$0xf]
        %v4317 = vld [vmem:[%s1694 + $0x54] sm:$0xf]
        %v4318 = vld [vmem:[%s1694 + $0x58] sm:$0xf]
        %v4319 = vld [vmem:[%s1694 + $0x5c] sm:$0xf]
        %v4320 = vld [vmem:[%s1694 + $0x60] sm:$0xf]
        %v4321 = vld [vmem:[%s1694 + $0x64] sm:$0xf]
        %v4322 = vld [vmem:[%s1694 + $0x68] sm:$0xf]
        %v4323 = vld [vmem:[%s1694 + $0x6c] sm:$0xf]
        %v4324 = vld [vmem:[%s1694 + $0x70] sm:$0xf]
        %v4325 = vld [vmem:[%s1694 + $0x74] sm:$0xf]
        %v4326 = vld [vmem:[%s1694 + $0x78] sm:$0xf]
        %v4327 = vld [vmem:[%s1694 + $0x7c] sm:$0xf]
        %v4328 = vld [vmem:[%s1694 + $0x80] sm:$0xf]
        %v4329 = vld [vmem:[%s1694 + $0x84] sm:$0xf]
        %v4330 = vld [vmem:[%s1694 + $0x88] sm:$0xf]
        %v4331 = vld [vmem:[%s1694 + $0x8c] sm:$0xf]
        %v4332 = vld [vmem:[%s1694 + $0x90] sm:$0xf]
        %v4333 = vld [vmem:[%s1694 + $0x94] sm:$0xf]
        %v4334 = vld [vmem:[%s1694 + $0x98] sm:$0xf]
        %v4335 = vld [vmem:[%s1694 + $0x9c] sm:$0xf]
        %v4336 = vld [vmem:[%s1694 + $0xa0] sm:$0xf]
        %v4337 = vld [vmem:[%s1694 + $0xa4] sm:$0xf]
        %v4338 = vld [vmem:[%s1694 + $0xa8] sm:$0xf]
        %v4339 = vld [vmem:[%s1694 + $0xac] sm:$0xf]
        %v4340 = vld [vmem:[%s1694 + $0xb0] sm:$0xf]
        %v4341 = vld [vmem:[%s1694 + $0xb4] sm:$0xf]
        %v4342 = vld [vmem:[%s1694 + $0xb8] sm:$0xf]
        %v4343 = vld [vmem:[%s1694 + $0xbc] sm:$0xf]
        %s4344 = scalar_lea.vmem [#allocation10], 320
        %v4345 = vld [vmem:[%s4344] sm:$0xf]
        %v4346 = vld [vmem:[%s4344 + $0x4] sm:$0xf]
        %v4347 = vld [vmem:[%s4344 + $0x8] sm:$0xf]
        %v4348 = vld [vmem:[%s4344 + $0xc] sm:$0xf]
        %v4349 = vld [vmem:[%s4344 + $0x10] sm:$0xf]
        %v4350 = vld [vmem:[%s4344 + $0x14] sm:$0xf]
        %v4351 = vld [vmem:[%s4344 + $0x18] sm:$0xf]
        %v4352 = vld [vmem:[%s4344 + $0x1c] sm:$0xf]
        %v4353 = vld [vmem:[%s4344 + $0x20] sm:$0xf]
        %v4354 = vld [vmem:[%s4344 + $0x24] sm:$0xf]
        %v4355 = vld [vmem:[%s4344 + $0x28] sm:$0xf]
        %v4356 = vld [vmem:[%s4344 + $0x2c] sm:$0xf]
        %v4357 = vld [vmem:[%s4344 + $0x30] sm:$0xf]
        %v4358 = vld [vmem:[%s4344 + $0x34] sm:$0xf]
        %v4359 = vld [vmem:[%s4344 + $0x38] sm:$0xf]
        %v4360 = vld [vmem:[%s4344 + $0x3c] sm:$0xf]
        %v4409 = vunpack.c.l.b16 %v4296
        %v4410 = vunpack.c.l.b16 %v4297
        %v4411 = vunpack.c.l.b16 %v4298
        %v4412 = vunpack.c.l.b16 %v4299
        %v4413 = vunpack.c.l.b16 %v4300
        %v4414 = vunpack.c.l.b16 %v4301
        %v4415 = vunpack.c.l.b16 %v4302
        %v4416 = vunpack.c.l.b16 %v4303
        %v4417 = vunpack.c.l.b16 %v4304
        %v4418 = vunpack.c.l.b16 %v4305
        %v4419 = vunpack.c.l.b16 %v4306
        %v4420 = vunpack.c.l.b16 %v4307
        %v4421 = vunpack.c.l.b16 %v4308
        %v4422 = vunpack.c.l.b16 %v4309
        %v4423 = vunpack.c.l.b16 %v4310
        %v4424 = vunpack.c.l.b16 %v4311
        %v4425 = vunpack.c.l.b16 %v4312
        %v4426 = vunpack.c.l.b16 %v4313
        %v4427 = vunpack.c.l.b16 %v4314
        %v4428 = vunpack.c.l.b16 %v4315
        %v4429 = vunpack.c.l.b16 %v4316
        %v4430 = vunpack.c.l.b16 %v4317
        %v4431 = vunpack.c.l.b16 %v4318
        %v4432 = vunpack.c.l.b16 %v4319
        %v4433 = vunpack.c.l.b16 %v4320
        %v4434 = vunpack.c.l.b16 %v4321
        %v4435 = vunpack.c.l.b16 %v4322
        %v4436 = vunpack.c.l.b16 %v4323
        %v4437 = vunpack.c.l.b16 %v4324
        %v4438 = vunpack.c.l.b16 %v4325
        %v4439 = vunpack.c.l.b16 %v4326
        %v4440 = vunpack.c.l.b16 %v4327
        %v4441 = vunpack.c.l.b16 %v4328
        %v4442 = vunpack.c.l.b16 %v4329
        %v4443 = vunpack.c.l.b16 %v4330
        %v4444 = vunpack.c.l.b16 %v4331
        %v4445 = vunpack.c.l.b16 %v4332
        %v4446 = vunpack.c.l.b16 %v4333
        %v4447 = vunpack.c.l.b16 %v4334
        %v4448 = vunpack.c.l.b16 %v4335
        %v4449 = vunpack.c.l.b16 %v4336
        %v4450 = vunpack.c.l.b16 %v4337
        %v4451 = vunpack.c.l.b16 %v4338
        %v4452 = vunpack.c.l.b16 %v4339
        %v4453 = vunpack.c.l.b16 %v4340
        %v4454 = vunpack.c.l.b16 %v4341
        %v4455 = vunpack.c.l.b16 %v4342
        %v4456 = vunpack.c.l.b16 %v4343
        %v4457 = vpack.c.b16 %v4410, %v4409
        %v4458 = vpack.c.b16 %v4412, %v4411
        %v4459 = vpack.c.b16 %v4414, %v4413
        %v4460 = vpack.c.b16 %v4416, %v4415
        %v4461 = vpack.c.b16 %v4418, %v4417
        %v4462 = vpack.c.b16 %v4420, %v4419
        %v4463 = vpack.c.b16 %v4422, %v4421
        %v4464 = vpack.c.b16 %v4424, %v4423
        %v4465 = vpack.c.b16 %v4426, %v4425
        %v4466 = vpack.c.b16 %v4428, %v4427
        %v4467 = vpack.c.b16 %v4430, %v4429
        %v4468 = vpack.c.b16 %v4432, %v4431
        %v4469 = vpack.c.b16 %v4434, %v4433
        %v4470 = vpack.c.b16 %v4436, %v4435
        %v4471 = vpack.c.b16 %v4438, %v4437
        %v4472 = vpack.c.b16 %v4440, %v4439
        %v4473 = vpack.c.b16 %v4442, %v4441
        %v4474 = vpack.c.b16 %v4444, %v4443
        %v4475 = vpack.c.b16 %v4446, %v4445
        %v4476 = vpack.c.b16 %v4448, %v4447
        %v4477 = vpack.c.b16 %v4450, %v4449
        %v4478 = vpack.c.b16 %v4452, %v4451
        %v4479 = vpack.c.b16 %v4454, %v4453
        %v4480 = vpack.c.b16 %v4456, %v4455
        %v4521 = vunpack.c.l.b16 %v4345
        %v4522 = vunpack.c.l.b16 %v4346
        %v4523 = vunpack.c.l.b16 %v4347
        %v4524 = vunpack.c.l.b16 %v4348
        %v4525 = vunpack.c.l.b16 %v4349
        %v4526 = vunpack.c.l.b16 %v4350
        %v4527 = vunpack.c.l.b16 %v4351
        %v4528 = vunpack.c.l.b16 %v4352
        %v4529 = vunpack.c.l.b16 %v4353
        %v4530 = vunpack.c.l.b16 %v4354
        %v4531 = vunpack.c.l.b16 %v4355
        %v4532 = vunpack.c.l.b16 %v4356
        %v4533 = vunpack.c.l.b16 %v4357
        %v4534 = vunpack.c.l.b16 %v4358
        %v4535 = vunpack.c.l.b16 %v4359
        %v4536 = vunpack.c.l.b16 %v4360
        %v4537 = vpack.c.b16 %v4522, %v4521
        %v4538 = vpack.c.b16 %v4524, %v4523
        %v4539 = vpack.c.b16 %v4526, %v4525
        %v4540 = vpack.c.b16 %v4528, %v4527
        %v4541 = vpack.c.b16 %v4530, %v4529
        %v4542 = vpack.c.b16 %v4532, %v4531
        %v4543 = vpack.c.b16 %v4534, %v4533
        %v4544 = vpack.c.b16 %v4536, %v4535
        %4553 = vmatprep.subr.bf16.mxu0 0
        %4554 = vmatpush1.bf16.msra.mxu0 %v4544
        %4555 = vmatprep.subr.bf16.mxu0 0
        %4556 = vmatpush1.bf16.msra.mxu0 %v4543
        %4557 = vmatprep.subr.bf16.mxu0 0
        %4558 = vmatpush1.bf16.msra.mxu0 %v4542
        %4559 = vmatprep.subr.bf16.mxu0 0
        %4560 = vmatpush1.bf16.msra.mxu0 %v4541
        %4561 = vmatprep.subr.bf16.mxu0 0
        %4562 = vmatpush1.bf16.msra.mxu0 %v4540
        %4563 = vmatprep.subr.bf16.mxu0 0
        %4564 = vmatpush1.bf16.msra.mxu0 %v4539
        %4565 = vmatprep.subr.bf16.mxu0 0
        %4566 = vmatpush1.bf16.msra.mxu0 %v4538
        %4567 = vmatprep.subr.bf16.mxu0 0
        %4568 = vmatpush1.bf16.msra.mxu0 %v4537
        %4569 = vmatprep.subr.bf16.mxu0 0
        %4570 = vmatpush2.bf16.msra.mxu0 0
        %4571 = vmatprep.subr.bf16.mxu0 0
        %4572 = vmatpush2.bf16.msra.mxu0 0
        %4573 = vmatprep.subr.bf16.mxu0 0
        %4574 = vmatpush2.bf16.msra.mxu0 0
        %4575 = vmatprep.subr.bf16.mxu0 0
        %4576 = vmatpush2.bf16.msra.mxu0 0
        %4577 = vmatprep.subr.bf16.mxu0 0
        %4578 = vmatpush2.bf16.msra.mxu0 0
        %4579 = vmatprep.subr.bf16.mxu0 0
        %4580 = vmatpush2.bf16.msra.mxu0 0
        %4581 = vmatprep.subr.bf16.mxu0 0
        %4582 = vmatpush2.bf16.msra.mxu0 0
        %4583 = vmatprep.subr.bf16.mxu0 0
        %4584 = vmatpush2.bf16.msra.mxu0 0
        %4585 = vmatprep.mubr.bf16.mxu0 0
        %4586 = vmatmul.mubr.bf16.gmra.mxu0 %v4457
        %v4587 = vpop.f32.mrf.mxu0
        %v4588 = vadd.f32 0.0, %v4587
        %v4589 = vpop.f32.mrf.mxu0
        %v4590 = vpop.f32.mrf.mxu0
        %v4591 = vadd.f32 0.0, %v4590
        %v4592 = vpop.f32.mrf.mxu0
        %4593 = vmatprep.mubr.bf16.mxu0 0
        %4594 = vmatmul.mubr.bf16.gmra.mxu0 %v4458
        %v4595 = vpop.f32.mrf.mxu0
        %v4596 = vadd.f32 0.0, %v4595
        %v4597 = vpop.f32.mrf.mxu0
        %v4598 = vpop.f32.mrf.mxu0
        %v4599 = vadd.f32 0.0, %v4598
        %v4600 = vpop.f32.mrf.mxu0
        %4601 = vmatprep.mubr.bf16.mxu0 0
        %4602 = vmatmul.mubr.bf16.gmra.mxu0 %v4459
        %v4603 = vpop.f32.mrf.mxu0
        %v4604 = vadd.f32 0.0, %v4603
        %v4605 = vpop.f32.mrf.mxu0
        %v4606 = vpop.f32.mrf.mxu0
        %v4607 = vadd.f32 0.0, %v4606
        %v4608 = vpop.f32.mrf.mxu0
        %4609 = vmatprep.mubr.bf16.mxu0 0
        %4610 = vmatmul.mubr.bf16.gmra.mxu0 %v4460
        %v4611 = vpop.f32.mrf.mxu0
        %v4612 = vadd.f32 0.0, %v4611
        %v4613 = vpop.f32.mrf.mxu0
        %v4614 = vpop.f32.mrf.mxu0
        %v4615 = vadd.f32 0.0, %v4614
        %v4616 = vpop.f32.mrf.mxu0
        %4617 = vmatprep.mubr.bf16.mxu0 0
        %4618 = vmatmul.mubr.bf16.gmra.mxu0 %v4461
        %v4619 = vpop.f32.mrf.mxu0
        %v4620 = vadd.f32 0.0, %v4619
        %v4621 = vpop.f32.mrf.mxu0
        %v4622 = vpop.f32.mrf.mxu0
        %v4623 = vadd.f32 0.0, %v4622
        %v4624 = vpop.f32.mrf.mxu0
        %4625 = vmatprep.mubr.bf16.mxu0 0
        %4626 = vmatmul.mubr.bf16.gmra.mxu0 %v4462
        %v4627 = vpop.f32.mrf.mxu0
        %v4628 = vadd.f32 0.0, %v4627
        %v4629 = vpop.f32.mrf.mxu0
        %v4630 = vpop.f32.mrf.mxu0
        %v4631 = vadd.f32 0.0, %v4630
        %v4632 = vpop.f32.mrf.mxu0
        %4633 = vmatprep.mubr.bf16.mxu0 0
        %4634 = vmatmul.mubr.bf16.gmra.mxu0 %v4463
        %v4635 = vpop.f32.mrf.mxu0
        %v4636 = vadd.f32 0.0, %v4635
        %v4637 = vpop.f32.mrf.mxu0
        %v4638 = vpop.f32.mrf.mxu0
        %v4639 = vadd.f32 0.0, %v4638
        %v4640 = vpop.f32.mrf.mxu0
        %4641 = vmatprep.mubr.bf16.mxu0 0
        %4642 = vmatmul.mubr.bf16.gmra.mxu0 %v4464
        %v4643 = vpop.f32.mrf.mxu0
        %v4644 = vadd.f32 0.0, %v4643
        %v4645 = vpop.f32.mrf.mxu0
        %v4646 = vpop.f32.mrf.mxu0
        %v4647 = vadd.f32 0.0, %v4646
        %v4648 = vpop.f32.mrf.mxu0
        %4649 = vmatprep.mubr.bf16.mxu0 0
        %4650 = vmatmul.mubr.bf16.gmra.mxu0 %v4465
        %v4651 = vpop.f32.mrf.mxu0
        %v4652 = vadd.f32 0.0, %v4651
        %v4653 = vpop.f32.mrf.mxu0
        %v4654 = vpop.f32.mrf.mxu0
        %v4655 = vadd.f32 0.0, %v4654
        %v4656 = vpop.f32.mrf.mxu0
        %4657 = vmatprep.mubr.bf16.mxu0 0
        %4658 = vmatmul.mubr.bf16.gmra.mxu0 %v4466
        %v4659 = vpop.f32.mrf.mxu0
        %v4660 = vadd.f32 0.0, %v4659
        %v4661 = vpop.f32.mrf.mxu0
        %v4662 = vpop.f32.mrf.mxu0
        %v4663 = vadd.f32 0.0, %v4662
        %v4664 = vpop.f32.mrf.mxu0
        %4665 = vmatprep.mubr.bf16.mxu0 0
        %4666 = vmatmul.mubr.bf16.gmra.mxu0 %v4467
        %v4667 = vpop.f32.mrf.mxu0
        %v4668 = vadd.f32 0.0, %v4667
        %v4669 = vpop.f32.mrf.mxu0
        %v4670 = vpop.f32.mrf.mxu0
        %v4671 = vadd.f32 0.0, %v4670
        %v4672 = vpop.f32.mrf.mxu0
        %4673 = vmatprep.mubr.bf16.mxu0 0
        %4674 = vmatmul.mubr.bf16.gmra.mxu0 %v4468
        %v4675 = vpop.f32.mrf.mxu0
        %v4676 = vadd.f32 0.0, %v4675
        %v4677 = vpop.f32.mrf.mxu0
        %v4678 = vpop.f32.mrf.mxu0
        %v4679 = vadd.f32 0.0, %v4678
        %v4680 = vpop.f32.mrf.mxu0
        %4681 = vmatprep.mubr.bf16.mxu0 0
        %4682 = vmatmul.mubr.bf16.gmra.mxu0 %v4469
        %v4683 = vpop.f32.mrf.mxu0
        %v4684 = vadd.f32 0.0, %v4683
        %v4685 = vpop.f32.mrf.mxu0
        %v4686 = vpop.f32.mrf.mxu0
        %v4687 = vadd.f32 0.0, %v4686
        %v4688 = vpop.f32.mrf.mxu0
        %4689 = vmatprep.mubr.bf16.mxu0 0
        %4690 = vmatmul.mubr.bf16.gmra.mxu0 %v4470
        %v4691 = vpop.f32.mrf.mxu0
        %v4692 = vadd.f32 0.0, %v4691
        %v4693 = vpop.f32.mrf.mxu0
        %v4694 = vpop.f32.mrf.mxu0
        %v4695 = vadd.f32 0.0, %v4694
        %v4696 = vpop.f32.mrf.mxu0
        %4697 = vmatprep.mubr.bf16.mxu0 0
        %4698 = vmatmul.mubr.bf16.gmra.mxu0 %v4471
        %v4699 = vpop.f32.mrf.mxu0
        %v4700 = vadd.f32 0.0, %v4699
        %v4701 = vpop.f32.mrf.mxu0
        %v4702 = vpop.f32.mrf.mxu0
        %v4703 = vadd.f32 0.0, %v4702
        %v4704 = vpop.f32.mrf.mxu0
        %4705 = vmatprep.mubr.bf16.mxu0 0
        %4706 = vmatmul.mubr.bf16.gmra.mxu0 %v4472
        %v4707 = vpop.f32.mrf.mxu0
        %v4708 = vadd.f32 0.0, %v4707
        %v4709 = vpop.f32.mrf.mxu0
        %v4710 = vpop.f32.mrf.mxu0
        %v4711 = vadd.f32 0.0, %v4710
        %v4712 = vpop.f32.mrf.mxu0
        %4713 = vmatprep.mubr.bf16.mxu0 0
        %4714 = vmatmul.mubr.bf16.gmra.mxu0 %v4473
        %v4715 = vpop.f32.mrf.mxu0
        %v4716 = vadd.f32 0.0, %v4715
        %v4717 = vpop.f32.mrf.mxu0
        %v4718 = vpop.f32.mrf.mxu0
        %v4719 = vadd.f32 0.0, %v4718
        %v4720 = vpop.f32.mrf.mxu0
        %4721 = vmatprep.mubr.bf16.mxu0 0
        %4722 = vmatmul.mubr.bf16.gmra.mxu0 %v4474
        %v4723 = vpop.f32.mrf.mxu0
        %v4724 = vadd.f32 0.0, %v4723
        %v4725 = vpop.f32.mrf.mxu0
        %v4726 = vpop.f32.mrf.mxu0
        %v4727 = vadd.f32 0.0, %v4726
        %v4728 = vpop.f32.mrf.mxu0
        %4729 = vmatprep.mubr.bf16.mxu0 0
        %4730 = vmatmul.mubr.bf16.gmra.mxu0 %v4475
        %v4731 = vpop.f32.mrf.mxu0
        %v4732 = vadd.f32 0.0, %v4731
        %v4733 = vpop.f32.mrf.mxu0
        %v4734 = vpop.f32.mrf.mxu0
        %v4735 = vadd.f32 0.0, %v4734
        %v4736 = vpop.f32.mrf.mxu0
        %4737 = vmatprep.mubr.bf16.mxu0 0
        %4738 = vmatmul.mubr.bf16.gmra.mxu0 %v4476
        %v4739 = vpop.f32.mrf.mxu0
        %v4740 = vadd.f32 0.0, %v4739
        %v4741 = vpop.f32.mrf.mxu0
        %v4742 = vpop.f32.mrf.mxu0
        %v4743 = vadd.f32 0.0, %v4742
        %v4744 = vpop.f32.mrf.mxu0
        %4745 = vmatprep.mubr.bf16.mxu0 0
        %4746 = vmatmul.mubr.bf16.gmra.mxu0 %v4477
        %v4747 = vpop.f32.mrf.mxu0
        %v4748 = vadd.f32 0.0, %v4747
        %v4749 = vpop.f32.mrf.mxu0
        %v4750 = vpop.f32.mrf.mxu0
        %v4751 = vadd.f32 0.0, %v4750
        %v4752 = vpop.f32.mrf.mxu0
        %4753 = vmatprep.mubr.bf16.mxu0 0
        %4754 = vmatmul.mubr.bf16.gmra.mxu0 %v4478
        %v4755 = vpop.f32.mrf.mxu0
        %v4756 = vadd.f32 0.0, %v4755
        %v4757 = vpop.f32.mrf.mxu0
        %v4758 = vpop.f32.mrf.mxu0
        %v4759 = vadd.f32 0.0, %v4758
        %v4760 = vpop.f32.mrf.mxu0
        %4761 = vmatprep.mubr.bf16.mxu0 0
        %4762 = vmatmul.mubr.bf16.gmra.mxu0 %v4479
        %v4763 = vpop.f32.mrf.mxu0
        %v4764 = vadd.f32 0.0, %v4763
        %v4765 = vpop.f32.mrf.mxu0
        %v4766 = vpop.f32.mrf.mxu0
        %v4767 = vadd.f32 0.0, %v4766
        %v4768 = vpop.f32.mrf.mxu0
        %4769 = vmatprep.mubr.bf16.mxu0 0
        %4770 = vmatmul.mubr.bf16.gmra.mxu0 %v4480
        %v4771 = vpop.f32.mrf.mxu0
        %v4772 = vadd.f32 0.0, %v4771
        %v4773 = vpop.f32.mrf.mxu0
        %v4774 = vpop.f32.mrf.mxu0
        %v4775 = vadd.f32 0.0, %v4774
        %v4776 = vpop.f32.mrf.mxu0
        %4777 = vdwg.mxu0
        %v4778 = vadd.f32 %v4248, %v4588
        %v4779 = vadd.f32 %v4249, %v4591
        %v4780 = vadd.f32 %v4250, %v4596
        %v4781 = vadd.f32 %v4251, %v4599
        %v4782 = vadd.f32 %v4252, %v4604
        %v4783 = vadd.f32 %v4253, %v4607
        %v4784 = vadd.f32 %v4254, %v4612
        %v4785 = vadd.f32 %v4255, %v4615
        %v4786 = vadd.f32 %v4256, %v4620
        %v4787 = vadd.f32 %v4257, %v4623
        %v4788 = vadd.f32 %v4258, %v4628
        %v4789 = vadd.f32 %v4259, %v4631
        %v4790 = vadd.f32 %v4260, %v4636
        %v4791 = vadd.f32 %v4261, %v4639
        %v4792 = vadd.f32 %v4262, %v4644
        %v4793 = vadd.f32 %v4263, %v4647
        %v4794 = vadd.f32 %v4264, %v4652
        %v4795 = vadd.f32 %v4265, %v4655
        %v4796 = vadd.f32 %v4266, %v4660
        %v4797 = vadd.f32 %v4267, %v4663
        %v4798 = vadd.f32 %v4268, %v4668
        %v4799 = vadd.f32 %v4269, %v4671
        %v4800 = vadd.f32 %v4270, %v4676
        %v4801 = vadd.f32 %v4271, %v4679
        %v4802 = vadd.f32 %v4272, %v4684
        %v4803 = vadd.f32 %v4273, %v4687
        %v4804 = vadd.f32 %v4274, %v4692
        %v4805 = vadd.f32 %v4275, %v4695
        %v4806 = vadd.f32 %v4276, %v4700
        %v4807 = vadd.f32 %v4277, %v4703
        %v4808 = vadd.f32 %v4278, %v4708
        %v4809 = vadd.f32 %v4279, %v4711
        %v4810 = vadd.f32 %v4280, %v4716
        %v4811 = vadd.f32 %v4281, %v4719
        %v4812 = vadd.f32 %v4282, %v4724
        %v4813 = vadd.f32 %v4283, %v4727
        %v4814 = vadd.f32 %v4284, %v4732
        %v4815 = vadd.f32 %v4285, %v4735
        %v4816 = vadd.f32 %v4286, %v4740
        %v4817 = vadd.f32 %v4287, %v4743
        %v4818 = vadd.f32 %v4288, %v4748
        %v4819 = vadd.f32 %v4289, %v4751
        %v4820 = vadd.f32 %v4290, %v4756
        %v4821 = vadd.f32 %v4291, %v4759
        %v4822 = vadd.f32 %v4292, %v4764
        %v4823 = vadd.f32 %v4293, %v4767
        %v4824 = vadd.f32 %v4294, %v4772
        %v4825 = vadd.f32 %v4295, %v4775
        %s4826 = scalar_lea.vmem [#allocation3], 24
        %v4827 = vld [vmem:[%s4826] sm:$0xf]
        %v4828 = vld [vmem:[%s4826 + $0x4] sm:$0xf]
        %v4829 = vld [vmem:[%s4826 + $0x8] sm:$0xf]
        %v4830 = vld [vmem:[%s4826 + $0xc] sm:$0xf]
        %v4831 = vld [vmem:[%s4826 + $0x10] sm:$0xf]
        %v4832 = vld [vmem:[%s4826 + $0x14] sm:$0xf]
        %v4833 = vld [vmem:[%s4826 + $0x18] sm:$0xf]
        %v4834 = vld [vmem:[%s4826 + $0x1c] sm:$0xf]
        %v4835 = vld [vmem:[%s4826 + $0x20] sm:$0xf]
        %v4836 = vld [vmem:[%s4826 + $0x24] sm:$0xf]
        %v4837 = vld [vmem:[%s4826 + $0x28] sm:$0xf]
        %v4838 = vld [vmem:[%s4826 + $0x2c] sm:$0xf]
        %v4839 = vld [vmem:[%s4826 + $0x30] sm:$0xf]
        %v4840 = vld [vmem:[%s4826 + $0x34] sm:$0xf]
        %v4841 = vld [vmem:[%s4826 + $0x38] sm:$0xf]
        %v4842 = vld [vmem:[%s4826 + $0x3c] sm:$0xf]
        %v4843 = vld [vmem:[%s4826 + $0x40] sm:$0xf]
        %v4844 = vld [vmem:[%s4826 + $0x44] sm:$0xf]
        %v4845 = vld [vmem:[%s4826 + $0x48] sm:$0xf]
        %v4846 = vld [vmem:[%s4826 + $0x4c] sm:$0xf]
        %v4847 = vld [vmem:[%s4826 + $0x50] sm:$0xf]
        %v4848 = vld [vmem:[%s4826 + $0x54] sm:$0xf]
        %v4849 = vld [vmem:[%s4826 + $0x58] sm:$0xf]
        %v4850 = vld [vmem:[%s4826 + $0x5c] sm:$0xf]
        %v4851 = vld [vmem:[%s4826 + $0x60] sm:$0xf]
        %v4852 = vld [vmem:[%s4826 + $0x64] sm:$0xf]
        %v4853 = vld [vmem:[%s4826 + $0x68] sm:$0xf]
        %v4854 = vld [vmem:[%s4826 + $0x6c] sm:$0xf]
        %v4855 = vld [vmem:[%s4826 + $0x70] sm:$0xf]
        %v4856 = vld [vmem:[%s4826 + $0x74] sm:$0xf]
        %v4857 = vld [vmem:[%s4826 + $0x78] sm:$0xf]
        %v4858 = vld [vmem:[%s4826 + $0x7c] sm:$0xf]
        %v4859 = vld [vmem:[%s4826 + $0x80] sm:$0xf]
        %v4860 = vld [vmem:[%s4826 + $0x84] sm:$0xf]
        %v4861 = vld [vmem:[%s4826 + $0x88] sm:$0xf]
        %v4862 = vld [vmem:[%s4826 + $0x8c] sm:$0xf]
        %v4863 = vld [vmem:[%s4826 + $0x90] sm:$0xf]
        %v4864 = vld [vmem:[%s4826 + $0x94] sm:$0xf]
        %v4865 = vld [vmem:[%s4826 + $0x98] sm:$0xf]
        %v4866 = vld [vmem:[%s4826 + $0x9c] sm:$0xf]
        %v4867 = vld [vmem:[%s4826 + $0xa0] sm:$0xf]
        %v4868 = vld [vmem:[%s4826 + $0xa4] sm:$0xf]
        %v4869 = vld [vmem:[%s4826 + $0xa8] sm:$0xf]
        %v4870 = vld [vmem:[%s4826 + $0xac] sm:$0xf]
        %v4871 = vld [vmem:[%s4826 + $0xb0] sm:$0xf]
        %v4872 = vld [vmem:[%s4826 + $0xb4] sm:$0xf]
        %v4873 = vld [vmem:[%s4826 + $0xb8] sm:$0xf]
        %v4874 = vld [vmem:[%s4826 + $0xbc] sm:$0xf]
        %s4875 = scalar_lea.vmem [#allocation10], 384
        %v4876 = vld [vmem:[%s4875] sm:$0xf]
        %v4877 = vld [vmem:[%s4875 + $0x4] sm:$0xf]
        %v4878 = vld [vmem:[%s4875 + $0x8] sm:$0xf]
        %v4879 = vld [vmem:[%s4875 + $0xc] sm:$0xf]
        %v4880 = vld [vmem:[%s4875 + $0x10] sm:$0xf]
        %v4881 = vld [vmem:[%s4875 + $0x14] sm:$0xf]
        %v4882 = vld [vmem:[%s4875 + $0x18] sm:$0xf]
        %v4883 = vld [vmem:[%s4875 + $0x1c] sm:$0xf]
        %v4884 = vld [vmem:[%s4875 + $0x20] sm:$0xf]
        %v4885 = vld [vmem:[%s4875 + $0x24] sm:$0xf]
        %v4886 = vld [vmem:[%s4875 + $0x28] sm:$0xf]
        %v4887 = vld [vmem:[%s4875 + $0x2c] sm:$0xf]
        %v4888 = vld [vmem:[%s4875 + $0x30] sm:$0xf]
        %v4889 = vld [vmem:[%s4875 + $0x34] sm:$0xf]
        %v4890 = vld [vmem:[%s4875 + $0x38] sm:$0xf]
        %v4891 = vld [vmem:[%s4875 + $0x3c] sm:$0xf]
        %v4940 = vunpack.c.l.b16 %v4827
        %v4941 = vunpack.c.l.b16 %v4828
        %v4942 = vunpack.c.l.b16 %v4829
        %v4943 = vunpack.c.l.b16 %v4830
        %v4944 = vunpack.c.l.b16 %v4831
        %v4945 = vunpack.c.l.b16 %v4832
        %v4946 = vunpack.c.l.b16 %v4833
        %v4947 = vunpack.c.l.b16 %v4834
        %v4948 = vunpack.c.l.b16 %v4835
        %v4949 = vunpack.c.l.b16 %v4836
        %v4950 = vunpack.c.l.b16 %v4837
        %v4951 = vunpack.c.l.b16 %v4838
        %v4952 = vunpack.c.l.b16 %v4839
        %v4953 = vunpack.c.l.b16 %v4840
        %v4954 = vunpack.c.l.b16 %v4841
        %v4955 = vunpack.c.l.b16 %v4842
        %v4956 = vunpack.c.l.b16 %v4843
        %v4957 = vunpack.c.l.b16 %v4844
        %v4958 = vunpack.c.l.b16 %v4845
        %v4959 = vunpack.c.l.b16 %v4846
        %v4960 = vunpack.c.l.b16 %v4847
        %v4961 = vunpack.c.l.b16 %v4848
        %v4962 = vunpack.c.l.b16 %v4849
        %v4963 = vunpack.c.l.b16 %v4850
        %v4964 = vunpack.c.l.b16 %v4851
        %v4965 = vunpack.c.l.b16 %v4852
        %v4966 = vunpack.c.l.b16 %v4853
        %v4967 = vunpack.c.l.b16 %v4854
        %v4968 = vunpack.c.l.b16 %v4855
        %v4969 = vunpack.c.l.b16 %v4856
        %v4970 = vunpack.c.l.b16 %v4857
        %v4971 = vunpack.c.l.b16 %v4858
        %v4972 = vunpack.c.l.b16 %v4859
        %v4973 = vunpack.c.l.b16 %v4860
        %v4974 = vunpack.c.l.b16 %v4861
        %v4975 = vunpack.c.l.b16 %v4862
        %v4976 = vunpack.c.l.b16 %v4863
        %v4977 = vunpack.c.l.b16 %v4864
        %v4978 = vunpack.c.l.b16 %v4865
        %v4979 = vunpack.c.l.b16 %v4866
        %v4980 = vunpack.c.l.b16 %v4867
        %v4981 = vunpack.c.l.b16 %v4868
        %v4982 = vunpack.c.l.b16 %v4869
        %v4983 = vunpack.c.l.b16 %v4870
        %v4984 = vunpack.c.l.b16 %v4871
        %v4985 = vunpack.c.l.b16 %v4872
        %v4986 = vunpack.c.l.b16 %v4873
        %v4987 = vunpack.c.l.b16 %v4874
        %v4988 = vpack.c.b16 %v4941, %v4940
        %v4989 = vpack.c.b16 %v4943, %v4942
        %v4990 = vpack.c.b16 %v4945, %v4944
        %v4991 = vpack.c.b16 %v4947, %v4946
        %v4992 = vpack.c.b16 %v4949, %v4948
        %v4993 = vpack.c.b16 %v4951, %v4950
        %v4994 = vpack.c.b16 %v4953, %v4952
        %v4995 = vpack.c.b16 %v4955, %v4954
        %v4996 = vpack.c.b16 %v4957, %v4956
        %v4997 = vpack.c.b16 %v4959, %v4958
        %v4998 = vpack.c.b16 %v4961, %v4960
        %v4999 = vpack.c.b16 %v4963, %v4962
        %v5000 = vpack.c.b16 %v4965, %v4964
        %v5001 = vpack.c.b16 %v4967, %v4966
        %v5002 = vpack.c.b16 %v4969, %v4968
        %v5003 = vpack.c.b16 %v4971, %v4970
        %v5004 = vpack.c.b16 %v4973, %v4972
        %v5005 = vpack.c.b16 %v4975, %v4974
        %v5006 = vpack.c.b16 %v4977, %v4976
        %v5007 = vpack.c.b16 %v4979, %v4978
        %v5008 = vpack.c.b16 %v4981, %v4980
        %v5009 = vpack.c.b16 %v4983, %v4982
        %v5010 = vpack.c.b16 %v4985, %v4984
        %v5011 = vpack.c.b16 %v4987, %v4986
        %v5052 = vunpack.c.l.b16 %v4876
        %v5053 = vunpack.c.l.b16 %v4877
        %v5054 = vunpack.c.l.b16 %v4878
        %v5055 = vunpack.c.l.b16 %v4879
        %v5056 = vunpack.c.l.b16 %v4880
        %v5057 = vunpack.c.l.b16 %v4881
        %v5058 = vunpack.c.l.b16 %v4882
        %v5059 = vunpack.c.l.b16 %v4883
        %v5060 = vunpack.c.l.b16 %v4884
        %v5061 = vunpack.c.l.b16 %v4885
        %v5062 = vunpack.c.l.b16 %v4886
        %v5063 = vunpack.c.l.b16 %v4887
        %v5064 = vunpack.c.l.b16 %v4888
        %v5065 = vunpack.c.l.b16 %v4889
        %v5066 = vunpack.c.l.b16 %v4890
        %v5067 = vunpack.c.l.b16 %v4891
        %v5068 = vpack.c.b16 %v5053, %v5052
        %v5069 = vpack.c.b16 %v5055, %v5054
        %v5070 = vpack.c.b16 %v5057, %v5056
        %v5071 = vpack.c.b16 %v5059, %v5058
        %v5072 = vpack.c.b16 %v5061, %v5060
        %v5073 = vpack.c.b16 %v5063, %v5062
        %v5074 = vpack.c.b16 %v5065, %v5064
        %v5075 = vpack.c.b16 %v5067, %v5066
        %5084 = vmatprep.subr.bf16.mxu0 0
        %5085 = vmatpush1.bf16.msra.mxu0 %v5075
        %5086 = vmatprep.subr.bf16.mxu0 0
        %5087 = vmatpush1.bf16.msra.mxu0 %v5074
        %5088 = vmatprep.subr.bf16.mxu0 0
        %5089 = vmatpush1.bf16.msra.mxu0 %v5073
        %5090 = vmatprep.subr.bf16.mxu0 0
        %5091 = vmatpush1.bf16.msra.mxu0 %v5072
        %5092 = vmatprep.subr.bf16.mxu0 0
        %5093 = vmatpush1.bf16.msra.mxu0 %v5071
        %5094 = vmatprep.subr.bf16.mxu0 0
        %5095 = vmatpush1.bf16.msra.mxu0 %v5070
        %5096 = vmatprep.subr.bf16.mxu0 0
        %5097 = vmatpush1.bf16.msra.mxu0 %v5069
        %5098 = vmatprep.subr.bf16.mxu0 0
        %5099 = vmatpush1.bf16.msra.mxu0 %v5068
        %5100 = vmatprep.subr.bf16.mxu0 0
        %5101 = vmatpush2.bf16.msra.mxu0 0
        %5102 = vmatprep.subr.bf16.mxu0 0
        %5103 = vmatpush2.bf16.msra.mxu0 0
        %5104 = vmatprep.subr.bf16.mxu0 0
        %5105 = vmatpush2.bf16.msra.mxu0 0
        %5106 = vmatprep.subr.bf16.mxu0 0
        %5107 = vmatpush2.bf16.msra.mxu0 0
        %5108 = vmatprep.subr.bf16.mxu0 0
        %5109 = vmatpush2.bf16.msra.mxu0 0
        %5110 = vmatprep.subr.bf16.mxu0 0
        %5111 = vmatpush2.bf16.msra.mxu0 0
        %5112 = vmatprep.subr.bf16.mxu0 0
        %5113 = vmatpush2.bf16.msra.mxu0 0
        %5114 = vmatprep.subr.bf16.mxu0 0
        %5115 = vmatpush2.bf16.msra.mxu0 0
        %5116 = vmatprep.mubr.bf16.mxu0 0
        %5117 = vmatmul.mubr.bf16.gmra.mxu0 %v4988
        %v5118 = vpop.f32.mrf.mxu0
        %v5119 = vadd.f32 0.0, %v5118
        %v5120 = vpop.f32.mrf.mxu0
        %v5121 = vpop.f32.mrf.mxu0
        %v5122 = vadd.f32 0.0, %v5121
        %v5123 = vpop.f32.mrf.mxu0
        %5124 = vmatprep.mubr.bf16.mxu0 0
        %5125 = vmatmul.mubr.bf16.gmra.mxu0 %v4989
        %v5126 = vpop.f32.mrf.mxu0
        %v5127 = vadd.f32 0.0, %v5126
        %v5128 = vpop.f32.mrf.mxu0
        %v5129 = vpop.f32.mrf.mxu0
        %v5130 = vadd.f32 0.0, %v5129
        %v5131 = vpop.f32.mrf.mxu0
        %5132 = vmatprep.mubr.bf16.mxu0 0
        %5133 = vmatmul.mubr.bf16.gmra.mxu0 %v4990
        %v5134 = vpop.f32.mrf.mxu0
        %v5135 = vadd.f32 0.0, %v5134
        %v5136 = vpop.f32.mrf.mxu0
        %v5137 = vpop.f32.mrf.mxu0
        %v5138 = vadd.f32 0.0, %v5137
        %v5139 = vpop.f32.mrf.mxu0
        %5140 = vmatprep.mubr.bf16.mxu0 0
        %5141 = vmatmul.mubr.bf16.gmra.mxu0 %v4991
        %v5142 = vpop.f32.mrf.mxu0
        %v5143 = vadd.f32 0.0, %v5142
        %v5144 = vpop.f32.mrf.mxu0
        %v5145 = vpop.f32.mrf.mxu0
        %v5146 = vadd.f32 0.0, %v5145
        %v5147 = vpop.f32.mrf.mxu0
        %5148 = vmatprep.mubr.bf16.mxu0 0
        %5149 = vmatmul.mubr.bf16.gmra.mxu0 %v4992
        %v5150 = vpop.f32.mrf.mxu0
        %v5151 = vadd.f32 0.0, %v5150
        %v5152 = vpop.f32.mrf.mxu0
        %v5153 = vpop.f32.mrf.mxu0
        %v5154 = vadd.f32 0.0, %v5153
        %v5155 = vpop.f32.mrf.mxu0
        %5156 = vmatprep.mubr.bf16.mxu0 0
        %5157 = vmatmul.mubr.bf16.gmra.mxu0 %v4993
        %v5158 = vpop.f32.mrf.mxu0
        %v5159 = vadd.f32 0.0, %v5158
        %v5160 = vpop.f32.mrf.mxu0
        %v5161 = vpop.f32.mrf.mxu0
        %v5162 = vadd.f32 0.0, %v5161
        %v5163 = vpop.f32.mrf.mxu0
        %5164 = vmatprep.mubr.bf16.mxu0 0
        %5165 = vmatmul.mubr.bf16.gmra.mxu0 %v4994
        %v5166 = vpop.f32.mrf.mxu0
        %v5167 = vadd.f32 0.0, %v5166
        %v5168 = vpop.f32.mrf.mxu0
        %v5169 = vpop.f32.mrf.mxu0
        %v5170 = vadd.f32 0.0, %v5169
        %v5171 = vpop.f32.mrf.mxu0
        %5172 = vmatprep.mubr.bf16.mxu0 0
        %5173 = vmatmul.mubr.bf16.gmra.mxu0 %v4995
        %v5174 = vpop.f32.mrf.mxu0
        %v5175 = vadd.f32 0.0, %v5174
        %v5176 = vpop.f32.mrf.mxu0
        %v5177 = vpop.f32.mrf.mxu0
        %v5178 = vadd.f32 0.0, %v5177
        %v5179 = vpop.f32.mrf.mxu0
        %5180 = vmatprep.mubr.bf16.mxu0 0
        %5181 = vmatmul.mubr.bf16.gmra.mxu0 %v4996
        %v5182 = vpop.f32.mrf.mxu0
        %v5183 = vadd.f32 0.0, %v5182
        %v5184 = vpop.f32.mrf.mxu0
        %v5185 = vpop.f32.mrf.mxu0
        %v5186 = vadd.f32 0.0, %v5185
        %v5187 = vpop.f32.mrf.mxu0
        %5188 = vmatprep.mubr.bf16.mxu0 0
        %5189 = vmatmul.mubr.bf16.gmra.mxu0 %v4997
        %v5190 = vpop.f32.mrf.mxu0
        %v5191 = vadd.f32 0.0, %v5190
        %v5192 = vpop.f32.mrf.mxu0
        %v5193 = vpop.f32.mrf.mxu0
        %v5194 = vadd.f32 0.0, %v5193
        %v5195 = vpop.f32.mrf.mxu0
        %5196 = vmatprep.mubr.bf16.mxu0 0
        %5197 = vmatmul.mubr.bf16.gmra.mxu0 %v4998
        %v5198 = vpop.f32.mrf.mxu0
        %v5199 = vadd.f32 0.0, %v5198
        %v5200 = vpop.f32.mrf.mxu0
        %v5201 = vpop.f32.mrf.mxu0
        %v5202 = vadd.f32 0.0, %v5201
        %v5203 = vpop.f32.mrf.mxu0
        %5204 = vmatprep.mubr.bf16.mxu0 0
        %5205 = vmatmul.mubr.bf16.gmra.mxu0 %v4999
        %v5206 = vpop.f32.mrf.mxu0
        %v5207 = vadd.f32 0.0, %v5206
        %v5208 = vpop.f32.mrf.mxu0
        %v5209 = vpop.f32.mrf.mxu0
        %v5210 = vadd.f32 0.0, %v5209
        %v5211 = vpop.f32.mrf.mxu0
        %5212 = vmatprep.mubr.bf16.mxu0 0
        %5213 = vmatmul.mubr.bf16.gmra.mxu0 %v5000
        %v5214 = vpop.f32.mrf.mxu0
        %v5215 = vadd.f32 0.0, %v5214
        %v5216 = vpop.f32.mrf.mxu0
        %v5217 = vpop.f32.mrf.mxu0
        %v5218 = vadd.f32 0.0, %v5217
        %v5219 = vpop.f32.mrf.mxu0
        %5220 = vmatprep.mubr.bf16.mxu0 0
        %5221 = vmatmul.mubr.bf16.gmra.mxu0 %v5001
        %v5222 = vpop.f32.mrf.mxu0
        %v5223 = vadd.f32 0.0, %v5222
        %v5224 = vpop.f32.mrf.mxu0
        %v5225 = vpop.f32.mrf.mxu0
        %v5226 = vadd.f32 0.0, %v5225
        %v5227 = vpop.f32.mrf.mxu0
        %5228 = vmatprep.mubr.bf16.mxu0 0
        %5229 = vmatmul.mubr.bf16.gmra.mxu0 %v5002
        %v5230 = vpop.f32.mrf.mxu0
        %v5231 = vadd.f32 0.0, %v5230
        %v5232 = vpop.f32.mrf.mxu0
        %v5233 = vpop.f32.mrf.mxu0
        %v5234 = vadd.f32 0.0, %v5233
        %v5235 = vpop.f32.mrf.mxu0
        %5236 = vmatprep.mubr.bf16.mxu0 0
        %5237 = vmatmul.mubr.bf16.gmra.mxu0 %v5003
        %v5238 = vpop.f32.mrf.mxu0
        %v5239 = vadd.f32 0.0, %v5238
        %v5240 = vpop.f32.mrf.mxu0
        %v5241 = vpop.f32.mrf.mxu0
        %v5242 = vadd.f32 0.0, %v5241
        %v5243 = vpop.f32.mrf.mxu0
        %5244 = vmatprep.mubr.bf16.mxu0 0
        %5245 = vmatmul.mubr.bf16.gmra.mxu0 %v5004
        %v5246 = vpop.f32.mrf.mxu0
        %v5247 = vadd.f32 0.0, %v5246
        %v5248 = vpop.f32.mrf.mxu0
        %v5249 = vpop.f32.mrf.mxu0
        %v5250 = vadd.f32 0.0, %v5249
        %v5251 = vpop.f32.mrf.mxu0
        %5252 = vmatprep.mubr.bf16.mxu0 0
        %5253 = vmatmul.mubr.bf16.gmra.mxu0 %v5005
        %v5254 = vpop.f32.mrf.mxu0
        %v5255 = vadd.f32 0.0, %v5254
        %v5256 = vpop.f32.mrf.mxu0
        %v5257 = vpop.f32.mrf.mxu0
        %v5258 = vadd.f32 0.0, %v5257
        %v5259 = vpop.f32.mrf.mxu0
        %5260 = vmatprep.mubr.bf16.mxu0 0
        %5261 = vmatmul.mubr.bf16.gmra.mxu0 %v5006
        %v5262 = vpop.f32.mrf.mxu0
        %v5263 = vadd.f32 0.0, %v5262
        %v5264 = vpop.f32.mrf.mxu0
        %v5265 = vpop.f32.mrf.mxu0
        %v5266 = vadd.f32 0.0, %v5265
        %v5267 = vpop.f32.mrf.mxu0
        %5268 = vmatprep.mubr.bf16.mxu0 0
        %5269 = vmatmul.mubr.bf16.gmra.mxu0 %v5007
        %v5270 = vpop.f32.mrf.mxu0
        %v5271 = vadd.f32 0.0, %v5270
        %v5272 = vpop.f32.mrf.mxu0
        %v5273 = vpop.f32.mrf.mxu0
        %v5274 = vadd.f32 0.0, %v5273
        %v5275 = vpop.f32.mrf.mxu0
        %5276 = vmatprep.mubr.bf16.mxu0 0
        %5277 = vmatmul.mubr.bf16.gmra.mxu0 %v5008
        %v5278 = vpop.f32.mrf.mxu0
        %v5279 = vadd.f32 0.0, %v5278
        %v5280 = vpop.f32.mrf.mxu0
        %v5281 = vpop.f32.mrf.mxu0
        %v5282 = vadd.f32 0.0, %v5281
        %v5283 = vpop.f32.mrf.mxu0
        %5284 = vmatprep.mubr.bf16.mxu0 0
        %5285 = vmatmul.mubr.bf16.gmra.mxu0 %v5009
        %v5286 = vpop.f32.mrf.mxu0
        %v5287 = vadd.f32 0.0, %v5286
        %v5288 = vpop.f32.mrf.mxu0
        %v5289 = vpop.f32.mrf.mxu0
        %v5290 = vadd.f32 0.0, %v5289
        %v5291 = vpop.f32.mrf.mxu0
        %5292 = vmatprep.mubr.bf16.mxu0 0
        %5293 = vmatmul.mubr.bf16.gmra.mxu0 %v5010
        %v5294 = vpop.f32.mrf.mxu0
        %v5295 = vadd.f32 0.0, %v5294
        %v5296 = vpop.f32.mrf.mxu0
        %v5297 = vpop.f32.mrf.mxu0
        %v5298 = vadd.f32 0.0, %v5297
        %v5299 = vpop.f32.mrf.mxu0
        %5300 = vmatprep.mubr.bf16.mxu0 0
        %5301 = vmatmul.mubr.bf16.gmra.mxu0 %v5011
        %v5302 = vpop.f32.mrf.mxu0
        %v5303 = vadd.f32 0.0, %v5302
        %v5304 = vpop.f32.mrf.mxu0
        %v5305 = vpop.f32.mrf.mxu0
        %v5306 = vadd.f32 0.0, %v5305
        %v5307 = vpop.f32.mrf.mxu0
        %5308 = vdwg.mxu0
        %v5309 = vadd.f32 %v4778, %v5119
        %v5310 = vadd.f32 %v4779, %v5122
        %v5311 = vadd.f32 %v4780, %v5127
        %v5312 = vadd.f32 %v4781, %v5130
        %v5313 = vadd.f32 %v4782, %v5135
        %v5314 = vadd.f32 %v4783, %v5138
        %v5315 = vadd.f32 %v4784, %v5143
        %v5316 = vadd.f32 %v4785, %v5146
        %v5317 = vadd.f32 %v4786, %v5151
        %v5318 = vadd.f32 %v4787, %v5154
        %v5319 = vadd.f32 %v4788, %v5159
        %v5320 = vadd.f32 %v4789, %v5162
        %v5321 = vadd.f32 %v4790, %v5167
        %v5322 = vadd.f32 %v4791, %v5170
        %v5323 = vadd.f32 %v4792, %v5175
        %v5324 = vadd.f32 %v4793, %v5178
        %v5325 = vadd.f32 %v4794, %v5183
        %v5326 = vadd.f32 %v4795, %v5186
        %v5327 = vadd.f32 %v4796, %v5191
        %v5328 = vadd.f32 %v4797, %v5194
        %v5329 = vadd.f32 %v4798, %v5199
        %v5330 = vadd.f32 %v4799, %v5202
        %v5331 = vadd.f32 %v4800, %v5207
        %v5332 = vadd.f32 %v4801, %v5210
        %v5333 = vadd.f32 %v4802, %v5215
        %v5334 = vadd.f32 %v4803, %v5218
        %v5335 = vadd.f32 %v4804, %v5223
        %v5336 = vadd.f32 %v4805, %v5226
        %v5337 = vadd.f32 %v4806, %v5231
        %v5338 = vadd.f32 %v4807, %v5234
        %v5339 = vadd.f32 %v4808, %v5239
        %v5340 = vadd.f32 %v4809, %v5242
        %v5341 = vadd.f32 %v4810, %v5247
        %v5342 = vadd.f32 %v4811, %v5250
        %v5343 = vadd.f32 %v4812, %v5255
        %v5344 = vadd.f32 %v4813, %v5258
        %v5345 = vadd.f32 %v4814, %v5263
        %v5346 = vadd.f32 %v4815, %v5266
        %v5347 = vadd.f32 %v4816, %v5271
        %v5348 = vadd.f32 %v4817, %v5274
        %v5349 = vadd.f32 %v4818, %v5279
        %v5350 = vadd.f32 %v4819, %v5282
        %v5351 = vadd.f32 %v4820, %v5287
        %v5352 = vadd.f32 %v4821, %v5290
        %v5353 = vadd.f32 %v4822, %v5295
        %v5354 = vadd.f32 %v4823, %v5298
        %v5355 = vadd.f32 %v4824, %v5303
        %v5356 = vadd.f32 %v4825, %v5306
        %s5357 = scalar_lea.vmem [#allocation2], 24
        %v5358 = vld [vmem:[%s5357] sm:$0xf]
        %v5359 = vld [vmem:[%s5357 + $0x4] sm:$0xf]
        %v5360 = vld [vmem:[%s5357 + $0x8] sm:$0xf]
        %v5361 = vld [vmem:[%s5357 + $0xc] sm:$0xf]
        %v5362 = vld [vmem:[%s5357 + $0x10] sm:$0xf]
        %v5363 = vld [vmem:[%s5357 + $0x14] sm:$0xf]
        %v5364 = vld [vmem:[%s5357 + $0x18] sm:$0xf]
        %v5365 = vld [vmem:[%s5357 + $0x1c] sm:$0xf]
        %v5366 = vld [vmem:[%s5357 + $0x20] sm:$0xf]
        %v5367 = vld [vmem:[%s5357 + $0x24] sm:$0xf]
        %v5368 = vld [vmem:[%s5357 + $0x28] sm:$0xf]
        %v5369 = vld [vmem:[%s5357 + $0x2c] sm:$0xf]
        %v5370 = vld [vmem:[%s5357 + $0x30] sm:$0xf]
        %v5371 = vld [vmem:[%s5357 + $0x34] sm:$0xf]
        %v5372 = vld [vmem:[%s5357 + $0x38] sm:$0xf]
        %v5373 = vld [vmem:[%s5357 + $0x3c] sm:$0xf]
        %v5374 = vld [vmem:[%s5357 + $0x40] sm:$0xf]
        %v5375 = vld [vmem:[%s5357 + $0x44] sm:$0xf]
        %v5376 = vld [vmem:[%s5357 + $0x48] sm:$0xf]
        %v5377 = vld [vmem:[%s5357 + $0x4c] sm:$0xf]
        %v5378 = vld [vmem:[%s5357 + $0x50] sm:$0xf]
        %v5379 = vld [vmem:[%s5357 + $0x54] sm:$0xf]
        %v5380 = vld [vmem:[%s5357 + $0x58] sm:$0xf]
        %v5381 = vld [vmem:[%s5357 + $0x5c] sm:$0xf]
        %v5382 = vld [vmem:[%s5357 + $0x60] sm:$0xf]
        %v5383 = vld [vmem:[%s5357 + $0x64] sm:$0xf]
        %v5384 = vld [vmem:[%s5357 + $0x68] sm:$0xf]
        %v5385 = vld [vmem:[%s5357 + $0x6c] sm:$0xf]
        %v5386 = vld [vmem:[%s5357 + $0x70] sm:$0xf]
        %v5387 = vld [vmem:[%s5357 + $0x74] sm:$0xf]
        %v5388 = vld [vmem:[%s5357 + $0x78] sm:$0xf]
        %v5389 = vld [vmem:[%s5357 + $0x7c] sm:$0xf]
        %v5390 = vld [vmem:[%s5357 + $0x80] sm:$0xf]
        %v5391 = vld [vmem:[%s5357 + $0x84] sm:$0xf]
        %v5392 = vld [vmem:[%s5357 + $0x88] sm:$0xf]
        %v5393 = vld [vmem:[%s5357 + $0x8c] sm:$0xf]
        %v5394 = vld [vmem:[%s5357 + $0x90] sm:$0xf]
        %v5395 = vld [vmem:[%s5357 + $0x94] sm:$0xf]
        %v5396 = vld [vmem:[%s5357 + $0x98] sm:$0xf]
        %v5397 = vld [vmem:[%s5357 + $0x9c] sm:$0xf]
        %v5398 = vld [vmem:[%s5357 + $0xa0] sm:$0xf]
        %v5399 = vld [vmem:[%s5357 + $0xa4] sm:$0xf]
        %v5400 = vld [vmem:[%s5357 + $0xa8] sm:$0xf]
        %v5401 = vld [vmem:[%s5357 + $0xac] sm:$0xf]
        %v5402 = vld [vmem:[%s5357 + $0xb0] sm:$0xf]
        %v5403 = vld [vmem:[%s5357 + $0xb4] sm:$0xf]
        %v5404 = vld [vmem:[%s5357 + $0xb8] sm:$0xf]
        %v5405 = vld [vmem:[%s5357 + $0xbc] sm:$0xf]
        %s5406 = scalar_lea.vmem [#allocation10], 448
        %v5407 = vld [vmem:[%s5406] sm:$0xf]
        %v5408 = vld [vmem:[%s5406 + $0x4] sm:$0xf]
        %v5409 = vld [vmem:[%s5406 + $0x8] sm:$0xf]
        %v5410 = vld [vmem:[%s5406 + $0xc] sm:$0xf]
        %v5411 = vld [vmem:[%s5406 + $0x10] sm:$0xf]
        %v5412 = vld [vmem:[%s5406 + $0x14] sm:$0xf]
        %v5413 = vld [vmem:[%s5406 + $0x18] sm:$0xf]
        %v5414 = vld [vmem:[%s5406 + $0x1c] sm:$0xf]
        %v5415 = vld [vmem:[%s5406 + $0x20] sm:$0xf]
        %v5416 = vld [vmem:[%s5406 + $0x24] sm:$0xf]
        %v5417 = vld [vmem:[%s5406 + $0x28] sm:$0xf]
        %v5418 = vld [vmem:[%s5406 + $0x2c] sm:$0xf]
        %v5419 = vld [vmem:[%s5406 + $0x30] sm:$0xf]
        %v5420 = vld [vmem:[%s5406 + $0x34] sm:$0xf]
        %v5421 = vld [vmem:[%s5406 + $0x38] sm:$0xf]
        %v5422 = vld [vmem:[%s5406 + $0x3c] sm:$0xf]
        %v5471 = vunpack.c.l.b16 %v5358
        %v5472 = vunpack.c.l.b16 %v5359
        %v5473 = vunpack.c.l.b16 %v5360
        %v5474 = vunpack.c.l.b16 %v5361
        %v5475 = vunpack.c.l.b16 %v5362
        %v5476 = vunpack.c.l.b16 %v5363
        %v5477 = vunpack.c.l.b16 %v5364
        %v5478 = vunpack.c.l.b16 %v5365
        %v5479 = vunpack.c.l.b16 %v5366
        %v5480 = vunpack.c.l.b16 %v5367
        %v5481 = vunpack.c.l.b16 %v5368
        %v5482 = vunpack.c.l.b16 %v5369
        %v5483 = vunpack.c.l.b16 %v5370
        %v5484 = vunpack.c.l.b16 %v5371
        %v5485 = vunpack.c.l.b16 %v5372
        %v5486 = vunpack.c.l.b16 %v5373
        %v5487 = vunpack.c.l.b16 %v5374
        %v5488 = vunpack.c.l.b16 %v5375
        %v5489 = vunpack.c.l.b16 %v5376
        %v5490 = vunpack.c.l.b16 %v5377
        %v5491 = vunpack.c.l.b16 %v5378
        %v5492 = vunpack.c.l.b16 %v5379
        %v5493 = vunpack.c.l.b16 %v5380
        %v5494 = vunpack.c.l.b16 %v5381
        %v5495 = vunpack.c.l.b16 %v5382
        %v5496 = vunpack.c.l.b16 %v5383
        %v5497 = vunpack.c.l.b16 %v5384
        %v5498 = vunpack.c.l.b16 %v5385
        %v5499 = vunpack.c.l.b16 %v5386
        %v5500 = vunpack.c.l.b16 %v5387
        %v5501 = vunpack.c.l.b16 %v5388
        %v5502 = vunpack.c.l.b16 %v5389
        %v5503 = vunpack.c.l.b16 %v5390
        %v5504 = vunpack.c.l.b16 %v5391
        %v5505 = vunpack.c.l.b16 %v5392
        %v5506 = vunpack.c.l.b16 %v5393
        %v5507 = vunpack.c.l.b16 %v5394
        %v5508 = vunpack.c.l.b16 %v5395
        %v5509 = vunpack.c.l.b16 %v5396
        %v5510 = vunpack.c.l.b16 %v5397
        %v5511 = vunpack.c.l.b16 %v5398
        %v5512 = vunpack.c.l.b16 %v5399
        %v5513 = vunpack.c.l.b16 %v5400
        %v5514 = vunpack.c.l.b16 %v5401
        %v5515 = vunpack.c.l.b16 %v5402
        %v5516 = vunpack.c.l.b16 %v5403
        %v5517 = vunpack.c.l.b16 %v5404
        %v5518 = vunpack.c.l.b16 %v5405
        %v5519 = vpack.c.b16 %v5472, %v5471
        %v5520 = vpack.c.b16 %v5474, %v5473
        %v5521 = vpack.c.b16 %v5476, %v5475
        %v5522 = vpack.c.b16 %v5478, %v5477
        %v5523 = vpack.c.b16 %v5480, %v5479
        %v5524 = vpack.c.b16 %v5482, %v5481
        %v5525 = vpack.c.b16 %v5484, %v5483
        %v5526 = vpack.c.b16 %v5486, %v5485
        %v5527 = vpack.c.b16 %v5488, %v5487
        %v5528 = vpack.c.b16 %v5490, %v5489
        %v5529 = vpack.c.b16 %v5492, %v5491
        %v5530 = vpack.c.b16 %v5494, %v5493
        %v5531 = vpack.c.b16 %v5496, %v5495
        %v5532 = vpack.c.b16 %v5498, %v5497
        %v5533 = vpack.c.b16 %v5500, %v5499
        %v5534 = vpack.c.b16 %v5502, %v5501
        %v5535 = vpack.c.b16 %v5504, %v5503
        %v5536 = vpack.c.b16 %v5506, %v5505
        %v5537 = vpack.c.b16 %v5508, %v5507
        %v5538 = vpack.c.b16 %v5510, %v5509
        %v5539 = vpack.c.b16 %v5512, %v5511
        %v5540 = vpack.c.b16 %v5514, %v5513
        %v5541 = vpack.c.b16 %v5516, %v5515
        %v5542 = vpack.c.b16 %v5518, %v5517
        %v5583 = vunpack.c.l.b16 %v5407
        %v5584 = vunpack.c.l.b16 %v5408
        %v5585 = vunpack.c.l.b16 %v5409
        %v5586 = vunpack.c.l.b16 %v5410
        %v5587 = vunpack.c.l.b16 %v5411
        %v5588 = vunpack.c.l.b16 %v5412
        %v5589 = vunpack.c.l.b16 %v5413
        %v5590 = vunpack.c.l.b16 %v5414
        %v5591 = vunpack.c.l.b16 %v5415
        %v5592 = vunpack.c.l.b16 %v5416
        %v5593 = vunpack.c.l.b16 %v5417
        %v5594 = vunpack.c.l.b16 %v5418
        %v5595 = vunpack.c.l.b16 %v5419
        %v5596 = vunpack.c.l.b16 %v5420
        %v5597 = vunpack.c.l.b16 %v5421
        %v5598 = vunpack.c.l.b16 %v5422
        %v5599 = vpack.c.b16 %v5584, %v5583
        %v5600 = vpack.c.b16 %v5586, %v5585
        %v5601 = vpack.c.b16 %v5588, %v5587
        %v5602 = vpack.c.b16 %v5590, %v5589
        %v5603 = vpack.c.b16 %v5592, %v5591
        %v5604 = vpack.c.b16 %v5594, %v5593
        %v5605 = vpack.c.b16 %v5596, %v5595
        %v5606 = vpack.c.b16 %v5598, %v5597
        %5615 = vmatprep.subr.bf16.mxu0 0
        %5616 = vmatpush1.bf16.msra.mxu0 %v5606
        %5617 = vmatprep.subr.bf16.mxu0 0
        %5618 = vmatpush1.bf16.msra.mxu0 %v5605
        %5619 = vmatprep.subr.bf16.mxu0 0
        %5620 = vmatpush1.bf16.msra.mxu0 %v5604
        %5621 = vmatprep.subr.bf16.mxu0 0
        %5622 = vmatpush1.bf16.msra.mxu0 %v5603
        %5623 = vmatprep.subr.bf16.mxu0 0
        %5624 = vmatpush1.bf16.msra.mxu0 %v5602
        %5625 = vmatprep.subr.bf16.mxu0 0
        %5626 = vmatpush1.bf16.msra.mxu0 %v5601
        %5627 = vmatprep.subr.bf16.mxu0 0
        %5628 = vmatpush1.bf16.msra.mxu0 %v5600
        %5629 = vmatprep.subr.bf16.mxu0 0
        %5630 = vmatpush1.bf16.msra.mxu0 %v5599
        %5631 = vmatprep.subr.bf16.mxu0 0
        %5632 = vmatpush2.bf16.msra.mxu0 0
        %5633 = vmatprep.subr.bf16.mxu0 0
        %5634 = vmatpush2.bf16.msra.mxu0 0
        %5635 = vmatprep.subr.bf16.mxu0 0
        %5636 = vmatpush2.bf16.msra.mxu0 0
        %5637 = vmatprep.subr.bf16.mxu0 0
        %5638 = vmatpush2.bf16.msra.mxu0 0
        %5639 = vmatprep.subr.bf16.mxu0 0
        %5640 = vmatpush2.bf16.msra.mxu0 0
        %5641 = vmatprep.subr.bf16.mxu0 0
        %5642 = vmatpush2.bf16.msra.mxu0 0
        %5643 = vmatprep.subr.bf16.mxu0 0
        %5644 = vmatpush2.bf16.msra.mxu0 0
        %5645 = vmatprep.subr.bf16.mxu0 0
        %5646 = vmatpush2.bf16.msra.mxu0 0
        %5647 = vmatprep.mubr.bf16.mxu0 0
        %5648 = vmatmul.mubr.bf16.gmra.mxu0 %v5519
        %v5649 = vpop.f32.mrf.mxu0
        %v5650 = vadd.f32 0.0, %v5649
        %v5651 = vpop.f32.mrf.mxu0
        %v5652 = vpop.f32.mrf.mxu0
        %v5653 = vadd.f32 0.0, %v5652
        %v5654 = vpop.f32.mrf.mxu0
        %5655 = vmatprep.mubr.bf16.mxu0 0
        %5656 = vmatmul.mubr.bf16.gmra.mxu0 %v5520
        %v5657 = vpop.f32.mrf.mxu0
        %v5658 = vadd.f32 0.0, %v5657
        %v5659 = vpop.f32.mrf.mxu0
        %v5660 = vpop.f32.mrf.mxu0
        %v5661 = vadd.f32 0.0, %v5660
        %v5662 = vpop.f32.mrf.mxu0
        %5663 = vmatprep.mubr.bf16.mxu0 0
        %5664 = vmatmul.mubr.bf16.gmra.mxu0 %v5521
        %v5665 = vpop.f32.mrf.mxu0
        %v5666 = vadd.f32 0.0, %v5665
        %v5667 = vpop.f32.mrf.mxu0
        %v5668 = vpop.f32.mrf.mxu0
        %v5669 = vadd.f32 0.0, %v5668
        %v5670 = vpop.f32.mrf.mxu0
        %5671 = vmatprep.mubr.bf16.mxu0 0
        %5672 = vmatmul.mubr.bf16.gmra.mxu0 %v5522
        %v5673 = vpop.f32.mrf.mxu0
        %v5674 = vadd.f32 0.0, %v5673
        %v5675 = vpop.f32.mrf.mxu0
        %v5676 = vpop.f32.mrf.mxu0
        %v5677 = vadd.f32 0.0, %v5676
        %v5678 = vpop.f32.mrf.mxu0
        %5679 = vmatprep.mubr.bf16.mxu0 0
        %5680 = vmatmul.mubr.bf16.gmra.mxu0 %v5523
        %v5681 = vpop.f32.mrf.mxu0
        %v5682 = vadd.f32 0.0, %v5681
        %v5683 = vpop.f32.mrf.mxu0
        %v5684 = vpop.f32.mrf.mxu0
        %v5685 = vadd.f32 0.0, %v5684
        %v5686 = vpop.f32.mrf.mxu0
        %5687 = vmatprep.mubr.bf16.mxu0 0
        %5688 = vmatmul.mubr.bf16.gmra.mxu0 %v5524
        %v5689 = vpop.f32.mrf.mxu0
        %v5690 = vadd.f32 0.0, %v5689
        %v5691 = vpop.f32.mrf.mxu0
        %v5692 = vpop.f32.mrf.mxu0
        %v5693 = vadd.f32 0.0, %v5692
        %v5694 = vpop.f32.mrf.mxu0
        %5695 = vmatprep.mubr.bf16.mxu0 0
        %5696 = vmatmul.mubr.bf16.gmra.mxu0 %v5525
        %v5697 = vpop.f32.mrf.mxu0
        %v5698 = vadd.f32 0.0, %v5697
        %v5699 = vpop.f32.mrf.mxu0
        %v5700 = vpop.f32.mrf.mxu0
        %v5701 = vadd.f32 0.0, %v5700
        %v5702 = vpop.f32.mrf.mxu0
        %5703 = vmatprep.mubr.bf16.mxu0 0
        %5704 = vmatmul.mubr.bf16.gmra.mxu0 %v5526
        %v5705 = vpop.f32.mrf.mxu0
        %v5706 = vadd.f32 0.0, %v5705
        %v5707 = vpop.f32.mrf.mxu0
        %v5708 = vpop.f32.mrf.mxu0
        %v5709 = vadd.f32 0.0, %v5708
        %v5710 = vpop.f32.mrf.mxu0
        %5711 = vmatprep.mubr.bf16.mxu0 0
        %5712 = vmatmul.mubr.bf16.gmra.mxu0 %v5527
        %v5713 = vpop.f32.mrf.mxu0
        %v5714 = vadd.f32 0.0, %v5713
        %v5715 = vpop.f32.mrf.mxu0
        %v5716 = vpop.f32.mrf.mxu0
        %v5717 = vadd.f32 0.0, %v5716
        %v5718 = vpop.f32.mrf.mxu0
        %5719 = vmatprep.mubr.bf16.mxu0 0
        %5720 = vmatmul.mubr.bf16.gmra.mxu0 %v5528
        %v5721 = vpop.f32.mrf.mxu0
        %v5722 = vadd.f32 0.0, %v5721
        %v5723 = vpop.f32.mrf.mxu0
        %v5724 = vpop.f32.mrf.mxu0
        %v5725 = vadd.f32 0.0, %v5724
        %v5726 = vpop.f32.mrf.mxu0
        %5727 = vmatprep.mubr.bf16.mxu0 0
        %5728 = vmatmul.mubr.bf16.gmra.mxu0 %v5529
        %v5729 = vpop.f32.mrf.mxu0
        %v5730 = vadd.f32 0.0, %v5729
        %v5731 = vpop.f32.mrf.mxu0
        %v5732 = vpop.f32.mrf.mxu0
        %v5733 = vadd.f32 0.0, %v5732
        %v5734 = vpop.f32.mrf.mxu0
        %5735 = vmatprep.mubr.bf16.mxu0 0
        %5736 = vmatmul.mubr.bf16.gmra.mxu0 %v5530
        %v5737 = vpop.f32.mrf.mxu0
        %v5738 = vadd.f32 0.0, %v5737
        %v5739 = vpop.f32.mrf.mxu0
        %v5740 = vpop.f32.mrf.mxu0
        %v5741 = vadd.f32 0.0, %v5740
        %v5742 = vpop.f32.mrf.mxu0
        %5743 = vmatprep.mubr.bf16.mxu0 0
        %5744 = vmatmul.mubr.bf16.gmra.mxu0 %v5531
        %v5745 = vpop.f32.mrf.mxu0
        %v5746 = vadd.f32 0.0, %v5745
        %v5747 = vpop.f32.mrf.mxu0
        %v5748 = vpop.f32.mrf.mxu0
        %v5749 = vadd.f32 0.0, %v5748
        %v5750 = vpop.f32.mrf.mxu0
        %5751 = vmatprep.mubr.bf16.mxu0 0
        %5752 = vmatmul.mubr.bf16.gmra.mxu0 %v5532
        %v5753 = vpop.f32.mrf.mxu0
        %v5754 = vadd.f32 0.0, %v5753
        %v5755 = vpop.f32.mrf.mxu0
        %v5756 = vpop.f32.mrf.mxu0
        %v5757 = vadd.f32 0.0, %v5756
        %v5758 = vpop.f32.mrf.mxu0
        %5759 = vmatprep.mubr.bf16.mxu0 0
        %5760 = vmatmul.mubr.bf16.gmra.mxu0 %v5533
        %v5761 = vpop.f32.mrf.mxu0
        %v5762 = vadd.f32 0.0, %v5761
        %v5763 = vpop.f32.mrf.mxu0
        %v5764 = vpop.f32.mrf.mxu0
        %v5765 = vadd.f32 0.0, %v5764
        %v5766 = vpop.f32.mrf.mxu0
        %5767 = vmatprep.mubr.bf16.mxu0 0
        %5768 = vmatmul.mubr.bf16.gmra.mxu0 %v5534
        %v5769 = vpop.f32.mrf.mxu0
        %v5770 = vadd.f32 0.0, %v5769
        %v5771 = vpop.f32.mrf.mxu0
        %v5772 = vpop.f32.mrf.mxu0
        %v5773 = vadd.f32 0.0, %v5772
        %v5774 = vpop.f32.mrf.mxu0
        %5775 = vmatprep.mubr.bf16.mxu0 0
        %5776 = vmatmul.mubr.bf16.gmra.mxu0 %v5535
        %v5777 = vpop.f32.mrf.mxu0
        %v5778 = vadd.f32 0.0, %v5777
        %v5779 = vpop.f32.mrf.mxu0
        %v5780 = vpop.f32.mrf.mxu0
        %v5781 = vadd.f32 0.0, %v5780
        %v5782 = vpop.f32.mrf.mxu0
        %5783 = vmatprep.mubr.bf16.mxu0 0
        %5784 = vmatmul.mubr.bf16.gmra.mxu0 %v5536
        %v5785 = vpop.f32.mrf.mxu0
        %v5786 = vadd.f32 0.0, %v5785
        %v5787 = vpop.f32.mrf.mxu0
        %v5788 = vpop.f32.mrf.mxu0
        %v5789 = vadd.f32 0.0, %v5788
        %v5790 = vpop.f32.mrf.mxu0
        %5791 = vmatprep.mubr.bf16.mxu0 0
        %5792 = vmatmul.mubr.bf16.gmra.mxu0 %v5537
        %v5793 = vpop.f32.mrf.mxu0
        %v5794 = vadd.f32 0.0, %v5793
        %v5795 = vpop.f32.mrf.mxu0
        %v5796 = vpop.f32.mrf.mxu0
        %v5797 = vadd.f32 0.0, %v5796
        %v5798 = vpop.f32.mrf.mxu0
        %5799 = vmatprep.mubr.bf16.mxu0 0
        %5800 = vmatmul.mubr.bf16.gmra.mxu0 %v5538
        %v5801 = vpop.f32.mrf.mxu0
        %v5802 = vadd.f32 0.0, %v5801
        %v5803 = vpop.f32.mrf.mxu0
        %v5804 = vpop.f32.mrf.mxu0
        %v5805 = vadd.f32 0.0, %v5804
        %v5806 = vpop.f32.mrf.mxu0
        %5807 = vmatprep.mubr.bf16.mxu0 0
        %5808 = vmatmul.mubr.bf16.gmra.mxu0 %v5539
        %v5809 = vpop.f32.mrf.mxu0
        %v5810 = vadd.f32 0.0, %v5809
        %v5811 = vpop.f32.mrf.mxu0
        %v5812 = vpop.f32.mrf.mxu0
        %v5813 = vadd.f32 0.0, %v5812
        %v5814 = vpop.f32.mrf.mxu0
        %5815 = vmatprep.mubr.bf16.mxu0 0
        %5816 = vmatmul.mubr.bf16.gmra.mxu0 %v5540
        %v5817 = vpop.f32.mrf.mxu0
        %v5818 = vadd.f32 0.0, %v5817
        %v5819 = vpop.f32.mrf.mxu0
        %v5820 = vpop.f32.mrf.mxu0
        %v5821 = vadd.f32 0.0, %v5820
        %v5822 = vpop.f32.mrf.mxu0
        %5823 = vmatprep.mubr.bf16.mxu0 0
        %5824 = vmatmul.mubr.bf16.gmra.mxu0 %v5541
        %v5825 = vpop.f32.mrf.mxu0
        %v5826 = vadd.f32 0.0, %v5825
        %v5827 = vpop.f32.mrf.mxu0
        %v5828 = vpop.f32.mrf.mxu0
        %v5829 = vadd.f32 0.0, %v5828
        %v5830 = vpop.f32.mrf.mxu0
        %5831 = vmatprep.mubr.bf16.mxu0 0
        %5832 = vmatmul.mubr.bf16.gmra.mxu0 %v5542
        %v5833 = vpop.f32.mrf.mxu0
        %v5834 = vadd.f32 0.0, %v5833
        %v5835 = vpop.f32.mrf.mxu0
        %v5836 = vpop.f32.mrf.mxu0
        %v5837 = vadd.f32 0.0, %v5836
        %v5838 = vpop.f32.mrf.mxu0
        %5839 = vdwg.mxu0
        %v5840 = vadd.f32 %v5309, %v5650
        %v5841 = vadd.f32 %v5310, %v5653
        %v5842 = vadd.f32 %v5311, %v5658
        %v5843 = vadd.f32 %v5312, %v5661
        %v5844 = vadd.f32 %v5313, %v5666
        %v5845 = vadd.f32 %v5314, %v5669
        %v5846 = vadd.f32 %v5315, %v5674
        %v5847 = vadd.f32 %v5316, %v5677
        %v5848 = vadd.f32 %v5317, %v5682
        %v5849 = vadd.f32 %v5318, %v5685
        %v5850 = vadd.f32 %v5319, %v5690
        %v5851 = vadd.f32 %v5320, %v5693
        %v5852 = vadd.f32 %v5321, %v5698
        %v5853 = vadd.f32 %v5322, %v5701
        %v5854 = vadd.f32 %v5323, %v5706
        %v5855 = vadd.f32 %v5324, %v5709
        %v5856 = vadd.f32 %v5325, %v5714
        %v5857 = vadd.f32 %v5326, %v5717
        %v5858 = vadd.f32 %v5327, %v5722
        %v5859 = vadd.f32 %v5328, %v5725
        %v5860 = vadd.f32 %v5329, %v5730
        %v5861 = vadd.f32 %v5330, %v5733
        %v5862 = vadd.f32 %v5331, %v5738
        %v5863 = vadd.f32 %v5332, %v5741
        %v5864 = vadd.f32 %v5333, %v5746
        %v5865 = vadd.f32 %v5334, %v5749
        %v5866 = vadd.f32 %v5335, %v5754
        %v5867 = vadd.f32 %v5336, %v5757
        %v5868 = vadd.f32 %v5337, %v5762
        %v5869 = vadd.f32 %v5338, %v5765
        %v5870 = vadd.f32 %v5339, %v5770
        %v5871 = vadd.f32 %v5340, %v5773
        %v5872 = vadd.f32 %v5341, %v5778
        %v5873 = vadd.f32 %v5342, %v5781
        %v5874 = vadd.f32 %v5343, %v5786
        %v5875 = vadd.f32 %v5344, %v5789
        %v5876 = vadd.f32 %v5345, %v5794
        %v5877 = vadd.f32 %v5346, %v5797
        %v5878 = vadd.f32 %v5347, %v5802
        %v5879 = vadd.f32 %v5348, %v5805
        %v5880 = vadd.f32 %v5349, %v5810
        %v5881 = vadd.f32 %v5350, %v5813
        %v5882 = vadd.f32 %v5351, %v5818
        %v5883 = vadd.f32 %v5352, %v5821
        %v5884 = vadd.f32 %v5353, %v5826
        %v5885 = vadd.f32 %v5354, %v5829
        %v5886 = vadd.f32 %v5355, %v5834
        %v5887 = vadd.f32 %v5356, %v5837
        %s5888 = scalar_lea.vmem [#allocation4], 24
        %v5889 = vld [vmem:[%s5888] sm:$0xf]
        %v5890 = vld [vmem:[%s5888 + $0x4] sm:$0xf]
        %v5891 = vld [vmem:[%s5888 + $0x8] sm:$0xf]
        %v5892 = vld [vmem:[%s5888 + $0xc] sm:$0xf]
        %v5893 = vld [vmem:[%s5888 + $0x10] sm:$0xf]
        %v5894 = vld [vmem:[%s5888 + $0x14] sm:$0xf]
        %v5895 = vld [vmem:[%s5888 + $0x18] sm:$0xf]
        %v5896 = vld [vmem:[%s5888 + $0x1c] sm:$0xf]
        %v5897 = vld [vmem:[%s5888 + $0x20] sm:$0xf]
        %v5898 = vld [vmem:[%s5888 + $0x24] sm:$0xf]
        %v5899 = vld [vmem:[%s5888 + $0x28] sm:$0xf]
        %v5900 = vld [vmem:[%s5888 + $0x2c] sm:$0xf]
        %v5901 = vld [vmem:[%s5888 + $0x30] sm:$0xf]
        %v5902 = vld [vmem:[%s5888 + $0x34] sm:$0xf]
        %v5903 = vld [vmem:[%s5888 + $0x38] sm:$0xf]
        %v5904 = vld [vmem:[%s5888 + $0x3c] sm:$0xf]
        %v5905 = vld [vmem:[%s5888 + $0x40] sm:$0xf]
        %v5906 = vld [vmem:[%s5888 + $0x44] sm:$0xf]
        %v5907 = vld [vmem:[%s5888 + $0x48] sm:$0xf]
        %v5908 = vld [vmem:[%s5888 + $0x4c] sm:$0xf]
        %v5909 = vld [vmem:[%s5888 + $0x50] sm:$0xf]
        %v5910 = vld [vmem:[%s5888 + $0x54] sm:$0xf]
        %v5911 = vld [vmem:[%s5888 + $0x58] sm:$0xf]
        %v5912 = vld [vmem:[%s5888 + $0x5c] sm:$0xf]
        %v5913 = vld [vmem:[%s5888 + $0x60] sm:$0xf]
        %v5914 = vld [vmem:[%s5888 + $0x64] sm:$0xf]
        %v5915 = vld [vmem:[%s5888 + $0x68] sm:$0xf]
        %v5916 = vld [vmem:[%s5888 + $0x6c] sm:$0xf]
        %v5917 = vld [vmem:[%s5888 + $0x70] sm:$0xf]
        %v5918 = vld [vmem:[%s5888 + $0x74] sm:$0xf]
        %v5919 = vld [vmem:[%s5888 + $0x78] sm:$0xf]
        %v5920 = vld [vmem:[%s5888 + $0x7c] sm:$0xf]
        %v5921 = vld [vmem:[%s5888 + $0x80] sm:$0xf]
        %v5922 = vld [vmem:[%s5888 + $0x84] sm:$0xf]
        %v5923 = vld [vmem:[%s5888 + $0x88] sm:$0xf]
        %v5924 = vld [vmem:[%s5888 + $0x8c] sm:$0xf]
        %v5925 = vld [vmem:[%s5888 + $0x90] sm:$0xf]
        %v5926 = vld [vmem:[%s5888 + $0x94] sm:$0xf]
        %v5927 = vld [vmem:[%s5888 + $0x98] sm:$0xf]
        %v5928 = vld [vmem:[%s5888 + $0x9c] sm:$0xf]
        %v5929 = vld [vmem:[%s5888 + $0xa0] sm:$0xf]
        %v5930 = vld [vmem:[%s5888 + $0xa4] sm:$0xf]
        %v5931 = vld [vmem:[%s5888 + $0xa8] sm:$0xf]
        %v5932 = vld [vmem:[%s5888 + $0xac] sm:$0xf]
        %v5933 = vld [vmem:[%s5888 + $0xb0] sm:$0xf]
        %v5934 = vld [vmem:[%s5888 + $0xb4] sm:$0xf]
        %v5935 = vld [vmem:[%s5888 + $0xb8] sm:$0xf]
        %v5936 = vld [vmem:[%s5888 + $0xbc] sm:$0xf]
        %s5937 = scalar_lea.vmem [#allocation10], 512
        %v5938 = vld [vmem:[%s5937] sm:$0xf]
        %v5939 = vld [vmem:[%s5937 + $0x4] sm:$0xf]
        %v5940 = vld [vmem:[%s5937 + $0x8] sm:$0xf]
        %v5941 = vld [vmem:[%s5937 + $0xc] sm:$0xf]
        %v5942 = vld [vmem:[%s5937 + $0x10] sm:$0xf]
        %v5943 = vld [vmem:[%s5937 + $0x14] sm:$0xf]
        %v5944 = vld [vmem:[%s5937 + $0x18] sm:$0xf]
        %v5945 = vld [vmem:[%s5937 + $0x1c] sm:$0xf]
        %v5946 = vld [vmem:[%s5937 + $0x20] sm:$0xf]
        %v5947 = vld [vmem:[%s5937 + $0x24] sm:$0xf]
        %v5948 = vld [vmem:[%s5937 + $0x28] sm:$0xf]
        %v5949 = vld [vmem:[%s5937 + $0x2c] sm:$0xf]
        %v5950 = vld [vmem:[%s5937 + $0x30] sm:$0xf]
        %v5951 = vld [vmem:[%s5937 + $0x34] sm:$0xf]
        %v5952 = vld [vmem:[%s5937 + $0x38] sm:$0xf]
        %v5953 = vld [vmem:[%s5937 + $0x3c] sm:$0xf]
        %v6002 = vunpack.c.l.b16 %v5889
        %v6003 = vunpack.c.l.b16 %v5890
        %v6004 = vunpack.c.l.b16 %v5891
        %v6005 = vunpack.c.l.b16 %v5892
        %v6006 = vunpack.c.l.b16 %v5893
        %v6007 = vunpack.c.l.b16 %v5894
        %v6008 = vunpack.c.l.b16 %v5895
        %v6009 = vunpack.c.l.b16 %v5896
        %v6010 = vunpack.c.l.b16 %v5897
        %v6011 = vunpack.c.l.b16 %v5898
        %v6012 = vunpack.c.l.b16 %v5899
        %v6013 = vunpack.c.l.b16 %v5900
        %v6014 = vunpack.c.l.b16 %v5901
        %v6015 = vunpack.c.l.b16 %v5902
        %v6016 = vunpack.c.l.b16 %v5903
        %v6017 = vunpack.c.l.b16 %v5904
        %v6018 = vunpack.c.l.b16 %v5905
        %v6019 = vunpack.c.l.b16 %v5906
        %v6020 = vunpack.c.l.b16 %v5907
        %v6021 = vunpack.c.l.b16 %v5908
        %v6022 = vunpack.c.l.b16 %v5909
        %v6023 = vunpack.c.l.b16 %v5910
        %v6024 = vunpack.c.l.b16 %v5911
        %v6025 = vunpack.c.l.b16 %v5912
        %v6026 = vunpack.c.l.b16 %v5913
        %v6027 = vunpack.c.l.b16 %v5914
        %v6028 = vunpack.c.l.b16 %v5915
        %v6029 = vunpack.c.l.b16 %v5916
        %v6030 = vunpack.c.l.b16 %v5917
        %v6031 = vunpack.c.l.b16 %v5918
        %v6032 = vunpack.c.l.b16 %v5919
        %v6033 = vunpack.c.l.b16 %v5920
        %v6034 = vunpack.c.l.b16 %v5921
        %v6035 = vunpack.c.l.b16 %v5922
        %v6036 = vunpack.c.l.b16 %v5923
        %v6037 = vunpack.c.l.b16 %v5924
        %v6038 = vunpack.c.l.b16 %v5925
        %v6039 = vunpack.c.l.b16 %v5926
        %v6040 = vunpack.c.l.b16 %v5927
        %v6041 = vunpack.c.l.b16 %v5928
        %v6042 = vunpack.c.l.b16 %v5929
        %v6043 = vunpack.c.l.b16 %v5930
        %v6044 = vunpack.c.l.b16 %v5931
        %v6045 = vunpack.c.l.b16 %v5932
        %v6046 = vunpack.c.l.b16 %v5933
        %v6047 = vunpack.c.l.b16 %v5934
        %v6048 = vunpack.c.l.b16 %v5935
        %v6049 = vunpack.c.l.b16 %v5936
        %v6050 = vpack.c.b16 %v6003, %v6002
        %v6051 = vpack.c.b16 %v6005, %v6004
        %v6052 = vpack.c.b16 %v6007, %v6006
        %v6053 = vpack.c.b16 %v6009, %v6008
        %v6054 = vpack.c.b16 %v6011, %v6010
        %v6055 = vpack.c.b16 %v6013, %v6012
        %v6056 = vpack.c.b16 %v6015, %v6014
        %v6057 = vpack.c.b16 %v6017, %v6016
        %v6058 = vpack.c.b16 %v6019, %v6018
        %v6059 = vpack.c.b16 %v6021, %v6020
        %v6060 = vpack.c.b16 %v6023, %v6022
        %v6061 = vpack.c.b16 %v6025, %v6024
        %v6062 = vpack.c.b16 %v6027, %v6026
        %v6063 = vpack.c.b16 %v6029, %v6028
        %v6064 = vpack.c.b16 %v6031, %v6030
        %v6065 = vpack.c.b16 %v6033, %v6032
        %v6066 = vpack.c.b16 %v6035, %v6034
        %v6067 = vpack.c.b16 %v6037, %v6036
        %v6068 = vpack.c.b16 %v6039, %v6038
        %v6069 = vpack.c.b16 %v6041, %v6040
        %v6070 = vpack.c.b16 %v6043, %v6042
        %v6071 = vpack.c.b16 %v6045, %v6044
        %v6072 = vpack.c.b16 %v6047, %v6046
        %v6073 = vpack.c.b16 %v6049, %v6048
        %v6114 = vunpack.c.l.b16 %v5938
        %v6115 = vunpack.c.l.b16 %v5939
        %v6116 = vunpack.c.l.b16 %v5940
        %v6117 = vunpack.c.l.b16 %v5941
        %v6118 = vunpack.c.l.b16 %v5942
        %v6119 = vunpack.c.l.b16 %v5943
        %v6120 = vunpack.c.l.b16 %v5944
        %v6121 = vunpack.c.l.b16 %v5945
        %v6122 = vunpack.c.l.b16 %v5946
        %v6123 = vunpack.c.l.b16 %v5947
        %v6124 = vunpack.c.l.b16 %v5948
        %v6125 = vunpack.c.l.b16 %v5949
        %v6126 = vunpack.c.l.b16 %v5950
        %v6127 = vunpack.c.l.b16 %v5951
        %v6128 = vunpack.c.l.b16 %v5952
        %v6129 = vunpack.c.l.b16 %v5953
        %v6130 = vpack.c.b16 %v6115, %v6114
        %v6131 = vpack.c.b16 %v6117, %v6116
        %v6132 = vpack.c.b16 %v6119, %v6118
        %v6133 = vpack.c.b16 %v6121, %v6120
        %v6134 = vpack.c.b16 %v6123, %v6122
        %v6135 = vpack.c.b16 %v6125, %v6124
        %v6136 = vpack.c.b16 %v6127, %v6126
        %v6137 = vpack.c.b16 %v6129, %v6128
        %6146 = vmatprep.subr.bf16.mxu0 0
        %6147 = vmatpush1.bf16.msra.mxu0 %v6137
        %6148 = vmatprep.subr.bf16.mxu0 0
        %6149 = vmatpush1.bf16.msra.mxu0 %v6136
        %6150 = vmatprep.subr.bf16.mxu0 0
        %6151 = vmatpush1.bf16.msra.mxu0 %v6135
        %6152 = vmatprep.subr.bf16.mxu0 0
        %6153 = vmatpush1.bf16.msra.mxu0 %v6134
        %6154 = vmatprep.subr.bf16.mxu0 0
        %6155 = vmatpush1.bf16.msra.mxu0 %v6133
        %6156 = vmatprep.subr.bf16.mxu0 0
        %6157 = vmatpush1.bf16.msra.mxu0 %v6132
        %6158 = vmatprep.subr.bf16.mxu0 0
        %6159 = vmatpush1.bf16.msra.mxu0 %v6131
        %6160 = vmatprep.subr.bf16.mxu0 0
        %6161 = vmatpush1.bf16.msra.mxu0 %v6130
        %6162 = vmatprep.subr.bf16.mxu0 0
        %6163 = vmatpush2.bf16.msra.mxu0 0
        %6164 = vmatprep.subr.bf16.mxu0 0
        %6165 = vmatpush2.bf16.msra.mxu0 0
        %6166 = vmatprep.subr.bf16.mxu0 0
        %6167 = vmatpush2.bf16.msra.mxu0 0
        %6168 = vmatprep.subr.bf16.mxu0 0
        %6169 = vmatpush2.bf16.msra.mxu0 0
        %6170 = vmatprep.subr.bf16.mxu0 0
        %6171 = vmatpush2.bf16.msra.mxu0 0
        %6172 = vmatprep.subr.bf16.mxu0 0
        %6173 = vmatpush2.bf16.msra.mxu0 0
        %6174 = vmatprep.subr.bf16.mxu0 0
        %6175 = vmatpush2.bf16.msra.mxu0 0
        %6176 = vmatprep.subr.bf16.mxu0 0
        %6177 = vmatpush2.bf16.msra.mxu0 0
        %6178 = vmatprep.mubr.bf16.mxu0 0
        %6179 = vmatmul.mubr.bf16.gmra.mxu0 %v6050
        %v6180 = vpop.f32.mrf.mxu0
        %v6181 = vadd.f32 0.0, %v6180
        %v6182 = vpop.f32.mrf.mxu0
        %v6183 = vpop.f32.mrf.mxu0
        %v6184 = vadd.f32 0.0, %v6183
        %v6185 = vpop.f32.mrf.mxu0
        %6186 = vmatprep.mubr.bf16.mxu0 0
        %6187 = vmatmul.mubr.bf16.gmra.mxu0 %v6051
        %v6188 = vpop.f32.mrf.mxu0
        %v6189 = vadd.f32 0.0, %v6188
        %v6190 = vpop.f32.mrf.mxu0
        %v6191 = vpop.f32.mrf.mxu0
        %v6192 = vadd.f32 0.0, %v6191
        %v6193 = vpop.f32.mrf.mxu0
        %6194 = vmatprep.mubr.bf16.mxu0 0
        %6195 = vmatmul.mubr.bf16.gmra.mxu0 %v6052
        %v6196 = vpop.f32.mrf.mxu0
        %v6197 = vadd.f32 0.0, %v6196
        %v6198 = vpop.f32.mrf.mxu0
        %v6199 = vpop.f32.mrf.mxu0
        %v6200 = vadd.f32 0.0, %v6199
        %v6201 = vpop.f32.mrf.mxu0
        %6202 = vmatprep.mubr.bf16.mxu0 0
        %6203 = vmatmul.mubr.bf16.gmra.mxu0 %v6053
        %v6204 = vpop.f32.mrf.mxu0
        %v6205 = vadd.f32 0.0, %v6204
        %v6206 = vpop.f32.mrf.mxu0
        %v6207 = vpop.f32.mrf.mxu0
        %v6208 = vadd.f32 0.0, %v6207
        %v6209 = vpop.f32.mrf.mxu0
        %6210 = vmatprep.mubr.bf16.mxu0 0
        %6211 = vmatmul.mubr.bf16.gmra.mxu0 %v6054
        %v6212 = vpop.f32.mrf.mxu0
        %v6213 = vadd.f32 0.0, %v6212
        %v6214 = vpop.f32.mrf.mxu0
        %v6215 = vpop.f32.mrf.mxu0
        %v6216 = vadd.f32 0.0, %v6215
        %v6217 = vpop.f32.mrf.mxu0
        %6218 = vmatprep.mubr.bf16.mxu0 0
        %6219 = vmatmul.mubr.bf16.gmra.mxu0 %v6055
        %v6220 = vpop.f32.mrf.mxu0
        %v6221 = vadd.f32 0.0, %v6220
        %v6222 = vpop.f32.mrf.mxu0
        %v6223 = vpop.f32.mrf.mxu0
        %v6224 = vadd.f32 0.0, %v6223
        %v6225 = vpop.f32.mrf.mxu0
        %6226 = vmatprep.mubr.bf16.mxu0 0
        %6227 = vmatmul.mubr.bf16.gmra.mxu0 %v6056
        %v6228 = vpop.f32.mrf.mxu0
        %v6229 = vadd.f32 0.0, %v6228
        %v6230 = vpop.f32.mrf.mxu0
        %v6231 = vpop.f32.mrf.mxu0
        %v6232 = vadd.f32 0.0, %v6231
        %v6233 = vpop.f32.mrf.mxu0
        %6234 = vmatprep.mubr.bf16.mxu0 0
        %6235 = vmatmul.mubr.bf16.gmra.mxu0 %v6057
        %v6236 = vpop.f32.mrf.mxu0
        %v6237 = vadd.f32 0.0, %v6236
        %v6238 = vpop.f32.mrf.mxu0
        %v6239 = vpop.f32.mrf.mxu0
        %v6240 = vadd.f32 0.0, %v6239
        %v6241 = vpop.f32.mrf.mxu0
        %6242 = vmatprep.mubr.bf16.mxu0 0
        %6243 = vmatmul.mubr.bf16.gmra.mxu0 %v6058
        %v6244 = vpop.f32.mrf.mxu0
        %v6245 = vadd.f32 0.0, %v6244
        %v6246 = vpop.f32.mrf.mxu0
        %v6247 = vpop.f32.mrf.mxu0
        %v6248 = vadd.f32 0.0, %v6247
        %v6249 = vpop.f32.mrf.mxu0
        %6250 = vmatprep.mubr.bf16.mxu0 0
        %6251 = vmatmul.mubr.bf16.gmra.mxu0 %v6059
        %v6252 = vpop.f32.mrf.mxu0
        %v6253 = vadd.f32 0.0, %v6252
        %v6254 = vpop.f32.mrf.mxu0
        %v6255 = vpop.f32.mrf.mxu0
        %v6256 = vadd.f32 0.0, %v6255
        %v6257 = vpop.f32.mrf.mxu0
        %6258 = vmatprep.mubr.bf16.mxu0 0
        %6259 = vmatmul.mubr.bf16.gmra.mxu0 %v6060
        %v6260 = vpop.f32.mrf.mxu0
        %v6261 = vadd.f32 0.0, %v6260
        %v6262 = vpop.f32.mrf.mxu0
        %v6263 = vpop.f32.mrf.mxu0
        %v6264 = vadd.f32 0.0, %v6263
        %v6265 = vpop.f32.mrf.mxu0
        %6266 = vmatprep.mubr.bf16.mxu0 0
        %6267 = vmatmul.mubr.bf16.gmra.mxu0 %v6061
        %v6268 = vpop.f32.mrf.mxu0
        %v6269 = vadd.f32 0.0, %v6268
        %v6270 = vpop.f32.mrf.mxu0
        %v6271 = vpop.f32.mrf.mxu0
        %v6272 = vadd.f32 0.0, %v6271
        %v6273 = vpop.f32.mrf.mxu0
        %6274 = vmatprep.mubr.bf16.mxu0 0
        %6275 = vmatmul.mubr.bf16.gmra.mxu0 %v6062
        %v6276 = vpop.f32.mrf.mxu0
        %v6277 = vadd.f32 0.0, %v6276
        %v6278 = vpop.f32.mrf.mxu0
        %v6279 = vpop.f32.mrf.mxu0
        %v6280 = vadd.f32 0.0, %v6279
        %v6281 = vpop.f32.mrf.mxu0
        %6282 = vmatprep.mubr.bf16.mxu0 0
        %6283 = vmatmul.mubr.bf16.gmra.mxu0 %v6063
        %v6284 = vpop.f32.mrf.mxu0
        %v6285 = vadd.f32 0.0, %v6284
        %v6286 = vpop.f32.mrf.mxu0
        %v6287 = vpop.f32.mrf.mxu0
        %v6288 = vadd.f32 0.0, %v6287
        %v6289 = vpop.f32.mrf.mxu0
        %6290 = vmatprep.mubr.bf16.mxu0 0
        %6291 = vmatmul.mubr.bf16.gmra.mxu0 %v6064
        %v6292 = vpop.f32.mrf.mxu0
        %v6293 = vadd.f32 0.0, %v6292
        %v6294 = vpop.f32.mrf.mxu0
        %v6295 = vpop.f32.mrf.mxu0
        %v6296 = vadd.f32 0.0, %v6295
        %v6297 = vpop.f32.mrf.mxu0
        %6298 = vmatprep.mubr.bf16.mxu0 0
        %6299 = vmatmul.mubr.bf16.gmra.mxu0 %v6065
        %v6300 = vpop.f32.mrf.mxu0
        %v6301 = vadd.f32 0.0, %v6300
        %v6302 = vpop.f32.mrf.mxu0
        %v6303 = vpop.f32.mrf.mxu0
        %v6304 = vadd.f32 0.0, %v6303
        %v6305 = vpop.f32.mrf.mxu0
        %6306 = vmatprep.mubr.bf16.mxu0 0
        %6307 = vmatmul.mubr.bf16.gmra.mxu0 %v6066
        %v6308 = vpop.f32.mrf.mxu0
        %v6309 = vadd.f32 0.0, %v6308
        %v6310 = vpop.f32.mrf.mxu0
        %v6311 = vpop.f32.mrf.mxu0
        %v6312 = vadd.f32 0.0, %v6311
        %v6313 = vpop.f32.mrf.mxu0
        %6314 = vmatprep.mubr.bf16.mxu0 0
        %6315 = vmatmul.mubr.bf16.gmra.mxu0 %v6067
        %v6316 = vpop.f32.mrf.mxu0
        %v6317 = vadd.f32 0.0, %v6316
        %v6318 = vpop.f32.mrf.mxu0
        %v6319 = vpop.f32.mrf.mxu0
        %v6320 = vadd.f32 0.0, %v6319
        %v6321 = vpop.f32.mrf.mxu0
        %6322 = vmatprep.mubr.bf16.mxu0 0
        %6323 = vmatmul.mubr.bf16.gmra.mxu0 %v6068
        %v6324 = vpop.f32.mrf.mxu0
        %v6325 = vadd.f32 0.0, %v6324
        %v6326 = vpop.f32.mrf.mxu0
        %v6327 = vpop.f32.mrf.mxu0
        %v6328 = vadd.f32 0.0, %v6327
        %v6329 = vpop.f32.mrf.mxu0
        %6330 = vmatprep.mubr.bf16.mxu0 0
        %6331 = vmatmul.mubr.bf16.gmra.mxu0 %v6069
        %v6332 = vpop.f32.mrf.mxu0
        %v6333 = vadd.f32 0.0, %v6332
        %v6334 = vpop.f32.mrf.mxu0
        %v6335 = vpop.f32.mrf.mxu0
        %v6336 = vadd.f32 0.0, %v6335
        %v6337 = vpop.f32.mrf.mxu0
        %6338 = vmatprep.mubr.bf16.mxu0 0
        %6339 = vmatmul.mubr.bf16.gmra.mxu0 %v6070
        %v6340 = vpop.f32.mrf.mxu0
        %v6341 = vadd.f32 0.0, %v6340
        %v6342 = vpop.f32.mrf.mxu0
        %v6343 = vpop.f32.mrf.mxu0
        %v6344 = vadd.f32 0.0, %v6343
        %v6345 = vpop.f32.mrf.mxu0
        %6346 = vmatprep.mubr.bf16.mxu0 0
        %6347 = vmatmul.mubr.bf16.gmra.mxu0 %v6071
        %v6348 = vpop.f32.mrf.mxu0
        %v6349 = vadd.f32 0.0, %v6348
        %v6350 = vpop.f32.mrf.mxu0
        %v6351 = vpop.f32.mrf.mxu0
        %v6352 = vadd.f32 0.0, %v6351
        %v6353 = vpop.f32.mrf.mxu0
        %6354 = vmatprep.mubr.bf16.mxu0 0
        %6355 = vmatmul.mubr.bf16.gmra.mxu0 %v6072
        %v6356 = vpop.f32.mrf.mxu0
        %v6357 = vadd.f32 0.0, %v6356
        %v6358 = vpop.f32.mrf.mxu0
        %v6359 = vpop.f32.mrf.mxu0
        %v6360 = vadd.f32 0.0, %v6359
        %v6361 = vpop.f32.mrf.mxu0
        %6362 = vmatprep.mubr.bf16.mxu0 0
        %6363 = vmatmul.mubr.bf16.gmra.mxu0 %v6073
        %v6364 = vpop.f32.mrf.mxu0
        %v6365 = vadd.f32 0.0, %v6364
        %v6366 = vpop.f32.mrf.mxu0
        %v6367 = vpop.f32.mrf.mxu0
        %v6368 = vadd.f32 0.0, %v6367
        %v6369 = vpop.f32.mrf.mxu0
        %6370 = vdwg.mxu0
        %v6371 = vadd.f32 %v5840, %v6181
        %v6372 = vadd.f32 %v5841, %v6184
        %v6373 = vadd.f32 %v5842, %v6189
        %v6374 = vadd.f32 %v5843, %v6192
        %v6375 = vadd.f32 %v5844, %v6197
        %v6376 = vadd.f32 %v5845, %v6200
        %v6377 = vadd.f32 %v5846, %v6205
        %v6378 = vadd.f32 %v5847, %v6208
        %v6379 = vadd.f32 %v5848, %v6213
        %v6380 = vadd.f32 %v5849, %v6216
        %v6381 = vadd.f32 %v5850, %v6221
        %v6382 = vadd.f32 %v5851, %v6224
        %v6383 = vadd.f32 %v5852, %v6229
        %v6384 = vadd.f32 %v5853, %v6232
        %v6385 = vadd.f32 %v5854, %v6237
        %v6386 = vadd.f32 %v5855, %v6240
        %v6387 = vadd.f32 %v5856, %v6245
        %v6388 = vadd.f32 %v5857, %v6248
        %v6389 = vadd.f32 %v5858, %v6253
        %v6390 = vadd.f32 %v5859, %v6256
        %v6391 = vadd.f32 %v5860, %v6261
        %v6392 = vadd.f32 %v5861, %v6264
        %v6393 = vadd.f32 %v5862, %v6269
        %v6394 = vadd.f32 %v5863, %v6272
        %v6395 = vadd.f32 %v5864, %v6277
        %v6396 = vadd.f32 %v5865, %v6280
        %v6397 = vadd.f32 %v5866, %v6285
        %v6398 = vadd.f32 %v5867, %v6288
        %v6399 = vadd.f32 %v5868, %v6293
        %v6400 = vadd.f32 %v5869, %v6296
        %v6401 = vadd.f32 %v5870, %v6301
        %v6402 = vadd.f32 %v5871, %v6304
        %v6403 = vadd.f32 %v5872, %v6309
        %v6404 = vadd.f32 %v5873, %v6312
        %v6405 = vadd.f32 %v5874, %v6317
        %v6406 = vadd.f32 %v5875, %v6320
        %v6407 = vadd.f32 %v5876, %v6325
        %v6408 = vadd.f32 %v5877, %v6328
        %v6409 = vadd.f32 %v5878, %v6333
        %v6410 = vadd.f32 %v5879, %v6336
        %v6411 = vadd.f32 %v5880, %v6341
        %v6412 = vadd.f32 %v5881, %v6344
        %v6413 = vadd.f32 %v5882, %v6349
        %v6414 = vadd.f32 %v5883, %v6352
        %v6415 = vadd.f32 %v5884, %v6357
        %v6416 = vadd.f32 %v5885, %v6360
        %v6417 = vadd.f32 %v5886, %v6365
        %v6418 = vadd.f32 %v5887, %v6368
        %v6420 = vlaneseq
        %v6421 = vshrl.u32 %v6420, 7
        %v6422 = vsub.s32 0, %v6421
        %v6423 = vrot.slane %v343, %v6422
        %v6425 = vadd.f32 %v6371, %v6423
        %v6426 = vadd.f32 %v6372, %v6423
        %v6427 = vadd.f32 %v6373, %v6423
        %v6428 = vadd.f32 %v6374, %v6423
        %v6429 = vadd.f32 %v6375, %v6423
        %v6430 = vadd.f32 %v6376, %v6423
        %v6431 = vadd.f32 %v6377, %v6423
        %v6432 = vadd.f32 %v6378, %v6423
        %v6433 = vadd.f32 %v6379, %v6423
        %v6434 = vadd.f32 %v6380, %v6423
        %v6435 = vadd.f32 %v6381, %v6423
        %v6436 = vadd.f32 %v6382, %v6423
        %v6437 = vadd.f32 %v6383, %v6423
        %v6438 = vadd.f32 %v6384, %v6423
        %v6439 = vadd.f32 %v6385, %v6423
        %v6440 = vadd.f32 %v6386, %v6423
        %v6441 = vadd.f32 %v6387, %v6423
        %v6442 = vadd.f32 %v6388, %v6423
        %v6443 = vadd.f32 %v6389, %v6423
        %v6444 = vadd.f32 %v6390, %v6423
        %v6445 = vadd.f32 %v6391, %v6423
        %v6446 = vadd.f32 %v6392, %v6423
        %v6447 = vadd.f32 %v6393, %v6423
        %v6448 = vadd.f32 %v6394, %v6423
        %v6449 = vadd.f32 %v6395, %v6423
        %v6450 = vadd.f32 %v6396, %v6423
        %v6451 = vadd.f32 %v6397, %v6423
        %v6452 = vadd.f32 %v6398, %v6423
        %v6453 = vadd.f32 %v6399, %v6423
        %v6454 = vadd.f32 %v6400, %v6423
        %v6455 = vadd.f32 %v6401, %v6423
        %v6456 = vadd.f32 %v6402, %v6423
        %v6457 = vadd.f32 %v6403, %v6423
        %v6458 = vadd.f32 %v6404, %v6423
        %v6459 = vadd.f32 %v6405, %v6423
        %v6460 = vadd.f32 %v6406, %v6423
        %v6461 = vadd.f32 %v6407, %v6423
        %v6462 = vadd.f32 %v6408, %v6423
        %v6463 = vadd.f32 %v6409, %v6423
        %v6464 = vadd.f32 %v6410, %v6423
        %v6465 = vadd.f32 %v6411, %v6423
        %v6466 = vadd.f32 %v6412, %v6423
        %v6467 = vadd.f32 %v6413, %v6423
        %v6468 = vadd.f32 %v6414, %v6423
        %v6469 = vadd.f32 %v6415, %v6423
        %v6470 = vadd.f32 %v6416, %v6423
        %v6471 = vadd.f32 %v6417, %v6423
        %v6472 = vadd.f32 %v6418, %v6423
        %v6473 = vmax.f32 %v6425, 0.0
        %v6474 = vmax.f32 %v6426, 0.0
        %v6475 = vmax.f32 %v6427, 0.0
        %v6476 = vmax.f32 %v6428, 0.0
        %v6477 = vmax.f32 %v6429, 0.0
        %v6478 = vmax.f32 %v6430, 0.0
        %v6479 = vmax.f32 %v6431, 0.0
        %v6480 = vmax.f32 %v6432, 0.0
        %v6481 = vmax.f32 %v6433, 0.0
        %v6482 = vmax.f32 %v6434, 0.0
        %v6483 = vmax.f32 %v6435, 0.0
        %v6484 = vmax.f32 %v6436, 0.0
        %v6485 = vmax.f32 %v6437, 0.0
        %v6486 = vmax.f32 %v6438, 0.0
        %v6487 = vmax.f32 %v6439, 0.0
        %v6488 = vmax.f32 %v6440, 0.0
        %v6489 = vmax.f32 %v6441, 0.0
        %v6490 = vmax.f32 %v6442, 0.0
        %v6491 = vmax.f32 %v6443, 0.0
        %v6492 = vmax.f32 %v6444, 0.0
        %v6493 = vmax.f32 %v6445, 0.0
        %v6494 = vmax.f32 %v6446, 0.0
        %v6495 = vmax.f32 %v6447, 0.0
        %v6496 = vmax.f32 %v6448, 0.0
        %v6497 = vmax.f32 %v6449, 0.0
        %v6498 = vmax.f32 %v6450, 0.0
        %v6499 = vmax.f32 %v6451, 0.0
        %v6500 = vmax.f32 %v6452, 0.0
        %v6501 = vmax.f32 %v6453, 0.0
        %v6502 = vmax.f32 %v6454, 0.0
        %v6503 = vmax.f32 %v6455, 0.0
        %v6504 = vmax.f32 %v6456, 0.0
        %v6505 = vmax.f32 %v6457, 0.0
        %v6506 = vmax.f32 %v6458, 0.0
        %v6507 = vmax.f32 %v6459, 0.0
        %v6508 = vmax.f32 %v6460, 0.0
        %v6509 = vmax.f32 %v6461, 0.0
        %v6510 = vmax.f32 %v6462, 0.0
        %v6511 = vmax.f32 %v6463, 0.0
        %v6512 = vmax.f32 %v6464, 0.0
        %v6513 = vmax.f32 %v6465, 0.0
        %v6514 = vmax.f32 %v6466, 0.0
        %v6515 = vmax.f32 %v6467, 0.0
        %v6516 = vmax.f32 %v6468, 0.0
        %v6517 = vmax.f32 %v6469, 0.0
        %v6518 = vmax.f32 %v6470, 0.0
        %v6519 = vmax.f32 %v6471, 0.0
        %v6520 = vmax.f32 %v6472, 0.0
        %v6521 = vpack.c.bf16 %v6474, %v6473
        %v6522 = vpack.c.bf16 %v6476, %v6475
        %v6523 = vpack.c.bf16 %v6478, %v6477
        %v6524 = vpack.c.bf16 %v6480, %v6479
        %v6525 = vpack.c.bf16 %v6482, %v6481
        %v6526 = vpack.c.bf16 %v6484, %v6483
        %v6527 = vpack.c.bf16 %v6486, %v6485
        %v6528 = vpack.c.bf16 %v6488, %v6487
        %v6529 = vpack.c.bf16 %v6490, %v6489
        %v6530 = vpack.c.bf16 %v6492, %v6491
        %v6531 = vpack.c.bf16 %v6494, %v6493
        %v6532 = vpack.c.bf16 %v6496, %v6495
        %v6533 = vpack.c.bf16 %v6498, %v6497
        %v6534 = vpack.c.bf16 %v6500, %v6499
        %v6535 = vpack.c.bf16 %v6502, %v6501
        %v6536 = vpack.c.bf16 %v6504, %v6503
        %v6537 = vpack.c.bf16 %v6506, %v6505
        %v6538 = vpack.c.bf16 %v6508, %v6507
        %v6539 = vpack.c.bf16 %v6510, %v6509
        %v6540 = vpack.c.bf16 %v6512, %v6511
        %v6541 = vpack.c.bf16 %v6514, %v6513
        %v6542 = vpack.c.bf16 %v6516, %v6515
        %v6543 = vpack.c.bf16 %v6518, %v6517
        %v6544 = vpack.c.bf16 %v6520, %v6519
        %v6545 = vld [vmem:[#allocation11] sm:$0xf]
        %v6546 = vld [vmem:[#allocation11 + $0x4] sm:$0xf]
        %v6547 = vld [vmem:[#allocation11 + $0x8] sm:$0xf]
        %v6548 = vld [vmem:[#allocation11 + $0xc] sm:$0xf]
        %v6549 = vld [vmem:[#allocation11 + $0x10] sm:$0xf]
        %v6550 = vld [vmem:[#allocation11 + $0x14] sm:$0xf]
        %v6551 = vld [vmem:[#allocation11 + $0x18] sm:$0xf]
        %v6552 = vld [vmem:[#allocation11 + $0x1c] sm:$0xf]
        %v6553 = vld [vmem:[#allocation11 + $0x20] sm:$0xf]
        %v6554 = vld [vmem:[#allocation11 + $0x24] sm:$0xf]
        %v6555 = vld [vmem:[#allocation11 + $0x28] sm:$0xf]
        %v6556 = vld [vmem:[#allocation11 + $0x2c] sm:$0xf]
        %v6557 = vld [vmem:[#allocation11 + $0x30] sm:$0xf]
        %v6558 = vld [vmem:[#allocation11 + $0x34] sm:$0xf]
        %v6559 = vld [vmem:[#allocation11 + $0x38] sm:$0xf]
        %v6560 = vld [vmem:[#allocation11 + $0x3c] sm:$0xf]
        %v6562 = vlaneseq
        %v6563 = vshrl.u32 %v6562, 7
        %v6564 = vsub.s32 0, %v6563
        %v6565 = vrot.slane %v344, %v6564
        %v6583 = vunpack.c.l.b16 %v6545
        %v6584 = vunpack.c.l.b16 %v6546
        %v6585 = vunpack.c.l.b16 %v6547
        %v6586 = vunpack.c.l.b16 %v6548
        %v6587 = vunpack.c.l.b16 %v6549
        %v6588 = vunpack.c.l.b16 %v6550
        %v6589 = vunpack.c.l.b16 %v6551
        %v6590 = vunpack.c.l.b16 %v6552
        %v6591 = vunpack.c.l.b16 %v6553
        %v6592 = vunpack.c.l.b16 %v6554
        %v6593 = vunpack.c.l.b16 %v6555
        %v6594 = vunpack.c.l.b16 %v6556
        %v6595 = vunpack.c.l.b16 %v6557
        %v6596 = vunpack.c.l.b16 %v6558
        %v6597 = vunpack.c.l.b16 %v6559
        %v6598 = vunpack.c.l.b16 %v6560
        %v6599 = vpack.c.b16 %v6584, %v6583
        %v6600 = vpack.c.b16 %v6586, %v6585
        %v6601 = vpack.c.b16 %v6588, %v6587
        %v6602 = vpack.c.b16 %v6590, %v6589
        %v6603 = vpack.c.b16 %v6592, %v6591
        %v6604 = vpack.c.b16 %v6594, %v6593
        %v6605 = vpack.c.b16 %v6596, %v6595
        %v6606 = vpack.c.b16 %v6598, %v6597
        %6615 = vmatprep.subr.bf16.mxu0 0
        %6616 = vmatpush1.bf16.msra.mxu0 %v6606
        %6617 = vmatprep.subr.bf16.mxu0 0
        %6618 = vmatpush1.bf16.msra.mxu0 %v6605
        %6619 = vmatprep.subr.bf16.mxu0 0
        %6620 = vmatpush1.bf16.msra.mxu0 %v6604
        %6621 = vmatprep.subr.bf16.mxu0 0
        %6622 = vmatpush1.bf16.msra.mxu0 %v6603
        %6623 = vmatprep.subr.bf16.mxu0 0
        %6624 = vmatpush1.bf16.msra.mxu0 %v6602
        %6625 = vmatprep.subr.bf16.mxu0 0
        %6626 = vmatpush1.bf16.msra.mxu0 %v6601
        %6627 = vmatprep.subr.bf16.mxu0 0
        %6628 = vmatpush1.bf16.msra.mxu0 %v6600
        %6629 = vmatprep.subr.bf16.mxu0 0
        %6630 = vmatpush1.bf16.msra.mxu0 %v6599
        %6631 = vmatprep.subr.bf16.mxu0 0
        %6632 = vmatpush2.bf16.msra.mxu0 0
        %6633 = vmatprep.subr.bf16.mxu0 0
        %6634 = vmatpush2.bf16.msra.mxu0 0
        %6635 = vmatprep.subr.bf16.mxu0 0
        %6636 = vmatpush2.bf16.msra.mxu0 0
        %6637 = vmatprep.subr.bf16.mxu0 0
        %6638 = vmatpush2.bf16.msra.mxu0 0
        %6639 = vmatprep.subr.bf16.mxu0 0
        %6640 = vmatpush2.bf16.msra.mxu0 0
        %6641 = vmatprep.subr.bf16.mxu0 0
        %6642 = vmatpush2.bf16.msra.mxu0 0
        %6643 = vmatprep.subr.bf16.mxu0 0
        %6644 = vmatpush2.bf16.msra.mxu0 0
        %6645 = vmatprep.subr.bf16.mxu0 0
        %6646 = vmatpush2.bf16.msra.mxu0 0
        %6647 = vmatprep.mubr.bf16.mxu0 0
        %6648 = vmatmul.mubr.bf16.gmra.mxu0 %v6521
        %v6649 = vpop.f32.mrf.mxu0
        %v6650 = vadd.f32 %v6565, %v6649
        %v6651 = vpop.f32.mrf.mxu0
        %v6652 = vpop.f32.mrf.mxu0
        %v6653 = vadd.f32 %v6565, %v6652
        %v6654 = vpop.f32.mrf.mxu0
        %6655 = vmatprep.mubr.bf16.mxu0 0
        %6656 = vmatmul.mubr.bf16.gmra.mxu0 %v6522
        %v6657 = vpop.f32.mrf.mxu0
        %v6658 = vpop.f32.mrf.mxu0
        %v6659 = vpop.f32.mrf.mxu0
        %v6660 = vadd.f32 %v6565, %v6659
        %v6661 = vpop.f32.mrf.mxu0
        %6662 = vmatprep.mubr.bf16.mxu0 0
        %6663 = vmatmul.mubr.bf16.gmra.mxu0 %v6523
        %v6664 = vpop.f32.mrf.mxu0
        %v6665 = vadd.f32 %v6565, %v6664
        %v6666 = vpop.f32.mrf.mxu0
        %v6667 = vpop.f32.mrf.mxu0
        %v6668 = vpop.f32.mrf.mxu0
        %6669 = vmatprep.mubr.bf16.mxu0 0
        %6670 = vmatmul.mubr.bf16.gmra.mxu0 %v6524
        %v6671 = vpop.f32.mrf.mxu0
        %v6672 = vadd.f32 %v6565, %v6671
        %v6673 = vpop.f32.mrf.mxu0
        %v6674 = vpop.f32.mrf.mxu0
        %v6675 = vadd.f32 %v6565, %v6674
        %v6676 = vpop.f32.mrf.mxu0
        %6677 = vmatprep.mubr.bf16.mxu0 0
        %6678 = vmatmul.mubr.bf16.gmra.mxu0 %v6525
        %v6679 = vpop.f32.mrf.mxu0
        %v6680 = vpop.f32.mrf.mxu0
        %v6681 = vpop.f32.mrf.mxu0
        %v6682 = vadd.f32 %v6565, %v6681
        %v6683 = vpop.f32.mrf.mxu0
        %6684 = vmatprep.mubr.bf16.mxu0 0
        %6685 = vmatmul.mubr.bf16.gmra.mxu0 %v6526
        %v6686 = vpop.f32.mrf.mxu0
        %v6687 = vadd.f32 %v6565, %v6686
        %v6688 = vpop.f32.mrf.mxu0
        %v6689 = vpop.f32.mrf.mxu0
        %v6690 = vpop.f32.mrf.mxu0
        %6691 = vmatprep.mubr.bf16.mxu0 0
        %6692 = vmatmul.mubr.bf16.gmra.mxu0 %v6527
        %v6693 = vpop.f32.mrf.mxu0
        %v6694 = vadd.f32 %v6565, %v6693
        %v6695 = vpop.f32.mrf.mxu0
        %v6696 = vpop.f32.mrf.mxu0
        %v6697 = vadd.f32 %v6565, %v6696
        %v6698 = vpop.f32.mrf.mxu0
        %6699 = vmatprep.mubr.bf16.mxu0 0
        %6700 = vmatmul.mubr.bf16.gmra.mxu0 %v6528
        %v6701 = vpop.f32.mrf.mxu0
        %v6702 = vpop.f32.mrf.mxu0
        %v6703 = vpop.f32.mrf.mxu0
        %v6704 = vadd.f32 %v6565, %v6703
        %v6705 = vpop.f32.mrf.mxu0
        %6706 = vmatprep.mubr.bf16.mxu0 0
        %6707 = vmatmul.mubr.bf16.gmra.mxu0 %v6529
        %v6708 = vpop.f32.mrf.mxu0
        %v6709 = vadd.f32 %v6565, %v6708
        %v6710 = vpop.f32.mrf.mxu0
        %v6711 = vpop.f32.mrf.mxu0
        %v6712 = vpop.f32.mrf.mxu0
        %6713 = vmatprep.mubr.bf16.mxu0 0
        %6714 = vmatmul.mubr.bf16.gmra.mxu0 %v6530
        %v6715 = vpop.f32.mrf.mxu0
        %v6716 = vadd.f32 %v6565, %v6715
        %v6717 = vpop.f32.mrf.mxu0
        %v6718 = vpop.f32.mrf.mxu0
        %v6719 = vadd.f32 %v6565, %v6718
        %v6720 = vpop.f32.mrf.mxu0
        %6721 = vmatprep.mubr.bf16.mxu0 0
        %6722 = vmatmul.mubr.bf16.gmra.mxu0 %v6531
        %v6723 = vpop.f32.mrf.mxu0
        %v6724 = vpop.f32.mrf.mxu0
        %v6725 = vpop.f32.mrf.mxu0
        %v6726 = vadd.f32 %v6565, %v6725
        %v6727 = vpop.f32.mrf.mxu0
        %6728 = vmatprep.mubr.bf16.mxu0 0
        %6729 = vmatmul.mubr.bf16.gmra.mxu0 %v6532
        %v6730 = vpop.f32.mrf.mxu0
        %v6731 = vadd.f32 %v6565, %v6730
        %v6732 = vpop.f32.mrf.mxu0
        %v6733 = vpop.f32.mrf.mxu0
        %v6734 = vpop.f32.mrf.mxu0
        %6735 = vmatprep.mubr.bf16.mxu0 0
        %6736 = vmatmul.mubr.bf16.gmra.mxu0 %v6533
        %v6737 = vpop.f32.mrf.mxu0
        %v6738 = vadd.f32 %v6565, %v6737
        %v6739 = vpop.f32.mrf.mxu0
        %v6740 = vpop.f32.mrf.mxu0
        %v6741 = vadd.f32 %v6565, %v6740
        %v6742 = vpop.f32.mrf.mxu0
        %6743 = vmatprep.mubr.bf16.mxu0 0
        %6744 = vmatmul.mubr.bf16.gmra.mxu0 %v6534
        %v6745 = vpop.f32.mrf.mxu0
        %v6746 = vpop.f32.mrf.mxu0
        %v6747 = vpop.f32.mrf.mxu0
        %v6748 = vadd.f32 %v6565, %v6747
        %v6749 = vpop.f32.mrf.mxu0
        %6750 = vmatprep.mubr.bf16.mxu0 0
        %6751 = vmatmul.mubr.bf16.gmra.mxu0 %v6535
        %v6752 = vpop.f32.mrf.mxu0
        %v6753 = vadd.f32 %v6565, %v6752
        %v6754 = vpop.f32.mrf.mxu0
        %v6755 = vpop.f32.mrf.mxu0
        %v6756 = vpop.f32.mrf.mxu0
        %6757 = vmatprep.mubr.bf16.mxu0 0
        %6758 = vmatmul.mubr.bf16.gmra.mxu0 %v6536
        %v6759 = vpop.f32.mrf.mxu0
        %v6760 = vadd.f32 %v6565, %v6759
        %v6761 = vpop.f32.mrf.mxu0
        %v6762 = vpop.f32.mrf.mxu0
        %v6763 = vadd.f32 %v6565, %v6762
        %v6764 = vpop.f32.mrf.mxu0
        %6765 = vmatprep.mubr.bf16.mxu0 0
        %6766 = vmatmul.mubr.bf16.gmra.mxu0 %v6537
        %v6767 = vpop.f32.mrf.mxu0
        %v6768 = vpop.f32.mrf.mxu0
        %v6769 = vpop.f32.mrf.mxu0
        %v6770 = vadd.f32 %v6565, %v6769
        %v6771 = vpop.f32.mrf.mxu0
        %6772 = vmatprep.mubr.bf16.mxu0 0
        %6773 = vmatmul.mubr.bf16.gmra.mxu0 %v6538
        %v6774 = vpop.f32.mrf.mxu0
        %v6775 = vadd.f32 %v6565, %v6774
        %v6776 = vpop.f32.mrf.mxu0
        %v6777 = vpop.f32.mrf.mxu0
        %v6778 = vpop.f32.mrf.mxu0
        %6779 = vmatprep.mubr.bf16.mxu0 0
        %6780 = vmatmul.mubr.bf16.gmra.mxu0 %v6539
        %v6781 = vpop.f32.mrf.mxu0
        %v6782 = vadd.f32 %v6565, %v6781
        %v6783 = vpop.f32.mrf.mxu0
        %v6784 = vpop.f32.mrf.mxu0
        %v6785 = vadd.f32 %v6565, %v6784
        %v6786 = vpop.f32.mrf.mxu0
        %6787 = vmatprep.mubr.bf16.mxu0 0
        %6788 = vmatmul.mubr.bf16.gmra.mxu0 %v6540
        %v6789 = vpop.f32.mrf.mxu0
        %v6790 = vpop.f32.mrf.mxu0
        %v6791 = vpop.f32.mrf.mxu0
        %v6792 = vadd.f32 %v6565, %v6791
        %v6793 = vpop.f32.mrf.mxu0
        %6794 = vmatprep.mubr.bf16.mxu0 0
        %6795 = vmatmul.mubr.bf16.gmra.mxu0 %v6541
        %v6796 = vpop.f32.mrf.mxu0
        %v6797 = vadd.f32 %v6565, %v6796
        %v6798 = vpop.f32.mrf.mxu0
        %v6799 = vpop.f32.mrf.mxu0
        %v6800 = vpop.f32.mrf.mxu0
        %6801 = vmatprep.mubr.bf16.mxu0 0
        %6802 = vmatmul.mubr.bf16.gmra.mxu0 %v6542
        %v6803 = vpop.f32.mrf.mxu0
        %v6804 = vadd.f32 %v6565, %v6803
        %v6805 = vpop.f32.mrf.mxu0
        %v6806 = vpop.f32.mrf.mxu0
        %v6807 = vadd.f32 %v6565, %v6806
        %v6808 = vpop.f32.mrf.mxu0
        %6809 = vmatprep.mubr.bf16.mxu0 0
        %6810 = vmatmul.mubr.bf16.gmra.mxu0 %v6543
        %v6811 = vpop.f32.mrf.mxu0
        %v6812 = vpop.f32.mrf.mxu0
        %v6813 = vpop.f32.mrf.mxu0
        %v6814 = vadd.f32 %v6565, %v6813
        %v6815 = vpop.f32.mrf.mxu0
        %6816 = vmatprep.mubr.bf16.mxu0 0
        %6817 = vmatmul.mubr.bf16.gmra.mxu0 %v6544
        %v6818 = vpop.f32.mrf.mxu0
        %v6819 = vadd.f32 %v6565, %v6818
        %v6820 = vpop.f32.mrf.mxu0
        %v6821 = vpop.f32.mrf.mxu0
        %v6822 = vpop.f32.mrf.mxu0
        %6823 = vdwg.mxu0
        %v6824 = vld [vmem:[%s298] sm:$0xf]
        %v6825 = vld [vmem:[%s298 + $0x4] sm:$0xf]
        %v6826 = vld [vmem:[%s298 + $0xc] sm:$0xf]
        %v6827 = vld [vmem:[%s298 + $0x10] sm:$0xf]
        %v6828 = vld [vmem:[%s298 + $0x18] sm:$0xf]
        %v6829 = vld [vmem:[%s298 + $0x1c] sm:$0xf]
        %v6830 = vld [vmem:[%s298 + $0x24] sm:$0xf]
        %v6831 = vld [vmem:[%s298 + $0x28] sm:$0xf]
        %v6832 = vld [vmem:[%s298 + $0x30] sm:$0xf]
        %v6833 = vld [vmem:[%s298 + $0x34] sm:$0xf]
        %v6834 = vld [vmem:[%s298 + $0x3c] sm:$0xf]
        %v6835 = vld [vmem:[%s298 + $0x40] sm:$0xf]
        %v6836 = vld [vmem:[%s298 + $0x48] sm:$0xf]
        %v6837 = vld [vmem:[%s298 + $0x4c] sm:$0xf]
        %v6838 = vld [vmem:[%s298 + $0x54] sm:$0xf]
        %v6839 = vld [vmem:[%s298 + $0x58] sm:$0xf]
        %v6840 = vld [vmem:[%s298 + $0x60] sm:$0xf]
        %v6841 = vld [vmem:[%s298 + $0x64] sm:$0xf]
        %v6842 = vld [vmem:[%s298 + $0x6c] sm:$0xf]
        %v6843 = vld [vmem:[%s298 + $0x70] sm:$0xf]
        %v6844 = vld [vmem:[%s298 + $0x78] sm:$0xf]
        %v6845 = vld [vmem:[%s298 + $0x7c] sm:$0xf]
        %v6846 = vld [vmem:[%s298 + $0x84] sm:$0xf]
        %v6847 = vld [vmem:[%s298 + $0x88] sm:$0xf]
        %v6848 = vld [vmem:[%s298 + $0x90] sm:$0xf]
        %v6849 = vld [vmem:[%s298 + $0x94] sm:$0xf]
        %v6850 = vld [vmem:[%s298 + $0x9c] sm:$0xf]
        %v6851 = vld [vmem:[%s298 + $0xa0] sm:$0xf]
        %v6852 = vld [vmem:[%s298 + $0xa8] sm:$0xf]
        %v6853 = vld [vmem:[%s298 + $0xac] sm:$0xf]
        %v6854 = vld [vmem:[%s298 + $0xb4] sm:$0xf]
        %v6855 = vld [vmem:[%s298 + $0xb8] sm:$0xf]
        %v6856 = vunpack.c.l.bf16 %v6824
        %v6857 = vunpack.c.l.bf16 %v6825
        %v6858 = vunpack.c.l.bf16 %v6826
        %v6859 = vunpack.c.l.bf16 %v6827
        %v6860 = vunpack.c.l.bf16 %v6828
        %v6861 = vunpack.c.l.bf16 %v6829
        %v6862 = vunpack.c.l.bf16 %v6830
        %v6863 = vunpack.c.l.bf16 %v6831
        %v6864 = vunpack.c.l.bf16 %v6832
        %v6865 = vunpack.c.l.bf16 %v6833
        %v6866 = vunpack.c.l.bf16 %v6834
        %v6867 = vunpack.c.l.bf16 %v6835
        %v6868 = vunpack.c.l.bf16 %v6836
        %v6869 = vunpack.c.l.bf16 %v6837
        %v6870 = vunpack.c.l.bf16 %v6838
        %v6871 = vunpack.c.l.bf16 %v6839
        %v6872 = vunpack.c.l.bf16 %v6840
        %v6873 = vunpack.c.l.bf16 %v6841
        %v6874 = vunpack.c.l.bf16 %v6842
        %v6875 = vunpack.c.l.bf16 %v6843
        %v6876 = vunpack.c.l.bf16 %v6844
        %v6877 = vunpack.c.l.bf16 %v6845
        %v6878 = vunpack.c.l.bf16 %v6846
        %v6879 = vunpack.c.l.bf16 %v6847
        %v6880 = vunpack.c.l.bf16 %v6848
        %v6881 = vunpack.c.l.bf16 %v6849
        %v6882 = vunpack.c.l.bf16 %v6850
        %v6883 = vunpack.c.l.bf16 %v6851
        %v6884 = vunpack.c.l.bf16 %v6852
        %v6885 = vunpack.c.l.bf16 %v6853
        %v6886 = vunpack.c.l.bf16 %v6854
        %v6887 = vunpack.c.l.bf16 %v6855
        %v6888 = vadd.f32 %v6650, %v6856
        %v6889 = vadd.f32 %v6653, %v6857
        %v6890 = vadd.f32 %v6660, %v6858
        %v6891 = vadd.f32 %v6665, %v6859
        %v6892 = vadd.f32 %v6672, %v6860
        %v6893 = vadd.f32 %v6675, %v6861
        %v6894 = vadd.f32 %v6682, %v6862
        %v6895 = vadd.f32 %v6687, %v6863
        %v6896 = vadd.f32 %v6694, %v6864
        %v6897 = vadd.f32 %v6697, %v6865
        %v6898 = vadd.f32 %v6704, %v6866
        %v6899 = vadd.f32 %v6709, %v6867
        %v6900 = vadd.f32 %v6716, %v6868
        %v6901 = vadd.f32 %v6719, %v6869
        %v6902 = vadd.f32 %v6726, %v6870
        %v6903 = vadd.f32 %v6731, %v6871
        %v6904 = vadd.f32 %v6738, %v6872
        %v6905 = vadd.f32 %v6741, %v6873
        %v6906 = vadd.f32 %v6748, %v6874
        %v6907 = vadd.f32 %v6753, %v6875
        %v6908 = vadd.f32 %v6760, %v6876
        %v6909 = vadd.f32 %v6763, %v6877
        %v6910 = vadd.f32 %v6770, %v6878
        %v6911 = vadd.f32 %v6775, %v6879
        %v6912 = vadd.f32 %v6782, %v6880
        %v6913 = vadd.f32 %v6785, %v6881
        %v6914 = vadd.f32 %v6792, %v6882
        %v6915 = vadd.f32 %v6797, %v6883
        %v6916 = vadd.f32 %v6804, %v6884
        %v6917 = vadd.f32 %v6807, %v6885
        %v6918 = vadd.f32 %v6814, %v6886
        %v6919 = vadd.f32 %v6819, %v6887
        %v6920 = vmax.f32 %v6888, 0.0
        %v6921 = vmax.f32 %v6889, 0.0
        %v6922 = vmax.f32 %v6890, 0.0
        %v6923 = vmax.f32 %v6891, 0.0
        %v6924 = vmax.f32 %v6892, 0.0
        %v6925 = vmax.f32 %v6893, 0.0
        %v6926 = vmax.f32 %v6894, 0.0
        %v6927 = vmax.f32 %v6895, 0.0
        %v6928 = vmax.f32 %v6896, 0.0
        %v6929 = vmax.f32 %v6897, 0.0
        %v6930 = vmax.f32 %v6898, 0.0
        %v6931 = vmax.f32 %v6899, 0.0
        %v6932 = vmax.f32 %v6900, 0.0
        %v6933 = vmax.f32 %v6901, 0.0
        %v6934 = vmax.f32 %v6902, 0.0
        %v6935 = vmax.f32 %v6903, 0.0
        %v6936 = vmax.f32 %v6904, 0.0
        %v6937 = vmax.f32 %v6905, 0.0
        %v6938 = vmax.f32 %v6906, 0.0
        %v6939 = vmax.f32 %v6907, 0.0
        %v6940 = vmax.f32 %v6908, 0.0
        %v6941 = vmax.f32 %v6909, 0.0
        %v6942 = vmax.f32 %v6910, 0.0
        %v6943 = vmax.f32 %v6911, 0.0
        %v6944 = vmax.f32 %v6912, 0.0
        %v6945 = vmax.f32 %v6913, 0.0
        %v6946 = vmax.f32 %v6914, 0.0
        %v6947 = vmax.f32 %v6915, 0.0
        %v6948 = vmax.f32 %v6916, 0.0
        %v6949 = vmax.f32 %v6917, 0.0
        %v6950 = vmax.f32 %v6918, 0.0
        %v6951 = vmax.f32 %v6919, 0.0
        %6952 = vst [vmem:[%s340] sm:$0xff] %v6920
        %6953 = vst [vmem:[%s340 + $0x8] sm:$0xff] %v6921
        %6954 = vst [vmem:[%s340 + $0x10] sm:$0xff] %v6922
        %6955 = vst [vmem:[%s340 + $0x18] sm:$0xff] %v6923
        %6956 = vst [vmem:[%s340 + $0x20] sm:$0xff] %v6924
        %6957 = vst [vmem:[%s340 + $0x28] sm:$0xff] %v6925
        %6958 = vst [vmem:[%s340 + $0x30] sm:$0xff] %v6926
        %6959 = vst [vmem:[%s340 + $0x38] sm:$0xff] %v6927
        %6960 = vst [vmem:[%s340 + $0x40] sm:$0xff] %v6928
        %6961 = vst [vmem:[%s340 + $0x48] sm:$0xff] %v6929
        %6962 = vst [vmem:[%s340 + $0x50] sm:$0xff] %v6930
        %6963 = vst [vmem:[%s340 + $0x58] sm:$0xff] %v6931
        %6964 = vst [vmem:[%s340 + $0x60] sm:$0xff] %v6932
        %6965 = vst [vmem:[%s340 + $0x68] sm:$0xff] %v6933
        %6966 = vst [vmem:[%s340 + $0x70] sm:$0xff] %v6934
        %6967 = vst [vmem:[%s340 + $0x78] sm:$0xff] %v6935
        %6968 = vst [vmem:[%s340 + $0x80] sm:$0xff] %v6936
        %6969 = vst [vmem:[%s340 + $0x88] sm:$0xff] %v6937
        %6970 = vst [vmem:[%s340 + $0x90] sm:$0xff] %v6938
        %6971 = vst [vmem:[%s340 + $0x98] sm:$0xff] %v6939
        %6972 = vst [vmem:[%s340 + $0xa0] sm:$0xff] %v6940
        %6973 = vst [vmem:[%s340 + $0xa8] sm:$0xff] %v6941
        %6974 = vst [vmem:[%s340 + $0xb0] sm:$0xff] %v6942
        %6975 = vst [vmem:[%s340 + $0xb8] sm:$0xff] %v6943
        %6976 = vst [vmem:[%s340 + $0xc0] sm:$0xff] %v6944
        %6977 = vst [vmem:[%s340 + $0xc8] sm:$0xff] %v6945
        %6978 = vst [vmem:[%s340 + $0xd0] sm:$0xff] %v6946
        %6979 = vst [vmem:[%s340 + $0xd8] sm:$0xff] %v6947
        %6980 = vst [vmem:[%s340 + $0xe0] sm:$0xff] %v6948
        %6981 = vst [vmem:[%s340 + $0xe8] sm:$0xff] %v6949
        %6982 = vst [vmem:[%s340 + $0xf0] sm:$0xff] %v6950
        %6983 = vst [vmem:[%s340 + $0xf8] sm:$0xff] %v6951
        %s6984 = sand.u32 %s186, 1
        %s6985 = scalar_lea.sflag [#allocation7], %s6984
        %s6986 = sand.u32 %s186, 1
        %s6987 = smul.addr %s6986, 256
        %s6988 = scalar_lea.vmem [#allocation13], %s6987
        // Predicated region
        $region65: #{tpu_custom_call.1} parent=47 // pred_check
          %p6989 = pneg %p196
        $region66: #{tpu_custom_call.1} parent=47 // pred_check_branch
          %6991 = sbr.rel (%p6989) target = $region68
        $region67: #{tpu_custom_call.1} parent=47 // pred_region
          %s6993 = ssub.s32 4096, 4096
          %6994 = vsyncadd %s6985, %s6993
          %s6995 = smul.addr %s26, 32
          %s6996 = smul.addr %s6995, 128
          %s6997 = scalar_lea.hbm %s7, %s6996
          %s6998 = sshll.u32 %s6988, 4
          %s6999 = int_to_ptr.vmem [resolvable:$true] %s6998
          %7004 = dma.vmem_to_hbm [thread:$0]  %s6999, 4096, %s6997, %s6985, 128, 128, 8
        $region68: #{tpu_custom_call.1} parent=47 // pred_fallthru
          _
      $region48: #{tpu_custom_call.1} parent=5 // pred_fallthru
        _
      %p7005 = scmp.le.s32.totalorder 2, %s21
      // Predicated region
      $region69: #{tpu_custom_call.1} parent=5 // pred_check
        %p7006 = pneg %p7005
      $region70: #{tpu_custom_call.1} parent=5 // pred_check_branch
        %7008 = sbr.rel (%p7006) target = $region72
      $region71: #{tpu_custom_call.1} parent=5 // pred_region
        %s7009 = ssub.s32 %s21, 2
        // Predicated region
        $region73: #{tpu_custom_call.1} parent=71 // pred_check
          %p7010 = pneg %p202
        $region74: #{tpu_custom_call.1} parent=71 // pred_check_branch
          %7012 = sbr.rel (%p7010) target = $region76
        $region75: #{tpu_custom_call.1} parent=71 // pred_region
          %s7013 = sand.u32 %s187, 1
          %s7014 = scalar_lea.sflag [#allocation7], %s7013
          %s7015 = sand.u32 %s187, 1
          %s7016 = smul.addr %s7015, 256
          %s7017 = scalar_lea.vmem [#allocation13], %s7016
          %7018 = dma.done %s7014, 4096
        $region76: #{tpu_custom_call.1} parent=71 // pred_fallthru
          _
      $region72: #{tpu_custom_call.1} parent=5 // pred_fallthru
        _
    $region6: #{tpu_custom_call.1} parent=1 // loop_footer
      %s25 = sadd.s32 1, %s21
    $region7: #{tpu_custom_call.1} parent=1 // loop_footer_branch
      %20 = sbr.rel target = $region3
    $region8: #{tpu_custom_call.1} parent=1 // loop_exit
      _
    %7019 = vsyncpa [#allocation6], 1
    %s7020 = scalar_lea.sflag [#allocation6], 1
    %7021 = vsyncpa %s7020, 1
    %7022 = vsyncpa [#allocation9], 1
    %7023 = vsyncpa [#allocation12], 1
    %7024 = vsyncpa [#allocation7], 1
    %s7025 = scalar_lea.sflag [#allocation7], 1
    %7026 = vsyncpa %s7025, 1

</llo_original>
